<compile_context>
chip_gen: v7x
topology: tpu7x:2x2x1
jax: 0.10.0
libtpu: 0.0.40
codegen_flags: <defaults>
</compile_context>

<pallas_src>
import jax
import jax.numpy as jnp
from jax import lax
from jax.experimental import pallas as pl
from jax.experimental.pallas import tpu as pltpu  # noqa: F401  (imported per template)

# ----------------------------- config (small synthetic shapes) ---------------
BATCH = 2
CIN = 4
H = W = 16
FEATURE_DIM = 32          # CONFIG['FEATURE_DIM'] stand-in (encoder output dim)
HIDDEN_DIM = 64           # ProjectionHead hidden_dim (2048 in full-size model)
PROJ_DIM = 128            # ProjectionHead proj_dim (default)
BN_EPS = 1e-5

LANE = 128


def _round_up(v, m=LANE):
    return ((v + m - 1) // m) * m


C_PAD = 8                          # conv input channels padded (zero cost)
F_PAD = _round_up(FEATURE_DIM)     # 128
H_PAD = _round_up(HIDDEN_DIM)      # 128
P_PAD = _round_up(PROJ_DIM)        # 128

# Padded conv grid per sample: one zero ring for the "same" conv, plus two
# extra zero rows at the bottom so R = HP*WP is a multiple of 8 (tile-aligned
# reshape for the pooling reduce).
WP = W + 2                          # 18
HP = H + 4                          # 20  (rows 17..19 are extra zero rows)
R = HP * WP                         # 360 per-sample flattened positions
GUARD = 20                          # >= WP+1 zero guard rows at both ends
ROWS_TOTAL = BATCH * R + 2 * GUARD  # 760

# Static shifted-slice starts for the 9 conv taps (di outer, dj inner),
# matching conv_w[di, dj] after the (3,3,C,F) -> (9,C,F) reshape.
TAP_STARTS = [GUARD + (di - 1) * WP + (dj - 1) for di in range(3) for dj in range(3)]


# ----------------------------- fused Pallas kernel ----------------------------
def simclr_fused_kernel(x2_ref, wtap_ref, cb_ref, poolw_ref,
                        w1_ref, b1_ref, gamma_ref, beta_ref, w2_ref, b2_ref,
                        feat_ref, proj_ref):
    """Fused encoder + projection head on the full (tiny) batch in VMEM.

    x2_ref:    (ROWS_TOTAL, C_PAD) f32   zero-padded, guarded, flattened NHWC input
    wtap_ref:  (9, C_PAD, F_PAD)   f32   per-tap 3x3 conv weights
    cb_ref:    (1, F_PAD)          f32   conv bias
    poolw_ref: (N*R, 1)            f32   pooling weights (1/(H*W) on valid rows, 0 else)
    w1_ref:    (F_PAD, H_PAD) bf16       b1/gamma/beta: (1, H_PAD) f32
    w2_ref:    (H_PAD, P_PAD) bf16       b2: (1, P_PAD) f32
    feat_ref:  (N, F_PAD) f32            proj_ref: (N, P_PAD) f32
    """
    n = feat_ref.shape[0]
    n_rows = poolw_ref.shape[0]
    r = n_rows // n
    f_pad = feat_ref.shape[1]

    # ---- encoder: 3x3 "same" conv as 9 statically shifted tap matmuls
    #      (in-kernel im2col; batch folded into the matmul M dimension).
    acc = jnp.zeros((n_rows, f_pad), jnp.float32)
    for t, start in enumerate(TAP_STARTS):          # static 9-iteration loop
        tap = x2_ref[start:start + n_rows, :]       # (n_rows, C_PAD) f32
        acc = acc + jnp.dot(tap, wtap_ref[t],
                            preferred_element_type=jnp.float32)
    conv = jnp.maximum(acc + cb_ref[...], 0.0)      # bias + ReLU, f32 on VPU

    # ---- global average pool, fully in f32: masked weighted sum + XLU reduce.
    #      Border / extra-pad / garbage rows have pooling weight 0.
    pooled = conv * poolw_ref[...]                              # (n_rows, f_pad)
    feat = jnp.sum(pooled.reshape(n, r, f_pad), axis=1)         # (n, f_pad) f32
    feat_ref[...] = feat

    # ---- projection head: Linear -> BatchNorm1d (batch stats) -> ReLU -> Linear
    h = jnp.dot(feat.astype(jnp.bfloat16), w1_ref[...],
                preferred_element_type=jnp.float32) + b1_ref[...]
    mu = jnp.mean(h, axis=0, keepdims=True)
    var = jnp.mean((h - mu) ** 2, axis=0, keepdims=True)        # biased (train mode)
    h_hat = (h - mu) * lax.rsqrt(var + BN_EPS)
    h_act = jnp.maximum(h_hat * gamma_ref[...] + beta_ref[...], 0.0)
    proj_ref[...] = jnp.dot(h_act.astype(jnp.bfloat16), w2_ref[...],
                            preferred_element_type=jnp.float32) + b2_ref[...]


# ----------------------------- JAX glue ---------------------------------------
def _pad_to(x, shape):
    return jnp.pad(x, [(0, t - s) for s, t in zip(x.shape, shape)])


@jax.jit
def simclr_forward(x_nchw, params):
    """Returns (feat, proj) exactly like SimCLRModel.forward."""
    n = x_nchw.shape[0]

    # ---- layout plumbing only (plain JAX, no 9x/lane-pad inflation):
    # NCHW -> NHWC, conv zero ring (+2 extra bottom rows for 8-row alignment),
    # channel pad to C_PAD, flatten spatial+batch, add zero guard rows.
    x_nhwc = jnp.transpose(x_nchw, (0, 2, 3, 1))
    xp = jnp.pad(x_nhwc, ((0, 0), (1, HP - H - 1), (1, 1), (0, C_PAD - CIN)))
    x2 = xp.reshape(n * R, C_PAD)
    x2 = jnp.pad(x2, ((GUARD, GUARD), (0, 0)))                       # f32 slab

    # per-tap conv weights (3,3,Cin,F) -> (9, C_PAD, F_PAD)
    wtap = _pad_to(params["conv_w"], (3, 3, C_PAD, F_PAD)).reshape(9, C_PAD, F_PAD)
    cb = _pad_to(params["conv_b"].reshape(1, FEATURE_DIM), (1, F_PAD))

    # pooling weights: 1/(H*W) at valid conv-output positions, 0 elsewhere.
    hh = jnp.arange(HP)
    ww = jnp.arange(WP)
    valid = ((hh >= 1) & (hh <= H))[:, None] & ((ww >= 1) & (ww <= W))[None, :]
    poolw = (valid.astype(jnp.float32) / float(H * W)).reshape(R, 1)
    poolw = jnp.tile(poolw, (n, 1))                                  # (n*R, 1)

    w1 = _pad_to(params["w1"], (F_PAD, H_PAD)).astype(jnp.bfloat16)
    b1 = _pad_to(params["b1"].reshape(1, HIDDEN_DIM), (1, H_PAD))
    gamma = _pad_to(params["gamma"].reshape(1, HIDDEN_DIM), (1, H_PAD))
    beta = _pad_to(params["beta"].reshape(1, HIDDEN_DIM), (1, H_PAD))
    w2 = _pad_to(params["w2"], (H_PAD, P_PAD)).astype(jnp.bfloat16)
    b2 = _pad_to(params["b2"].reshape(1, PROJ_DIM), (1, P_PAD))

    feat_pad, proj_pad = pl.pallas_call(
        simclr_fused_kernel,
        out_shape=(jax.ShapeDtypeStruct((n, F_PAD), jnp.float32),
                   jax.ShapeDtypeStruct((n, P_PAD), jnp.float32)),
        cost_estimate=pl.CostEstimate(
            flops=(2 * n * R * C_PAD * F_PAD * 9
                   + 2 * n * F_PAD * H_PAD + 2 * n * H_PAD * P_PAD),
            transcendentals=H_PAD,
            bytes_accessed=(x2.size * 4 + wtap.size * 4 + cb.size * 4
                            + poolw.size * 4 + w1.size * 2 + w2.size * 2
                            + 4 * H_PAD * 4 + n * (F_PAD + P_PAD) * 4)),
    )(x2, wtap, cb, poolw, w1, b1, gamma, beta, w2, b2)

    feat = feat_pad[:, :FEATURE_DIM]
    proj = proj_pad[:, :PROJ_DIM]
    return feat, proj


def _reference_feat(x_nchw, params):
    """Pure-JAX f32 reference for the synthetic encoder (conv->ReLU->GAP)."""
    x = jnp.transpose(x_nchw, (0, 2, 3, 1)).astype(jnp.float32)
    n, h, w, c = x.shape
    xp = jnp.pad(x, ((0, 0), (1, 1), (1, 1), (0, 0)))
    cols = [xp[:, di:di + h, dj:dj + w, :] for di in range(3) for dj in range(3)]
    patches = jnp.concatenate(cols, axis=-1).reshape(n, h * w, 9 * c)
    wmat = params["conv_w"].reshape(9 * c, FEATURE_DIM)
    conv = jnp.maximum(
        jnp.einsum("npk,kf->npf", patches, wmat,
                   precision=jax.lax.Precision.HIGHEST) + params["conv_b"], 0.0)
    return conv.mean(axis=1)


def init_params(key):
    """Deterministic synthetic parameters (canonical layouts, padded in wrapper)."""
    ks = jax.random.split(key, 6)
    scale = 0.05
    return {
        # conv weight in HWIO; split into per-tap matrices in the wrapper.
        "conv_w": scale * jax.random.normal(ks[0], (3, 3, CIN, FEATURE_DIM),
                                            jnp.float32),
        "conv_b": jnp.zeros((FEATURE_DIM,), jnp.float32),
        # Linear weights stored as (in, out) == torch_weight.T
        "w1": scale * jax.random.normal(ks[1], (FEATURE_DIM, HIDDEN_DIM),
                                        jnp.float32),
        "b1": 0.01 * jax.random.normal(ks[2], (HIDDEN_DIM,), jnp.float32),
        "gamma": jnp.ones((HIDDEN_DIM,), jnp.float32),
        "beta": jnp.zeros((HIDDEN_DIM,), jnp.float32),
        "w2": scale * jax.random.normal(ks[3], (HIDDEN_DIM, PROJ_DIM),
                                        jnp.float32),
        "b2": 0.01 * jax.random.normal(ks[4], (PROJ_DIM,), jnp.float32),
    }


if __name__ == "__main__":
    key = jax.random.PRNGKey(0)
    k_x, k_p = jax.random.split(key)
    x = jax.random.normal(k_x, (BATCH, CIN, H, W), jnp.float32)  # NCHW input
    params = init_params(k_p)

    feat, proj = simclr_forward(x, params)
    jax.block_until_ready((feat, proj))

    assert feat.shape == (BATCH, FEATURE_DIM) and feat.dtype == jnp.float32
    assert proj.shape == (BATCH, PROJ_DIM) and proj.dtype == jnp.float32
    assert bool(jnp.all(jnp.isfinite(feat))) and bool(jnp.all(jnp.isfinite(proj)))

    # Numerical sanity check of the in-kernel conv/pool against a pure-JAX f32
    # reference (the projection head is a direct transcription).
    feat_err = float(jnp.max(jnp.abs(feat - _reference_feat(x, params))))
    assert feat_err < 5e-3, f"encoder feature mismatch: {feat_err}"

    print("KERNEL_OK")
</pallas_src>

<mosaic_0001>
module attributes {stable_mosaic.version = 11 : i64} {
  func.func @simclr_fused_kernel(%arg0: memref<760x8xf32, #tpu.memory_space<vmem>>, %arg1: memref<9x8x128xf32, #tpu.memory_space<vmem>>, %arg2: memref<1x128xf32, #tpu.memory_space<vmem>>, %arg3: memref<720x1xf32, #tpu.memory_space<vmem>>, %arg4: memref<128x128xbf16, #tpu.memory_space<vmem>>, %arg5: memref<1x128xf32, #tpu.memory_space<vmem>>, %arg6: memref<1x128xf32, #tpu.memory_space<vmem>>, %arg7: memref<1x128xf32, #tpu.memory_space<vmem>>, %arg8: memref<128x128xbf16, #tpu.memory_space<vmem>>, %arg9: memref<1x128xf32, #tpu.memory_space<vmem>>, %arg10: memref<2x128xf32, #tpu.memory_space<vmem>>, %arg11: memref<2x128xf32, #tpu.memory_space<vmem>>) attributes {dimension_semantics = [], scalar_prefetch = 0 : i64, scratch_operands = 0 : i64, tpu.core_type = #tpu.core_type<tc>} {
    %cst = arith.constant 0.000000e+00 : f32
    %0 = vector.broadcast %cst : f32 to vector<720x128xf32>
    %c1 = arith.constant 1 : index
    %c0 = arith.constant 0 : index
    %1 = vector.load %arg0[%c1, %c0] : memref<760x8xf32, #tpu.memory_space<vmem>>, vector<720x8xf32>
    %c0_0 = arith.constant 0 : index
    %c0_1 = arith.constant 0 : index
    %c0_2 = arith.constant 0 : index
    %2 = vector.load %arg1[%c0_0, %c0_1, %c0_2] : memref<9x8x128xf32, #tpu.memory_space<vmem>>, vector<1x8x128xf32>
    %3 = vector.shape_cast %2 : vector<1x8x128xf32> to vector<8x128xf32>
    %cst_3 = arith.constant dense<0.000000e+00> : vector<720x128xf32>
    %4 = tpu.matmul %1, %3, %cst_3 {dimension_numbers = #tpu.dot_dimension_numbers<[1], [0], [0], [1], [0, 0, 1, 1], [], []>} : vector<720x8xf32>, vector<8x128xf32>, vector<720x128xf32> -> vector<720x128xf32>
    %5 = arith.addf %0, %4 : vector<720x128xf32>
    %c2 = arith.constant 2 : index
    %c0_4 = arith.constant 0 : index
    %6 = vector.load %arg0[%c2, %c0_4] : memref<760x8xf32, #tpu.memory_space<vmem>>, vector<720x8xf32>
    %c1_5 = arith.constant 1 : index
    %c0_6 = arith.constant 0 : index
    %c0_7 = arith.constant 0 : index
    %7 = vector.load %arg1[%c1_5, %c0_6, %c0_7] : memref<9x8x128xf32, #tpu.memory_space<vmem>>, vector<1x8x128xf32>
    %8 = vector.shape_cast %7 : vector<1x8x128xf32> to vector<8x128xf32>
    %cst_8 = arith.constant dense<0.000000e+00> : vector<720x128xf32>
    %9 = tpu.matmul %6, %8, %cst_8 {dimension_numbers = #tpu.dot_dimension_numbers<[1], [0], [0], [1], [0, 0, 1, 1], [], []>} : vector<720x8xf32>, vector<8x128xf32>, vector<720x128xf32> -> vector<720x128xf32>
    %10 = arith.addf %5, %9 : vector<720x128xf32>
    %c3 = arith.constant 3 : index
    %c0_9 = arith.constant 0 : index
    %11 = vector.load %arg0[%c3, %c0_9] : memref<760x8xf32, #tpu.memory_space<vmem>>, vector<720x8xf32>
    %c2_10 = arith.constant 2 : index
    %c0_11 = arith.constant 0 : index
    %c0_12 = arith.constant 0 : index
    %12 = vector.load %arg1[%c2_10, %c0_11, %c0_12] : memref<9x8x128xf32, #tpu.memory_space<vmem>>, vector<1x8x128xf32>
    %13 = vector.shape_cast %12 : vector<1x8x128xf32> to vector<8x128xf32>
    %cst_13 = arith.constant dense<0.000000e+00> : vector<720x128xf32>
    %14 = tpu.matmul %11, %13, %cst_13 {dimension_numbers = #tpu.dot_dimension_numbers<[1], [0], [0], [1], [0, 0, 1, 1], [], []>} : vector<720x8xf32>, vector<8x128xf32>, vector<720x128xf32> -> vector<720x128xf32>
    %15 = arith.addf %10, %14 : vector<720x128xf32>
    %c19 = arith.constant 19 : index
    %c0_14 = arith.constant 0 : index
    %16 = vector.load %arg0[%c19, %c0_14] : memref<760x8xf32, #tpu.memory_space<vmem>>, vector<720x8xf32>
    %c3_15 = arith.constant 3 : index
    %c0_16 = arith.constant 0 : index
    %c0_17 = arith.constant 0 : index
    %17 = vector.load %arg1[%c3_15, %c0_16, %c0_17] : memref<9x8x128xf32, #tpu.memory_space<vmem>>, vector<1x8x128xf32>
    %18 = vector.shape_cast %17 : vector<1x8x128xf32> to vector<8x128xf32>
    %cst_18 = arith.constant dense<0.000000e+00> : vector<720x128xf32>
    %19 = tpu.matmul %16, %18, %cst_18 {dimension_numbers = #tpu.dot_dimension_numbers<[1], [0], [0], [1], [0, 0, 1, 1], [], []>} : vector<720x8xf32>, vector<8x128xf32>, vector<720x128xf32> -> vector<720x128xf32>
    %20 = arith.addf %15, %19 : vector<720x128xf32>
    %c20 = arith.constant 20 : index
    %c0_19 = arith.constant 0 : index
    %21 = vector.load %arg0[%c20, %c0_19] : memref<760x8xf32, #tpu.memory_space<vmem>>, vector<720x8xf32>
    %c4 = arith.constant 4 : index
    %c0_20 = arith.constant 0 : index
    %c0_21 = arith.constant 0 : index
    %22 = vector.load %arg1[%c4, %c0_20, %c0_21] : memref<9x8x128xf32, #tpu.memory_space<vmem>>, vector<1x8x128xf32>
    %23 = vector.shape_cast %22 : vector<1x8x128xf32> to vector<8x128xf32>
    %cst_22 = arith.constant dense<0.000000e+00> : vector<720x128xf32>
    %24 = tpu.matmul %21, %23, %cst_22 {dimension_numbers = #tpu.dot_dimension_numbers<[1], [0], [0], [1], [0, 0, 1, 1], [], []>} : vector<720x8xf32>, vector<8x128xf32>, vector<720x128xf32> -> vector<720x128xf32>
    %25 = arith.addf %20, %24 : vector<720x128xf32>
    %c21 = arith.constant 21 : index
    %c0_23 = arith.constant 0 : index
    %26 = vector.load %arg0[%c21, %c0_23] : memref<760x8xf32, #tpu.memory_space<vmem>>, vector<720x8xf32>
    %c5 = arith.constant 5 : index
    %c0_24 = arith.constant 0 : index
    %c0_25 = arith.constant 0 : index
    %27 = vector.load %arg1[%c5, %c0_24, %c0_25] : memref<9x8x128xf32, #tpu.memory_space<vmem>>, vector<1x8x128xf32>
    %28 = vector.shape_cast %27 : vector<1x8x128xf32> to vector<8x128xf32>
    %cst_26 = arith.constant dense<0.000000e+00> : vector<720x128xf32>
    %29 = tpu.matmul %26, %28, %cst_26 {dimension_numbers = #tpu.dot_dimension_numbers<[1], [0], [0], [1], [0, 0, 1, 1], [], []>} : vector<720x8xf32>, vector<8x128xf32>, vector<720x128xf32> -> vector<720x128xf32>
    %30 = arith.addf %25, %29 : vector<720x128xf32>
    %c37 = arith.constant 37 : index
    %c0_27 = arith.constant 0 : index
    %31 = vector.load %arg0[%c37, %c0_27] : memref<760x8xf32, #tpu.memory_space<vmem>>, vector<720x8xf32>
    %c6 = arith.constant 6 : index
    %c0_28 = arith.constant 0 : index
    %c0_29 = arith.constant 0 : index
    %32 = vector.load %arg1[%c6, %c0_28, %c0_29] : memref<9x8x128xf32, #tpu.memory_space<vmem>>, vector<1x8x128xf32>
    %33 = vector.shape_cast %32 : vector<1x8x128xf32> to vector<8x128xf32>
    %cst_30 = arith.constant dense<0.000000e+00> : vector<720x128xf32>
    %34 = tpu.matmul %31, %33, %cst_30 {dimension_numbers = #tpu.dot_dimension_numbers<[1], [0], [0], [1], [0, 0, 1, 1], [], []>} : vector<720x8xf32>, vector<8x128xf32>, vector<720x128xf32> -> vector<720x128xf32>
    %35 = arith.addf %30, %34 : vector<720x128xf32>
    %c38 = arith.constant 38 : index
    %c0_31 = arith.constant 0 : index
    %36 = vector.load %arg0[%c38, %c0_31] : memref<760x8xf32, #tpu.memory_space<vmem>>, vector<720x8xf32>
    %c7 = arith.constant 7 : index
    %c0_32 = arith.constant 0 : index
    %c0_33 = arith.constant 0 : index
    %37 = vector.load %arg1[%c7, %c0_32, %c0_33] : memref<9x8x128xf32, #tpu.memory_space<vmem>>, vector<1x8x128xf32>
    %38 = vector.shape_cast %37 : vector<1x8x128xf32> to vector<8x128xf32>
    %cst_34 = arith.constant dense<0.000000e+00> : vector<720x128xf32>
    %39 = tpu.matmul %36, %38, %cst_34 {dimension_numbers = #tpu.dot_dimension_numbers<[1], [0], [0], [1], [0, 0, 1, 1], [], []>} : vector<720x8xf32>, vector<8x128xf32>, vector<720x128xf32> -> vector<720x128xf32>
    %40 = arith.addf %35, %39 : vector<720x128xf32>
    %c39 = arith.constant 39 : index
    %c0_35 = arith.constant 0 : index
    %41 = vector.load %arg0[%c39, %c0_35] : memref<760x8xf32, #tpu.memory_space<vmem>>, vector<720x8xf32>
    %c8 = arith.constant 8 : index
    %c0_36 = arith.constant 0 : index
    %c0_37 = arith.constant 0 : index
    %42 = vector.load %arg1[%c8, %c0_36, %c0_37] : memref<9x8x128xf32, #tpu.memory_space<vmem>>, vector<1x8x128xf32>
    %43 = vector.shape_cast %42 : vector<1x8x128xf32> to vector<8x128xf32>
    %cst_38 = arith.constant dense<0.000000e+00> : vector<720x128xf32>
    %44 = tpu.matmul %41, %43, %cst_38 {dimension_numbers = #tpu.dot_dimension_numbers<[1], [0], [0], [1], [0, 0, 1, 1], [], []>} : vector<720x8xf32>, vector<8x128xf32>, vector<720x128xf32> -> vector<720x128xf32>
    %45 = arith.addf %40, %44 : vector<720x128xf32>
    %c0_39 = arith.constant 0 : index
    %c0_40 = arith.constant 0 : index
    %46 = vector.load %arg2[%c0_39, %c0_40] : memref<1x128xf32, #tpu.memory_space<vmem>>, vector<1x128xf32>
    %47 = vector.broadcast %46 : vector<1x128xf32> to vector<720x128xf32>
    %48 = arith.addf %45, %47 : vector<720x128xf32>
    %cst_41 = arith.constant 0.000000e+00 : f32
    %49 = vector.broadcast %cst_41 : f32 to vector<720x128xf32>
    %50 = arith.maximumf %48, %49 : vector<720x128xf32>
    %c0_42 = arith.constant 0 : index
    %c0_43 = arith.constant 0 : index
    %51 = vector.load %arg3[%c0_42, %c0_43] : memref<720x1xf32, #tpu.memory_space<vmem>>, vector<720x1xf32>
    %52 = vector.broadcast %51 : vector<720x1xf32> to vector<720x128xf32>
    %53 = arith.mulf %50, %52 : vector<720x128xf32>
    %54 = vector.shape_cast %53 : vector<720x128xf32> to vector<2x360x128xf32>
    %cst_44 = arith.constant dense<0.000000e+00> : vector<2x128xf32>
    %55 = vector.multi_reduction <add>, %54, %cst_44 [1] : vector<2x360x128xf32> to vector<2x128xf32>
    %c0_45 = arith.constant 0 : index
    %c0_46 = arith.constant 0 : index
    %56 = vector.load %arg10[%c0_45, %c0_46] : memref<2x128xf32, #tpu.memory_space<vmem>>, vector<2x128xf32>
    tpu.vector_store %arg10[%c0_45, %c0_46], %55 {strides = array<i32>} : memref<2x128xf32, #tpu.memory_space<vmem>>, vector<2x128xf32>,
    %57 = arith.truncf %55 : vector<2x128xf32> to vector<2x128xbf16>
    %c0_47 = arith.constant 0 : index
    %c0_48 = arith.constant 0 : index
    %58 = vector.load %arg4[%c0_47, %c0_48] : memref<128x128xbf16, #tpu.memory_space<vmem>>, vector<128x128xbf16>
    %cst_49 = arith.constant dense<0.000000e+00> : vector<2x128xf32>
    %59 = tpu.matmul %57, %58, %cst_49 {dimension_numbers = #tpu.dot_dimension_numbers<[1], [0], [0], [1], [0, 0, 1, 1], [], []>} : vector<2x128xbf16>, vector<128x128xbf16>, vector<2x128xf32> -> vector<2x128xf32>
    %c0_50 = arith.constant 0 : index
    %c0_51 = arith.constant 0 : index
    %60 = vector.load %arg5[%c0_50, %c0_51] : memref<1x128xf32, #tpu.memory_space<vmem>>, vector<1x128xf32>
    %61 = vector.broadcast %60 : vector<1x128xf32> to vector<2x128xf32>
    %62 = arith.addf %59, %61 : vector<2x128xf32>
    %cst_52 = arith.constant dense<0.000000e+00> : vector<128xf32>
    %63 = vector.multi_reduction <add>, %62, %cst_52 [0] : vector<2x128xf32> to vector<128xf32>
    %64 = vector.shape_cast %63 : vector<128xf32> to vector<1x128xf32>
    %cst_53 = arith.constant 2.000000e+00 : f32
    %65 = vector.broadcast %cst_53 : f32 to vector<1x128xf32>
    %66 = arith.divf %64, %65 : vector<1x128xf32>
    %67 = vector.broadcast %66 : vector<1x128xf32> to vector<2x128xf32>
    %68 = arith.subf %62, %67 : vector<2x128xf32>
    %69 = arith.mulf %68, %68 : vector<2x128xf32>
    %cst_54 = arith.constant dense<0.000000e+00> : vector<128xf32>
    %70 = vector.multi_reduction <add>, %69, %cst_54 [0] : vector<2x128xf32> to vector<128xf32>
    %71 = vector.shape_cast %70 : vector<128xf32> to vector<1x128xf32>
    %cst_55 = arith.constant 2.000000e+00 : f32
    %72 = vector.broadcast %cst_55 : f32 to vector<1x128xf32>
    %73 = arith.divf %71, %72 : vector<1x128xf32>
    %74 = vector.broadcast %66 : vector<1x128xf32> to vector<2x128xf32>
    %75 = arith.subf %62, %74 : vector<2x128xf32>
    %cst_56 = arith.constant 9.99999974E-6 : f32
    %76 = vector.broadcast %cst_56 : f32 to vector<1x128xf32>
    %77 = arith.addf %73, %76 : vector<1x128xf32>
    %78 = math.rsqrt %77 : vector<1x128xf32>
    %79 = vector.broadcast %78 : vector<1x128xf32> to vector<2x128xf32>
    %80 = arith.mulf %75, %79 : vector<2x128xf32>
    %c0_57 = arith.constant 0 : index
    %c0_58 = arith.constant 0 : index
    %81 = vector.load %arg6[%c0_57, %c0_58] : memref<1x128xf32, #tpu.memory_space<vmem>>, vector<1x128xf32>
    %82 = vector.broadcast %81 : vector<1x128xf32> to vector<2x128xf32>
    %83 = arith.mulf %80, %82 : vector<2x128xf32>
    %c0_59 = arith.constant 0 : index
    %c0_60 = arith.constant 0 : index
    %84 = vector.load %arg7[%c0_59, %c0_60] : memref<1x128xf32, #tpu.memory_space<vmem>>, vector<1x128xf32>
    %85 = vector.broadcast %84 : vector<1x128xf32> to vector<2x128xf32>
    %86 = arith.addf %83, %85 : vector<2x128xf32>
    %cst_61 = arith.constant 0.000000e+00 : f32
    %87 = vector.broadcast %cst_61 : f32 to vector<2x128xf32>
    %88 = arith.maximumf %86, %87 : vector<2x128xf32>
    %89 = arith.truncf %88 : vector<2x128xf32> to vector<2x128xbf16>
    %c0_62 = arith.constant 0 : index
    %c0_63 = arith.constant 0 : index
    %90 = vector.load %arg8[%c0_62, %c0_63] : memref<128x128xbf16, #tpu.memory_space<vmem>>, vector<128x128xbf16>
    %cst_64 = arith.constant dense<0.000000e+00> : vector<2x128xf32>
    %91 = tpu.matmul %89, %90, %cst_64 {dimension_numbers = #tpu.dot_dimension_numbers<[1], [0], [0], [1], [0, 0, 1, 1], [], []>} : vector<2x128xbf16>, vector<128x128xbf16>, vector<2x128xf32> -> vector<2x128xf32>
    %c0_65 = arith.constant 0 : index
    %c0_66 = arith.constant 0 : index
    %92 = vector.load %arg9[%c0_65, %c0_66] : memref<1x128xf32, #tpu.memory_space<vmem>>, vector<1x128xf32>
    %93 = vector.broadcast %92 : vector<1x128xf32> to vector<2x128xf32>
    %94 = arith.addf %91, %93 : vector<2x128xf32>
    %c0_67 = arith.constant 0 : index
    %c0_68 = arith.constant 0 : index
    %95 = vector.load %arg11[%c0_67, %c0_68] : memref<2x128xf32, #tpu.memory_space<vmem>>, vector<2x128xf32>
    tpu.vector_store %arg11[%c0_67, %c0_68], %94 {strides = array<i32>} : memref<2x128xf32, #tpu.memory_space<vmem>>, vector<2x128xf32>,
    return
  }
}

</mosaic_0001>

<llo_original>
// kernel: simclr_forward.1
$region0: #{simclr_forward.1}
  #allocation0 [shape = 'u32[]', space=smem, size = 0x4, offset = 0x4, fixed_abs, tag = 'smem constant byte address 0x4 - core index']
  #allocation1 [shape = 'u32[144,128]{1,0:T(1,128)}', space=vmem, size = 0x12000, scoped, tag = 'internal scratch']
  %s0 = inlined_call_operand.vmem [shape: f32[760,8], index: 0, kind: input, shape index: {}]
  %s1 = inlined_call_operand.vmem [shape: f32[9,8,128], index: 1, kind: input, shape index: {}]
  %s2 = inlined_call_operand.vmem [shape: f32[1,128], index: 2, kind: input, shape index: {}]
  %s3 = inlined_call_operand.vmem [shape: f32[720,1], index: 3, kind: input, shape index: {}]
  %s4 = inlined_call_operand.vmem [shape: bf16[128,128], index: 4, kind: input, shape index: {}]
  %s5 = inlined_call_operand.vmem [shape: f32[1,128], index: 5, kind: input, shape index: {}]
  %s6 = inlined_call_operand.vmem [shape: f32[1,128], index: 6, kind: input, shape index: {}]
  %s7 = inlined_call_operand.vmem [shape: f32[1,128], index: 7, kind: input, shape index: {}]
  %s8 = inlined_call_operand.vmem [shape: bf16[128,128], index: 8, kind: input, shape index: {}]
  %s9 = inlined_call_operand.vmem [shape: f32[1,128], index: 9, kind: input, shape index: {}]
  %s10 = inlined_call_operand.hbm [shape: f32[2,128], index: 10, kind: output, shape index: {0}]
  %s11 = inlined_call_operand.hbm [shape: f32[2,128], index: 11, kind: output, shape index: {1}]
  %12 = xla_tuple %s10, %s11
  %s13 = sld [smem:[#allocation0]]
  $region58: #{simclr_forward.1} parent=0
    _
  %s15 = ssub.s32 1, %s13
  %s16 = scalar_select 0, %s15, %s13
  $region1: #{simclr_forward.1} parent=0
    #allocation2 [shape = 'u8[1024]{0}', space=vmem, size = 0x400, scoped, tag = 'output window, operand 0, single buffered']
    #allocation3 [shape = 's32[1]{0}', space=sflag, size = 0x4, scoped, tag = 'scoped memory for simclr_forward.1']
    #allocation4 [shape = 'u8[1024]{0}', space=vmem, size = 0x400, scoped, tag = 'output window, operand 1, single buffered']
    #allocation5 [shape = 's32[1]{0}', space=sflag, size = 0x4, scoped, tag = 'scoped memory for simclr_forward.1']
    %17 = vsyncpa [#allocation3], 0
    %18 = vsyncpa [#allocation5], 0
    // Predicated region
    $region2: #{simclr_forward.1} parent=1 // pred_check
      _
    $region3: #{simclr_forward.1} parent=1 // pred_check_branch
      %20 = sbr.rel (0) target = $region5
    $region4: #{simclr_forward.1} parent=1 // pred_region
      _
    $region5: #{simclr_forward.1} parent=1 // pred_fallthru
      _
    // Predicated region
    $region6: #{simclr_forward.1} parent=1 // pred_check
      _
    $region7: #{simclr_forward.1} parent=1 // pred_check_branch
      %22 = sbr.rel (0) target = $region9
    $region8: #{simclr_forward.1} parent=1 // pred_region
      _
    $region9: #{simclr_forward.1} parent=1 // pred_fallthru
      _
    // Predicated region
    $region10: #{simclr_forward.1} parent=1 // pred_check
      _
    $region11: #{simclr_forward.1} parent=1 // pred_check_branch
      %24 = sbr.rel (0) target = $region13
    $region12: #{simclr_forward.1} parent=1 // pred_region
      _
    $region13: #{simclr_forward.1} parent=1 // pred_fallthru
      _
    // Predicated region
    $region14: #{simclr_forward.1} parent=1 // pred_check
      _
    $region15: #{simclr_forward.1} parent=1 // pred_check_branch
      %26 = sbr.rel (0) target = $region17
    $region16: #{simclr_forward.1} parent=1 // pred_region
      _
    $region17: #{simclr_forward.1} parent=1 // pred_fallthru
      _
    // Predicated region
    $region18: #{simclr_forward.1} parent=1 // pred_check
      _
    $region19: #{simclr_forward.1} parent=1 // pred_check_branch
      %28 = sbr.rel (0) target = $region21
    $region20: #{simclr_forward.1} parent=1 // pred_region
      _
    $region21: #{simclr_forward.1} parent=1 // pred_fallthru
      _
    // Predicated region
    $region22: #{simclr_forward.1} parent=1 // pred_check
      _
    $region23: #{simclr_forward.1} parent=1 // pred_check_branch
      %30 = sbr.rel (0) target = $region25
    $region24: #{simclr_forward.1} parent=1 // pred_region
      _
    $region25: #{simclr_forward.1} parent=1 // pred_fallthru
      _
    // Predicated region
    $region26: #{simclr_forward.1} parent=1 // pred_check
      _
    $region27: #{simclr_forward.1} parent=1 // pred_check_branch
      %32 = sbr.rel (0) target = $region29
    $region28: #{simclr_forward.1} parent=1 // pred_region
      _
    $region29: #{simclr_forward.1} parent=1 // pred_fallthru
      _
    // Predicated region
    $region30: #{simclr_forward.1} parent=1 // pred_check
      _
    $region31: #{simclr_forward.1} parent=1 // pred_check_branch
      %34 = sbr.rel (0) target = $region33
    $region32: #{simclr_forward.1} parent=1 // pred_region
      _
    $region33: #{simclr_forward.1} parent=1 // pred_fallthru
      _
    // Predicated region
    $region34: #{simclr_forward.1} parent=1 // pred_check
      _
    $region35: #{simclr_forward.1} parent=1 // pred_check_branch
      %36 = sbr.rel (0) target = $region37
    $region36: #{simclr_forward.1} parent=1 // pred_region
      _
    $region37: #{simclr_forward.1} parent=1 // pred_fallthru
      _
    // Predicated region
    $region38: #{simclr_forward.1} parent=1 // pred_check
      _
    $region39: #{simclr_forward.1} parent=1 // pred_check_branch
      %38 = sbr.rel (0) target = $region41
    $region40: #{simclr_forward.1} parent=1 // pred_region
      _
    $region41: #{simclr_forward.1} parent=1 // pred_fallthru
      _
    %v40 = vld [vmem:[%s0 + $0x1] sm:$0xff]
    %v41 = vld [vmem:[%s0 + $0x9] sm:$0xff]
    %v42 = vld [vmem:[%s0 + $0x11] sm:$0xff]
    %v43 = vld [vmem:[%s0 + $0x19] sm:$0xff]
    %v44 = vld [vmem:[%s0 + $0x21] sm:$0xff]
    %v45 = vld [vmem:[%s0 + $0x29] sm:$0xff]
    %v46 = vld [vmem:[%s0 + $0x31] sm:$0xff]
    %v47 = vld [vmem:[%s0 + $0x39] sm:$0xff]
    %v48 = vld [vmem:[%s0 + $0x41] sm:$0xff]
    %v49 = vld [vmem:[%s0 + $0x49] sm:$0xff]
    %v50 = vld [vmem:[%s0 + $0x51] sm:$0xff]
    %v51 = vld [vmem:[%s0 + $0x59] sm:$0xff]
    %v52 = vld [vmem:[%s0 + $0x61] sm:$0xff]
    %v53 = vld [vmem:[%s0 + $0x69] sm:$0xff]
    %v54 = vld [vmem:[%s0 + $0x71] sm:$0xff]
    %v55 = vld [vmem:[%s0 + $0x79] sm:$0xff]
    %v56 = vld [vmem:[%s0 + $0x81] sm:$0xff]
    %v57 = vld [vmem:[%s0 + $0x89] sm:$0xff]
    %v58 = vld [vmem:[%s0 + $0x91] sm:$0xff]
    %v59 = vld [vmem:[%s0 + $0x99] sm:$0xff]
    %v60 = vld [vmem:[%s0 + $0xa1] sm:$0xff]
    %v61 = vld [vmem:[%s0 + $0xa9] sm:$0xff]
    %v62 = vld [vmem:[%s0 + $0xb1] sm:$0xff]
    %v63 = vld [vmem:[%s0 + $0xb9] sm:$0xff]
    %v64 = vld [vmem:[%s0 + $0xc1] sm:$0xff]
    %v65 = vld [vmem:[%s0 + $0xc9] sm:$0xff]
    %v66 = vld [vmem:[%s0 + $0xd1] sm:$0xff]
    %v67 = vld [vmem:[%s0 + $0xd9] sm:$0xff]
    %v68 = vld [vmem:[%s0 + $0xe1] sm:$0xff]
    %v69 = vld [vmem:[%s0 + $0xe9] sm:$0xff]
    %v70 = vld [vmem:[%s0 + $0xf1] sm:$0xff]
    %v71 = vld [vmem:[%s0 + $0xf9] sm:$0xff]
    %v72 = vld [vmem:[%s0 + $0x101] sm:$0xff]
    %v73 = vld [vmem:[%s0 + $0x109] sm:$0xff]
    %v74 = vld [vmem:[%s0 + $0x111] sm:$0xff]
    %v75 = vld [vmem:[%s0 + $0x119] sm:$0xff]
    %v76 = vld [vmem:[%s0 + $0x121] sm:$0xff]
    %v77 = vld [vmem:[%s0 + $0x129] sm:$0xff]
    %v78 = vld [vmem:[%s0 + $0x131] sm:$0xff]
    %v79 = vld [vmem:[%s0 + $0x139] sm:$0xff]
    %v80 = vld [vmem:[%s0 + $0x141] sm:$0xff]
    %v81 = vld [vmem:[%s0 + $0x149] sm:$0xff]
    %v82 = vld [vmem:[%s0 + $0x151] sm:$0xff]
    %v83 = vld [vmem:[%s0 + $0x159] sm:$0xff]
    %v84 = vld [vmem:[%s0 + $0x161] sm:$0xff]
    %v85 = vld [vmem:[%s0 + $0x169] sm:$0xff]
    %v86 = vld [vmem:[%s0 + $0x171] sm:$0xff]
    %v87 = vld [vmem:[%s0 + $0x179] sm:$0xff]
    %v88 = vld [vmem:[%s0 + $0x181] sm:$0xff]
    %v89 = vld [vmem:[%s0 + $0x189] sm:$0xff]
    %v90 = vld [vmem:[%s0 + $0x191] sm:$0xff]
    %v91 = vld [vmem:[%s0 + $0x199] sm:$0xff]
    %v92 = vld [vmem:[%s0 + $0x1a1] sm:$0xff]
    %v93 = vld [vmem:[%s0 + $0x1a9] sm:$0xff]
    %v94 = vld [vmem:[%s0 + $0x1b1] sm:$0xff]
    %v95 = vld [vmem:[%s0 + $0x1b9] sm:$0xff]
    %v96 = vld [vmem:[%s0 + $0x1c1] sm:$0xff]
    %v97 = vld [vmem:[%s0 + $0x1c9] sm:$0xff]
    %v98 = vld [vmem:[%s0 + $0x1d1] sm:$0xff]
    %v99 = vld [vmem:[%s0 + $0x1d9] sm:$0xff]
    %v100 = vld [vmem:[%s0 + $0x1e1] sm:$0xff]
    %v101 = vld [vmem:[%s0 + $0x1e9] sm:$0xff]
    %v102 = vld [vmem:[%s0 + $0x1f1] sm:$0xff]
    %v103 = vld [vmem:[%s0 + $0x1f9] sm:$0xff]
    %v104 = vld [vmem:[%s0 + $0x201] sm:$0xff]
    %v105 = vld [vmem:[%s0 + $0x209] sm:$0xff]
    %v106 = vld [vmem:[%s0 + $0x211] sm:$0xff]
    %v107 = vld [vmem:[%s0 + $0x219] sm:$0xff]
    %v108 = vld [vmem:[%s0 + $0x221] sm:$0xff]
    %v109 = vld [vmem:[%s0 + $0x229] sm:$0xff]
    %v110 = vld [vmem:[%s0 + $0x231] sm:$0xff]
    %v111 = vld [vmem:[%s0 + $0x239] sm:$0xff]
    %v112 = vld [vmem:[%s0 + $0x241] sm:$0xff]
    %v113 = vld [vmem:[%s0 + $0x249] sm:$0xff]
    %v114 = vld [vmem:[%s0 + $0x251] sm:$0xff]
    %v115 = vld [vmem:[%s0 + $0x259] sm:$0xff]
    %v116 = vld [vmem:[%s0 + $0x261] sm:$0xff]
    %v117 = vld [vmem:[%s0 + $0x269] sm:$0xff]
    %v118 = vld [vmem:[%s0 + $0x271] sm:$0xff]
    %v119 = vld [vmem:[%s0 + $0x279] sm:$0xff]
    %v120 = vld [vmem:[%s0 + $0x281] sm:$0xff]
    %v121 = vld [vmem:[%s0 + $0x289] sm:$0xff]
    %v122 = vld [vmem:[%s0 + $0x291] sm:$0xff]
    %v123 = vld [vmem:[%s0 + $0x299] sm:$0xff]
    %v124 = vld [vmem:[%s0 + $0x2a1] sm:$0xff]
    %v125 = vld [vmem:[%s0 + $0x2a9] sm:$0xff]
    %v126 = vld [vmem:[%s0 + $0x2b1] sm:$0xff]
    %v127 = vld [vmem:[%s0 + $0x2b9] sm:$0xff]
    %v128 = vld [vmem:[%s0 + $0x2c1] sm:$0xff]
    %v129 = vld [vmem:[%s0 + $0x2c9] sm:$0xff]
    %v130 = vld [vmem:[%s1] sm:$0xff]
    %v131 = vld [vmem:[%s0 + $0x2] sm:$0xff]
    %v132 = vld [vmem:[%s0 + $0xa] sm:$0xff]
    %v133 = vld [vmem:[%s0 + $0x12] sm:$0xff]
    %v134 = vld [vmem:[%s0 + $0x1a] sm:$0xff]
    %v135 = vld [vmem:[%s0 + $0x22] sm:$0xff]
    %v136 = vld [vmem:[%s0 + $0x2a] sm:$0xff]
    %v137 = vld [vmem:[%s0 + $0x32] sm:$0xff]
    %v138 = vld [vmem:[%s0 + $0x3a] sm:$0xff]
    %v139 = vld [vmem:[%s0 + $0x42] sm:$0xff]
    %v140 = vld [vmem:[%s0 + $0x4a] sm:$0xff]
    %v141 = vld [vmem:[%s0 + $0x52] sm:$0xff]
    %v142 = vld [vmem:[%s0 + $0x5a] sm:$0xff]
    %v143 = vld [vmem:[%s0 + $0x62] sm:$0xff]
    %v144 = vld [vmem:[%s0 + $0x6a] sm:$0xff]
    %v145 = vld [vmem:[%s0 + $0x72] sm:$0xff]
    %v146 = vld [vmem:[%s0 + $0x7a] sm:$0xff]
    %v147 = vld [vmem:[%s0 + $0x82] sm:$0xff]
    %v148 = vld [vmem:[%s0 + $0x8a] sm:$0xff]
    %v149 = vld [vmem:[%s0 + $0x92] sm:$0xff]
    %v150 = vld [vmem:[%s0 + $0x9a] sm:$0xff]
    %v151 = vld [vmem:[%s0 + $0xa2] sm:$0xff]
    %v152 = vld [vmem:[%s0 + $0xaa] sm:$0xff]
    %v153 = vld [vmem:[%s0 + $0xb2] sm:$0xff]
    %v154 = vld [vmem:[%s0 + $0xba] sm:$0xff]
    %v155 = vld [vmem:[%s0 + $0xc2] sm:$0xff]
    %v156 = vld [vmem:[%s0 + $0xca] sm:$0xff]
    %v157 = vld [vmem:[%s0 + $0xd2] sm:$0xff]
    %v158 = vld [vmem:[%s0 + $0xda] sm:$0xff]
    %v159 = vld [vmem:[%s0 + $0xe2] sm:$0xff]
    %v160 = vld [vmem:[%s0 + $0xea] sm:$0xff]
    %v161 = vld [vmem:[%s0 + $0xf2] sm:$0xff]
    %v162 = vld [vmem:[%s0 + $0xfa] sm:$0xff]
    %v163 = vld [vmem:[%s0 + $0x102] sm:$0xff]
    %v164 = vld [vmem:[%s0 + $0x10a] sm:$0xff]
    %v165 = vld [vmem:[%s0 + $0x112] sm:$0xff]
    %v166 = vld [vmem:[%s0 + $0x11a] sm:$0xff]
    %v167 = vld [vmem:[%s0 + $0x122] sm:$0xff]
    %v168 = vld [vmem:[%s0 + $0x12a] sm:$0xff]
    %v169 = vld [vmem:[%s0 + $0x132] sm:$0xff]
    %v170 = vld [vmem:[%s0 + $0x13a] sm:$0xff]
    %v171 = vld [vmem:[%s0 + $0x142] sm:$0xff]
    %v172 = vld [vmem:[%s0 + $0x14a] sm:$0xff]
    %v173 = vld [vmem:[%s0 + $0x152] sm:$0xff]
    %v174 = vld [vmem:[%s0 + $0x15a] sm:$0xff]
    %v175 = vld [vmem:[%s0 + $0x162] sm:$0xff]
    %v176 = vld [vmem:[%s0 + $0x16a] sm:$0xff]
    %v177 = vld [vmem:[%s0 + $0x172] sm:$0xff]
    %v178 = vld [vmem:[%s0 + $0x17a] sm:$0xff]
    %v179 = vld [vmem:[%s0 + $0x182] sm:$0xff]
    %v180 = vld [vmem:[%s0 + $0x18a] sm:$0xff]
    %v181 = vld [vmem:[%s0 + $0x192] sm:$0xff]
    %v182 = vld [vmem:[%s0 + $0x19a] sm:$0xff]
    %v183 = vld [vmem:[%s0 + $0x1a2] sm:$0xff]
    %v184 = vld [vmem:[%s0 + $0x1aa] sm:$0xff]
    %v185 = vld [vmem:[%s0 + $0x1b2] sm:$0xff]
    %v186 = vld [vmem:[%s0 + $0x1ba] sm:$0xff]
    %v187 = vld [vmem:[%s0 + $0x1c2] sm:$0xff]
    %v188 = vld [vmem:[%s0 + $0x1ca] sm:$0xff]
    %v189 = vld [vmem:[%s0 + $0x1d2] sm:$0xff]
    %v190 = vld [vmem:[%s0 + $0x1da] sm:$0xff]
    %v191 = vld [vmem:[%s0 + $0x1e2] sm:$0xff]
    %v192 = vld [vmem:[%s0 + $0x1ea] sm:$0xff]
    %v193 = vld [vmem:[%s0 + $0x1f2] sm:$0xff]
    %v194 = vld [vmem:[%s0 + $0x1fa] sm:$0xff]
    %v195 = vld [vmem:[%s0 + $0x202] sm:$0xff]
    %v196 = vld [vmem:[%s0 + $0x20a] sm:$0xff]
    %v197 = vld [vmem:[%s0 + $0x212] sm:$0xff]
    %v198 = vld [vmem:[%s0 + $0x21a] sm:$0xff]
    %v199 = vld [vmem:[%s0 + $0x222] sm:$0xff]
    %v200 = vld [vmem:[%s0 + $0x22a] sm:$0xff]
    %v201 = vld [vmem:[%s0 + $0x232] sm:$0xff]
    %v202 = vld [vmem:[%s0 + $0x23a] sm:$0xff]
    %v203 = vld [vmem:[%s0 + $0x242] sm:$0xff]
    %v204 = vld [vmem:[%s0 + $0x24a] sm:$0xff]
    %v205 = vld [vmem:[%s0 + $0x252] sm:$0xff]
    %v206 = vld [vmem:[%s0 + $0x25a] sm:$0xff]
    %v207 = vld [vmem:[%s0 + $0x262] sm:$0xff]
    %v208 = vld [vmem:[%s0 + $0x26a] sm:$0xff]
    %v209 = vld [vmem:[%s0 + $0x272] sm:$0xff]
    %v210 = vld [vmem:[%s0 + $0x27a] sm:$0xff]
    %v211 = vld [vmem:[%s0 + $0x282] sm:$0xff]
    %v212 = vld [vmem:[%s0 + $0x28a] sm:$0xff]
    %v213 = vld [vmem:[%s0 + $0x292] sm:$0xff]
    %v214 = vld [vmem:[%s0 + $0x29a] sm:$0xff]
    %v215 = vld [vmem:[%s0 + $0x2a2] sm:$0xff]
    %v216 = vld [vmem:[%s0 + $0x2aa] sm:$0xff]
    %v217 = vld [vmem:[%s0 + $0x2b2] sm:$0xff]
    %v218 = vld [vmem:[%s0 + $0x2ba] sm:$0xff]
    %v219 = vld [vmem:[%s0 + $0x2c2] sm:$0xff]
    %v220 = vld [vmem:[%s0 + $0x2ca] sm:$0xff]
    %s221 = scalar_lea.vmem %s1, 8
    %v222 = vld [vmem:[%s221] sm:$0xff]
    %vm223 = vcmask 64512
    %v225 = vsel %vm223, %v131, 0
    %v228 = vsel %vm223, %v132, 0
    %v231 = vsel %vm223, %v133, 0
    %v234 = vsel %vm223, %v134, 0
    %v237 = vsel %vm223, %v135, 0
    %v240 = vsel %vm223, %v136, 0
    %v243 = vsel %vm223, %v137, 0
    %v246 = vsel %vm223, %v138, 0
    %v249 = vsel %vm223, %v139, 0
    %v252 = vsel %vm223, %v140, 0
    %v255 = vsel %vm223, %v141, 0
    %v258 = vsel %vm223, %v142, 0
    %v261 = vsel %vm223, %v143, 0
    %v264 = vsel %vm223, %v144, 0
    %v267 = vsel %vm223, %v145, 0
    %v270 = vsel %vm223, %v146, 0
    %v273 = vsel %vm223, %v147, 0
    %v276 = vsel %vm223, %v148, 0
    %v279 = vsel %vm223, %v149, 0
    %v282 = vsel %vm223, %v150, 0
    %v285 = vsel %vm223, %v151, 0
    %v288 = vsel %vm223, %v152, 0
    %v291 = vsel %vm223, %v153, 0
    %v294 = vsel %vm223, %v154, 0
    %v297 = vsel %vm223, %v155, 0
    %v300 = vsel %vm223, %v156, 0
    %v303 = vsel %vm223, %v157, 0
    %v306 = vsel %vm223, %v158, 0
    %v309 = vsel %vm223, %v159, 0
    %v312 = vsel %vm223, %v160, 0
    %v315 = vsel %vm223, %v161, 0
    %v318 = vsel %vm223, %v162, 0
    %v321 = vsel %vm223, %v163, 0
    %v324 = vsel %vm223, %v164, 0
    %v327 = vsel %vm223, %v165, 0
    %v330 = vsel %vm223, %v166, 0
    %v333 = vsel %vm223, %v167, 0
    %v336 = vsel %vm223, %v168, 0
    %v339 = vsel %vm223, %v169, 0
    %v342 = vsel %vm223, %v170, 0
    %v345 = vsel %vm223, %v171, 0
    %v348 = vsel %vm223, %v172, 0
    %v351 = vsel %vm223, %v173, 0
    %v354 = vsel %vm223, %v174, 0
    %v357 = vsel %vm223, %v175, 0
    %v360 = vsel %vm223, %v176, 0
    %v363 = vsel %vm223, %v177, 0
    %v366 = vsel %vm223, %v178, 0
    %v369 = vsel %vm223, %v179, 0
    %v372 = vsel %vm223, %v180, 0
    %v375 = vsel %vm223, %v181, 0
    %v378 = vsel %vm223, %v182, 0
    %v381 = vsel %vm223, %v183, 0
    %v384 = vsel %vm223, %v184, 0
    %v387 = vsel %vm223, %v185, 0
    %v390 = vsel %vm223, %v186, 0
    %v393 = vsel %vm223, %v187, 0
    %v396 = vsel %vm223, %v188, 0
    %v399 = vsel %vm223, %v189, 0
    %v402 = vsel %vm223, %v190, 0
    %v405 = vsel %vm223, %v191, 0
    %v408 = vsel %vm223, %v192, 0
    %v411 = vsel %vm223, %v193, 0
    %v414 = vsel %vm223, %v194, 0
    %v417 = vsel %vm223, %v195, 0
    %v420 = vsel %vm223, %v196, 0
    %v423 = vsel %vm223, %v197, 0
    %v426 = vsel %vm223, %v198, 0
    %v429 = vsel %vm223, %v199, 0
    %v432 = vsel %vm223, %v200, 0
    %v435 = vsel %vm223, %v201, 0
    %v438 = vsel %vm223, %v202, 0
    %v441 = vsel %vm223, %v203, 0
    %v444 = vsel %vm223, %v204, 0
    %v447 = vsel %vm223, %v205, 0
    %v450 = vsel %vm223, %v206, 0
    %v453 = vsel %vm223, %v207, 0
    %v456 = vsel %vm223, %v208, 0
    %v459 = vsel %vm223, %v209, 0
    %v462 = vsel %vm223, %v210, 0
    %v465 = vsel %vm223, %v211, 0
    %v468 = vsel %vm223, %v212, 0
    %v471 = vsel %vm223, %v213, 0
    %v474 = vsel %vm223, %v214, 0
    %v477 = vsel %vm223, %v215, 0
    %v480 = vsel %vm223, %v216, 0
    %v483 = vsel %vm223, %v217, 0
    %v486 = vsel %vm223, %v218, 0
    %v489 = vsel %vm223, %v219, 0
    %v492 = vsel %vm223, %v220, 0
    %494 = vmatprep.subr.mxu0 0.0
    %495 = vmatpush1.msra.mxu0 %v222
    %496 = vmatprep.subr.mxu0 0.0
    %497 = vmatpush1.msra.mxu0 0.0
    %498 = vmatprep.subr.mxu0 0.0
    %499 = vmatpush1.msra.mxu0 0.0
    %500 = vmatprep.subr.mxu0 0.0
    %501 = vmatpush1.msra.mxu0 0.0
    %502 = vmatprep.subr.mxu0 0.0
    %503 = vmatpush1.msra.mxu0 0.0
    %504 = vmatprep.subr.mxu0 0.0
    %505 = vmatpush1.msra.mxu0 0.0
    %506 = vmatprep.subr.mxu0 0.0
    %507 = vmatpush1.msra.mxu0 0.0
    %508 = vmatprep.subr.mxu0 0.0
    %509 = vmatpush1.msra.mxu0 0.0
    %510 = vmatprep.subr.mxu0 0.0
    %511 = vmatpush1.msra.mxu0 0.0
    %512 = vmatprep.subr.mxu0 0.0
    %513 = vmatpush1.msra.mxu0 0.0
    %514 = vmatprep.subr.mxu0 0.0
    %515 = vmatpush1.msra.mxu0 0.0
    %516 = vmatprep.subr.mxu0 0.0
    %517 = vmatpush1.msra.mxu0 0.0
    %518 = vmatprep.subr.mxu0 0.0
    %519 = vmatpush1.msra.mxu0 0.0
    %520 = vmatprep.subr.mxu0 0.0
    %521 = vmatpush1.msra.mxu0 0.0
    %522 = vmatprep.subr.mxu0 0.0
    %523 = vmatpush1.msra.mxu0 0.0
    %524 = vmatprep.subr.mxu0 0.0
    %525 = vmatpush1.msra.mxu0 0.0
    %526 = vmatprep.subr.mxu0 0.0
    %527 = vmatpush1.msra.mxu0 0.0
    %528 = vmatprep.subr.mxu0 0.0
    %529 = vmatpush1.msra.mxu0 0.0
    %530 = vmatprep.subr.mxu0 0.0
    %531 = vmatpush1.msra.mxu0 0.0
    %532 = vmatprep.subr.mxu0 0.0
    %533 = vmatpush1.msra.mxu0 0.0
    %534 = vmatprep.subr.mxu0 0.0
    %535 = vmatpush1.msra.mxu0 0.0
    %536 = vmatprep.subr.mxu0 0.0
    %537 = vmatpush1.msra.mxu0 0.0
    %538 = vmatprep.subr.mxu0 0.0
    %539 = vmatpush1.msra.mxu0 0.0
    %540 = vmatprep.subr.mxu0 0.0
    %541 = vmatpush1.msra.mxu0 0.0
    %542 = vmatprep.subr.mxu0 0.0
    %543 = vmatpush1.msra.mxu0 0.0
    %544 = vmatprep.subr.mxu0 0.0
    %545 = vmatpush1.msra.mxu0 0.0
    %546 = vmatprep.subr.mxu0 0.0
    %547 = vmatpush1.msra.mxu0 0.0
    %548 = vmatprep.subr.mxu0 0.0
    %549 = vmatpush1.msra.mxu0 0.0
    %550 = vmatprep.subr.mxu0 0.0
    %551 = vmatpush1.msra.mxu0 0.0
    %552 = vmatprep.subr.mxu0 0.0
    %553 = vmatpush1.msra.mxu0 0.0
    %554 = vmatprep.subr.mxu0 0.0
    %555 = vmatpush1.msra.mxu0 0.0
    %556 = vmatprep.subr.mxu0 0.0
    %557 = vmatpush1.msra.mxu0 0.0
    %558 = vmatprep.mubr.f32.mxu0 0.0
    %559 = vmatmul.mubr.f32.gmra.mrb[0].mxu0 %v225
    %v560 = vpop.f32.mrb[0].mxu0
    %v561 = vadd.f32 0.0, %v560
    %v562 = vpop.f32.mrb[0].mxu0
    %563 = vmatprep.mubr.f32.mxu0 0.0
    %564 = vmatmul.mubr.f32.gmra.mrb[0].mxu0 %v228
    %v565 = vpop.f32.mrb[0].mxu0
    %v566 = vadd.f32 0.0, %v565
    %v567 = vpop.f32.mrb[0].mxu0
    %568 = vmatprep.mubr.f32.mxu0 0.0
    %569 = vmatmul.mubr.f32.gmra.mrb[0].mxu0 %v231
    %v570 = vpop.f32.mrb[0].mxu0
    %v571 = vadd.f32 0.0, %v570
    %v572 = vpop.f32.mrb[0].mxu0
    %573 = vmatprep.mubr.f32.mxu0 0.0
    %574 = vmatmul.mubr.f32.gmra.mrb[0].mxu0 %v234
    %v575 = vpop.f32.mrb[0].mxu0
    %v576 = vadd.f32 0.0, %v575
    %v577 = vpop.f32.mrb[0].mxu0
    %578 = vmatprep.mubr.f32.mxu0 0.0
    %579 = vmatmul.mubr.f32.gmra.mrb[0].mxu0 %v237
    %v580 = vpop.f32.mrb[0].mxu0
    %v581 = vadd.f32 0.0, %v580
    %v582 = vpop.f32.mrb[0].mxu0
    %583 = vmatprep.mubr.f32.mxu0 0.0
    %584 = vmatmul.mubr.f32.gmra.mrb[0].mxu0 %v240
    %v585 = vpop.f32.mrb[0].mxu0
    %v586 = vadd.f32 0.0, %v585
    %v587 = vpop.f32.mrb[0].mxu0
    %588 = vmatprep.mubr.f32.mxu0 0.0
    %589 = vmatmul.mubr.f32.gmra.mrb[0].mxu0 %v243
    %v590 = vpop.f32.mrb[0].mxu0
    %v591 = vadd.f32 0.0, %v590
    %v592 = vpop.f32.mrb[0].mxu0
    %593 = vmatprep.mubr.f32.mxu0 0.0
    %594 = vmatmul.mubr.f32.gmra.mrb[0].mxu0 %v246
    %v595 = vpop.f32.mrb[0].mxu0
    %v596 = vadd.f32 0.0, %v595
    %v597 = vpop.f32.mrb[0].mxu0
    %598 = vmatprep.mubr.f32.mxu0 0.0
    %599 = vmatmul.mubr.f32.gmra.mrb[0].mxu0 %v249
    %v600 = vpop.f32.mrb[0].mxu0
    %v601 = vadd.f32 0.0, %v600
    %v602 = vpop.f32.mrb[0].mxu0
    %603 = vmatprep.mubr.f32.mxu0 0.0
    %604 = vmatmul.mubr.f32.gmra.mrb[0].mxu0 %v252
    %v605 = vpop.f32.mrb[0].mxu0
    %v606 = vadd.f32 0.0, %v605
    %v607 = vpop.f32.mrb[0].mxu0
    %608 = vmatprep.mubr.f32.mxu0 0.0
    %609 = vmatmul.mubr.f32.gmra.mrb[0].mxu0 %v255
    %v610 = vpop.f32.mrb[0].mxu0
    %v611 = vadd.f32 0.0, %v610
    %v612 = vpop.f32.mrb[0].mxu0
    %613 = vmatprep.mubr.f32.mxu0 0.0
    %614 = vmatmul.mubr.f32.gmra.mrb[0].mxu0 %v258
    %v615 = vpop.f32.mrb[0].mxu0
    %v616 = vadd.f32 0.0, %v615
    %v617 = vpop.f32.mrb[0].mxu0
    %618 = vmatprep.mubr.f32.mxu0 0.0
    %619 = vmatmul.mubr.f32.gmra.mrb[0].mxu0 %v261
    %v620 = vpop.f32.mrb[0].mxu0
    %v621 = vadd.f32 0.0, %v620
    %v622 = vpop.f32.mrb[0].mxu0
    %623 = vmatprep.mubr.f32.mxu0 0.0
    %624 = vmatmul.mubr.f32.gmra.mrb[0].mxu0 %v264
    %v625 = vpop.f32.mrb[0].mxu0
    %v626 = vadd.f32 0.0, %v625
    %v627 = vpop.f32.mrb[0].mxu0
    %628 = vmatprep.mubr.f32.mxu0 0.0
    %629 = vmatmul.mubr.f32.gmra.mrb[0].mxu0 %v267
    %v630 = vpop.f32.mrb[0].mxu0
    %v631 = vadd.f32 0.0, %v630
    %v632 = vpop.f32.mrb[0].mxu0
    %633 = vmatprep.mubr.f32.mxu0 0.0
    %634 = vmatmul.mubr.f32.gmra.mrb[0].mxu0 %v270
    %v635 = vpop.f32.mrb[0].mxu0
    %v636 = vadd.f32 0.0, %v635
    %v637 = vpop.f32.mrb[0].mxu0
    %638 = vmatprep.mubr.f32.mxu0 0.0
    %639 = vmatmul.mubr.f32.gmra.mrb[0].mxu0 %v273
    %v640 = vpop.f32.mrb[0].mxu0
    %v641 = vadd.f32 0.0, %v640
    %v642 = vpop.f32.mrb[0].mxu0
    %643 = vmatprep.mubr.f32.mxu0 0.0
    %644 = vmatmul.mubr.f32.gmra.mrb[0].mxu0 %v276
    %v645 = vpop.f32.mrb[0].mxu0
    %v646 = vadd.f32 0.0, %v645
    %v647 = vpop.f32.mrb[0].mxu0
    %648 = vmatprep.mubr.f32.mxu0 0.0
    %649 = vmatmul.mubr.f32.gmra.mrb[0].mxu0 %v279
    %v650 = vpop.f32.mrb[0].mxu0
    %v651 = vadd.f32 0.0, %v650
    %v652 = vpop.f32.mrb[0].mxu0
    %653 = vmatprep.mubr.f32.mxu0 0.0
    %654 = vmatmul.mubr.f32.gmra.mrb[0].mxu0 %v282
    %v655 = vpop.f32.mrb[0].mxu0
    %v656 = vadd.f32 0.0, %v655
    %v657 = vpop.f32.mrb[0].mxu0
    %658 = vmatprep.mubr.f32.mxu0 0.0
    %659 = vmatmul.mubr.f32.gmra.mrb[0].mxu0 %v285
    %v660 = vpop.f32.mrb[0].mxu0
    %v661 = vadd.f32 0.0, %v660
    %v662 = vpop.f32.mrb[0].mxu0
    %663 = vmatprep.mubr.f32.mxu0 0.0
    %664 = vmatmul.mubr.f32.gmra.mrb[0].mxu0 %v288
    %v665 = vpop.f32.mrb[0].mxu0
    %v666 = vadd.f32 0.0, %v665
    %v667 = vpop.f32.mrb[0].mxu0
    %668 = vmatprep.mubr.f32.mxu0 0.0
    %669 = vmatmul.mubr.f32.gmra.mrb[0].mxu0 %v291
    %v670 = vpop.f32.mrb[0].mxu0
    %v671 = vadd.f32 0.0, %v670
    %v672 = vpop.f32.mrb[0].mxu0
    %673 = vmatprep.mubr.f32.mxu0 0.0
    %674 = vmatmul.mubr.f32.gmra.mrb[0].mxu0 %v294
    %v675 = vpop.f32.mrb[0].mxu0
    %v676 = vadd.f32 0.0, %v675
    %v677 = vpop.f32.mrb[0].mxu0
    %678 = vmatprep.mubr.f32.mxu0 0.0
    %679 = vmatmul.mubr.f32.gmra.mrb[0].mxu0 %v297
    %v680 = vpop.f32.mrb[0].mxu0
    %v681 = vadd.f32 0.0, %v680
    %v682 = vpop.f32.mrb[0].mxu0
    %683 = vmatprep.mubr.f32.mxu0 0.0
    %684 = vmatmul.mubr.f32.gmra.mrb[0].mxu0 %v300
    %v685 = vpop.f32.mrb[0].mxu0
    %v686 = vadd.f32 0.0, %v685
    %v687 = vpop.f32.mrb[0].mxu0
    %688 = vmatprep.mubr.f32.mxu0 0.0
    %689 = vmatmul.mubr.f32.gmra.mrb[0].mxu0 %v303
    %v690 = vpop.f32.mrb[0].mxu0
    %v691 = vadd.f32 0.0, %v690
    %v692 = vpop.f32.mrb[0].mxu0
    %693 = vmatprep.mubr.f32.mxu0 0.0
    %694 = vmatmul.mubr.f32.gmra.mrb[0].mxu0 %v306
    %v695 = vpop.f32.mrb[0].mxu0
    %v696 = vadd.f32 0.0, %v695
    %v697 = vpop.f32.mrb[0].mxu0
    %698 = vmatprep.mubr.f32.mxu0 0.0
    %699 = vmatmul.mubr.f32.gmra.mrb[0].mxu0 %v309
    %v700 = vpop.f32.mrb[0].mxu0
    %v701 = vadd.f32 0.0, %v700
    %v702 = vpop.f32.mrb[0].mxu0
    %703 = vmatprep.mubr.f32.mxu0 0.0
    %704 = vmatmul.mubr.f32.gmra.mrb[0].mxu0 %v312
    %v705 = vpop.f32.mrb[0].mxu0
    %v706 = vadd.f32 0.0, %v705
    %v707 = vpop.f32.mrb[0].mxu0
    %708 = vmatprep.mubr.f32.mxu0 0.0
    %709 = vmatmul.mubr.f32.gmra.mrb[0].mxu0 %v315
    %v710 = vpop.f32.mrb[0].mxu0
    %v711 = vadd.f32 0.0, %v710
    %v712 = vpop.f32.mrb[0].mxu0
    %713 = vmatprep.mubr.f32.mxu0 0.0
    %714 = vmatmul.mubr.f32.gmra.mrb[0].mxu0 %v318
    %v715 = vpop.f32.mrb[0].mxu0
    %v716 = vadd.f32 0.0, %v715
    %v717 = vpop.f32.mrb[0].mxu0
    %718 = vmatprep.mubr.f32.mxu0 0.0
    %719 = vmatmul.mubr.f32.gmra.mrb[0].mxu0 %v321
    %v720 = vpop.f32.mrb[0].mxu0
    %v721 = vadd.f32 0.0, %v720
    %v722 = vpop.f32.mrb[0].mxu0
    %723 = vmatprep.mubr.f32.mxu0 0.0
    %724 = vmatmul.mubr.f32.gmra.mrb[0].mxu0 %v324
    %v725 = vpop.f32.mrb[0].mxu0
    %v726 = vadd.f32 0.0, %v725
    %v727 = vpop.f32.mrb[0].mxu0
    %728 = vmatprep.mubr.f32.mxu0 0.0
    %729 = vmatmul.mubr.f32.gmra.mrb[0].mxu0 %v327
    %v730 = vpop.f32.mrb[0].mxu0
    %v731 = vadd.f32 0.0, %v730
    %v732 = vpop.f32.mrb[0].mxu0
    %733 = vmatprep.mubr.f32.mxu0 0.0
    %734 = vmatmul.mubr.f32.gmra.mrb[0].mxu0 %v330
    %v735 = vpop.f32.mrb[0].mxu0
    %v736 = vadd.f32 0.0, %v735
    %v737 = vpop.f32.mrb[0].mxu0
    %738 = vmatprep.mubr.f32.mxu0 0.0
    %739 = vmatmul.mubr.f32.gmra.mrb[0].mxu0 %v333
    %v740 = vpop.f32.mrb[0].mxu0
    %v741 = vadd.f32 0.0, %v740
    %v742 = vpop.f32.mrb[0].mxu0
    %743 = vmatprep.mubr.f32.mxu0 0.0
    %744 = vmatmul.mubr.f32.gmra.mrb[0].mxu0 %v336
    %v745 = vpop.f32.mrb[0].mxu0
    %v746 = vadd.f32 0.0, %v745
    %v747 = vpop.f32.mrb[0].mxu0
    %748 = vmatprep.mubr.f32.mxu0 0.0
    %749 = vmatmul.mubr.f32.gmra.mrb[0].mxu0 %v339
    %v750 = vpop.f32.mrb[0].mxu0
    %v751 = vadd.f32 0.0, %v750
    %v752 = vpop.f32.mrb[0].mxu0
    %753 = vmatprep.mubr.f32.mxu0 0.0
    %754 = vmatmul.mubr.f32.gmra.mrb[0].mxu0 %v342
    %v755 = vpop.f32.mrb[0].mxu0
    %v756 = vadd.f32 0.0, %v755
    %v757 = vpop.f32.mrb[0].mxu0
    %758 = vmatprep.mubr.f32.mxu0 0.0
    %759 = vmatmul.mubr.f32.gmra.mrb[0].mxu0 %v345
    %v760 = vpop.f32.mrb[0].mxu0
    %v761 = vadd.f32 0.0, %v760
    %v762 = vpop.f32.mrb[0].mxu0
    %763 = vmatprep.mubr.f32.mxu0 0.0
    %764 = vmatmul.mubr.f32.gmra.mrb[0].mxu0 %v348
    %v765 = vpop.f32.mrb[0].mxu0
    %v766 = vadd.f32 0.0, %v765
    %v767 = vpop.f32.mrb[0].mxu0
    %768 = vmatprep.mubr.f32.mxu0 0.0
    %769 = vmatmul.mubr.f32.gmra.mrb[0].mxu0 %v351
    %v770 = vpop.f32.mrb[0].mxu0
    %v771 = vadd.f32 0.0, %v770
    %v772 = vpop.f32.mrb[0].mxu0
    %773 = vmatprep.mubr.f32.mxu0 0.0
    %774 = vmatmul.mubr.f32.gmra.mrb[0].mxu0 %v354
    %v775 = vpop.f32.mrb[0].mxu0
    %v776 = vadd.f32 0.0, %v775
    %v777 = vpop.f32.mrb[0].mxu0
    %778 = vmatprep.mubr.f32.mxu0 0.0
    %779 = vmatmul.mubr.f32.gmra.mrb[0].mxu0 %v357
    %v780 = vpop.f32.mrb[0].mxu0
    %v781 = vadd.f32 0.0, %v780
    %v782 = vpop.f32.mrb[0].mxu0
    %783 = vmatprep.mubr.f32.mxu0 0.0
    %784 = vmatmul.mubr.f32.gmra.mrb[0].mxu0 %v360
    %v785 = vpop.f32.mrb[0].mxu0
    %v786 = vadd.f32 0.0, %v785
    %v787 = vpop.f32.mrb[0].mxu0
    %788 = vmatprep.mubr.f32.mxu0 0.0
    %789 = vmatmul.mubr.f32.gmra.mrb[0].mxu0 %v363
    %v790 = vpop.f32.mrb[0].mxu0
    %v791 = vadd.f32 0.0, %v790
    %v792 = vpop.f32.mrb[0].mxu0
    %793 = vmatprep.mubr.f32.mxu0 0.0
    %794 = vmatmul.mubr.f32.gmra.mrb[0].mxu0 %v366
    %v795 = vpop.f32.mrb[0].mxu0
    %v796 = vadd.f32 0.0, %v795
    %v797 = vpop.f32.mrb[0].mxu0
    %798 = vmatprep.mubr.f32.mxu0 0.0
    %799 = vmatmul.mubr.f32.gmra.mrb[0].mxu0 %v369
    %v800 = vpop.f32.mrb[0].mxu0
    %v801 = vadd.f32 0.0, %v800
    %v802 = vpop.f32.mrb[0].mxu0
    %803 = vmatprep.mubr.f32.mxu0 0.0
    %804 = vmatmul.mubr.f32.gmra.mrb[0].mxu0 %v372
    %v805 = vpop.f32.mrb[0].mxu0
    %v806 = vadd.f32 0.0, %v805
    %v807 = vpop.f32.mrb[0].mxu0
    %808 = vmatprep.mubr.f32.mxu0 0.0
    %809 = vmatmul.mubr.f32.gmra.mrb[0].mxu0 %v375
    %v810 = vpop.f32.mrb[0].mxu0
    %v811 = vadd.f32 0.0, %v810
    %v812 = vpop.f32.mrb[0].mxu0
    %813 = vmatprep.mubr.f32.mxu0 0.0
    %814 = vmatmul.mubr.f32.gmra.mrb[0].mxu0 %v378
    %v815 = vpop.f32.mrb[0].mxu0
    %v816 = vadd.f32 0.0, %v815
    %v817 = vpop.f32.mrb[0].mxu0
    %818 = vmatprep.mubr.f32.mxu0 0.0
    %819 = vmatmul.mubr.f32.gmra.mrb[0].mxu0 %v381
    %v820 = vpop.f32.mrb[0].mxu0
    %v821 = vadd.f32 0.0, %v820
    %v822 = vpop.f32.mrb[0].mxu0
    %823 = vmatprep.mubr.f32.mxu0 0.0
    %824 = vmatmul.mubr.f32.gmra.mrb[0].mxu0 %v384
    %v825 = vpop.f32.mrb[0].mxu0
    %v826 = vadd.f32 0.0, %v825
    %v827 = vpop.f32.mrb[0].mxu0
    %828 = vmatprep.mubr.f32.mxu0 0.0
    %829 = vmatmul.mubr.f32.gmra.mrb[0].mxu0 %v387
    %v830 = vpop.f32.mrb[0].mxu0
    %v831 = vadd.f32 0.0, %v830
    %v832 = vpop.f32.mrb[0].mxu0
    %833 = vmatprep.mubr.f32.mxu0 0.0
    %834 = vmatmul.mubr.f32.gmra.mrb[0].mxu0 %v390
    %v835 = vpop.f32.mrb[0].mxu0
    %v836 = vadd.f32 0.0, %v835
    %v837 = vpop.f32.mrb[0].mxu0
    %838 = vmatprep.mubr.f32.mxu0 0.0
    %839 = vmatmul.mubr.f32.gmra.mrb[0].mxu0 %v393
    %v840 = vpop.f32.mrb[0].mxu0
    %v841 = vadd.f32 0.0, %v840
    %v842 = vpop.f32.mrb[0].mxu0
    %843 = vmatprep.mubr.f32.mxu0 0.0
    %844 = vmatmul.mubr.f32.gmra.mrb[0].mxu0 %v396
    %v845 = vpop.f32.mrb[0].mxu0
    %v846 = vadd.f32 0.0, %v845
    %v847 = vpop.f32.mrb[0].mxu0
    %848 = vmatprep.mubr.f32.mxu0 0.0
    %849 = vmatmul.mubr.f32.gmra.mrb[0].mxu0 %v399
    %v850 = vpop.f32.mrb[0].mxu0
    %v851 = vadd.f32 0.0, %v850
    %v852 = vpop.f32.mrb[0].mxu0
    %853 = vmatprep.mubr.f32.mxu0 0.0
    %854 = vmatmul.mubr.f32.gmra.mrb[0].mxu0 %v402
    %v855 = vpop.f32.mrb[0].mxu0
    %v856 = vadd.f32 0.0, %v855
    %v857 = vpop.f32.mrb[0].mxu0
    %858 = vmatprep.mubr.f32.mxu0 0.0
    %859 = vmatmul.mubr.f32.gmra.mrb[0].mxu0 %v405
    %v860 = vpop.f32.mrb[0].mxu0
    %v861 = vadd.f32 0.0, %v860
    %v862 = vpop.f32.mrb[0].mxu0
    %863 = vmatprep.mubr.f32.mxu0 0.0
    %864 = vmatmul.mubr.f32.gmra.mrb[0].mxu0 %v408
    %v865 = vpop.f32.mrb[0].mxu0
    %v866 = vadd.f32 0.0, %v865
    %v867 = vpop.f32.mrb[0].mxu0
    %868 = vmatprep.mubr.f32.mxu0 0.0
    %869 = vmatmul.mubr.f32.gmra.mrb[0].mxu0 %v411
    %v870 = vpop.f32.mrb[0].mxu0
    %v871 = vadd.f32 0.0, %v870
    %v872 = vpop.f32.mrb[0].mxu0
    %873 = vmatprep.mubr.f32.mxu0 0.0
    %874 = vmatmul.mubr.f32.gmra.mrb[0].mxu0 %v414
    %v875 = vpop.f32.mrb[0].mxu0
    %v876 = vadd.f32 0.0, %v875
    %v877 = vpop.f32.mrb[0].mxu0
    %878 = vmatprep.mubr.f32.mxu0 0.0
    %879 = vmatmul.mubr.f32.gmra.mrb[0].mxu0 %v417
    %v880 = vpop.f32.mrb[0].mxu0
    %v881 = vadd.f32 0.0, %v880
    %v882 = vpop.f32.mrb[0].mxu0
    %883 = vmatprep.mubr.f32.mxu0 0.0
    %884 = vmatmul.mubr.f32.gmra.mrb[0].mxu0 %v420
    %v885 = vpop.f32.mrb[0].mxu0
    %v886 = vadd.f32 0.0, %v885
    %v887 = vpop.f32.mrb[0].mxu0
    %888 = vmatprep.mubr.f32.mxu0 0.0
    %889 = vmatmul.mubr.f32.gmra.mrb[0].mxu0 %v423
    %v890 = vpop.f32.mrb[0].mxu0
    %v891 = vadd.f32 0.0, %v890
    %v892 = vpop.f32.mrb[0].mxu0
    %893 = vmatprep.mubr.f32.mxu0 0.0
    %894 = vmatmul.mubr.f32.gmra.mrb[0].mxu0 %v426
    %v895 = vpop.f32.mrb[0].mxu0
    %v896 = vadd.f32 0.0, %v895
    %v897 = vpop.f32.mrb[0].mxu0
    %898 = vmatprep.mubr.f32.mxu0 0.0
    %899 = vmatmul.mubr.f32.gmra.mrb[0].mxu0 %v429
    %v900 = vpop.f32.mrb[0].mxu0
    %v901 = vadd.f32 0.0, %v900
    %v902 = vpop.f32.mrb[0].mxu0
    %903 = vmatprep.mubr.f32.mxu0 0.0
    %904 = vmatmul.mubr.f32.gmra.mrb[0].mxu0 %v432
    %v905 = vpop.f32.mrb[0].mxu0
    %v906 = vadd.f32 0.0, %v905
    %v907 = vpop.f32.mrb[0].mxu0
    %908 = vmatprep.mubr.f32.mxu0 0.0
    %909 = vmatmul.mubr.f32.gmra.mrb[0].mxu0 %v435
    %v910 = vpop.f32.mrb[0].mxu0
    %v911 = vadd.f32 0.0, %v910
    %v912 = vpop.f32.mrb[0].mxu0
    %913 = vmatprep.mubr.f32.mxu0 0.0
    %914 = vmatmul.mubr.f32.gmra.mrb[0].mxu0 %v438
    %v915 = vpop.f32.mrb[0].mxu0
    %v916 = vadd.f32 0.0, %v915
    %v917 = vpop.f32.mrb[0].mxu0
    %918 = vmatprep.mubr.f32.mxu0 0.0
    %919 = vmatmul.mubr.f32.gmra.mrb[0].mxu0 %v441
    %v920 = vpop.f32.mrb[0].mxu0
    %v921 = vadd.f32 0.0, %v920
    %v922 = vpop.f32.mrb[0].mxu0
    %923 = vmatprep.mubr.f32.mxu0 0.0
    %924 = vmatmul.mubr.f32.gmra.mrb[0].mxu0 %v444
    %v925 = vpop.f32.mrb[0].mxu0
    %v926 = vadd.f32 0.0, %v925
    %v927 = vpop.f32.mrb[0].mxu0
    %928 = vmatprep.mubr.f32.mxu0 0.0
    %929 = vmatmul.mubr.f32.gmra.mrb[0].mxu0 %v447
    %v930 = vpop.f32.mrb[0].mxu0
    %v931 = vadd.f32 0.0, %v930
    %v932 = vpop.f32.mrb[0].mxu0
    %933 = vmatprep.mubr.f32.mxu0 0.0
    %934 = vmatmul.mubr.f32.gmra.mrb[0].mxu0 %v450
    %v935 = vpop.f32.mrb[0].mxu0
    %v936 = vadd.f32 0.0, %v935
    %v937 = vpop.f32.mrb[0].mxu0
    %938 = vmatprep.mubr.f32.mxu0 0.0
    %939 = vmatmul.mubr.f32.gmra.mrb[0].mxu0 %v453
    %v940 = vpop.f32.mrb[0].mxu0
    %v941 = vadd.f32 0.0, %v940
    %v942 = vpop.f32.mrb[0].mxu0
    %943 = vmatprep.mubr.f32.mxu0 0.0
    %944 = vmatmul.mubr.f32.gmra.mrb[0].mxu0 %v456
    %v945 = vpop.f32.mrb[0].mxu0
    %v946 = vadd.f32 0.0, %v945
    %v947 = vpop.f32.mrb[0].mxu0
    %948 = vmatprep.mubr.f32.mxu0 0.0
    %949 = vmatmul.mubr.f32.gmra.mrb[0].mxu0 %v459
    %v950 = vpop.f32.mrb[0].mxu0
    %v951 = vadd.f32 0.0, %v950
    %v952 = vpop.f32.mrb[0].mxu0
    %953 = vmatprep.mubr.f32.mxu0 0.0
    %954 = vmatmul.mubr.f32.gmra.mrb[0].mxu0 %v462
    %v955 = vpop.f32.mrb[0].mxu0
    %v956 = vadd.f32 0.0, %v955
    %v957 = vpop.f32.mrb[0].mxu0
    %958 = vmatprep.mubr.f32.mxu0 0.0
    %959 = vmatmul.mubr.f32.gmra.mrb[0].mxu0 %v465
    %v960 = vpop.f32.mrb[0].mxu0
    %v961 = vadd.f32 0.0, %v960
    %v962 = vpop.f32.mrb[0].mxu0
    %963 = vmatprep.mubr.f32.mxu0 0.0
    %964 = vmatmul.mubr.f32.gmra.mrb[0].mxu0 %v468
    %v965 = vpop.f32.mrb[0].mxu0
    %v966 = vadd.f32 0.0, %v965
    %v967 = vpop.f32.mrb[0].mxu0
    %968 = vmatprep.mubr.f32.mxu0 0.0
    %969 = vmatmul.mubr.f32.gmra.mrb[0].mxu0 %v471
    %v970 = vpop.f32.mrb[0].mxu0
    %v971 = vadd.f32 0.0, %v970
    %v972 = vpop.f32.mrb[0].mxu0
    %973 = vmatprep.mubr.f32.mxu0 0.0
    %974 = vmatmul.mubr.f32.gmra.mrb[0].mxu0 %v474
    %v975 = vpop.f32.mrb[0].mxu0
    %v976 = vadd.f32 0.0, %v975
    %v977 = vpop.f32.mrb[0].mxu0
    %978 = vmatprep.mubr.f32.mxu0 0.0
    %979 = vmatmul.mubr.f32.gmra.mrb[0].mxu0 %v477
    %v980 = vpop.f32.mrb[0].mxu0
    %v981 = vadd.f32 0.0, %v980
    %v982 = vpop.f32.mrb[0].mxu0
    %983 = vmatprep.mubr.f32.mxu0 0.0
    %984 = vmatmul.mubr.f32.gmra.mrb[0].mxu0 %v480
    %v985 = vpop.f32.mrb[0].mxu0
    %v986 = vadd.f32 0.0, %v985
    %v987 = vpop.f32.mrb[0].mxu0
    %988 = vmatprep.mubr.f32.mxu0 0.0
    %989 = vmatmul.mubr.f32.gmra.mrb[0].mxu0 %v483
    %v990 = vpop.f32.mrb[0].mxu0
    %v991 = vadd.f32 0.0, %v990
    %v992 = vpop.f32.mrb[0].mxu0
    %993 = vmatprep.mubr.f32.mxu0 0.0
    %994 = vmatmul.mubr.f32.gmra.mrb[0].mxu0 %v486
    %v995 = vpop.f32.mrb[0].mxu0
    %v996 = vadd.f32 0.0, %v995
    %v997 = vpop.f32.mrb[0].mxu0
    %998 = vmatprep.mubr.f32.mxu0 0.0
    %999 = vmatmul.mubr.f32.gmra.mrb[0].mxu0 %v489
    %v1000 = vpop.f32.mrb[0].mxu0
    %v1001 = vadd.f32 0.0, %v1000
    %v1002 = vpop.f32.mrb[0].mxu0
    %1003 = vmatprep.mubr.f32.mxu0 0.0
    %1004 = vmatmul.mubr.f32.gmra.mrb[0].mxu0 %v492
    %v1005 = vpop.f32.mrb[0].mxu0
    %v1006 = vadd.f32 0.0, %v1005
    %v1007 = vpop.f32.mrb[0].mxu0
    %1008 = vdwg.mxu0
    %v1010 = vsel %vm223, %v40, 0
    %v1013 = vsel %vm223, %v41, 0
    %v1016 = vsel %vm223, %v42, 0
    %v1019 = vsel %vm223, %v43, 0
    %v1022 = vsel %vm223, %v44, 0
    %v1025 = vsel %vm223, %v45, 0
    %v1028 = vsel %vm223, %v46, 0
    %v1031 = vsel %vm223, %v47, 0
    %v1034 = vsel %vm223, %v48, 0
    %v1037 = vsel %vm223, %v49, 0
    %v1040 = vsel %vm223, %v50, 0
    %v1043 = vsel %vm223, %v51, 0
    %v1046 = vsel %vm223, %v52, 0
    %v1049 = vsel %vm223, %v53, 0
    %v1052 = vsel %vm223, %v54, 0
    %v1055 = vsel %vm223, %v55, 0
    %v1058 = vsel %vm223, %v56, 0
    %v1061 = vsel %vm223, %v57, 0
    %v1064 = vsel %vm223, %v58, 0
    %v1067 = vsel %vm223, %v59, 0
    %v1070 = vsel %vm223, %v60, 0
    %v1073 = vsel %vm223, %v61, 0
    %v1076 = vsel %vm223, %v62, 0
    %v1079 = vsel %vm223, %v63, 0
    %v1082 = vsel %vm223, %v64, 0
    %v1085 = vsel %vm223, %v65, 0
    %v1088 = vsel %vm223, %v66, 0
    %v1091 = vsel %vm223, %v67, 0
    %v1094 = vsel %vm223, %v68, 0
    %v1097 = vsel %vm223, %v69, 0
    %v1100 = vsel %vm223, %v70, 0
    %v1103 = vsel %vm223, %v71, 0
    %v1106 = vsel %vm223, %v72, 0
    %v1109 = vsel %vm223, %v73, 0
    %v1112 = vsel %vm223, %v74, 0
    %v1115 = vsel %vm223, %v75, 0
    %v1118 = vsel %vm223, %v76, 0
    %v1121 = vsel %vm223, %v77, 0
    %v1124 = vsel %vm223, %v78, 0
    %v1127 = vsel %vm223, %v79, 0
    %v1130 = vsel %vm223, %v80, 0
    %v1133 = vsel %vm223, %v81, 0
    %v1136 = vsel %vm223, %v82, 0
    %v1139 = vsel %vm223, %v83, 0
    %v1142 = vsel %vm223, %v84, 0
    %v1145 = vsel %vm223, %v85, 0
    %v1148 = vsel %vm223, %v86, 0
    %v1151 = vsel %vm223, %v87, 0
    %v1154 = vsel %vm223, %v88, 0
    %v1157 = vsel %vm223, %v89, 0
    %v1160 = vsel %vm223, %v90, 0
    %v1163 = vsel %vm223, %v91, 0
    %v1166 = vsel %vm223, %v92, 0
    %v1169 = vsel %vm223, %v93, 0
    %v1172 = vsel %vm223, %v94, 0
    %v1175 = vsel %vm223, %v95, 0
    %v1178 = vsel %vm223, %v96, 0
    %v1181 = vsel %vm223, %v97, 0
    %v1184 = vsel %vm223, %v98, 0
    %v1187 = vsel %vm223, %v99, 0
    %v1190 = vsel %vm223, %v100, 0
    %v1193 = vsel %vm223, %v101, 0
    %v1196 = vsel %vm223, %v102, 0
    %v1199 = vsel %vm223, %v103, 0
    %v1202 = vsel %vm223, %v104, 0
    %v1205 = vsel %vm223, %v105, 0
    %v1208 = vsel %vm223, %v106, 0
    %v1211 = vsel %vm223, %v107, 0
    %v1214 = vsel %vm223, %v108, 0
    %v1217 = vsel %vm223, %v109, 0
    %v1220 = vsel %vm223, %v110, 0
    %v1223 = vsel %vm223, %v111, 0
    %v1226 = vsel %vm223, %v112, 0
    %v1229 = vsel %vm223, %v113, 0
    %v1232 = vsel %vm223, %v114, 0
    %v1235 = vsel %vm223, %v115, 0
    %v1238 = vsel %vm223, %v116, 0
    %v1241 = vsel %vm223, %v117, 0
    %v1244 = vsel %vm223, %v118, 0
    %v1247 = vsel %vm223, %v119, 0
    %v1250 = vsel %vm223, %v120, 0
    %v1253 = vsel %vm223, %v121, 0
    %v1256 = vsel %vm223, %v122, 0
    %v1259 = vsel %vm223, %v123, 0
    %v1262 = vsel %vm223, %v124, 0
    %v1265 = vsel %vm223, %v125, 0
    %v1268 = vsel %vm223, %v126, 0
    %v1271 = vsel %vm223, %v127, 0
    %v1274 = vsel %vm223, %v128, 0
    %v1277 = vsel %vm223, %v129, 0
    %1279 = vmatprep.subr.mxu0 0.0
    %1280 = vmatpush1.msra.mxu0 %v130
    %1281 = vmatprep.subr.mxu0 0.0
    %1282 = vmatpush1.msra.mxu0 0.0
    %1283 = vmatprep.subr.mxu0 0.0
    %1284 = vmatpush1.msra.mxu0 0.0
    %1285 = vmatprep.subr.mxu0 0.0
    %1286 = vmatpush1.msra.mxu0 0.0
    %1287 = vmatprep.subr.mxu0 0.0
    %1288 = vmatpush1.msra.mxu0 0.0
    %1289 = vmatprep.subr.mxu0 0.0
    %1290 = vmatpush1.msra.mxu0 0.0
    %1291 = vmatprep.subr.mxu0 0.0
    %1292 = vmatpush1.msra.mxu0 0.0
    %1293 = vmatprep.subr.mxu0 0.0
    %1294 = vmatpush1.msra.mxu0 0.0
    %1295 = vmatprep.subr.mxu0 0.0
    %1296 = vmatpush1.msra.mxu0 0.0
    %1297 = vmatprep.subr.mxu0 0.0
    %1298 = vmatpush1.msra.mxu0 0.0
    %1299 = vmatprep.subr.mxu0 0.0
    %1300 = vmatpush1.msra.mxu0 0.0
    %1301 = vmatprep.subr.mxu0 0.0
    %1302 = vmatpush1.msra.mxu0 0.0
    %1303 = vmatprep.subr.mxu0 0.0
    %1304 = vmatpush1.msra.mxu0 0.0
    %1305 = vmatprep.subr.mxu0 0.0
    %1306 = vmatpush1.msra.mxu0 0.0
    %1307 = vmatprep.subr.mxu0 0.0
    %1308 = vmatpush1.msra.mxu0 0.0
    %1309 = vmatprep.subr.mxu0 0.0
    %1310 = vmatpush1.msra.mxu0 0.0
    %1311 = vmatprep.subr.mxu0 0.0
    %1312 = vmatpush1.msra.mxu0 0.0
    %1313 = vmatprep.subr.mxu0 0.0
    %1314 = vmatpush1.msra.mxu0 0.0
    %1315 = vmatprep.subr.mxu0 0.0
    %1316 = vmatpush1.msra.mxu0 0.0
    %1317 = vmatprep.subr.mxu0 0.0
    %1318 = vmatpush1.msra.mxu0 0.0
    %1319 = vmatprep.subr.mxu0 0.0
    %1320 = vmatpush1.msra.mxu0 0.0
    %1321 = vmatprep.subr.mxu0 0.0
    %1322 = vmatpush1.msra.mxu0 0.0
    %1323 = vmatprep.subr.mxu0 0.0
    %1324 = vmatpush1.msra.mxu0 0.0
    %1325 = vmatprep.subr.mxu0 0.0
    %1326 = vmatpush1.msra.mxu0 0.0
    %1327 = vmatprep.subr.mxu0 0.0
    %1328 = vmatpush1.msra.mxu0 0.0
    %1329 = vmatprep.subr.mxu0 0.0
    %1330 = vmatpush1.msra.mxu0 0.0
    %1331 = vmatprep.subr.mxu0 0.0
    %1332 = vmatpush1.msra.mxu0 0.0
    %1333 = vmatprep.subr.mxu0 0.0
    %1334 = vmatpush1.msra.mxu0 0.0
    %1335 = vmatprep.subr.mxu0 0.0
    %1336 = vmatpush1.msra.mxu0 0.0
    %1337 = vmatprep.subr.mxu0 0.0
    %1338 = vmatpush1.msra.mxu0 0.0
    %1339 = vmatprep.subr.mxu0 0.0
    %1340 = vmatpush1.msra.mxu0 0.0
    %1341 = vmatprep.subr.mxu0 0.0
    %1342 = vmatpush1.msra.mxu0 0.0
    %1343 = vmatprep.mubr.f32.mxu0 0.0
    %1344 = vmatmul.mubr.f32.gmra.mrb[0].mxu0 %v1010
    %v1345 = vpop.f32.mrb[0].mxu0
    %v1346 = vadd.f32 %v561, %v1345
    %v1347 = vpop.f32.mrb[0].mxu0
    %1348 = vmatprep.mubr.f32.mxu0 0.0
    %1349 = vmatmul.mubr.f32.gmra.mrb[0].mxu0 %v1013
    %v1350 = vpop.f32.mrb[0].mxu0
    %v1351 = vadd.f32 %v566, %v1350
    %v1352 = vpop.f32.mrb[0].mxu0
    %1353 = vmatprep.mubr.f32.mxu0 0.0
    %1354 = vmatmul.mubr.f32.gmra.mrb[0].mxu0 %v1016
    %v1355 = vpop.f32.mrb[0].mxu0
    %v1356 = vadd.f32 %v571, %v1355
    %v1357 = vpop.f32.mrb[0].mxu0
    %1358 = vmatprep.mubr.f32.mxu0 0.0
    %1359 = vmatmul.mubr.f32.gmra.mrb[0].mxu0 %v1019
    %v1360 = vpop.f32.mrb[0].mxu0
    %v1361 = vadd.f32 %v576, %v1360
    %v1362 = vpop.f32.mrb[0].mxu0
    %1363 = vmatprep.mubr.f32.mxu0 0.0
    %1364 = vmatmul.mubr.f32.gmra.mrb[0].mxu0 %v1022
    %v1365 = vpop.f32.mrb[0].mxu0
    %v1366 = vadd.f32 %v581, %v1365
    %v1367 = vpop.f32.mrb[0].mxu0
    %1368 = vmatprep.mubr.f32.mxu0 0.0
    %1369 = vmatmul.mubr.f32.gmra.mrb[0].mxu0 %v1025
    %v1370 = vpop.f32.mrb[0].mxu0
    %v1371 = vadd.f32 %v586, %v1370
    %v1372 = vpop.f32.mrb[0].mxu0
    %1373 = vmatprep.mubr.f32.mxu0 0.0
    %1374 = vmatmul.mubr.f32.gmra.mrb[0].mxu0 %v1028
    %v1375 = vpop.f32.mrb[0].mxu0
    %v1376 = vadd.f32 %v591, %v1375
    %v1377 = vpop.f32.mrb[0].mxu0
    %1378 = vmatprep.mubr.f32.mxu0 0.0
    %1379 = vmatmul.mubr.f32.gmra.mrb[0].mxu0 %v1031
    %v1380 = vpop.f32.mrb[0].mxu0
    %v1381 = vadd.f32 %v596, %v1380
    %v1382 = vpop.f32.mrb[0].mxu0
    %1383 = vmatprep.mubr.f32.mxu0 0.0
    %1384 = vmatmul.mubr.f32.gmra.mrb[0].mxu0 %v1034
    %v1385 = vpop.f32.mrb[0].mxu0
    %v1386 = vadd.f32 %v601, %v1385
    %v1387 = vpop.f32.mrb[0].mxu0
    %1388 = vmatprep.mubr.f32.mxu0 0.0
    %1389 = vmatmul.mubr.f32.gmra.mrb[0].mxu0 %v1037
    %v1390 = vpop.f32.mrb[0].mxu0
    %v1391 = vadd.f32 %v606, %v1390
    %v1392 = vpop.f32.mrb[0].mxu0
    %1393 = vmatprep.mubr.f32.mxu0 0.0
    %1394 = vmatmul.mubr.f32.gmra.mrb[0].mxu0 %v1040
    %v1395 = vpop.f32.mrb[0].mxu0
    %v1396 = vadd.f32 %v611, %v1395
    %v1397 = vpop.f32.mrb[0].mxu0
    %1398 = vmatprep.mubr.f32.mxu0 0.0
    %1399 = vmatmul.mubr.f32.gmra.mrb[0].mxu0 %v1043
    %v1400 = vpop.f32.mrb[0].mxu0
    %v1401 = vadd.f32 %v616, %v1400
    %v1402 = vpop.f32.mrb[0].mxu0
    %1403 = vmatprep.mubr.f32.mxu0 0.0
    %1404 = vmatmul.mubr.f32.gmra.mrb[0].mxu0 %v1046
    %v1405 = vpop.f32.mrb[0].mxu0
    %v1406 = vadd.f32 %v621, %v1405
    %v1407 = vpop.f32.mrb[0].mxu0
    %1408 = vmatprep.mubr.f32.mxu0 0.0
    %1409 = vmatmul.mubr.f32.gmra.mrb[0].mxu0 %v1049
    %v1410 = vpop.f32.mrb[0].mxu0
    %v1411 = vadd.f32 %v626, %v1410
    %v1412 = vpop.f32.mrb[0].mxu0
    %1413 = vmatprep.mubr.f32.mxu0 0.0
    %1414 = vmatmul.mubr.f32.gmra.mrb[0].mxu0 %v1052
    %v1415 = vpop.f32.mrb[0].mxu0
    %v1416 = vadd.f32 %v631, %v1415
    %v1417 = vpop.f32.mrb[0].mxu0
    %1418 = vmatprep.mubr.f32.mxu0 0.0
    %1419 = vmatmul.mubr.f32.gmra.mrb[0].mxu0 %v1055
    %v1420 = vpop.f32.mrb[0].mxu0
    %v1421 = vadd.f32 %v636, %v1420
    %v1422 = vpop.f32.mrb[0].mxu0
    %1423 = vmatprep.mubr.f32.mxu0 0.0
    %1424 = vmatmul.mubr.f32.gmra.mrb[0].mxu0 %v1058
    %v1425 = vpop.f32.mrb[0].mxu0
    %v1426 = vadd.f32 %v641, %v1425
    %v1427 = vpop.f32.mrb[0].mxu0
    %1428 = vmatprep.mubr.f32.mxu0 0.0
    %1429 = vmatmul.mubr.f32.gmra.mrb[0].mxu0 %v1061
    %v1430 = vpop.f32.mrb[0].mxu0
    %v1431 = vadd.f32 %v646, %v1430
    %v1432 = vpop.f32.mrb[0].mxu0
    %1433 = vmatprep.mubr.f32.mxu0 0.0
    %1434 = vmatmul.mubr.f32.gmra.mrb[0].mxu0 %v1064
    %v1435 = vpop.f32.mrb[0].mxu0
    %v1436 = vadd.f32 %v651, %v1435
    %v1437 = vpop.f32.mrb[0].mxu0
    %1438 = vmatprep.mubr.f32.mxu0 0.0
    %1439 = vmatmul.mubr.f32.gmra.mrb[0].mxu0 %v1067
    %v1440 = vpop.f32.mrb[0].mxu0
    %v1441 = vadd.f32 %v656, %v1440
    %v1442 = vpop.f32.mrb[0].mxu0
    %1443 = vmatprep.mubr.f32.mxu0 0.0
    %1444 = vmatmul.mubr.f32.gmra.mrb[0].mxu0 %v1070
    %v1445 = vpop.f32.mrb[0].mxu0
    %v1446 = vadd.f32 %v661, %v1445
    %v1447 = vpop.f32.mrb[0].mxu0
    %1448 = vmatprep.mubr.f32.mxu0 0.0
    %1449 = vmatmul.mubr.f32.gmra.mrb[0].mxu0 %v1073
    %v1450 = vpop.f32.mrb[0].mxu0
    %v1451 = vadd.f32 %v666, %v1450
    %v1452 = vpop.f32.mrb[0].mxu0
    %1453 = vmatprep.mubr.f32.mxu0 0.0
    %1454 = vmatmul.mubr.f32.gmra.mrb[0].mxu0 %v1076
    %v1455 = vpop.f32.mrb[0].mxu0
    %v1456 = vadd.f32 %v671, %v1455
    %v1457 = vpop.f32.mrb[0].mxu0
    %1458 = vmatprep.mubr.f32.mxu0 0.0
    %1459 = vmatmul.mubr.f32.gmra.mrb[0].mxu0 %v1079
    %v1460 = vpop.f32.mrb[0].mxu0
    %v1461 = vadd.f32 %v676, %v1460
    %v1462 = vpop.f32.mrb[0].mxu0
    %1463 = vmatprep.mubr.f32.mxu0 0.0
    %1464 = vmatmul.mubr.f32.gmra.mrb[0].mxu0 %v1082
    %v1465 = vpop.f32.mrb[0].mxu0
    %v1466 = vadd.f32 %v681, %v1465
    %v1467 = vpop.f32.mrb[0].mxu0
    %1468 = vmatprep.mubr.f32.mxu0 0.0
    %1469 = vmatmul.mubr.f32.gmra.mrb[0].mxu0 %v1085
    %v1470 = vpop.f32.mrb[0].mxu0
    %v1471 = vadd.f32 %v686, %v1470
    %v1472 = vpop.f32.mrb[0].mxu0
    %1473 = vmatprep.mubr.f32.mxu0 0.0
    %1474 = vmatmul.mubr.f32.gmra.mrb[0].mxu0 %v1088
    %v1475 = vpop.f32.mrb[0].mxu0
    %v1476 = vadd.f32 %v691, %v1475
    %v1477 = vpop.f32.mrb[0].mxu0
    %1478 = vmatprep.mubr.f32.mxu0 0.0
    %1479 = vmatmul.mubr.f32.gmra.mrb[0].mxu0 %v1091
    %v1480 = vpop.f32.mrb[0].mxu0
    %v1481 = vadd.f32 %v696, %v1480
    %v1482 = vpop.f32.mrb[0].mxu0
    %1483 = vmatprep.mubr.f32.mxu0 0.0
    %1484 = vmatmul.mubr.f32.gmra.mrb[0].mxu0 %v1094
    %v1485 = vpop.f32.mrb[0].mxu0
    %v1486 = vadd.f32 %v701, %v1485
    %v1487 = vpop.f32.mrb[0].mxu0
    %1488 = vmatprep.mubr.f32.mxu0 0.0
    %1489 = vmatmul.mubr.f32.gmra.mrb[0].mxu0 %v1097
    %v1490 = vpop.f32.mrb[0].mxu0
    %v1491 = vadd.f32 %v706, %v1490
    %v1492 = vpop.f32.mrb[0].mxu0
    %1493 = vmatprep.mubr.f32.mxu0 0.0
    %1494 = vmatmul.mubr.f32.gmra.mrb[0].mxu0 %v1100
    %v1495 = vpop.f32.mrb[0].mxu0
    %v1496 = vadd.f32 %v711, %v1495
    %v1497 = vpop.f32.mrb[0].mxu0
    %1498 = vmatprep.mubr.f32.mxu0 0.0
    %1499 = vmatmul.mubr.f32.gmra.mrb[0].mxu0 %v1103
    %v1500 = vpop.f32.mrb[0].mxu0
    %v1501 = vadd.f32 %v716, %v1500
    %v1502 = vpop.f32.mrb[0].mxu0
    %1503 = vmatprep.mubr.f32.mxu0 0.0
    %1504 = vmatmul.mubr.f32.gmra.mrb[0].mxu0 %v1106
    %v1505 = vpop.f32.mrb[0].mxu0
    %v1506 = vadd.f32 %v721, %v1505
    %v1507 = vpop.f32.mrb[0].mxu0
    %1508 = vmatprep.mubr.f32.mxu0 0.0
    %1509 = vmatmul.mubr.f32.gmra.mrb[0].mxu0 %v1109
    %v1510 = vpop.f32.mrb[0].mxu0
    %v1511 = vadd.f32 %v726, %v1510
    %v1512 = vpop.f32.mrb[0].mxu0
    %1513 = vmatprep.mubr.f32.mxu0 0.0
    %1514 = vmatmul.mubr.f32.gmra.mrb[0].mxu0 %v1112
    %v1515 = vpop.f32.mrb[0].mxu0
    %v1516 = vadd.f32 %v731, %v1515
    %v1517 = vpop.f32.mrb[0].mxu0
    %1518 = vmatprep.mubr.f32.mxu0 0.0
    %1519 = vmatmul.mubr.f32.gmra.mrb[0].mxu0 %v1115
    %v1520 = vpop.f32.mrb[0].mxu0
    %v1521 = vadd.f32 %v736, %v1520
    %v1522 = vpop.f32.mrb[0].mxu0
    %1523 = vmatprep.mubr.f32.mxu0 0.0
    %1524 = vmatmul.mubr.f32.gmra.mrb[0].mxu0 %v1118
    %v1525 = vpop.f32.mrb[0].mxu0
    %v1526 = vadd.f32 %v741, %v1525
    %v1527 = vpop.f32.mrb[0].mxu0
    %1528 = vmatprep.mubr.f32.mxu0 0.0
    %1529 = vmatmul.mubr.f32.gmra.mrb[0].mxu0 %v1121
    %v1530 = vpop.f32.mrb[0].mxu0
    %v1531 = vadd.f32 %v746, %v1530
    %v1532 = vpop.f32.mrb[0].mxu0
    %1533 = vmatprep.mubr.f32.mxu0 0.0
    %1534 = vmatmul.mubr.f32.gmra.mrb[0].mxu0 %v1124
    %v1535 = vpop.f32.mrb[0].mxu0
    %v1536 = vadd.f32 %v751, %v1535
    %v1537 = vpop.f32.mrb[0].mxu0
    %1538 = vmatprep.mubr.f32.mxu0 0.0
    %1539 = vmatmul.mubr.f32.gmra.mrb[0].mxu0 %v1127
    %v1540 = vpop.f32.mrb[0].mxu0
    %v1541 = vadd.f32 %v756, %v1540
    %v1542 = vpop.f32.mrb[0].mxu0
    %1543 = vmatprep.mubr.f32.mxu0 0.0
    %1544 = vmatmul.mubr.f32.gmra.mrb[0].mxu0 %v1130
    %v1545 = vpop.f32.mrb[0].mxu0
    %v1546 = vadd.f32 %v761, %v1545
    %v1547 = vpop.f32.mrb[0].mxu0
    %1548 = vmatprep.mubr.f32.mxu0 0.0
    %1549 = vmatmul.mubr.f32.gmra.mrb[0].mxu0 %v1133
    %v1550 = vpop.f32.mrb[0].mxu0
    %v1551 = vadd.f32 %v766, %v1550
    %v1552 = vpop.f32.mrb[0].mxu0
    %1553 = vmatprep.mubr.f32.mxu0 0.0
    %1554 = vmatmul.mubr.f32.gmra.mrb[0].mxu0 %v1136
    %v1555 = vpop.f32.mrb[0].mxu0
    %v1556 = vadd.f32 %v771, %v1555
    %v1557 = vpop.f32.mrb[0].mxu0
    %1558 = vmatprep.mubr.f32.mxu0 0.0
    %1559 = vmatmul.mubr.f32.gmra.mrb[0].mxu0 %v1139
    %v1560 = vpop.f32.mrb[0].mxu0
    %v1561 = vadd.f32 %v776, %v1560
    %v1562 = vpop.f32.mrb[0].mxu0
    %1563 = vmatprep.mubr.f32.mxu0 0.0
    %1564 = vmatmul.mubr.f32.gmra.mrb[0].mxu0 %v1142
    %v1565 = vpop.f32.mrb[0].mxu0
    %v1566 = vadd.f32 %v781, %v1565
    %v1567 = vpop.f32.mrb[0].mxu0
    %1568 = vmatprep.mubr.f32.mxu0 0.0
    %1569 = vmatmul.mubr.f32.gmra.mrb[0].mxu0 %v1145
    %v1570 = vpop.f32.mrb[0].mxu0
    %v1571 = vadd.f32 %v786, %v1570
    %v1572 = vpop.f32.mrb[0].mxu0
    %1573 = vmatprep.mubr.f32.mxu0 0.0
    %1574 = vmatmul.mubr.f32.gmra.mrb[0].mxu0 %v1148
    %v1575 = vpop.f32.mrb[0].mxu0
    %v1576 = vadd.f32 %v791, %v1575
    %v1577 = vpop.f32.mrb[0].mxu0
    %1578 = vmatprep.mubr.f32.mxu0 0.0
    %1579 = vmatmul.mubr.f32.gmra.mrb[0].mxu0 %v1151
    %v1580 = vpop.f32.mrb[0].mxu0
    %v1581 = vadd.f32 %v796, %v1580
    %v1582 = vpop.f32.mrb[0].mxu0
    %1583 = vmatprep.mubr.f32.mxu0 0.0
    %1584 = vmatmul.mubr.f32.gmra.mrb[0].mxu0 %v1154
    %v1585 = vpop.f32.mrb[0].mxu0
    %v1586 = vadd.f32 %v801, %v1585
    %v1587 = vpop.f32.mrb[0].mxu0
    %1588 = vmatprep.mubr.f32.mxu0 0.0
    %1589 = vmatmul.mubr.f32.gmra.mrb[0].mxu0 %v1157
    %v1590 = vpop.f32.mrb[0].mxu0
    %v1591 = vadd.f32 %v806, %v1590
    %v1592 = vpop.f32.mrb[0].mxu0
    %1593 = vmatprep.mubr.f32.mxu0 0.0
    %1594 = vmatmul.mubr.f32.gmra.mrb[0].mxu0 %v1160
    %v1595 = vpop.f32.mrb[0].mxu0
    %v1596 = vadd.f32 %v811, %v1595
    %v1597 = vpop.f32.mrb[0].mxu0
    %1598 = vmatprep.mubr.f32.mxu0 0.0
    %1599 = vmatmul.mubr.f32.gmra.mrb[0].mxu0 %v1163
    %v1600 = vpop.f32.mrb[0].mxu0
    %v1601 = vadd.f32 %v816, %v1600
    %v1602 = vpop.f32.mrb[0].mxu0
    %1603 = vmatprep.mubr.f32.mxu0 0.0
    %1604 = vmatmul.mubr.f32.gmra.mrb[0].mxu0 %v1166
    %v1605 = vpop.f32.mrb[0].mxu0
    %v1606 = vadd.f32 %v821, %v1605
    %v1607 = vpop.f32.mrb[0].mxu0
    %1608 = vmatprep.mubr.f32.mxu0 0.0
    %1609 = vmatmul.mubr.f32.gmra.mrb[0].mxu0 %v1169
    %v1610 = vpop.f32.mrb[0].mxu0
    %v1611 = vadd.f32 %v826, %v1610
    %v1612 = vpop.f32.mrb[0].mxu0
    %1613 = vmatprep.mubr.f32.mxu0 0.0
    %1614 = vmatmul.mubr.f32.gmra.mrb[0].mxu0 %v1172
    %v1615 = vpop.f32.mrb[0].mxu0
    %v1616 = vadd.f32 %v831, %v1615
    %v1617 = vpop.f32.mrb[0].mxu0
    %1618 = vmatprep.mubr.f32.mxu0 0.0
    %1619 = vmatmul.mubr.f32.gmra.mrb[0].mxu0 %v1175
    %v1620 = vpop.f32.mrb[0].mxu0
    %v1621 = vadd.f32 %v836, %v1620
    %v1622 = vpop.f32.mrb[0].mxu0
    %1623 = vmatprep.mubr.f32.mxu0 0.0
    %1624 = vmatmul.mubr.f32.gmra.mrb[0].mxu0 %v1178
    %v1625 = vpop.f32.mrb[0].mxu0
    %v1626 = vadd.f32 %v841, %v1625
    %v1627 = vpop.f32.mrb[0].mxu0
    %1628 = vmatprep.mubr.f32.mxu0 0.0
    %1629 = vmatmul.mubr.f32.gmra.mrb[0].mxu0 %v1181
    %v1630 = vpop.f32.mrb[0].mxu0
    %v1631 = vadd.f32 %v846, %v1630
    %v1632 = vpop.f32.mrb[0].mxu0
    %1633 = vmatprep.mubr.f32.mxu0 0.0
    %1634 = vmatmul.mubr.f32.gmra.mrb[0].mxu0 %v1184
    %v1635 = vpop.f32.mrb[0].mxu0
    %v1636 = vadd.f32 %v851, %v1635
    %v1637 = vpop.f32.mrb[0].mxu0
    %1638 = vmatprep.mubr.f32.mxu0 0.0
    %1639 = vmatmul.mubr.f32.gmra.mrb[0].mxu0 %v1187
    %v1640 = vpop.f32.mrb[0].mxu0
    %v1641 = vadd.f32 %v856, %v1640
    %v1642 = vpop.f32.mrb[0].mxu0
    %1643 = vmatprep.mubr.f32.mxu0 0.0
    %1644 = vmatmul.mubr.f32.gmra.mrb[0].mxu0 %v1190
    %v1645 = vpop.f32.mrb[0].mxu0
    %v1646 = vadd.f32 %v861, %v1645
    %v1647 = vpop.f32.mrb[0].mxu0
    %1648 = vmatprep.mubr.f32.mxu0 0.0
    %1649 = vmatmul.mubr.f32.gmra.mrb[0].mxu0 %v1193
    %v1650 = vpop.f32.mrb[0].mxu0
    %v1651 = vadd.f32 %v866, %v1650
    %v1652 = vpop.f32.mrb[0].mxu0
    %1653 = vmatprep.mubr.f32.mxu0 0.0
    %1654 = vmatmul.mubr.f32.gmra.mrb[0].mxu0 %v1196
    %v1655 = vpop.f32.mrb[0].mxu0
    %v1656 = vadd.f32 %v871, %v1655
    %v1657 = vpop.f32.mrb[0].mxu0
    %1658 = vmatprep.mubr.f32.mxu0 0.0
    %1659 = vmatmul.mubr.f32.gmra.mrb[0].mxu0 %v1199
    %v1660 = vpop.f32.mrb[0].mxu0
    %v1661 = vadd.f32 %v876, %v1660
    %v1662 = vpop.f32.mrb[0].mxu0
    %1663 = vmatprep.mubr.f32.mxu0 0.0
    %1664 = vmatmul.mubr.f32.gmra.mrb[0].mxu0 %v1202
    %v1665 = vpop.f32.mrb[0].mxu0
    %v1666 = vadd.f32 %v881, %v1665
    %v1667 = vpop.f32.mrb[0].mxu0
    %1668 = vmatprep.mubr.f32.mxu0 0.0
    %1669 = vmatmul.mubr.f32.gmra.mrb[0].mxu0 %v1205
    %v1670 = vpop.f32.mrb[0].mxu0
    %v1671 = vadd.f32 %v886, %v1670
    %v1672 = vpop.f32.mrb[0].mxu0
    %1673 = vmatprep.mubr.f32.mxu0 0.0
    %1674 = vmatmul.mubr.f32.gmra.mrb[0].mxu0 %v1208
    %v1675 = vpop.f32.mrb[0].mxu0
    %v1676 = vadd.f32 %v891, %v1675
    %v1677 = vpop.f32.mrb[0].mxu0
    %1678 = vmatprep.mubr.f32.mxu0 0.0
    %1679 = vmatmul.mubr.f32.gmra.mrb[0].mxu0 %v1211
    %v1680 = vpop.f32.mrb[0].mxu0
    %v1681 = vadd.f32 %v896, %v1680
    %v1682 = vpop.f32.mrb[0].mxu0
    %1683 = vmatprep.mubr.f32.mxu0 0.0
    %1684 = vmatmul.mubr.f32.gmra.mrb[0].mxu0 %v1214
    %v1685 = vpop.f32.mrb[0].mxu0
    %v1686 = vadd.f32 %v901, %v1685
    %v1687 = vpop.f32.mrb[0].mxu0
    %1688 = vmatprep.mubr.f32.mxu0 0.0
    %1689 = vmatmul.mubr.f32.gmra.mrb[0].mxu0 %v1217
    %v1690 = vpop.f32.mrb[0].mxu0
    %v1691 = vadd.f32 %v906, %v1690
    %v1692 = vpop.f32.mrb[0].mxu0
    %1693 = vmatprep.mubr.f32.mxu0 0.0
    %1694 = vmatmul.mubr.f32.gmra.mrb[0].mxu0 %v1220
    %v1695 = vpop.f32.mrb[0].mxu0
    %v1696 = vadd.f32 %v911, %v1695
    %v1697 = vpop.f32.mrb[0].mxu0
    %1698 = vmatprep.mubr.f32.mxu0 0.0
    %1699 = vmatmul.mubr.f32.gmra.mrb[0].mxu0 %v1223
    %v1700 = vpop.f32.mrb[0].mxu0
    %v1701 = vadd.f32 %v916, %v1700
    %v1702 = vpop.f32.mrb[0].mxu0
    %1703 = vmatprep.mubr.f32.mxu0 0.0
    %1704 = vmatmul.mubr.f32.gmra.mrb[0].mxu0 %v1226
    %v1705 = vpop.f32.mrb[0].mxu0
    %v1706 = vadd.f32 %v921, %v1705
    %v1707 = vpop.f32.mrb[0].mxu0
    %1708 = vmatprep.mubr.f32.mxu0 0.0
    %1709 = vmatmul.mubr.f32.gmra.mrb[0].mxu0 %v1229
    %v1710 = vpop.f32.mrb[0].mxu0
    %v1711 = vadd.f32 %v926, %v1710
    %v1712 = vpop.f32.mrb[0].mxu0
    %1713 = vmatprep.mubr.f32.mxu0 0.0
    %1714 = vmatmul.mubr.f32.gmra.mrb[0].mxu0 %v1232
    %v1715 = vpop.f32.mrb[0].mxu0
    %v1716 = vadd.f32 %v931, %v1715
    %v1717 = vpop.f32.mrb[0].mxu0
    %1718 = vmatprep.mubr.f32.mxu0 0.0
    %1719 = vmatmul.mubr.f32.gmra.mrb[0].mxu0 %v1235
    %v1720 = vpop.f32.mrb[0].mxu0
    %v1721 = vadd.f32 %v936, %v1720
    %v1722 = vpop.f32.mrb[0].mxu0
    %1723 = vmatprep.mubr.f32.mxu0 0.0
    %1724 = vmatmul.mubr.f32.gmra.mrb[0].mxu0 %v1238
    %v1725 = vpop.f32.mrb[0].mxu0
    %v1726 = vadd.f32 %v941, %v1725
    %v1727 = vpop.f32.mrb[0].mxu0
    %1728 = vmatprep.mubr.f32.mxu0 0.0
    %1729 = vmatmul.mubr.f32.gmra.mrb[0].mxu0 %v1241
    %v1730 = vpop.f32.mrb[0].mxu0
    %v1731 = vadd.f32 %v946, %v1730
    %v1732 = vpop.f32.mrb[0].mxu0
    %1733 = vmatprep.mubr.f32.mxu0 0.0
    %1734 = vmatmul.mubr.f32.gmra.mrb[0].mxu0 %v1244
    %v1735 = vpop.f32.mrb[0].mxu0
    %v1736 = vadd.f32 %v951, %v1735
    %v1737 = vpop.f32.mrb[0].mxu0
    %1738 = vmatprep.mubr.f32.mxu0 0.0
    %1739 = vmatmul.mubr.f32.gmra.mrb[0].mxu0 %v1247
    %v1740 = vpop.f32.mrb[0].mxu0
    %v1741 = vadd.f32 %v956, %v1740
    %v1742 = vpop.f32.mrb[0].mxu0
    %1743 = vmatprep.mubr.f32.mxu0 0.0
    %1744 = vmatmul.mubr.f32.gmra.mrb[0].mxu0 %v1250
    %v1745 = vpop.f32.mrb[0].mxu0
    %v1746 = vadd.f32 %v961, %v1745
    %v1747 = vpop.f32.mrb[0].mxu0
    %1748 = vmatprep.mubr.f32.mxu0 0.0
    %1749 = vmatmul.mubr.f32.gmra.mrb[0].mxu0 %v1253
    %v1750 = vpop.f32.mrb[0].mxu0
    %v1751 = vadd.f32 %v966, %v1750
    %v1752 = vpop.f32.mrb[0].mxu0
    %1753 = vmatprep.mubr.f32.mxu0 0.0
    %1754 = vmatmul.mubr.f32.gmra.mrb[0].mxu0 %v1256
    %v1755 = vpop.f32.mrb[0].mxu0
    %v1756 = vadd.f32 %v971, %v1755
    %v1757 = vpop.f32.mrb[0].mxu0
    %1758 = vmatprep.mubr.f32.mxu0 0.0
    %1759 = vmatmul.mubr.f32.gmra.mrb[0].mxu0 %v1259
    %v1760 = vpop.f32.mrb[0].mxu0
    %v1761 = vadd.f32 %v976, %v1760
    %v1762 = vpop.f32.mrb[0].mxu0
    %1763 = vmatprep.mubr.f32.mxu0 0.0
    %1764 = vmatmul.mubr.f32.gmra.mrb[0].mxu0 %v1262
    %v1765 = vpop.f32.mrb[0].mxu0
    %v1766 = vadd.f32 %v981, %v1765
    %v1767 = vpop.f32.mrb[0].mxu0
    %1768 = vmatprep.mubr.f32.mxu0 0.0
    %1769 = vmatmul.mubr.f32.gmra.mrb[0].mxu0 %v1265
    %v1770 = vpop.f32.mrb[0].mxu0
    %v1771 = vadd.f32 %v986, %v1770
    %v1772 = vpop.f32.mrb[0].mxu0
    %1773 = vmatprep.mubr.f32.mxu0 0.0
    %1774 = vmatmul.mubr.f32.gmra.mrb[0].mxu0 %v1268
    %v1775 = vpop.f32.mrb[0].mxu0
    %v1776 = vadd.f32 %v991, %v1775
    %v1777 = vpop.f32.mrb[0].mxu0
    %1778 = vmatprep.mubr.f32.mxu0 0.0
    %1779 = vmatmul.mubr.f32.gmra.mrb[0].mxu0 %v1271
    %v1780 = vpop.f32.mrb[0].mxu0
    %v1781 = vadd.f32 %v996, %v1780
    %v1782 = vpop.f32.mrb[0].mxu0
    %1783 = vmatprep.mubr.f32.mxu0 0.0
    %1784 = vmatmul.mubr.f32.gmra.mrb[0].mxu0 %v1274
    %v1785 = vpop.f32.mrb[0].mxu0
    %v1786 = vadd.f32 %v1001, %v1785
    %v1787 = vpop.f32.mrb[0].mxu0
    %1788 = vmatprep.mubr.f32.mxu0 0.0
    %1789 = vmatmul.mubr.f32.gmra.mrb[0].mxu0 %v1277
    %v1790 = vpop.f32.mrb[0].mxu0
    %v1791 = vadd.f32 %v1006, %v1790
    %v1792 = vpop.f32.mrb[0].mxu0
    %1793 = vdwg.mxu0
    %v1794 = vld [vmem:[%s0 + $0x3] sm:$0xff]
    %v1795 = vld [vmem:[%s0 + $0xb] sm:$0xff]
    %v1796 = vld [vmem:[%s0 + $0x13] sm:$0xff]
    %v1797 = vld [vmem:[%s0 + $0x1b] sm:$0xff]
    %v1798 = vld [vmem:[%s0 + $0x23] sm:$0xff]
    %v1799 = vld [vmem:[%s0 + $0x2b] sm:$0xff]
    %v1800 = vld [vmem:[%s0 + $0x33] sm:$0xff]
    %v1801 = vld [vmem:[%s0 + $0x3b] sm:$0xff]
    %v1802 = vld [vmem:[%s0 + $0x43] sm:$0xff]
    %v1803 = vld [vmem:[%s0 + $0x4b] sm:$0xff]
    %v1804 = vld [vmem:[%s0 + $0x53] sm:$0xff]
    %v1805 = vld [vmem:[%s0 + $0x5b] sm:$0xff]
    %v1806 = vld [vmem:[%s0 + $0x63] sm:$0xff]
    %v1807 = vld [vmem:[%s0 + $0x6b] sm:$0xff]
    %v1808 = vld [vmem:[%s0 + $0x73] sm:$0xff]
    %v1809 = vld [vmem:[%s0 + $0x7b] sm:$0xff]
    %v1810 = vld [vmem:[%s0 + $0x83] sm:$0xff]
    %v1811 = vld [vmem:[%s0 + $0x8b] sm:$0xff]
    %v1812 = vld [vmem:[%s0 + $0x93] sm:$0xff]
    %v1813 = vld [vmem:[%s0 + $0x9b] sm:$0xff]
    %v1814 = vld [vmem:[%s0 + $0xa3] sm:$0xff]
    %v1815 = vld [vmem:[%s0 + $0xab] sm:$0xff]
    %v1816 = vld [vmem:[%s0 + $0xb3] sm:$0xff]
    %v1817 = vld [vmem:[%s0 + $0xbb] sm:$0xff]
    %v1818 = vld [vmem:[%s0 + $0xc3] sm:$0xff]
    %v1819 = vld [vmem:[%s0 + $0xcb] sm:$0xff]
    %v1820 = vld [vmem:[%s0 + $0xd3] sm:$0xff]
    %v1821 = vld [vmem:[%s0 + $0xdb] sm:$0xff]
    %v1822 = vld [vmem:[%s0 + $0xe3] sm:$0xff]
    %v1823 = vld [vmem:[%s0 + $0xeb] sm:$0xff]
    %v1824 = vld [vmem:[%s0 + $0xf3] sm:$0xff]
    %v1825 = vld [vmem:[%s0 + $0xfb] sm:$0xff]
    %v1826 = vld [vmem:[%s0 + $0x103] sm:$0xff]
    %v1827 = vld [vmem:[%s0 + $0x10b] sm:$0xff]
    %v1828 = vld [vmem:[%s0 + $0x113] sm:$0xff]
    %v1829 = vld [vmem:[%s0 + $0x11b] sm:$0xff]
    %v1830 = vld [vmem:[%s0 + $0x123] sm:$0xff]
    %v1831 = vld [vmem:[%s0 + $0x12b] sm:$0xff]
    %v1832 = vld [vmem:[%s0 + $0x133] sm:$0xff]
    %v1833 = vld [vmem:[%s0 + $0x13b] sm:$0xff]
    %v1834 = vld [vmem:[%s0 + $0x143] sm:$0xff]
    %v1835 = vld [vmem:[%s0 + $0x14b] sm:$0xff]
    %v1836 = vld [vmem:[%s0 + $0x153] sm:$0xff]
    %v1837 = vld [vmem:[%s0 + $0x15b] sm:$0xff]
    %v1838 = vld [vmem:[%s0 + $0x163] sm:$0xff]
    %v1839 = vld [vmem:[%s0 + $0x16b] sm:$0xff]
    %v1840 = vld [vmem:[%s0 + $0x173] sm:$0xff]
    %v1841 = vld [vmem:[%s0 + $0x17b] sm:$0xff]
    %v1842 = vld [vmem:[%s0 + $0x183] sm:$0xff]
    %v1843 = vld [vmem:[%s0 + $0x18b] sm:$0xff]
    %v1844 = vld [vmem:[%s0 + $0x193] sm:$0xff]
    %v1845 = vld [vmem:[%s0 + $0x19b] sm:$0xff]
    %v1846 = vld [vmem:[%s0 + $0x1a3] sm:$0xff]
    %v1847 = vld [vmem:[%s0 + $0x1ab] sm:$0xff]
    %v1848 = vld [vmem:[%s0 + $0x1b3] sm:$0xff]
    %v1849 = vld [vmem:[%s0 + $0x1bb] sm:$0xff]
    %v1850 = vld [vmem:[%s0 + $0x1c3] sm:$0xff]
    %v1851 = vld [vmem:[%s0 + $0x1cb] sm:$0xff]
    %v1852 = vld [vmem:[%s0 + $0x1d3] sm:$0xff]
    %v1853 = vld [vmem:[%s0 + $0x1db] sm:$0xff]
    %v1854 = vld [vmem:[%s0 + $0x1e3] sm:$0xff]
    %v1855 = vld [vmem:[%s0 + $0x1eb] sm:$0xff]
    %v1856 = vld [vmem:[%s0 + $0x1f3] sm:$0xff]
    %v1857 = vld [vmem:[%s0 + $0x1fb] sm:$0xff]
    %v1858 = vld [vmem:[%s0 + $0x203] sm:$0xff]
    %v1859 = vld [vmem:[%s0 + $0x20b] sm:$0xff]
    %v1860 = vld [vmem:[%s0 + $0x213] sm:$0xff]
    %v1861 = vld [vmem:[%s0 + $0x21b] sm:$0xff]
    %v1862 = vld [vmem:[%s0 + $0x223] sm:$0xff]
    %v1863 = vld [vmem:[%s0 + $0x22b] sm:$0xff]
    %v1864 = vld [vmem:[%s0 + $0x233] sm:$0xff]
    %v1865 = vld [vmem:[%s0 + $0x23b] sm:$0xff]
    %v1866 = vld [vmem:[%s0 + $0x243] sm:$0xff]
    %v1867 = vld [vmem:[%s0 + $0x24b] sm:$0xff]
    %v1868 = vld [vmem:[%s0 + $0x253] sm:$0xff]
    %v1869 = vld [vmem:[%s0 + $0x25b] sm:$0xff]
    %v1870 = vld [vmem:[%s0 + $0x263] sm:$0xff]
    %v1871 = vld [vmem:[%s0 + $0x26b] sm:$0xff]
    %v1872 = vld [vmem:[%s0 + $0x273] sm:$0xff]
    %v1873 = vld [vmem:[%s0 + $0x27b] sm:$0xff]
    %v1874 = vld [vmem:[%s0 + $0x283] sm:$0xff]
    %v1875 = vld [vmem:[%s0 + $0x28b] sm:$0xff]
    %v1876 = vld [vmem:[%s0 + $0x293] sm:$0xff]
    %v1877 = vld [vmem:[%s0 + $0x29b] sm:$0xff]
    %v1878 = vld [vmem:[%s0 + $0x2a3] sm:$0xff]
    %v1879 = vld [vmem:[%s0 + $0x2ab] sm:$0xff]
    %v1880 = vld [vmem:[%s0 + $0x2b3] sm:$0xff]
    %v1881 = vld [vmem:[%s0 + $0x2bb] sm:$0xff]
    %v1882 = vld [vmem:[%s0 + $0x2c3] sm:$0xff]
    %v1883 = vld [vmem:[%s0 + $0x2cb] sm:$0xff]
    %s1884 = scalar_lea.vmem %s1, 16
    %v1885 = vld [vmem:[%s1884] sm:$0xff]
    %v1887 = vsel %vm223, %v1794, 0
    %v1890 = vsel %vm223, %v1795, 0
    %v1893 = vsel %vm223, %v1796, 0
    %v1896 = vsel %vm223, %v1797, 0
    %v1899 = vsel %vm223, %v1798, 0
    %v1902 = vsel %vm223, %v1799, 0
    %v1905 = vsel %vm223, %v1800, 0
    %v1908 = vsel %vm223, %v1801, 0
    %v1911 = vsel %vm223, %v1802, 0
    %v1914 = vsel %vm223, %v1803, 0
    %v1917 = vsel %vm223, %v1804, 0
    %v1920 = vsel %vm223, %v1805, 0
    %v1923 = vsel %vm223, %v1806, 0
    %v1926 = vsel %vm223, %v1807, 0
    %v1929 = vsel %vm223, %v1808, 0
    %v1932 = vsel %vm223, %v1809, 0
    %v1935 = vsel %vm223, %v1810, 0
    %v1938 = vsel %vm223, %v1811, 0
    %v1941 = vsel %vm223, %v1812, 0
    %v1944 = vsel %vm223, %v1813, 0
    %v1947 = vsel %vm223, %v1814, 0
    %v1950 = vsel %vm223, %v1815, 0
    %v1953 = vsel %vm223, %v1816, 0
    %v1956 = vsel %vm223, %v1817, 0
    %v1959 = vsel %vm223, %v1818, 0
    %v1962 = vsel %vm223, %v1819, 0
    %v1965 = vsel %vm223, %v1820, 0
    %v1968 = vsel %vm223, %v1821, 0
    %v1971 = vsel %vm223, %v1822, 0
    %v1974 = vsel %vm223, %v1823, 0
    %v1977 = vsel %vm223, %v1824, 0
    %v1980 = vsel %vm223, %v1825, 0
    %v1983 = vsel %vm223, %v1826, 0
    %v1986 = vsel %vm223, %v1827, 0
    %v1989 = vsel %vm223, %v1828, 0
    %v1992 = vsel %vm223, %v1829, 0
    %v1995 = vsel %vm223, %v1830, 0
    %v1998 = vsel %vm223, %v1831, 0
    %v2001 = vsel %vm223, %v1832, 0
    %v2004 = vsel %vm223, %v1833, 0
    %v2007 = vsel %vm223, %v1834, 0
    %v2010 = vsel %vm223, %v1835, 0
    %v2013 = vsel %vm223, %v1836, 0
    %v2016 = vsel %vm223, %v1837, 0
    %v2019 = vsel %vm223, %v1838, 0
    %v2022 = vsel %vm223, %v1839, 0
    %v2025 = vsel %vm223, %v1840, 0
    %v2028 = vsel %vm223, %v1841, 0
    %v2031 = vsel %vm223, %v1842, 0
    %v2034 = vsel %vm223, %v1843, 0
    %v2037 = vsel %vm223, %v1844, 0
    %v2040 = vsel %vm223, %v1845, 0
    %v2043 = vsel %vm223, %v1846, 0
    %v2046 = vsel %vm223, %v1847, 0
    %v2049 = vsel %vm223, %v1848, 0
    %v2052 = vsel %vm223, %v1849, 0
    %v2055 = vsel %vm223, %v1850, 0
    %v2058 = vsel %vm223, %v1851, 0
    %v2061 = vsel %vm223, %v1852, 0
    %v2064 = vsel %vm223, %v1853, 0
    %v2067 = vsel %vm223, %v1854, 0
    %v2070 = vsel %vm223, %v1855, 0
    %v2073 = vsel %vm223, %v1856, 0
    %v2076 = vsel %vm223, %v1857, 0
    %v2079 = vsel %vm223, %v1858, 0
    %v2082 = vsel %vm223, %v1859, 0
    %v2085 = vsel %vm223, %v1860, 0
    %v2088 = vsel %vm223, %v1861, 0
    %v2091 = vsel %vm223, %v1862, 0
    %v2094 = vsel %vm223, %v1863, 0
    %v2097 = vsel %vm223, %v1864, 0
    %v2100 = vsel %vm223, %v1865, 0
    %v2103 = vsel %vm223, %v1866, 0
    %v2106 = vsel %vm223, %v1867, 0
    %v2109 = vsel %vm223, %v1868, 0
    %v2112 = vsel %vm223, %v1869, 0
    %v2115 = vsel %vm223, %v1870, 0
    %v2118 = vsel %vm223, %v1871, 0
    %v2121 = vsel %vm223, %v1872, 0
    %v2124 = vsel %vm223, %v1873, 0
    %v2127 = vsel %vm223, %v1874, 0
    %v2130 = vsel %vm223, %v1875, 0
    %v2133 = vsel %vm223, %v1876, 0
    %v2136 = vsel %vm223, %v1877, 0
    %v2139 = vsel %vm223, %v1878, 0
    %v2142 = vsel %vm223, %v1879, 0
    %v2145 = vsel %vm223, %v1880, 0
    %v2148 = vsel %vm223, %v1881, 0
    %v2151 = vsel %vm223, %v1882, 0
    %v2154 = vsel %vm223, %v1883, 0
    %2156 = vmatprep.subr.mxu0 0.0
    %2157 = vmatpush1.msra.mxu0 %v1885
    %2158 = vmatprep.subr.mxu0 0.0
    %2159 = vmatpush1.msra.mxu0 0.0
    %2160 = vmatprep.subr.mxu0 0.0
    %2161 = vmatpush1.msra.mxu0 0.0
    %2162 = vmatprep.subr.mxu0 0.0
    %2163 = vmatpush1.msra.mxu0 0.0
    %2164 = vmatprep.subr.mxu0 0.0
    %2165 = vmatpush1.msra.mxu0 0.0
    %2166 = vmatprep.subr.mxu0 0.0
    %2167 = vmatpush1.msra.mxu0 0.0
    %2168 = vmatprep.subr.mxu0 0.0
    %2169 = vmatpush1.msra.mxu0 0.0
    %2170 = vmatprep.subr.mxu0 0.0
    %2171 = vmatpush1.msra.mxu0 0.0
    %2172 = vmatprep.subr.mxu0 0.0
    %2173 = vmatpush1.msra.mxu0 0.0
    %2174 = vmatprep.subr.mxu0 0.0
    %2175 = vmatpush1.msra.mxu0 0.0
    %2176 = vmatprep.subr.mxu0 0.0
    %2177 = vmatpush1.msra.mxu0 0.0
    %2178 = vmatprep.subr.mxu0 0.0
    %2179 = vmatpush1.msra.mxu0 0.0
    %2180 = vmatprep.subr.mxu0 0.0
    %2181 = vmatpush1.msra.mxu0 0.0
    %2182 = vmatprep.subr.mxu0 0.0
    %2183 = vmatpush1.msra.mxu0 0.0
    %2184 = vmatprep.subr.mxu0 0.0
    %2185 = vmatpush1.msra.mxu0 0.0
    %2186 = vmatprep.subr.mxu0 0.0
    %2187 = vmatpush1.msra.mxu0 0.0
    %2188 = vmatprep.subr.mxu0 0.0
    %2189 = vmatpush1.msra.mxu0 0.0
    %2190 = vmatprep.subr.mxu0 0.0
    %2191 = vmatpush1.msra.mxu0 0.0
    %2192 = vmatprep.subr.mxu0 0.0
    %2193 = vmatpush1.msra.mxu0 0.0
    %2194 = vmatprep.subr.mxu0 0.0
    %2195 = vmatpush1.msra.mxu0 0.0
    %2196 = vmatprep.subr.mxu0 0.0
    %2197 = vmatpush1.msra.mxu0 0.0
    %2198 = vmatprep.subr.mxu0 0.0
    %2199 = vmatpush1.msra.mxu0 0.0
    %2200 = vmatprep.subr.mxu0 0.0
    %2201 = vmatpush1.msra.mxu0 0.0
    %2202 = vmatprep.subr.mxu0 0.0
    %2203 = vmatpush1.msra.mxu0 0.0
    %2204 = vmatprep.subr.mxu0 0.0
    %2205 = vmatpush1.msra.mxu0 0.0
    %2206 = vmatprep.subr.mxu0 0.0
    %2207 = vmatpush1.msra.mxu0 0.0
    %2208 = vmatprep.subr.mxu0 0.0
    %2209 = vmatpush1.msra.mxu0 0.0
    %2210 = vmatprep.subr.mxu0 0.0
    %2211 = vmatpush1.msra.mxu0 0.0
    %2212 = vmatprep.subr.mxu0 0.0
    %2213 = vmatpush1.msra.mxu0 0.0
    %2214 = vmatprep.subr.mxu0 0.0
    %2215 = vmatpush1.msra.mxu0 0.0
    %2216 = vmatprep.subr.mxu0 0.0
    %2217 = vmatpush1.msra.mxu0 0.0
    %2218 = vmatprep.subr.mxu0 0.0
    %2219 = vmatpush1.msra.mxu0 0.0
    %2220 = vmatprep.mubr.f32.mxu0 0.0
    %2221 = vmatmul.mubr.f32.gmra.mrb[0].mxu0 %v1887
    %v2222 = vpop.f32.mrb[0].mxu0
    %v2223 = vadd.f32 0.0, %v2222
    %v2224 = vpop.f32.mrb[0].mxu0
    %2225 = vmatprep.mubr.f32.mxu0 0.0
    %2226 = vmatmul.mubr.f32.gmra.mrb[0].mxu0 %v1890
    %v2227 = vpop.f32.mrb[0].mxu0
    %v2228 = vadd.f32 0.0, %v2227
    %v2229 = vpop.f32.mrb[0].mxu0
    %2230 = vmatprep.mubr.f32.mxu0 0.0
    %2231 = vmatmul.mubr.f32.gmra.mrb[0].mxu0 %v1893
    %v2232 = vpop.f32.mrb[0].mxu0
    %v2233 = vadd.f32 0.0, %v2232
    %v2234 = vpop.f32.mrb[0].mxu0
    %2235 = vmatprep.mubr.f32.mxu0 0.0
    %2236 = vmatmul.mubr.f32.gmra.mrb[0].mxu0 %v1896
    %v2237 = vpop.f32.mrb[0].mxu0
    %v2238 = vadd.f32 0.0, %v2237
    %v2239 = vpop.f32.mrb[0].mxu0
    %2240 = vmatprep.mubr.f32.mxu0 0.0
    %2241 = vmatmul.mubr.f32.gmra.mrb[0].mxu0 %v1899
    %v2242 = vpop.f32.mrb[0].mxu0
    %v2243 = vadd.f32 0.0, %v2242
    %v2244 = vpop.f32.mrb[0].mxu0
    %2245 = vmatprep.mubr.f32.mxu0 0.0
    %2246 = vmatmul.mubr.f32.gmra.mrb[0].mxu0 %v1902
    %v2247 = vpop.f32.mrb[0].mxu0
    %v2248 = vadd.f32 0.0, %v2247
    %v2249 = vpop.f32.mrb[0].mxu0
    %2250 = vmatprep.mubr.f32.mxu0 0.0
    %2251 = vmatmul.mubr.f32.gmra.mrb[0].mxu0 %v1905
    %v2252 = vpop.f32.mrb[0].mxu0
    %v2253 = vadd.f32 0.0, %v2252
    %v2254 = vpop.f32.mrb[0].mxu0
    %2255 = vmatprep.mubr.f32.mxu0 0.0
    %2256 = vmatmul.mubr.f32.gmra.mrb[0].mxu0 %v1908
    %v2257 = vpop.f32.mrb[0].mxu0
    %v2258 = vadd.f32 0.0, %v2257
    %v2259 = vpop.f32.mrb[0].mxu0
    %2260 = vmatprep.mubr.f32.mxu0 0.0
    %2261 = vmatmul.mubr.f32.gmra.mrb[0].mxu0 %v1911
    %v2262 = vpop.f32.mrb[0].mxu0
    %v2263 = vadd.f32 0.0, %v2262
    %v2264 = vpop.f32.mrb[0].mxu0
    %2265 = vmatprep.mubr.f32.mxu0 0.0
    %2266 = vmatmul.mubr.f32.gmra.mrb[0].mxu0 %v1914
    %v2267 = vpop.f32.mrb[0].mxu0
    %v2268 = vadd.f32 0.0, %v2267
    %v2269 = vpop.f32.mrb[0].mxu0
    %2270 = vmatprep.mubr.f32.mxu0 0.0
    %2271 = vmatmul.mubr.f32.gmra.mrb[0].mxu0 %v1917
    %v2272 = vpop.f32.mrb[0].mxu0
    %v2273 = vadd.f32 0.0, %v2272
    %v2274 = vpop.f32.mrb[0].mxu0
    %2275 = vmatprep.mubr.f32.mxu0 0.0
    %2276 = vmatmul.mubr.f32.gmra.mrb[0].mxu0 %v1920
    %v2277 = vpop.f32.mrb[0].mxu0
    %v2278 = vadd.f32 0.0, %v2277
    %v2279 = vpop.f32.mrb[0].mxu0
    %2280 = vmatprep.mubr.f32.mxu0 0.0
    %2281 = vmatmul.mubr.f32.gmra.mrb[0].mxu0 %v1923
    %v2282 = vpop.f32.mrb[0].mxu0
    %v2283 = vadd.f32 0.0, %v2282
    %v2284 = vpop.f32.mrb[0].mxu0
    %2285 = vmatprep.mubr.f32.mxu0 0.0
    %2286 = vmatmul.mubr.f32.gmra.mrb[0].mxu0 %v1926
    %v2287 = vpop.f32.mrb[0].mxu0
    %v2288 = vadd.f32 0.0, %v2287
    %v2289 = vpop.f32.mrb[0].mxu0
    %2290 = vmatprep.mubr.f32.mxu0 0.0
    %2291 = vmatmul.mubr.f32.gmra.mrb[0].mxu0 %v1929
    %v2292 = vpop.f32.mrb[0].mxu0
    %v2293 = vadd.f32 0.0, %v2292
    %v2294 = vpop.f32.mrb[0].mxu0
    %2295 = vmatprep.mubr.f32.mxu0 0.0
    %2296 = vmatmul.mubr.f32.gmra.mrb[0].mxu0 %v1932
    %v2297 = vpop.f32.mrb[0].mxu0
    %v2298 = vadd.f32 0.0, %v2297
    %v2299 = vpop.f32.mrb[0].mxu0
    %2300 = vmatprep.mubr.f32.mxu0 0.0
    %2301 = vmatmul.mubr.f32.gmra.mrb[0].mxu0 %v1935
    %v2302 = vpop.f32.mrb[0].mxu0
    %v2303 = vadd.f32 0.0, %v2302
    %v2304 = vpop.f32.mrb[0].mxu0
    %2305 = vmatprep.mubr.f32.mxu0 0.0
    %2306 = vmatmul.mubr.f32.gmra.mrb[0].mxu0 %v1938
    %v2307 = vpop.f32.mrb[0].mxu0
    %v2308 = vadd.f32 0.0, %v2307
    %v2309 = vpop.f32.mrb[0].mxu0
    %2310 = vmatprep.mubr.f32.mxu0 0.0
    %2311 = vmatmul.mubr.f32.gmra.mrb[0].mxu0 %v1941
    %v2312 = vpop.f32.mrb[0].mxu0
    %v2313 = vadd.f32 0.0, %v2312
    %v2314 = vpop.f32.mrb[0].mxu0
    %2315 = vmatprep.mubr.f32.mxu0 0.0
    %2316 = vmatmul.mubr.f32.gmra.mrb[0].mxu0 %v1944
    %v2317 = vpop.f32.mrb[0].mxu0
    %v2318 = vadd.f32 0.0, %v2317
    %v2319 = vpop.f32.mrb[0].mxu0
    %2320 = vmatprep.mubr.f32.mxu0 0.0
    %2321 = vmatmul.mubr.f32.gmra.mrb[0].mxu0 %v1947
    %v2322 = vpop.f32.mrb[0].mxu0
    %v2323 = vadd.f32 0.0, %v2322
    %v2324 = vpop.f32.mrb[0].mxu0
    %2325 = vmatprep.mubr.f32.mxu0 0.0
    %2326 = vmatmul.mubr.f32.gmra.mrb[0].mxu0 %v1950
    %v2327 = vpop.f32.mrb[0].mxu0
    %v2328 = vadd.f32 0.0, %v2327
    %v2329 = vpop.f32.mrb[0].mxu0
    %2330 = vmatprep.mubr.f32.mxu0 0.0
    %2331 = vmatmul.mubr.f32.gmra.mrb[0].mxu0 %v1953
    %v2332 = vpop.f32.mrb[0].mxu0
    %v2333 = vadd.f32 0.0, %v2332
    %v2334 = vpop.f32.mrb[0].mxu0
    %2335 = vmatprep.mubr.f32.mxu0 0.0
    %2336 = vmatmul.mubr.f32.gmra.mrb[0].mxu0 %v1956
    %v2337 = vpop.f32.mrb[0].mxu0
    %v2338 = vadd.f32 0.0, %v2337
    %v2339 = vpop.f32.mrb[0].mxu0
    %2340 = vmatprep.mubr.f32.mxu0 0.0
    %2341 = vmatmul.mubr.f32.gmra.mrb[0].mxu0 %v1959
    %v2342 = vpop.f32.mrb[0].mxu0
    %v2343 = vadd.f32 0.0, %v2342
    %v2344 = vpop.f32.mrb[0].mxu0
    %2345 = vmatprep.mubr.f32.mxu0 0.0
    %2346 = vmatmul.mubr.f32.gmra.mrb[0].mxu0 %v1962
    %v2347 = vpop.f32.mrb[0].mxu0
    %v2348 = vadd.f32 0.0, %v2347
    %v2349 = vpop.f32.mrb[0].mxu0
    %2350 = vmatprep.mubr.f32.mxu0 0.0
    %2351 = vmatmul.mubr.f32.gmra.mrb[0].mxu0 %v1965
    %v2352 = vpop.f32.mrb[0].mxu0
    %v2353 = vadd.f32 0.0, %v2352
    %v2354 = vpop.f32.mrb[0].mxu0
    %2355 = vmatprep.mubr.f32.mxu0 0.0
    %2356 = vmatmul.mubr.f32.gmra.mrb[0].mxu0 %v1968
    %v2357 = vpop.f32.mrb[0].mxu0
    %v2358 = vadd.f32 0.0, %v2357
    %v2359 = vpop.f32.mrb[0].mxu0
    %2360 = vmatprep.mubr.f32.mxu0 0.0
    %2361 = vmatmul.mubr.f32.gmra.mrb[0].mxu0 %v1971
    %v2362 = vpop.f32.mrb[0].mxu0
    %v2363 = vadd.f32 0.0, %v2362
    %v2364 = vpop.f32.mrb[0].mxu0
    %2365 = vmatprep.mubr.f32.mxu0 0.0
    %2366 = vmatmul.mubr.f32.gmra.mrb[0].mxu0 %v1974
    %v2367 = vpop.f32.mrb[0].mxu0
    %v2368 = vadd.f32 0.0, %v2367
    %v2369 = vpop.f32.mrb[0].mxu0
    %2370 = vmatprep.mubr.f32.mxu0 0.0
    %2371 = vmatmul.mubr.f32.gmra.mrb[0].mxu0 %v1977
    %v2372 = vpop.f32.mrb[0].mxu0
    %v2373 = vadd.f32 0.0, %v2372
    %v2374 = vpop.f32.mrb[0].mxu0
    %2375 = vmatprep.mubr.f32.mxu0 0.0
    %2376 = vmatmul.mubr.f32.gmra.mrb[0].mxu0 %v1980
    %v2377 = vpop.f32.mrb[0].mxu0
    %v2378 = vadd.f32 0.0, %v2377
    %v2379 = vpop.f32.mrb[0].mxu0
    %2380 = vmatprep.mubr.f32.mxu0 0.0
    %2381 = vmatmul.mubr.f32.gmra.mrb[0].mxu0 %v1983
    %v2382 = vpop.f32.mrb[0].mxu0
    %v2383 = vadd.f32 0.0, %v2382
    %v2384 = vpop.f32.mrb[0].mxu0
    %2385 = vmatprep.mubr.f32.mxu0 0.0
    %2386 = vmatmul.mubr.f32.gmra.mrb[0].mxu0 %v1986
    %v2387 = vpop.f32.mrb[0].mxu0
    %v2388 = vadd.f32 0.0, %v2387
    %v2389 = vpop.f32.mrb[0].mxu0
    %2390 = vmatprep.mubr.f32.mxu0 0.0
    %2391 = vmatmul.mubr.f32.gmra.mrb[0].mxu0 %v1989
    %v2392 = vpop.f32.mrb[0].mxu0
    %v2393 = vadd.f32 0.0, %v2392
    %v2394 = vpop.f32.mrb[0].mxu0
    %2395 = vmatprep.mubr.f32.mxu0 0.0
    %2396 = vmatmul.mubr.f32.gmra.mrb[0].mxu0 %v1992
    %v2397 = vpop.f32.mrb[0].mxu0
    %v2398 = vadd.f32 0.0, %v2397
    %v2399 = vpop.f32.mrb[0].mxu0
    %2400 = vmatprep.mubr.f32.mxu0 0.0
    %2401 = vmatmul.mubr.f32.gmra.mrb[0].mxu0 %v1995
    %v2402 = vpop.f32.mrb[0].mxu0
    %v2403 = vadd.f32 0.0, %v2402
    %v2404 = vpop.f32.mrb[0].mxu0
    %2405 = vmatprep.mubr.f32.mxu0 0.0
    %2406 = vmatmul.mubr.f32.gmra.mrb[0].mxu0 %v1998
    %v2407 = vpop.f32.mrb[0].mxu0
    %v2408 = vadd.f32 0.0, %v2407
    %v2409 = vpop.f32.mrb[0].mxu0
    %2410 = vmatprep.mubr.f32.mxu0 0.0
    %2411 = vmatmul.mubr.f32.gmra.mrb[0].mxu0 %v2001
    %v2412 = vpop.f32.mrb[0].mxu0
    %v2413 = vadd.f32 0.0, %v2412
    %v2414 = vpop.f32.mrb[0].mxu0
    %2415 = vmatprep.mubr.f32.mxu0 0.0
    %2416 = vmatmul.mubr.f32.gmra.mrb[0].mxu0 %v2004
    %v2417 = vpop.f32.mrb[0].mxu0
    %v2418 = vadd.f32 0.0, %v2417
    %v2419 = vpop.f32.mrb[0].mxu0
    %2420 = vmatprep.mubr.f32.mxu0 0.0
    %2421 = vmatmul.mubr.f32.gmra.mrb[0].mxu0 %v2007
    %v2422 = vpop.f32.mrb[0].mxu0
    %v2423 = vadd.f32 0.0, %v2422
    %v2424 = vpop.f32.mrb[0].mxu0
    %2425 = vmatprep.mubr.f32.mxu0 0.0
    %2426 = vmatmul.mubr.f32.gmra.mrb[0].mxu0 %v2010
    %v2427 = vpop.f32.mrb[0].mxu0
    %v2428 = vadd.f32 0.0, %v2427
    %v2429 = vpop.f32.mrb[0].mxu0
    %2430 = vmatprep.mubr.f32.mxu0 0.0
    %2431 = vmatmul.mubr.f32.gmra.mrb[0].mxu0 %v2013
    %v2432 = vpop.f32.mrb[0].mxu0
    %v2433 = vadd.f32 0.0, %v2432
    %v2434 = vpop.f32.mrb[0].mxu0
    %2435 = vmatprep.mubr.f32.mxu0 0.0
    %2436 = vmatmul.mubr.f32.gmra.mrb[0].mxu0 %v2016
    %v2437 = vpop.f32.mrb[0].mxu0
    %v2438 = vadd.f32 0.0, %v2437
    %v2439 = vpop.f32.mrb[0].mxu0
    %2440 = vmatprep.mubr.f32.mxu0 0.0
    %2441 = vmatmul.mubr.f32.gmra.mrb[0].mxu0 %v2019
    %v2442 = vpop.f32.mrb[0].mxu0
    %v2443 = vadd.f32 0.0, %v2442
    %v2444 = vpop.f32.mrb[0].mxu0
    %2445 = vmatprep.mubr.f32.mxu0 0.0
    %2446 = vmatmul.mubr.f32.gmra.mrb[0].mxu0 %v2022
    %v2447 = vpop.f32.mrb[0].mxu0
    %v2448 = vadd.f32 0.0, %v2447
    %v2449 = vpop.f32.mrb[0].mxu0
    %2450 = vmatprep.mubr.f32.mxu0 0.0
    %2451 = vmatmul.mubr.f32.gmra.mrb[0].mxu0 %v2025
    %v2452 = vpop.f32.mrb[0].mxu0
    %v2453 = vadd.f32 0.0, %v2452
    %v2454 = vpop.f32.mrb[0].mxu0
    %2455 = vmatprep.mubr.f32.mxu0 0.0
    %2456 = vmatmul.mubr.f32.gmra.mrb[0].mxu0 %v2028
    %v2457 = vpop.f32.mrb[0].mxu0
    %v2458 = vadd.f32 0.0, %v2457
    %v2459 = vpop.f32.mrb[0].mxu0
    %2460 = vmatprep.mubr.f32.mxu0 0.0
    %2461 = vmatmul.mubr.f32.gmra.mrb[0].mxu0 %v2031
    %v2462 = vpop.f32.mrb[0].mxu0
    %v2463 = vadd.f32 0.0, %v2462
    %v2464 = vpop.f32.mrb[0].mxu0
    %2465 = vmatprep.mubr.f32.mxu0 0.0
    %2466 = vmatmul.mubr.f32.gmra.mrb[0].mxu0 %v2034
    %v2467 = vpop.f32.mrb[0].mxu0
    %v2468 = vadd.f32 0.0, %v2467
    %v2469 = vpop.f32.mrb[0].mxu0
    %2470 = vmatprep.mubr.f32.mxu0 0.0
    %2471 = vmatmul.mubr.f32.gmra.mrb[0].mxu0 %v2037
    %v2472 = vpop.f32.mrb[0].mxu0
    %v2473 = vadd.f32 0.0, %v2472
    %v2474 = vpop.f32.mrb[0].mxu0
    %2475 = vmatprep.mubr.f32.mxu0 0.0
    %2476 = vmatmul.mubr.f32.gmra.mrb[0].mxu0 %v2040
    %v2477 = vpop.f32.mrb[0].mxu0
    %v2478 = vadd.f32 0.0, %v2477
    %v2479 = vpop.f32.mrb[0].mxu0
    %2480 = vmatprep.mubr.f32.mxu0 0.0
    %2481 = vmatmul.mubr.f32.gmra.mrb[0].mxu0 %v2043
    %v2482 = vpop.f32.mrb[0].mxu0
    %v2483 = vadd.f32 0.0, %v2482
    %v2484 = vpop.f32.mrb[0].mxu0
    %2485 = vmatprep.mubr.f32.mxu0 0.0
    %2486 = vmatmul.mubr.f32.gmra.mrb[0].mxu0 %v2046
    %v2487 = vpop.f32.mrb[0].mxu0
    %v2488 = vadd.f32 0.0, %v2487
    %v2489 = vpop.f32.mrb[0].mxu0
    %2490 = vmatprep.mubr.f32.mxu0 0.0
    %2491 = vmatmul.mubr.f32.gmra.mrb[0].mxu0 %v2049
    %v2492 = vpop.f32.mrb[0].mxu0
    %v2493 = vadd.f32 0.0, %v2492
    %v2494 = vpop.f32.mrb[0].mxu0
    %2495 = vmatprep.mubr.f32.mxu0 0.0
    %2496 = vmatmul.mubr.f32.gmra.mrb[0].mxu0 %v2052
    %v2497 = vpop.f32.mrb[0].mxu0
    %v2498 = vadd.f32 0.0, %v2497
    %v2499 = vpop.f32.mrb[0].mxu0
    %2500 = vmatprep.mubr.f32.mxu0 0.0
    %2501 = vmatmul.mubr.f32.gmra.mrb[0].mxu0 %v2055
    %v2502 = vpop.f32.mrb[0].mxu0
    %v2503 = vadd.f32 0.0, %v2502
    %v2504 = vpop.f32.mrb[0].mxu0
    %2505 = vmatprep.mubr.f32.mxu0 0.0
    %2506 = vmatmul.mubr.f32.gmra.mrb[0].mxu0 %v2058
    %v2507 = vpop.f32.mrb[0].mxu0
    %v2508 = vadd.f32 0.0, %v2507
    %v2509 = vpop.f32.mrb[0].mxu0
    %2510 = vmatprep.mubr.f32.mxu0 0.0
    %2511 = vmatmul.mubr.f32.gmra.mrb[0].mxu0 %v2061
    %v2512 = vpop.f32.mrb[0].mxu0
    %v2513 = vadd.f32 0.0, %v2512
    %v2514 = vpop.f32.mrb[0].mxu0
    %2515 = vmatprep.mubr.f32.mxu0 0.0
    %2516 = vmatmul.mubr.f32.gmra.mrb[0].mxu0 %v2064
    %v2517 = vpop.f32.mrb[0].mxu0
    %v2518 = vadd.f32 0.0, %v2517
    %v2519 = vpop.f32.mrb[0].mxu0
    %2520 = vmatprep.mubr.f32.mxu0 0.0
    %2521 = vmatmul.mubr.f32.gmra.mrb[0].mxu0 %v2067
    %v2522 = vpop.f32.mrb[0].mxu0
    %v2523 = vadd.f32 0.0, %v2522
    %v2524 = vpop.f32.mrb[0].mxu0
    %2525 = vmatprep.mubr.f32.mxu0 0.0
    %2526 = vmatmul.mubr.f32.gmra.mrb[0].mxu0 %v2070
    %v2527 = vpop.f32.mrb[0].mxu0
    %v2528 = vadd.f32 0.0, %v2527
    %v2529 = vpop.f32.mrb[0].mxu0
    %2530 = vmatprep.mubr.f32.mxu0 0.0
    %2531 = vmatmul.mubr.f32.gmra.mrb[0].mxu0 %v2073
    %v2532 = vpop.f32.mrb[0].mxu0
    %v2533 = vadd.f32 0.0, %v2532
    %v2534 = vpop.f32.mrb[0].mxu0
    %2535 = vmatprep.mubr.f32.mxu0 0.0
    %2536 = vmatmul.mubr.f32.gmra.mrb[0].mxu0 %v2076
    %v2537 = vpop.f32.mrb[0].mxu0
    %v2538 = vadd.f32 0.0, %v2537
    %v2539 = vpop.f32.mrb[0].mxu0
    %2540 = vmatprep.mubr.f32.mxu0 0.0
    %2541 = vmatmul.mubr.f32.gmra.mrb[0].mxu0 %v2079
    %v2542 = vpop.f32.mrb[0].mxu0
    %v2543 = vadd.f32 0.0, %v2542
    %v2544 = vpop.f32.mrb[0].mxu0
    %2545 = vmatprep.mubr.f32.mxu0 0.0
    %2546 = vmatmul.mubr.f32.gmra.mrb[0].mxu0 %v2082
    %v2547 = vpop.f32.mrb[0].mxu0
    %v2548 = vadd.f32 0.0, %v2547
    %v2549 = vpop.f32.mrb[0].mxu0
    %2550 = vmatprep.mubr.f32.mxu0 0.0
    %2551 = vmatmul.mubr.f32.gmra.mrb[0].mxu0 %v2085
    %v2552 = vpop.f32.mrb[0].mxu0
    %v2553 = vadd.f32 0.0, %v2552
    %v2554 = vpop.f32.mrb[0].mxu0
    %2555 = vmatprep.mubr.f32.mxu0 0.0
    %2556 = vmatmul.mubr.f32.gmra.mrb[0].mxu0 %v2088
    %v2557 = vpop.f32.mrb[0].mxu0
    %v2558 = vadd.f32 0.0, %v2557
    %v2559 = vpop.f32.mrb[0].mxu0
    %2560 = vmatprep.mubr.f32.mxu0 0.0
    %2561 = vmatmul.mubr.f32.gmra.mrb[0].mxu0 %v2091
    %v2562 = vpop.f32.mrb[0].mxu0
    %v2563 = vadd.f32 0.0, %v2562
    %v2564 = vpop.f32.mrb[0].mxu0
    %2565 = vmatprep.mubr.f32.mxu0 0.0
    %2566 = vmatmul.mubr.f32.gmra.mrb[0].mxu0 %v2094
    %v2567 = vpop.f32.mrb[0].mxu0
    %v2568 = vadd.f32 0.0, %v2567
    %v2569 = vpop.f32.mrb[0].mxu0
    %2570 = vmatprep.mubr.f32.mxu0 0.0
    %2571 = vmatmul.mubr.f32.gmra.mrb[0].mxu0 %v2097
    %v2572 = vpop.f32.mrb[0].mxu0
    %v2573 = vadd.f32 0.0, %v2572
    %v2574 = vpop.f32.mrb[0].mxu0
    %2575 = vmatprep.mubr.f32.mxu0 0.0
    %2576 = vmatmul.mubr.f32.gmra.mrb[0].mxu0 %v2100
    %v2577 = vpop.f32.mrb[0].mxu0
    %v2578 = vadd.f32 0.0, %v2577
    %v2579 = vpop.f32.mrb[0].mxu0
    %2580 = vmatprep.mubr.f32.mxu0 0.0
    %2581 = vmatmul.mubr.f32.gmra.mrb[0].mxu0 %v2103
    %v2582 = vpop.f32.mrb[0].mxu0
    %v2583 = vadd.f32 0.0, %v2582
    %v2584 = vpop.f32.mrb[0].mxu0
    %2585 = vmatprep.mubr.f32.mxu0 0.0
    %2586 = vmatmul.mubr.f32.gmra.mrb[0].mxu0 %v2106
    %v2587 = vpop.f32.mrb[0].mxu0
    %v2588 = vadd.f32 0.0, %v2587
    %v2589 = vpop.f32.mrb[0].mxu0
    %2590 = vmatprep.mubr.f32.mxu0 0.0
    %2591 = vmatmul.mubr.f32.gmra.mrb[0].mxu0 %v2109
    %v2592 = vpop.f32.mrb[0].mxu0
    %v2593 = vadd.f32 0.0, %v2592
    %v2594 = vpop.f32.mrb[0].mxu0
    %2595 = vmatprep.mubr.f32.mxu0 0.0
    %2596 = vmatmul.mubr.f32.gmra.mrb[0].mxu0 %v2112
    %v2597 = vpop.f32.mrb[0].mxu0
    %v2598 = vadd.f32 0.0, %v2597
    %v2599 = vpop.f32.mrb[0].mxu0
    %2600 = vmatprep.mubr.f32.mxu0 0.0
    %2601 = vmatmul.mubr.f32.gmra.mrb[0].mxu0 %v2115
    %v2602 = vpop.f32.mrb[0].mxu0
    %v2603 = vadd.f32 0.0, %v2602
    %v2604 = vpop.f32.mrb[0].mxu0
    %2605 = vmatprep.mubr.f32.mxu0 0.0
    %2606 = vmatmul.mubr.f32.gmra.mrb[0].mxu0 %v2118
    %v2607 = vpop.f32.mrb[0].mxu0
    %v2608 = vadd.f32 0.0, %v2607
    %v2609 = vpop.f32.mrb[0].mxu0
    %2610 = vmatprep.mubr.f32.mxu0 0.0
    %2611 = vmatmul.mubr.f32.gmra.mrb[0].mxu0 %v2121
    %v2612 = vpop.f32.mrb[0].mxu0
    %v2613 = vadd.f32 0.0, %v2612
    %v2614 = vpop.f32.mrb[0].mxu0
    %2615 = vmatprep.mubr.f32.mxu0 0.0
    %2616 = vmatmul.mubr.f32.gmra.mrb[0].mxu0 %v2124
    %v2617 = vpop.f32.mrb[0].mxu0
    %v2618 = vadd.f32 0.0, %v2617
    %v2619 = vpop.f32.mrb[0].mxu0
    %2620 = vmatprep.mubr.f32.mxu0 0.0
    %2621 = vmatmul.mubr.f32.gmra.mrb[0].mxu0 %v2127
    %v2622 = vpop.f32.mrb[0].mxu0
    %v2623 = vadd.f32 0.0, %v2622
    %v2624 = vpop.f32.mrb[0].mxu0
    %2625 = vmatprep.mubr.f32.mxu0 0.0
    %2626 = vmatmul.mubr.f32.gmra.mrb[0].mxu0 %v2130
    %v2627 = vpop.f32.mrb[0].mxu0
    %v2628 = vadd.f32 0.0, %v2627
    %v2629 = vpop.f32.mrb[0].mxu0
    %2630 = vmatprep.mubr.f32.mxu0 0.0
    %2631 = vmatmul.mubr.f32.gmra.mrb[0].mxu0 %v2133
    %v2632 = vpop.f32.mrb[0].mxu0
    %v2633 = vadd.f32 0.0, %v2632
    %v2634 = vpop.f32.mrb[0].mxu0
    %2635 = vmatprep.mubr.f32.mxu0 0.0
    %2636 = vmatmul.mubr.f32.gmra.mrb[0].mxu0 %v2136
    %v2637 = vpop.f32.mrb[0].mxu0
    %v2638 = vadd.f32 0.0, %v2637
    %v2639 = vpop.f32.mrb[0].mxu0
    %2640 = vmatprep.mubr.f32.mxu0 0.0
    %2641 = vmatmul.mubr.f32.gmra.mrb[0].mxu0 %v2139
    %v2642 = vpop.f32.mrb[0].mxu0
    %v2643 = vadd.f32 0.0, %v2642
    %v2644 = vpop.f32.mrb[0].mxu0
    %2645 = vmatprep.mubr.f32.mxu0 0.0
    %2646 = vmatmul.mubr.f32.gmra.mrb[0].mxu0 %v2142
    %v2647 = vpop.f32.mrb[0].mxu0
    %v2648 = vadd.f32 0.0, %v2647
    %v2649 = vpop.f32.mrb[0].mxu0
    %2650 = vmatprep.mubr.f32.mxu0 0.0
    %2651 = vmatmul.mubr.f32.gmra.mrb[0].mxu0 %v2145
    %v2652 = vpop.f32.mrb[0].mxu0
    %v2653 = vadd.f32 0.0, %v2652
    %v2654 = vpop.f32.mrb[0].mxu0
    %2655 = vmatprep.mubr.f32.mxu0 0.0
    %2656 = vmatmul.mubr.f32.gmra.mrb[0].mxu0 %v2148
    %v2657 = vpop.f32.mrb[0].mxu0
    %v2658 = vadd.f32 0.0, %v2657
    %v2659 = vpop.f32.mrb[0].mxu0
    %2660 = vmatprep.mubr.f32.mxu0 0.0
    %2661 = vmatmul.mubr.f32.gmra.mrb[0].mxu0 %v2151
    %v2662 = vpop.f32.mrb[0].mxu0
    %v2663 = vadd.f32 0.0, %v2662
    %v2664 = vpop.f32.mrb[0].mxu0
    %2665 = vmatprep.mubr.f32.mxu0 0.0
    %2666 = vmatmul.mubr.f32.gmra.mrb[0].mxu0 %v2154
    %v2667 = vpop.f32.mrb[0].mxu0
    %v2668 = vadd.f32 0.0, %v2667
    %v2669 = vpop.f32.mrb[0].mxu0
    %2670 = vdwg.mxu0
    %v2671 = vadd.f32 %v1346, %v2223
    %v2672 = vadd.f32 %v1351, %v2228
    %v2673 = vadd.f32 %v1356, %v2233
    %v2674 = vadd.f32 %v1361, %v2238
    %v2675 = vadd.f32 %v1366, %v2243
    %v2676 = vadd.f32 %v1371, %v2248
    %v2677 = vadd.f32 %v1376, %v2253
    %v2678 = vadd.f32 %v1381, %v2258
    %v2679 = vadd.f32 %v1386, %v2263
    %v2680 = vadd.f32 %v1391, %v2268
    %v2681 = vadd.f32 %v1396, %v2273
    %v2682 = vadd.f32 %v1401, %v2278
    %v2683 = vadd.f32 %v1406, %v2283
    %v2684 = vadd.f32 %v1411, %v2288
    %v2685 = vadd.f32 %v1416, %v2293
    %v2686 = vadd.f32 %v1421, %v2298
    %v2687 = vadd.f32 %v1426, %v2303
    %v2688 = vadd.f32 %v1431, %v2308
    %v2689 = vadd.f32 %v1436, %v2313
    %v2690 = vadd.f32 %v1441, %v2318
    %v2691 = vadd.f32 %v1446, %v2323
    %v2692 = vadd.f32 %v1451, %v2328
    %v2693 = vadd.f32 %v1456, %v2333
    %v2694 = vadd.f32 %v1461, %v2338
    %v2695 = vadd.f32 %v1466, %v2343
    %v2696 = vadd.f32 %v1471, %v2348
    %v2697 = vadd.f32 %v1476, %v2353
    %v2698 = vadd.f32 %v1481, %v2358
    %v2699 = vadd.f32 %v1486, %v2363
    %v2700 = vadd.f32 %v1491, %v2368
    %v2701 = vadd.f32 %v1496, %v2373
    %v2702 = vadd.f32 %v1501, %v2378
    %v2703 = vadd.f32 %v1506, %v2383
    %v2704 = vadd.f32 %v1511, %v2388
    %v2705 = vadd.f32 %v1516, %v2393
    %v2706 = vadd.f32 %v1521, %v2398
    %v2707 = vadd.f32 %v1526, %v2403
    %v2708 = vadd.f32 %v1531, %v2408
    %v2709 = vadd.f32 %v1536, %v2413
    %v2710 = vadd.f32 %v1541, %v2418
    %v2711 = vadd.f32 %v1546, %v2423
    %v2712 = vadd.f32 %v1551, %v2428
    %v2713 = vadd.f32 %v1556, %v2433
    %v2714 = vadd.f32 %v1561, %v2438
    %v2715 = vadd.f32 %v1566, %v2443
    %v2716 = vadd.f32 %v1571, %v2448
    %v2717 = vadd.f32 %v1576, %v2453
    %v2718 = vadd.f32 %v1581, %v2458
    %v2719 = vadd.f32 %v1586, %v2463
    %v2720 = vadd.f32 %v1591, %v2468
    %v2721 = vadd.f32 %v1596, %v2473
    %v2722 = vadd.f32 %v1601, %v2478
    %v2723 = vadd.f32 %v1606, %v2483
    %v2724 = vadd.f32 %v1611, %v2488
    %v2725 = vadd.f32 %v1616, %v2493
    %v2726 = vadd.f32 %v1621, %v2498
    %v2727 = vadd.f32 %v1626, %v2503
    %v2728 = vadd.f32 %v1631, %v2508
    %v2729 = vadd.f32 %v1636, %v2513
    %v2730 = vadd.f32 %v1641, %v2518
    %v2731 = vadd.f32 %v1646, %v2523
    %v2732 = vadd.f32 %v1651, %v2528
    %v2733 = vadd.f32 %v1656, %v2533
    %v2734 = vadd.f32 %v1661, %v2538
    %v2735 = vadd.f32 %v1666, %v2543
    %v2736 = vadd.f32 %v1671, %v2548
    %v2737 = vadd.f32 %v1676, %v2553
    %v2738 = vadd.f32 %v1681, %v2558
    %v2739 = vadd.f32 %v1686, %v2563
    %v2740 = vadd.f32 %v1691, %v2568
    %v2741 = vadd.f32 %v1696, %v2573
    %v2742 = vadd.f32 %v1701, %v2578
    %v2743 = vadd.f32 %v1706, %v2583
    %v2744 = vadd.f32 %v1711, %v2588
    %v2745 = vadd.f32 %v1716, %v2593
    %v2746 = vadd.f32 %v1721, %v2598
    %v2747 = vadd.f32 %v1726, %v2603
    %v2748 = vadd.f32 %v1731, %v2608
    %v2749 = vadd.f32 %v1736, %v2613
    %v2750 = vadd.f32 %v1741, %v2618
    %v2751 = vadd.f32 %v1746, %v2623
    %v2752 = vadd.f32 %v1751, %v2628
    %v2753 = vadd.f32 %v1756, %v2633
    %v2754 = vadd.f32 %v1761, %v2638
    %v2755 = vadd.f32 %v1766, %v2643
    %v2756 = vadd.f32 %v1771, %v2648
    %v2757 = vadd.f32 %v1776, %v2653
    %v2758 = vadd.f32 %v1781, %v2658
    %v2759 = vadd.f32 %v1786, %v2663
    %v2760 = vadd.f32 %v1791, %v2668
    %v2761 = vld [vmem:[%s0 + $0x13] sm:$0xff]
    %v2762 = vld [vmem:[%s0 + $0x1b] sm:$0xff]
    %v2763 = vld [vmem:[%s0 + $0x23] sm:$0xff]
    %v2764 = vld [vmem:[%s0 + $0x2b] sm:$0xff]
    %v2765 = vld [vmem:[%s0 + $0x33] sm:$0xff]
    %v2766 = vld [vmem:[%s0 + $0x3b] sm:$0xff]
    %v2767 = vld [vmem:[%s0 + $0x43] sm:$0xff]
    %v2768 = vld [vmem:[%s0 + $0x4b] sm:$0xff]
    %v2769 = vld [vmem:[%s0 + $0x53] sm:$0xff]
    %v2770 = vld [vmem:[%s0 + $0x5b] sm:$0xff]
    %v2771 = vld [vmem:[%s0 + $0x63] sm:$0xff]
    %v2772 = vld [vmem:[%s0 + $0x6b] sm:$0xff]
    %v2773 = vld [vmem:[%s0 + $0x73] sm:$0xff]
    %v2774 = vld [vmem:[%s0 + $0x7b] sm:$0xff]
    %v2775 = vld [vmem:[%s0 + $0x83] sm:$0xff]
    %v2776 = vld [vmem:[%s0 + $0x8b] sm:$0xff]
    %v2777 = vld [vmem:[%s0 + $0x93] sm:$0xff]
    %v2778 = vld [vmem:[%s0 + $0x9b] sm:$0xff]
    %v2779 = vld [vmem:[%s0 + $0xa3] sm:$0xff]
    %v2780 = vld [vmem:[%s0 + $0xab] sm:$0xff]
    %v2781 = vld [vmem:[%s0 + $0xb3] sm:$0xff]
    %v2782 = vld [vmem:[%s0 + $0xbb] sm:$0xff]
    %v2783 = vld [vmem:[%s0 + $0xc3] sm:$0xff]
    %v2784 = vld [vmem:[%s0 + $0xcb] sm:$0xff]
    %v2785 = vld [vmem:[%s0 + $0xd3] sm:$0xff]
    %v2786 = vld [vmem:[%s0 + $0xdb] sm:$0xff]
    %v2787 = vld [vmem:[%s0 + $0xe3] sm:$0xff]
    %v2788 = vld [vmem:[%s0 + $0xeb] sm:$0xff]
    %v2789 = vld [vmem:[%s0 + $0xf3] sm:$0xff]
    %v2790 = vld [vmem:[%s0 + $0xfb] sm:$0xff]
    %v2791 = vld [vmem:[%s0 + $0x103] sm:$0xff]
    %v2792 = vld [vmem:[%s0 + $0x10b] sm:$0xff]
    %v2793 = vld [vmem:[%s0 + $0x113] sm:$0xff]
    %v2794 = vld [vmem:[%s0 + $0x11b] sm:$0xff]
    %v2795 = vld [vmem:[%s0 + $0x123] sm:$0xff]
    %v2796 = vld [vmem:[%s0 + $0x12b] sm:$0xff]
    %v2797 = vld [vmem:[%s0 + $0x133] sm:$0xff]
    %v2798 = vld [vmem:[%s0 + $0x13b] sm:$0xff]
    %v2799 = vld [vmem:[%s0 + $0x143] sm:$0xff]
    %v2800 = vld [vmem:[%s0 + $0x14b] sm:$0xff]
    %v2801 = vld [vmem:[%s0 + $0x153] sm:$0xff]
    %v2802 = vld [vmem:[%s0 + $0x15b] sm:$0xff]
    %v2803 = vld [vmem:[%s0 + $0x163] sm:$0xff]
    %v2804 = vld [vmem:[%s0 + $0x16b] sm:$0xff]
    %v2805 = vld [vmem:[%s0 + $0x173] sm:$0xff]
    %v2806 = vld [vmem:[%s0 + $0x17b] sm:$0xff]
    %v2807 = vld [vmem:[%s0 + $0x183] sm:$0xff]
    %v2808 = vld [vmem:[%s0 + $0x18b] sm:$0xff]
    %v2809 = vld [vmem:[%s0 + $0x193] sm:$0xff]
    %v2810 = vld [vmem:[%s0 + $0x19b] sm:$0xff]
    %v2811 = vld [vmem:[%s0 + $0x1a3] sm:$0xff]
    %v2812 = vld [vmem:[%s0 + $0x1ab] sm:$0xff]
    %v2813 = vld [vmem:[%s0 + $0x1b3] sm:$0xff]
    %v2814 = vld [vmem:[%s0 + $0x1bb] sm:$0xff]
    %v2815 = vld [vmem:[%s0 + $0x1c3] sm:$0xff]
    %v2816 = vld [vmem:[%s0 + $0x1cb] sm:$0xff]
    %v2817 = vld [vmem:[%s0 + $0x1d3] sm:$0xff]
    %v2818 = vld [vmem:[%s0 + $0x1db] sm:$0xff]
    %v2819 = vld [vmem:[%s0 + $0x1e3] sm:$0xff]
    %v2820 = vld [vmem:[%s0 + $0x1eb] sm:$0xff]
    %v2821 = vld [vmem:[%s0 + $0x1f3] sm:$0xff]
    %v2822 = vld [vmem:[%s0 + $0x1fb] sm:$0xff]
    %v2823 = vld [vmem:[%s0 + $0x203] sm:$0xff]
    %v2824 = vld [vmem:[%s0 + $0x20b] sm:$0xff]
    %v2825 = vld [vmem:[%s0 + $0x213] sm:$0xff]
    %v2826 = vld [vmem:[%s0 + $0x21b] sm:$0xff]
    %v2827 = vld [vmem:[%s0 + $0x223] sm:$0xff]
    %v2828 = vld [vmem:[%s0 + $0x22b] sm:$0xff]
    %v2829 = vld [vmem:[%s0 + $0x233] sm:$0xff]
    %v2830 = vld [vmem:[%s0 + $0x23b] sm:$0xff]
    %v2831 = vld [vmem:[%s0 + $0x243] sm:$0xff]
    %v2832 = vld [vmem:[%s0 + $0x24b] sm:$0xff]
    %v2833 = vld [vmem:[%s0 + $0x253] sm:$0xff]
    %v2834 = vld [vmem:[%s0 + $0x25b] sm:$0xff]
    %v2835 = vld [vmem:[%s0 + $0x263] sm:$0xff]
    %v2836 = vld [vmem:[%s0 + $0x26b] sm:$0xff]
    %v2837 = vld [vmem:[%s0 + $0x273] sm:$0xff]
    %v2838 = vld [vmem:[%s0 + $0x27b] sm:$0xff]
    %v2839 = vld [vmem:[%s0 + $0x283] sm:$0xff]
    %v2840 = vld [vmem:[%s0 + $0x28b] sm:$0xff]
    %v2841 = vld [vmem:[%s0 + $0x293] sm:$0xff]
    %v2842 = vld [vmem:[%s0 + $0x29b] sm:$0xff]
    %v2843 = vld [vmem:[%s0 + $0x2a3] sm:$0xff]
    %v2844 = vld [vmem:[%s0 + $0x2ab] sm:$0xff]
    %v2845 = vld [vmem:[%s0 + $0x2b3] sm:$0xff]
    %v2846 = vld [vmem:[%s0 + $0x2bb] sm:$0xff]
    %v2847 = vld [vmem:[%s0 + $0x2c3] sm:$0xff]
    %v2848 = vld [vmem:[%s0 + $0x2cb] sm:$0xff]
    %v2849 = vld [vmem:[%s0 + $0x2d3] sm:$0xff]
    %v2850 = vld [vmem:[%s0 + $0x2db] sm:$0xff]
    %s2851 = scalar_lea.vmem %s1, 24
    %v2852 = vld [vmem:[%s2851] sm:$0xff]
    %v2854 = vsel %vm223, %v2761, 0
    %v2857 = vsel %vm223, %v2762, 0
    %v2860 = vsel %vm223, %v2763, 0
    %v2863 = vsel %vm223, %v2764, 0
    %v2866 = vsel %vm223, %v2765, 0
    %v2869 = vsel %vm223, %v2766, 0
    %v2872 = vsel %vm223, %v2767, 0
    %v2875 = vsel %vm223, %v2768, 0
    %v2878 = vsel %vm223, %v2769, 0
    %v2881 = vsel %vm223, %v2770, 0
    %v2884 = vsel %vm223, %v2771, 0
    %v2887 = vsel %vm223, %v2772, 0
    %v2890 = vsel %vm223, %v2773, 0
    %v2893 = vsel %vm223, %v2774, 0
    %v2896 = vsel %vm223, %v2775, 0
    %v2899 = vsel %vm223, %v2776, 0
    %v2902 = vsel %vm223, %v2777, 0
    %v2905 = vsel %vm223, %v2778, 0
    %v2908 = vsel %vm223, %v2779, 0
    %v2911 = vsel %vm223, %v2780, 0
    %v2914 = vsel %vm223, %v2781, 0
    %v2917 = vsel %vm223, %v2782, 0
    %v2920 = vsel %vm223, %v2783, 0
    %v2923 = vsel %vm223, %v2784, 0
    %v2926 = vsel %vm223, %v2785, 0
    %v2929 = vsel %vm223, %v2786, 0
    %v2932 = vsel %vm223, %v2787, 0
    %v2935 = vsel %vm223, %v2788, 0
    %v2938 = vsel %vm223, %v2789, 0
    %v2941 = vsel %vm223, %v2790, 0
    %v2944 = vsel %vm223, %v2791, 0
    %v2947 = vsel %vm223, %v2792, 0
    %v2950 = vsel %vm223, %v2793, 0
    %v2953 = vsel %vm223, %v2794, 0
    %v2956 = vsel %vm223, %v2795, 0
    %v2959 = vsel %vm223, %v2796, 0
    %v2962 = vsel %vm223, %v2797, 0
    %v2965 = vsel %vm223, %v2798, 0
    %v2968 = vsel %vm223, %v2799, 0
    %v2971 = vsel %vm223, %v2800, 0
    %v2974 = vsel %vm223, %v2801, 0
    %v2977 = vsel %vm223, %v2802, 0
    %v2980 = vsel %vm223, %v2803, 0
    %v2983 = vsel %vm223, %v2804, 0
    %v2986 = vsel %vm223, %v2805, 0
    %v2989 = vsel %vm223, %v2806, 0
    %v2992 = vsel %vm223, %v2807, 0
    %v2995 = vsel %vm223, %v2808, 0
    %v2998 = vsel %vm223, %v2809, 0
    %v3001 = vsel %vm223, %v2810, 0
    %v3004 = vsel %vm223, %v2811, 0
    %v3007 = vsel %vm223, %v2812, 0
    %v3010 = vsel %vm223, %v2813, 0
    %v3013 = vsel %vm223, %v2814, 0
    %v3016 = vsel %vm223, %v2815, 0
    %v3019 = vsel %vm223, %v2816, 0
    %v3022 = vsel %vm223, %v2817, 0
    %v3025 = vsel %vm223, %v2818, 0
    %v3028 = vsel %vm223, %v2819, 0
    %v3031 = vsel %vm223, %v2820, 0
    %v3034 = vsel %vm223, %v2821, 0
    %v3037 = vsel %vm223, %v2822, 0
    %v3040 = vsel %vm223, %v2823, 0
    %v3043 = vsel %vm223, %v2824, 0
    %v3046 = vsel %vm223, %v2825, 0
    %v3049 = vsel %vm223, %v2826, 0
    %v3052 = vsel %vm223, %v2827, 0
    %v3055 = vsel %vm223, %v2828, 0
    %v3058 = vsel %vm223, %v2829, 0
    %v3061 = vsel %vm223, %v2830, 0
    %v3064 = vsel %vm223, %v2831, 0
    %v3067 = vsel %vm223, %v2832, 0
    %v3070 = vsel %vm223, %v2833, 0
    %v3073 = vsel %vm223, %v2834, 0
    %v3076 = vsel %vm223, %v2835, 0
    %v3079 = vsel %vm223, %v2836, 0
    %v3082 = vsel %vm223, %v2837, 0
    %v3085 = vsel %vm223, %v2838, 0
    %v3088 = vsel %vm223, %v2839, 0
    %v3091 = vsel %vm223, %v2840, 0
    %v3094 = vsel %vm223, %v2841, 0
    %v3097 = vsel %vm223, %v2842, 0
    %v3100 = vsel %vm223, %v2843, 0
    %v3103 = vsel %vm223, %v2844, 0
    %v3106 = vsel %vm223, %v2845, 0
    %v3109 = vsel %vm223, %v2846, 0
    %v3112 = vsel %vm223, %v2847, 0
    %v3115 = vsel %vm223, %v2848, 0
    %v3118 = vsel %vm223, %v2849, 0
    %v3121 = vsel %vm223, %v2850, 0
    %3123 = vmatprep.subr.mxu0 0.0
    %3124 = vmatpush1.msra.mxu0 %v2852
    %3125 = vmatprep.subr.mxu0 0.0
    %3126 = vmatpush1.msra.mxu0 0.0
    %3127 = vmatprep.subr.mxu0 0.0
    %3128 = vmatpush1.msra.mxu0 0.0
    %3129 = vmatprep.subr.mxu0 0.0
    %3130 = vmatpush1.msra.mxu0 0.0
    %3131 = vmatprep.subr.mxu0 0.0
    %3132 = vmatpush1.msra.mxu0 0.0
    %3133 = vmatprep.subr.mxu0 0.0
    %3134 = vmatpush1.msra.mxu0 0.0
    %3135 = vmatprep.subr.mxu0 0.0
    %3136 = vmatpush1.msra.mxu0 0.0
    %3137 = vmatprep.subr.mxu0 0.0
    %3138 = vmatpush1.msra.mxu0 0.0
    %3139 = vmatprep.subr.mxu0 0.0
    %3140 = vmatpush1.msra.mxu0 0.0
    %3141 = vmatprep.subr.mxu0 0.0
    %3142 = vmatpush1.msra.mxu0 0.0
    %3143 = vmatprep.subr.mxu0 0.0
    %3144 = vmatpush1.msra.mxu0 0.0
    %3145 = vmatprep.subr.mxu0 0.0
    %3146 = vmatpush1.msra.mxu0 0.0
    %3147 = vmatprep.subr.mxu0 0.0
    %3148 = vmatpush1.msra.mxu0 0.0
    %3149 = vmatprep.subr.mxu0 0.0
    %3150 = vmatpush1.msra.mxu0 0.0
    %3151 = vmatprep.subr.mxu0 0.0
    %3152 = vmatpush1.msra.mxu0 0.0
    %3153 = vmatprep.subr.mxu0 0.0
    %3154 = vmatpush1.msra.mxu0 0.0
    %3155 = vmatprep.subr.mxu0 0.0
    %3156 = vmatpush1.msra.mxu0 0.0
    %3157 = vmatprep.subr.mxu0 0.0
    %3158 = vmatpush1.msra.mxu0 0.0
    %3159 = vmatprep.subr.mxu0 0.0
    %3160 = vmatpush1.msra.mxu0 0.0
    %3161 = vmatprep.subr.mxu0 0.0
    %3162 = vmatpush1.msra.mxu0 0.0
    %3163 = vmatprep.subr.mxu0 0.0
    %3164 = vmatpush1.msra.mxu0 0.0
    %3165 = vmatprep.subr.mxu0 0.0
    %3166 = vmatpush1.msra.mxu0 0.0
    %3167 = vmatprep.subr.mxu0 0.0
    %3168 = vmatpush1.msra.mxu0 0.0
    %3169 = vmatprep.subr.mxu0 0.0
    %3170 = vmatpush1.msra.mxu0 0.0
    %3171 = vmatprep.subr.mxu0 0.0
    %3172 = vmatpush1.msra.mxu0 0.0
    %3173 = vmatprep.subr.mxu0 0.0
    %3174 = vmatpush1.msra.mxu0 0.0
    %3175 = vmatprep.subr.mxu0 0.0
    %3176 = vmatpush1.msra.mxu0 0.0
    %3177 = vmatprep.subr.mxu0 0.0
    %3178 = vmatpush1.msra.mxu0 0.0
    %3179 = vmatprep.subr.mxu0 0.0
    %3180 = vmatpush1.msra.mxu0 0.0
    %3181 = vmatprep.subr.mxu0 0.0
    %3182 = vmatpush1.msra.mxu0 0.0
    %3183 = vmatprep.subr.mxu0 0.0
    %3184 = vmatpush1.msra.mxu0 0.0
    %3185 = vmatprep.subr.mxu0 0.0
    %3186 = vmatpush1.msra.mxu0 0.0
    %3187 = vmatprep.mubr.f32.mxu0 0.0
    %3188 = vmatmul.mubr.f32.gmra.mrb[0].mxu0 %v2854
    %v3189 = vpop.f32.mrb[0].mxu0
    %v3190 = vadd.f32 0.0, %v3189
    %v3191 = vpop.f32.mrb[0].mxu0
    %3192 = vmatprep.mubr.f32.mxu0 0.0
    %3193 = vmatmul.mubr.f32.gmra.mrb[0].mxu0 %v2857
    %v3194 = vpop.f32.mrb[0].mxu0
    %v3195 = vadd.f32 0.0, %v3194
    %v3196 = vpop.f32.mrb[0].mxu0
    %3197 = vmatprep.mubr.f32.mxu0 0.0
    %3198 = vmatmul.mubr.f32.gmra.mrb[0].mxu0 %v2860
    %v3199 = vpop.f32.mrb[0].mxu0
    %v3200 = vadd.f32 0.0, %v3199
    %v3201 = vpop.f32.mrb[0].mxu0
    %3202 = vmatprep.mubr.f32.mxu0 0.0
    %3203 = vmatmul.mubr.f32.gmra.mrb[0].mxu0 %v2863
    %v3204 = vpop.f32.mrb[0].mxu0
    %v3205 = vadd.f32 0.0, %v3204
    %v3206 = vpop.f32.mrb[0].mxu0
    %3207 = vmatprep.mubr.f32.mxu0 0.0
    %3208 = vmatmul.mubr.f32.gmra.mrb[0].mxu0 %v2866
    %v3209 = vpop.f32.mrb[0].mxu0
    %v3210 = vadd.f32 0.0, %v3209
    %v3211 = vpop.f32.mrb[0].mxu0
    %3212 = vmatprep.mubr.f32.mxu0 0.0
    %3213 = vmatmul.mubr.f32.gmra.mrb[0].mxu0 %v2869
    %v3214 = vpop.f32.mrb[0].mxu0
    %v3215 = vadd.f32 0.0, %v3214
    %v3216 = vpop.f32.mrb[0].mxu0
    %3217 = vmatprep.mubr.f32.mxu0 0.0
    %3218 = vmatmul.mubr.f32.gmra.mrb[0].mxu0 %v2872
    %v3219 = vpop.f32.mrb[0].mxu0
    %v3220 = vadd.f32 0.0, %v3219
    %v3221 = vpop.f32.mrb[0].mxu0
    %3222 = vmatprep.mubr.f32.mxu0 0.0
    %3223 = vmatmul.mubr.f32.gmra.mrb[0].mxu0 %v2875
    %v3224 = vpop.f32.mrb[0].mxu0
    %v3225 = vadd.f32 0.0, %v3224
    %v3226 = vpop.f32.mrb[0].mxu0
    %3227 = vmatprep.mubr.f32.mxu0 0.0
    %3228 = vmatmul.mubr.f32.gmra.mrb[0].mxu0 %v2878
    %v3229 = vpop.f32.mrb[0].mxu0
    %v3230 = vadd.f32 0.0, %v3229
    %v3231 = vpop.f32.mrb[0].mxu0
    %3232 = vmatprep.mubr.f32.mxu0 0.0
    %3233 = vmatmul.mubr.f32.gmra.mrb[0].mxu0 %v2881
    %v3234 = vpop.f32.mrb[0].mxu0
    %v3235 = vadd.f32 0.0, %v3234
    %v3236 = vpop.f32.mrb[0].mxu0
    %3237 = vmatprep.mubr.f32.mxu0 0.0
    %3238 = vmatmul.mubr.f32.gmra.mrb[0].mxu0 %v2884
    %v3239 = vpop.f32.mrb[0].mxu0
    %v3240 = vadd.f32 0.0, %v3239
    %v3241 = vpop.f32.mrb[0].mxu0
    %3242 = vmatprep.mubr.f32.mxu0 0.0
    %3243 = vmatmul.mubr.f32.gmra.mrb[0].mxu0 %v2887
    %v3244 = vpop.f32.mrb[0].mxu0
    %v3245 = vadd.f32 0.0, %v3244
    %v3246 = vpop.f32.mrb[0].mxu0
    %3247 = vmatprep.mubr.f32.mxu0 0.0
    %3248 = vmatmul.mubr.f32.gmra.mrb[0].mxu0 %v2890
    %v3249 = vpop.f32.mrb[0].mxu0
    %v3250 = vadd.f32 0.0, %v3249
    %v3251 = vpop.f32.mrb[0].mxu0
    %3252 = vmatprep.mubr.f32.mxu0 0.0
    %3253 = vmatmul.mubr.f32.gmra.mrb[0].mxu0 %v2893
    %v3254 = vpop.f32.mrb[0].mxu0
    %v3255 = vadd.f32 0.0, %v3254
    %v3256 = vpop.f32.mrb[0].mxu0
    %3257 = vmatprep.mubr.f32.mxu0 0.0
    %3258 = vmatmul.mubr.f32.gmra.mrb[0].mxu0 %v2896
    %v3259 = vpop.f32.mrb[0].mxu0
    %v3260 = vadd.f32 0.0, %v3259
    %v3261 = vpop.f32.mrb[0].mxu0
    %3262 = vmatprep.mubr.f32.mxu0 0.0
    %3263 = vmatmul.mubr.f32.gmra.mrb[0].mxu0 %v2899
    %v3264 = vpop.f32.mrb[0].mxu0
    %v3265 = vadd.f32 0.0, %v3264
    %v3266 = vpop.f32.mrb[0].mxu0
    %3267 = vmatprep.mubr.f32.mxu0 0.0
    %3268 = vmatmul.mubr.f32.gmra.mrb[0].mxu0 %v2902
    %v3269 = vpop.f32.mrb[0].mxu0
    %v3270 = vadd.f32 0.0, %v3269
    %v3271 = vpop.f32.mrb[0].mxu0
    %3272 = vmatprep.mubr.f32.mxu0 0.0
    %3273 = vmatmul.mubr.f32.gmra.mrb[0].mxu0 %v2905
    %v3274 = vpop.f32.mrb[0].mxu0
    %v3275 = vadd.f32 0.0, %v3274
    %v3276 = vpop.f32.mrb[0].mxu0
    %3277 = vmatprep.mubr.f32.mxu0 0.0
    %3278 = vmatmul.mubr.f32.gmra.mrb[0].mxu0 %v2908
    %v3279 = vpop.f32.mrb[0].mxu0
    %v3280 = vadd.f32 0.0, %v3279
    %v3281 = vpop.f32.mrb[0].mxu0
    %3282 = vmatprep.mubr.f32.mxu0 0.0
    %3283 = vmatmul.mubr.f32.gmra.mrb[0].mxu0 %v2911
    %v3284 = vpop.f32.mrb[0].mxu0
    %v3285 = vadd.f32 0.0, %v3284
    %v3286 = vpop.f32.mrb[0].mxu0
    %3287 = vmatprep.mubr.f32.mxu0 0.0
    %3288 = vmatmul.mubr.f32.gmra.mrb[0].mxu0 %v2914
    %v3289 = vpop.f32.mrb[0].mxu0
    %v3290 = vadd.f32 0.0, %v3289
    %v3291 = vpop.f32.mrb[0].mxu0
    %3292 = vmatprep.mubr.f32.mxu0 0.0
    %3293 = vmatmul.mubr.f32.gmra.mrb[0].mxu0 %v2917
    %v3294 = vpop.f32.mrb[0].mxu0
    %v3295 = vadd.f32 0.0, %v3294
    %v3296 = vpop.f32.mrb[0].mxu0
    %3297 = vmatprep.mubr.f32.mxu0 0.0
    %3298 = vmatmul.mubr.f32.gmra.mrb[0].mxu0 %v2920
    %v3299 = vpop.f32.mrb[0].mxu0
    %v3300 = vadd.f32 0.0, %v3299
    %v3301 = vpop.f32.mrb[0].mxu0
    %3302 = vmatprep.mubr.f32.mxu0 0.0
    %3303 = vmatmul.mubr.f32.gmra.mrb[0].mxu0 %v2923
    %v3304 = vpop.f32.mrb[0].mxu0
    %v3305 = vadd.f32 0.0, %v3304
    %v3306 = vpop.f32.mrb[0].mxu0
    %3307 = vmatprep.mubr.f32.mxu0 0.0
    %3308 = vmatmul.mubr.f32.gmra.mrb[0].mxu0 %v2926
    %v3309 = vpop.f32.mrb[0].mxu0
    %v3310 = vadd.f32 0.0, %v3309
    %v3311 = vpop.f32.mrb[0].mxu0
    %3312 = vmatprep.mubr.f32.mxu0 0.0
    %3313 = vmatmul.mubr.f32.gmra.mrb[0].mxu0 %v2929
    %v3314 = vpop.f32.mrb[0].mxu0
    %v3315 = vadd.f32 0.0, %v3314
    %v3316 = vpop.f32.mrb[0].mxu0
    %3317 = vmatprep.mubr.f32.mxu0 0.0
    %3318 = vmatmul.mubr.f32.gmra.mrb[0].mxu0 %v2932
    %v3319 = vpop.f32.mrb[0].mxu0
    %v3320 = vadd.f32 0.0, %v3319
    %v3321 = vpop.f32.mrb[0].mxu0
    %3322 = vmatprep.mubr.f32.mxu0 0.0
    %3323 = vmatmul.mubr.f32.gmra.mrb[0].mxu0 %v2935
    %v3324 = vpop.f32.mrb[0].mxu0
    %v3325 = vadd.f32 0.0, %v3324
    %v3326 = vpop.f32.mrb[0].mxu0
    %3327 = vmatprep.mubr.f32.mxu0 0.0
    %3328 = vmatmul.mubr.f32.gmra.mrb[0].mxu0 %v2938
    %v3329 = vpop.f32.mrb[0].mxu0
    %v3330 = vadd.f32 0.0, %v3329
    %v3331 = vpop.f32.mrb[0].mxu0
    %3332 = vmatprep.mubr.f32.mxu0 0.0
    %3333 = vmatmul.mubr.f32.gmra.mrb[0].mxu0 %v2941
    %v3334 = vpop.f32.mrb[0].mxu0
    %v3335 = vadd.f32 0.0, %v3334
    %v3336 = vpop.f32.mrb[0].mxu0
    %3337 = vmatprep.mubr.f32.mxu0 0.0
    %3338 = vmatmul.mubr.f32.gmra.mrb[0].mxu0 %v2944
    %v3339 = vpop.f32.mrb[0].mxu0
    %v3340 = vadd.f32 0.0, %v3339
    %v3341 = vpop.f32.mrb[0].mxu0
    %3342 = vmatprep.mubr.f32.mxu0 0.0
    %3343 = vmatmul.mubr.f32.gmra.mrb[0].mxu0 %v2947
    %v3344 = vpop.f32.mrb[0].mxu0
    %v3345 = vadd.f32 0.0, %v3344
    %v3346 = vpop.f32.mrb[0].mxu0
    %3347 = vmatprep.mubr.f32.mxu0 0.0
    %3348 = vmatmul.mubr.f32.gmra.mrb[0].mxu0 %v2950
    %v3349 = vpop.f32.mrb[0].mxu0
    %v3350 = vadd.f32 0.0, %v3349
    %v3351 = vpop.f32.mrb[0].mxu0
    %3352 = vmatprep.mubr.f32.mxu0 0.0
    %3353 = vmatmul.mubr.f32.gmra.mrb[0].mxu0 %v2953
    %v3354 = vpop.f32.mrb[0].mxu0
    %v3355 = vadd.f32 0.0, %v3354
    %v3356 = vpop.f32.mrb[0].mxu0
    %3357 = vmatprep.mubr.f32.mxu0 0.0
    %3358 = vmatmul.mubr.f32.gmra.mrb[0].mxu0 %v2956
    %v3359 = vpop.f32.mrb[0].mxu0
    %v3360 = vadd.f32 0.0, %v3359
    %v3361 = vpop.f32.mrb[0].mxu0
    %3362 = vmatprep.mubr.f32.mxu0 0.0
    %3363 = vmatmul.mubr.f32.gmra.mrb[0].mxu0 %v2959
    %v3364 = vpop.f32.mrb[0].mxu0
    %v3365 = vadd.f32 0.0, %v3364
    %v3366 = vpop.f32.mrb[0].mxu0
    %3367 = vmatprep.mubr.f32.mxu0 0.0
    %3368 = vmatmul.mubr.f32.gmra.mrb[0].mxu0 %v2962
    %v3369 = vpop.f32.mrb[0].mxu0
    %v3370 = vadd.f32 0.0, %v3369
    %v3371 = vpop.f32.mrb[0].mxu0
    %3372 = vmatprep.mubr.f32.mxu0 0.0
    %3373 = vmatmul.mubr.f32.gmra.mrb[0].mxu0 %v2965
    %v3374 = vpop.f32.mrb[0].mxu0
    %v3375 = vadd.f32 0.0, %v3374
    %v3376 = vpop.f32.mrb[0].mxu0
    %3377 = vmatprep.mubr.f32.mxu0 0.0
    %3378 = vmatmul.mubr.f32.gmra.mrb[0].mxu0 %v2968
    %v3379 = vpop.f32.mrb[0].mxu0
    %v3380 = vadd.f32 0.0, %v3379
    %v3381 = vpop.f32.mrb[0].mxu0
    %3382 = vmatprep.mubr.f32.mxu0 0.0
    %3383 = vmatmul.mubr.f32.gmra.mrb[0].mxu0 %v2971
    %v3384 = vpop.f32.mrb[0].mxu0
    %v3385 = vadd.f32 0.0, %v3384
    %v3386 = vpop.f32.mrb[0].mxu0
    %3387 = vmatprep.mubr.f32.mxu0 0.0
    %3388 = vmatmul.mubr.f32.gmra.mrb[0].mxu0 %v2974
    %v3389 = vpop.f32.mrb[0].mxu0
    %v3390 = vadd.f32 0.0, %v3389
    %v3391 = vpop.f32.mrb[0].mxu0
    %3392 = vmatprep.mubr.f32.mxu0 0.0
    %3393 = vmatmul.mubr.f32.gmra.mrb[0].mxu0 %v2977
    %v3394 = vpop.f32.mrb[0].mxu0
    %v3395 = vadd.f32 0.0, %v3394
    %v3396 = vpop.f32.mrb[0].mxu0
    %3397 = vmatprep.mubr.f32.mxu0 0.0
    %3398 = vmatmul.mubr.f32.gmra.mrb[0].mxu0 %v2980
    %v3399 = vpop.f32.mrb[0].mxu0
    %v3400 = vadd.f32 0.0, %v3399
    %v3401 = vpop.f32.mrb[0].mxu0
    %3402 = vmatprep.mubr.f32.mxu0 0.0
    %3403 = vmatmul.mubr.f32.gmra.mrb[0].mxu0 %v2983
    %v3404 = vpop.f32.mrb[0].mxu0
    %v3405 = vadd.f32 0.0, %v3404
    %v3406 = vpop.f32.mrb[0].mxu0
    %3407 = vmatprep.mubr.f32.mxu0 0.0
    %3408 = vmatmul.mubr.f32.gmra.mrb[0].mxu0 %v2986
    %v3409 = vpop.f32.mrb[0].mxu0
    %v3410 = vadd.f32 0.0, %v3409
    %v3411 = vpop.f32.mrb[0].mxu0
    %3412 = vmatprep.mubr.f32.mxu0 0.0
    %3413 = vmatmul.mubr.f32.gmra.mrb[0].mxu0 %v2989
    %v3414 = vpop.f32.mrb[0].mxu0
    %v3415 = vadd.f32 0.0, %v3414
    %v3416 = vpop.f32.mrb[0].mxu0
    %3417 = vmatprep.mubr.f32.mxu0 0.0
    %3418 = vmatmul.mubr.f32.gmra.mrb[0].mxu0 %v2992
    %v3419 = vpop.f32.mrb[0].mxu0
    %v3420 = vadd.f32 0.0, %v3419
    %v3421 = vpop.f32.mrb[0].mxu0
    %3422 = vmatprep.mubr.f32.mxu0 0.0
    %3423 = vmatmul.mubr.f32.gmra.mrb[0].mxu0 %v2995
    %v3424 = vpop.f32.mrb[0].mxu0
    %v3425 = vadd.f32 0.0, %v3424
    %v3426 = vpop.f32.mrb[0].mxu0
    %3427 = vmatprep.mubr.f32.mxu0 0.0
    %3428 = vmatmul.mubr.f32.gmra.mrb[0].mxu0 %v2998
    %v3429 = vpop.f32.mrb[0].mxu0
    %v3430 = vadd.f32 0.0, %v3429
    %v3431 = vpop.f32.mrb[0].mxu0
    %3432 = vmatprep.mubr.f32.mxu0 0.0
    %3433 = vmatmul.mubr.f32.gmra.mrb[0].mxu0 %v3001
    %v3434 = vpop.f32.mrb[0].mxu0
    %v3435 = vadd.f32 0.0, %v3434
    %v3436 = vpop.f32.mrb[0].mxu0
    %3437 = vmatprep.mubr.f32.mxu0 0.0
    %3438 = vmatmul.mubr.f32.gmra.mrb[0].mxu0 %v3004
    %v3439 = vpop.f32.mrb[0].mxu0
    %v3440 = vadd.f32 0.0, %v3439
    %v3441 = vpop.f32.mrb[0].mxu0
    %3442 = vmatprep.mubr.f32.mxu0 0.0
    %3443 = vmatmul.mubr.f32.gmra.mrb[0].mxu0 %v3007
    %v3444 = vpop.f32.mrb[0].mxu0
    %v3445 = vadd.f32 0.0, %v3444
    %v3446 = vpop.f32.mrb[0].mxu0
    %3447 = vmatprep.mubr.f32.mxu0 0.0
    %3448 = vmatmul.mubr.f32.gmra.mrb[0].mxu0 %v3010
    %v3449 = vpop.f32.mrb[0].mxu0
    %v3450 = vadd.f32 0.0, %v3449
    %v3451 = vpop.f32.mrb[0].mxu0
    %3452 = vmatprep.mubr.f32.mxu0 0.0
    %3453 = vmatmul.mubr.f32.gmra.mrb[0].mxu0 %v3013
    %v3454 = vpop.f32.mrb[0].mxu0
    %v3455 = vadd.f32 0.0, %v3454
    %v3456 = vpop.f32.mrb[0].mxu0
    %3457 = vmatprep.mubr.f32.mxu0 0.0
    %3458 = vmatmul.mubr.f32.gmra.mrb[0].mxu0 %v3016
    %v3459 = vpop.f32.mrb[0].mxu0
    %v3460 = vadd.f32 0.0, %v3459
    %v3461 = vpop.f32.mrb[0].mxu0
    %3462 = vmatprep.mubr.f32.mxu0 0.0
    %3463 = vmatmul.mubr.f32.gmra.mrb[0].mxu0 %v3019
    %v3464 = vpop.f32.mrb[0].mxu0
    %v3465 = vadd.f32 0.0, %v3464
    %v3466 = vpop.f32.mrb[0].mxu0
    %3467 = vmatprep.mubr.f32.mxu0 0.0
    %3468 = vmatmul.mubr.f32.gmra.mrb[0].mxu0 %v3022
    %v3469 = vpop.f32.mrb[0].mxu0
    %v3470 = vadd.f32 0.0, %v3469
    %v3471 = vpop.f32.mrb[0].mxu0
    %3472 = vmatprep.mubr.f32.mxu0 0.0
    %3473 = vmatmul.mubr.f32.gmra.mrb[0].mxu0 %v3025
    %v3474 = vpop.f32.mrb[0].mxu0
    %v3475 = vadd.f32 0.0, %v3474
    %v3476 = vpop.f32.mrb[0].mxu0
    %3477 = vmatprep.mubr.f32.mxu0 0.0
    %3478 = vmatmul.mubr.f32.gmra.mrb[0].mxu0 %v3028
    %v3479 = vpop.f32.mrb[0].mxu0
    %v3480 = vadd.f32 0.0, %v3479
    %v3481 = vpop.f32.mrb[0].mxu0
    %3482 = vmatprep.mubr.f32.mxu0 0.0
    %3483 = vmatmul.mubr.f32.gmra.mrb[0].mxu0 %v3031
    %v3484 = vpop.f32.mrb[0].mxu0
    %v3485 = vadd.f32 0.0, %v3484
    %v3486 = vpop.f32.mrb[0].mxu0
    %3487 = vmatprep.mubr.f32.mxu0 0.0
    %3488 = vmatmul.mubr.f32.gmra.mrb[0].mxu0 %v3034
    %v3489 = vpop.f32.mrb[0].mxu0
    %v3490 = vadd.f32 0.0, %v3489
    %v3491 = vpop.f32.mrb[0].mxu0
    %3492 = vmatprep.mubr.f32.mxu0 0.0
    %3493 = vmatmul.mubr.f32.gmra.mrb[0].mxu0 %v3037
    %v3494 = vpop.f32.mrb[0].mxu0
    %v3495 = vadd.f32 0.0, %v3494
    %v3496 = vpop.f32.mrb[0].mxu0
    %3497 = vmatprep.mubr.f32.mxu0 0.0
    %3498 = vmatmul.mubr.f32.gmra.mrb[0].mxu0 %v3040
    %v3499 = vpop.f32.mrb[0].mxu0
    %v3500 = vadd.f32 0.0, %v3499
    %v3501 = vpop.f32.mrb[0].mxu0
    %3502 = vmatprep.mubr.f32.mxu0 0.0
    %3503 = vmatmul.mubr.f32.gmra.mrb[0].mxu0 %v3043
    %v3504 = vpop.f32.mrb[0].mxu0
    %v3505 = vadd.f32 0.0, %v3504
    %v3506 = vpop.f32.mrb[0].mxu0
    %3507 = vmatprep.mubr.f32.mxu0 0.0
    %3508 = vmatmul.mubr.f32.gmra.mrb[0].mxu0 %v3046
    %v3509 = vpop.f32.mrb[0].mxu0
    %v3510 = vadd.f32 0.0, %v3509
    %v3511 = vpop.f32.mrb[0].mxu0
    %3512 = vmatprep.mubr.f32.mxu0 0.0
    %3513 = vmatmul.mubr.f32.gmra.mrb[0].mxu0 %v3049
    %v3514 = vpop.f32.mrb[0].mxu0
    %v3515 = vadd.f32 0.0, %v3514
    %v3516 = vpop.f32.mrb[0].mxu0
    %3517 = vmatprep.mubr.f32.mxu0 0.0
    %3518 = vmatmul.mubr.f32.gmra.mrb[0].mxu0 %v3052
    %v3519 = vpop.f32.mrb[0].mxu0
    %v3520 = vadd.f32 0.0, %v3519
    %v3521 = vpop.f32.mrb[0].mxu0
    %3522 = vmatprep.mubr.f32.mxu0 0.0
    %3523 = vmatmul.mubr.f32.gmra.mrb[0].mxu0 %v3055
    %v3524 = vpop.f32.mrb[0].mxu0
    %v3525 = vadd.f32 0.0, %v3524
    %v3526 = vpop.f32.mrb[0].mxu0
    %3527 = vmatprep.mubr.f32.mxu0 0.0
    %3528 = vmatmul.mubr.f32.gmra.mrb[0].mxu0 %v3058
    %v3529 = vpop.f32.mrb[0].mxu0
    %v3530 = vadd.f32 0.0, %v3529
    %v3531 = vpop.f32.mrb[0].mxu0
    %3532 = vmatprep.mubr.f32.mxu0 0.0
    %3533 = vmatmul.mubr.f32.gmra.mrb[0].mxu0 %v3061
    %v3534 = vpop.f32.mrb[0].mxu0
    %v3535 = vadd.f32 0.0, %v3534
    %v3536 = vpop.f32.mrb[0].mxu0
    %3537 = vmatprep.mubr.f32.mxu0 0.0
    %3538 = vmatmul.mubr.f32.gmra.mrb[0].mxu0 %v3064
    %v3539 = vpop.f32.mrb[0].mxu0
    %v3540 = vadd.f32 0.0, %v3539
    %v3541 = vpop.f32.mrb[0].mxu0
    %3542 = vmatprep.mubr.f32.mxu0 0.0
    %3543 = vmatmul.mubr.f32.gmra.mrb[0].mxu0 %v3067
    %v3544 = vpop.f32.mrb[0].mxu0
    %v3545 = vadd.f32 0.0, %v3544
    %v3546 = vpop.f32.mrb[0].mxu0
    %3547 = vmatprep.mubr.f32.mxu0 0.0
    %3548 = vmatmul.mubr.f32.gmra.mrb[0].mxu0 %v3070
    %v3549 = vpop.f32.mrb[0].mxu0
    %v3550 = vadd.f32 0.0, %v3549
    %v3551 = vpop.f32.mrb[0].mxu0
    %3552 = vmatprep.mubr.f32.mxu0 0.0
    %3553 = vmatmul.mubr.f32.gmra.mrb[0].mxu0 %v3073
    %v3554 = vpop.f32.mrb[0].mxu0
    %v3555 = vadd.f32 0.0, %v3554
    %v3556 = vpop.f32.mrb[0].mxu0
    %3557 = vmatprep.mubr.f32.mxu0 0.0
    %3558 = vmatmul.mubr.f32.gmra.mrb[0].mxu0 %v3076
    %v3559 = vpop.f32.mrb[0].mxu0
    %v3560 = vadd.f32 0.0, %v3559
    %v3561 = vpop.f32.mrb[0].mxu0
    %3562 = vmatprep.mubr.f32.mxu0 0.0
    %3563 = vmatmul.mubr.f32.gmra.mrb[0].mxu0 %v3079
    %v3564 = vpop.f32.mrb[0].mxu0
    %v3565 = vadd.f32 0.0, %v3564
    %v3566 = vpop.f32.mrb[0].mxu0
    %3567 = vmatprep.mubr.f32.mxu0 0.0
    %3568 = vmatmul.mubr.f32.gmra.mrb[0].mxu0 %v3082
    %v3569 = vpop.f32.mrb[0].mxu0
    %v3570 = vadd.f32 0.0, %v3569
    %v3571 = vpop.f32.mrb[0].mxu0
    %3572 = vmatprep.mubr.f32.mxu0 0.0
    %3573 = vmatmul.mubr.f32.gmra.mrb[0].mxu0 %v3085
    %v3574 = vpop.f32.mrb[0].mxu0
    %v3575 = vadd.f32 0.0, %v3574
    %v3576 = vpop.f32.mrb[0].mxu0
    %3577 = vmatprep.mubr.f32.mxu0 0.0
    %3578 = vmatmul.mubr.f32.gmra.mrb[0].mxu0 %v3088
    %v3579 = vpop.f32.mrb[0].mxu0
    %v3580 = vadd.f32 0.0, %v3579
    %v3581 = vpop.f32.mrb[0].mxu0
    %3582 = vmatprep.mubr.f32.mxu0 0.0
    %3583 = vmatmul.mubr.f32.gmra.mrb[0].mxu0 %v3091
    %v3584 = vpop.f32.mrb[0].mxu0
    %v3585 = vadd.f32 0.0, %v3584
    %v3586 = vpop.f32.mrb[0].mxu0
    %3587 = vmatprep.mubr.f32.mxu0 0.0
    %3588 = vmatmul.mubr.f32.gmra.mrb[0].mxu0 %v3094
    %v3589 = vpop.f32.mrb[0].mxu0
    %v3590 = vadd.f32 0.0, %v3589
    %v3591 = vpop.f32.mrb[0].mxu0
    %3592 = vmatprep.mubr.f32.mxu0 0.0
    %3593 = vmatmul.mubr.f32.gmra.mrb[0].mxu0 %v3097
    %v3594 = vpop.f32.mrb[0].mxu0
    %v3595 = vadd.f32 0.0, %v3594
    %v3596 = vpop.f32.mrb[0].mxu0
    %3597 = vmatprep.mubr.f32.mxu0 0.0
    %3598 = vmatmul.mubr.f32.gmra.mrb[0].mxu0 %v3100
    %v3599 = vpop.f32.mrb[0].mxu0
    %v3600 = vadd.f32 0.0, %v3599
    %v3601 = vpop.f32.mrb[0].mxu0
    %3602 = vmatprep.mubr.f32.mxu0 0.0
    %3603 = vmatmul.mubr.f32.gmra.mrb[0].mxu0 %v3103
    %v3604 = vpop.f32.mrb[0].mxu0
    %v3605 = vadd.f32 0.0, %v3604
    %v3606 = vpop.f32.mrb[0].mxu0
    %3607 = vmatprep.mubr.f32.mxu0 0.0
    %3608 = vmatmul.mubr.f32.gmra.mrb[0].mxu0 %v3106
    %v3609 = vpop.f32.mrb[0].mxu0
    %v3610 = vadd.f32 0.0, %v3609
    %v3611 = vpop.f32.mrb[0].mxu0
    %3612 = vmatprep.mubr.f32.mxu0 0.0
    %3613 = vmatmul.mubr.f32.gmra.mrb[0].mxu0 %v3109
    %v3614 = vpop.f32.mrb[0].mxu0
    %v3615 = vadd.f32 0.0, %v3614
    %v3616 = vpop.f32.mrb[0].mxu0
    %3617 = vmatprep.mubr.f32.mxu0 0.0
    %3618 = vmatmul.mubr.f32.gmra.mrb[0].mxu0 %v3112
    %v3619 = vpop.f32.mrb[0].mxu0
    %v3620 = vadd.f32 0.0, %v3619
    %v3621 = vpop.f32.mrb[0].mxu0
    %3622 = vmatprep.mubr.f32.mxu0 0.0
    %3623 = vmatmul.mubr.f32.gmra.mrb[0].mxu0 %v3115
    %v3624 = vpop.f32.mrb[0].mxu0
    %v3625 = vadd.f32 0.0, %v3624
    %v3626 = vpop.f32.mrb[0].mxu0
    %3627 = vmatprep.mubr.f32.mxu0 0.0
    %3628 = vmatmul.mubr.f32.gmra.mrb[0].mxu0 %v3118
    %v3629 = vpop.f32.mrb[0].mxu0
    %v3630 = vadd.f32 0.0, %v3629
    %v3631 = vpop.f32.mrb[0].mxu0
    %3632 = vmatprep.mubr.f32.mxu0 0.0
    %3633 = vmatmul.mubr.f32.gmra.mrb[0].mxu0 %v3121
    %v3634 = vpop.f32.mrb[0].mxu0
    %v3635 = vadd.f32 0.0, %v3634
    %v3636 = vpop.f32.mrb[0].mxu0
    %3637 = vdwg.mxu0
    %v3638 = vadd.f32 %v2671, %v3190
    %v3639 = vadd.f32 %v2672, %v3195
    %v3640 = vadd.f32 %v2673, %v3200
    %v3641 = vadd.f32 %v2674, %v3205
    %v3642 = vadd.f32 %v2675, %v3210
    %v3643 = vadd.f32 %v2676, %v3215
    %v3644 = vadd.f32 %v2677, %v3220
    %v3645 = vadd.f32 %v2678, %v3225
    %v3646 = vadd.f32 %v2679, %v3230
    %v3647 = vadd.f32 %v2680, %v3235
    %v3648 = vadd.f32 %v2681, %v3240
    %v3649 = vadd.f32 %v2682, %v3245
    %v3650 = vadd.f32 %v2683, %v3250
    %v3651 = vadd.f32 %v2684, %v3255
    %v3652 = vadd.f32 %v2685, %v3260
    %v3653 = vadd.f32 %v2686, %v3265
    %v3654 = vadd.f32 %v2687, %v3270
    %v3655 = vadd.f32 %v2688, %v3275
    %v3656 = vadd.f32 %v2689, %v3280
    %v3657 = vadd.f32 %v2690, %v3285
    %v3658 = vadd.f32 %v2691, %v3290
    %v3659 = vadd.f32 %v2692, %v3295
    %v3660 = vadd.f32 %v2693, %v3300
    %v3661 = vadd.f32 %v2694, %v3305
    %v3662 = vadd.f32 %v2695, %v3310
    %v3663 = vadd.f32 %v2696, %v3315
    %v3664 = vadd.f32 %v2697, %v3320
    %v3665 = vadd.f32 %v2698, %v3325
    %v3666 = vadd.f32 %v2699, %v3330
    %v3667 = vadd.f32 %v2700, %v3335
    %v3668 = vadd.f32 %v2701, %v3340
    %v3669 = vadd.f32 %v2702, %v3345
    %v3670 = vadd.f32 %v2703, %v3350
    %v3671 = vadd.f32 %v2704, %v3355
    %v3672 = vadd.f32 %v2705, %v3360
    %v3673 = vadd.f32 %v2706, %v3365
    %v3674 = vadd.f32 %v2707, %v3370
    %v3675 = vadd.f32 %v2708, %v3375
    %v3676 = vadd.f32 %v2709, %v3380
    %v3677 = vadd.f32 %v2710, %v3385
    %v3678 = vadd.f32 %v2711, %v3390
    %v3679 = vadd.f32 %v2712, %v3395
    %v3680 = vadd.f32 %v2713, %v3400
    %v3681 = vadd.f32 %v2714, %v3405
    %v3682 = vadd.f32 %v2715, %v3410
    %v3683 = vadd.f32 %v2716, %v3415
    %v3684 = vadd.f32 %v2717, %v3420
    %v3685 = vadd.f32 %v2718, %v3425
    %v3686 = vadd.f32 %v2719, %v3430
    %v3687 = vadd.f32 %v2720, %v3435
    %v3688 = vadd.f32 %v2721, %v3440
    %v3689 = vadd.f32 %v2722, %v3445
    %v3690 = vadd.f32 %v2723, %v3450
    %v3691 = vadd.f32 %v2724, %v3455
    %v3692 = vadd.f32 %v2725, %v3460
    %v3693 = vadd.f32 %v2726, %v3465
    %v3694 = vadd.f32 %v2727, %v3470
    %v3695 = vadd.f32 %v2728, %v3475
    %v3696 = vadd.f32 %v2729, %v3480
    %v3697 = vadd.f32 %v2730, %v3485
    %v3698 = vadd.f32 %v2731, %v3490
    %v3699 = vadd.f32 %v2732, %v3495
    %v3700 = vadd.f32 %v2733, %v3500
    %v3701 = vadd.f32 %v2734, %v3505
    %v3702 = vadd.f32 %v2735, %v3510
    %v3703 = vadd.f32 %v2736, %v3515
    %v3704 = vadd.f32 %v2737, %v3520
    %v3705 = vadd.f32 %v2738, %v3525
    %v3706 = vadd.f32 %v2739, %v3530
    %v3707 = vadd.f32 %v2740, %v3535
    %v3708 = vadd.f32 %v2741, %v3540
    %v3709 = vadd.f32 %v2742, %v3545
    %v3710 = vadd.f32 %v2743, %v3550
    %v3711 = vadd.f32 %v2744, %v3555
    %v3712 = vadd.f32 %v2745, %v3560
    %v3713 = vadd.f32 %v2746, %v3565
    %v3714 = vadd.f32 %v2747, %v3570
    %v3715 = vadd.f32 %v2748, %v3575
    %v3716 = vadd.f32 %v2749, %v3580
    %v3717 = vadd.f32 %v2750, %v3585
    %v3718 = vadd.f32 %v2751, %v3590
    %v3719 = vadd.f32 %v2752, %v3595
    %v3720 = vadd.f32 %v2753, %v3600
    %v3721 = vadd.f32 %v2754, %v3605
    %v3722 = vadd.f32 %v2755, %v3610
    %v3723 = vadd.f32 %v2756, %v3615
    %v3724 = vadd.f32 %v2757, %v3620
    %v3725 = vadd.f32 %v2758, %v3625
    %v3726 = vadd.f32 %v2759, %v3630
    %v3727 = vadd.f32 %v2760, %v3635
    %v3728 = vld [vmem:[%s0 + $0x14] sm:$0xff]
    %v3729 = vld [vmem:[%s0 + $0x1c] sm:$0xff]
    %v3730 = vld [vmem:[%s0 + $0x24] sm:$0xff]
    %v3731 = vld [vmem:[%s0 + $0x2c] sm:$0xff]
    %v3732 = vld [vmem:[%s0 + $0x34] sm:$0xff]
    %v3733 = vld [vmem:[%s0 + $0x3c] sm:$0xff]
    %v3734 = vld [vmem:[%s0 + $0x44] sm:$0xff]
    %v3735 = vld [vmem:[%s0 + $0x4c] sm:$0xff]
    %v3736 = vld [vmem:[%s0 + $0x54] sm:$0xff]
    %v3737 = vld [vmem:[%s0 + $0x5c] sm:$0xff]
    %v3738 = vld [vmem:[%s0 + $0x64] sm:$0xff]
    %v3739 = vld [vmem:[%s0 + $0x6c] sm:$0xff]
    %v3740 = vld [vmem:[%s0 + $0x74] sm:$0xff]
    %v3741 = vld [vmem:[%s0 + $0x7c] sm:$0xff]
    %v3742 = vld [vmem:[%s0 + $0x84] sm:$0xff]
    %v3743 = vld [vmem:[%s0 + $0x8c] sm:$0xff]
    %v3744 = vld [vmem:[%s0 + $0x94] sm:$0xff]
    %v3745 = vld [vmem:[%s0 + $0x9c] sm:$0xff]
    %v3746 = vld [vmem:[%s0 + $0xa4] sm:$0xff]
    %v3747 = vld [vmem:[%s0 + $0xac] sm:$0xff]
    %v3748 = vld [vmem:[%s0 + $0xb4] sm:$0xff]
    %v3749 = vld [vmem:[%s0 + $0xbc] sm:$0xff]
    %v3750 = vld [vmem:[%s0 + $0xc4] sm:$0xff]
    %v3751 = vld [vmem:[%s0 + $0xcc] sm:$0xff]
    %v3752 = vld [vmem:[%s0 + $0xd4] sm:$0xff]
    %v3753 = vld [vmem:[%s0 + $0xdc] sm:$0xff]
    %v3754 = vld [vmem:[%s0 + $0xe4] sm:$0xff]
    %v3755 = vld [vmem:[%s0 + $0xec] sm:$0xff]
    %v3756 = vld [vmem:[%s0 + $0xf4] sm:$0xff]
    %v3757 = vld [vmem:[%s0 + $0xfc] sm:$0xff]
    %v3758 = vld [vmem:[%s0 + $0x104] sm:$0xff]
    %v3759 = vld [vmem:[%s0 + $0x10c] sm:$0xff]
    %v3760 = vld [vmem:[%s0 + $0x114] sm:$0xff]
    %v3761 = vld [vmem:[%s0 + $0x11c] sm:$0xff]
    %v3762 = vld [vmem:[%s0 + $0x124] sm:$0xff]
    %v3763 = vld [vmem:[%s0 + $0x12c] sm:$0xff]
    %v3764 = vld [vmem:[%s0 + $0x134] sm:$0xff]
    %v3765 = vld [vmem:[%s0 + $0x13c] sm:$0xff]
    %v3766 = vld [vmem:[%s0 + $0x144] sm:$0xff]
    %v3767 = vld [vmem:[%s0 + $0x14c] sm:$0xff]
    %v3768 = vld [vmem:[%s0 + $0x154] sm:$0xff]
    %v3769 = vld [vmem:[%s0 + $0x15c] sm:$0xff]
    %v3770 = vld [vmem:[%s0 + $0x164] sm:$0xff]
    %v3771 = vld [vmem:[%s0 + $0x16c] sm:$0xff]
    %v3772 = vld [vmem:[%s0 + $0x174] sm:$0xff]
    %v3773 = vld [vmem:[%s0 + $0x17c] sm:$0xff]
    %v3774 = vld [vmem:[%s0 + $0x184] sm:$0xff]
    %v3775 = vld [vmem:[%s0 + $0x18c] sm:$0xff]
    %v3776 = vld [vmem:[%s0 + $0x194] sm:$0xff]
    %v3777 = vld [vmem:[%s0 + $0x19c] sm:$0xff]
    %v3778 = vld [vmem:[%s0 + $0x1a4] sm:$0xff]
    %v3779 = vld [vmem:[%s0 + $0x1ac] sm:$0xff]
    %v3780 = vld [vmem:[%s0 + $0x1b4] sm:$0xff]
    %v3781 = vld [vmem:[%s0 + $0x1bc] sm:$0xff]
    %v3782 = vld [vmem:[%s0 + $0x1c4] sm:$0xff]
    %v3783 = vld [vmem:[%s0 + $0x1cc] sm:$0xff]
    %v3784 = vld [vmem:[%s0 + $0x1d4] sm:$0xff]
    %v3785 = vld [vmem:[%s0 + $0x1dc] sm:$0xff]
    %v3786 = vld [vmem:[%s0 + $0x1e4] sm:$0xff]
    %v3787 = vld [vmem:[%s0 + $0x1ec] sm:$0xff]
    %v3788 = vld [vmem:[%s0 + $0x1f4] sm:$0xff]
    %v3789 = vld [vmem:[%s0 + $0x1fc] sm:$0xff]
    %v3790 = vld [vmem:[%s0 + $0x204] sm:$0xff]
    %v3791 = vld [vmem:[%s0 + $0x20c] sm:$0xff]
    %v3792 = vld [vmem:[%s0 + $0x214] sm:$0xff]
    %v3793 = vld [vmem:[%s0 + $0x21c] sm:$0xff]
    %v3794 = vld [vmem:[%s0 + $0x224] sm:$0xff]
    %v3795 = vld [vmem:[%s0 + $0x22c] sm:$0xff]
    %v3796 = vld [vmem:[%s0 + $0x234] sm:$0xff]
    %v3797 = vld [vmem:[%s0 + $0x23c] sm:$0xff]
    %v3798 = vld [vmem:[%s0 + $0x244] sm:$0xff]
    %v3799 = vld [vmem:[%s0 + $0x24c] sm:$0xff]
    %v3800 = vld [vmem:[%s0 + $0x254] sm:$0xff]
    %v3801 = vld [vmem:[%s0 + $0x25c] sm:$0xff]
    %v3802 = vld [vmem:[%s0 + $0x264] sm:$0xff]
    %v3803 = vld [vmem:[%s0 + $0x26c] sm:$0xff]
    %v3804 = vld [vmem:[%s0 + $0x274] sm:$0xff]
    %v3805 = vld [vmem:[%s0 + $0x27c] sm:$0xff]
    %v3806 = vld [vmem:[%s0 + $0x284] sm:$0xff]
    %v3807 = vld [vmem:[%s0 + $0x28c] sm:$0xff]
    %v3808 = vld [vmem:[%s0 + $0x294] sm:$0xff]
    %v3809 = vld [vmem:[%s0 + $0x29c] sm:$0xff]
    %v3810 = vld [vmem:[%s0 + $0x2a4] sm:$0xff]
    %v3811 = vld [vmem:[%s0 + $0x2ac] sm:$0xff]
    %v3812 = vld [vmem:[%s0 + $0x2b4] sm:$0xff]
    %v3813 = vld [vmem:[%s0 + $0x2bc] sm:$0xff]
    %v3814 = vld [vmem:[%s0 + $0x2c4] sm:$0xff]
    %v3815 = vld [vmem:[%s0 + $0x2cc] sm:$0xff]
    %v3816 = vld [vmem:[%s0 + $0x2d4] sm:$0xff]
    %v3817 = vld [vmem:[%s0 + $0x2dc] sm:$0xff]
    %s3818 = scalar_lea.vmem %s1, 32
    %v3819 = vld [vmem:[%s3818] sm:$0xff]
    %v3821 = vsel %vm223, %v3728, 0
    %v3824 = vsel %vm223, %v3729, 0
    %v3827 = vsel %vm223, %v3730, 0
    %v3830 = vsel %vm223, %v3731, 0
    %v3833 = vsel %vm223, %v3732, 0
    %v3836 = vsel %vm223, %v3733, 0
    %v3839 = vsel %vm223, %v3734, 0
    %v3842 = vsel %vm223, %v3735, 0
    %v3845 = vsel %vm223, %v3736, 0
    %v3848 = vsel %vm223, %v3737, 0
    %v3851 = vsel %vm223, %v3738, 0
    %v3854 = vsel %vm223, %v3739, 0
    %v3857 = vsel %vm223, %v3740, 0
    %v3860 = vsel %vm223, %v3741, 0
    %v3863 = vsel %vm223, %v3742, 0
    %v3866 = vsel %vm223, %v3743, 0
    %v3869 = vsel %vm223, %v3744, 0
    %v3872 = vsel %vm223, %v3745, 0
    %v3875 = vsel %vm223, %v3746, 0
    %v3878 = vsel %vm223, %v3747, 0
    %v3881 = vsel %vm223, %v3748, 0
    %v3884 = vsel %vm223, %v3749, 0
    %v3887 = vsel %vm223, %v3750, 0
    %v3890 = vsel %vm223, %v3751, 0
    %v3893 = vsel %vm223, %v3752, 0
    %v3896 = vsel %vm223, %v3753, 0
    %v3899 = vsel %vm223, %v3754, 0
    %v3902 = vsel %vm223, %v3755, 0
    %v3905 = vsel %vm223, %v3756, 0
    %v3908 = vsel %vm223, %v3757, 0
    %v3911 = vsel %vm223, %v3758, 0
    %v3914 = vsel %vm223, %v3759, 0
    %v3917 = vsel %vm223, %v3760, 0
    %v3920 = vsel %vm223, %v3761, 0
    %v3923 = vsel %vm223, %v3762, 0
    %v3926 = vsel %vm223, %v3763, 0
    %v3929 = vsel %vm223, %v3764, 0
    %v3932 = vsel %vm223, %v3765, 0
    %v3935 = vsel %vm223, %v3766, 0
    %v3938 = vsel %vm223, %v3767, 0
    %v3941 = vsel %vm223, %v3768, 0
    %v3944 = vsel %vm223, %v3769, 0
    %v3947 = vsel %vm223, %v3770, 0
    %v3950 = vsel %vm223, %v3771, 0
    %v3953 = vsel %vm223, %v3772, 0
    %v3956 = vsel %vm223, %v3773, 0
    %v3959 = vsel %vm223, %v3774, 0
    %v3962 = vsel %vm223, %v3775, 0
    %v3965 = vsel %vm223, %v3776, 0
    %v3968 = vsel %vm223, %v3777, 0
    %v3971 = vsel %vm223, %v3778, 0
    %v3974 = vsel %vm223, %v3779, 0
    %v3977 = vsel %vm223, %v3780, 0
    %v3980 = vsel %vm223, %v3781, 0
    %v3983 = vsel %vm223, %v3782, 0
    %v3986 = vsel %vm223, %v3783, 0
    %v3989 = vsel %vm223, %v3784, 0
    %v3992 = vsel %vm223, %v3785, 0
    %v3995 = vsel %vm223, %v3786, 0
    %v3998 = vsel %vm223, %v3787, 0
    %v4001 = vsel %vm223, %v3788, 0
    %v4004 = vsel %vm223, %v3789, 0
    %v4007 = vsel %vm223, %v3790, 0
    %v4010 = vsel %vm223, %v3791, 0
    %v4013 = vsel %vm223, %v3792, 0
    %v4016 = vsel %vm223, %v3793, 0
    %v4019 = vsel %vm223, %v3794, 0
    %v4022 = vsel %vm223, %v3795, 0
    %v4025 = vsel %vm223, %v3796, 0
    %v4028 = vsel %vm223, %v3797, 0
    %v4031 = vsel %vm223, %v3798, 0
    %v4034 = vsel %vm223, %v3799, 0
    %v4037 = vsel %vm223, %v3800, 0
    %v4040 = vsel %vm223, %v3801, 0
    %v4043 = vsel %vm223, %v3802, 0
    %v4046 = vsel %vm223, %v3803, 0
    %v4049 = vsel %vm223, %v3804, 0
    %v4052 = vsel %vm223, %v3805, 0
    %v4055 = vsel %vm223, %v3806, 0
    %v4058 = vsel %vm223, %v3807, 0
    %v4061 = vsel %vm223, %v3808, 0
    %v4064 = vsel %vm223, %v3809, 0
    %v4067 = vsel %vm223, %v3810, 0
    %v4070 = vsel %vm223, %v3811, 0
    %v4073 = vsel %vm223, %v3812, 0
    %v4076 = vsel %vm223, %v3813, 0
    %v4079 = vsel %vm223, %v3814, 0
    %v4082 = vsel %vm223, %v3815, 0
    %v4085 = vsel %vm223, %v3816, 0
    %v4088 = vsel %vm223, %v3817, 0
    %4090 = vmatprep.subr.mxu0 0.0
    %4091 = vmatpush1.msra.mxu0 %v3819
    %4092 = vmatprep.subr.mxu0 0.0
    %4093 = vmatpush1.msra.mxu0 0.0
    %4094 = vmatprep.subr.mxu0 0.0
    %4095 = vmatpush1.msra.mxu0 0.0
    %4096 = vmatprep.subr.mxu0 0.0
    %4097 = vmatpush1.msra.mxu0 0.0
    %4098 = vmatprep.subr.mxu0 0.0
    %4099 = vmatpush1.msra.mxu0 0.0
    %4100 = vmatprep.subr.mxu0 0.0
    %4101 = vmatpush1.msra.mxu0 0.0
    %4102 = vmatprep.subr.mxu0 0.0
    %4103 = vmatpush1.msra.mxu0 0.0
    %4104 = vmatprep.subr.mxu0 0.0
    %4105 = vmatpush1.msra.mxu0 0.0
    %4106 = vmatprep.subr.mxu0 0.0
    %4107 = vmatpush1.msra.mxu0 0.0
    %4108 = vmatprep.subr.mxu0 0.0
    %4109 = vmatpush1.msra.mxu0 0.0
    %4110 = vmatprep.subr.mxu0 0.0
    %4111 = vmatpush1.msra.mxu0 0.0
    %4112 = vmatprep.subr.mxu0 0.0
    %4113 = vmatpush1.msra.mxu0 0.0
    %4114 = vmatprep.subr.mxu0 0.0
    %4115 = vmatpush1.msra.mxu0 0.0
    %4116 = vmatprep.subr.mxu0 0.0
    %4117 = vmatpush1.msra.mxu0 0.0
    %4118 = vmatprep.subr.mxu0 0.0
    %4119 = vmatpush1.msra.mxu0 0.0
    %4120 = vmatprep.subr.mxu0 0.0
    %4121 = vmatpush1.msra.mxu0 0.0
    %4122 = vmatprep.subr.mxu0 0.0
    %4123 = vmatpush1.msra.mxu0 0.0
    %4124 = vmatprep.subr.mxu0 0.0
    %4125 = vmatpush1.msra.mxu0 0.0
    %4126 = vmatprep.subr.mxu0 0.0
    %4127 = vmatpush1.msra.mxu0 0.0
    %4128 = vmatprep.subr.mxu0 0.0
    %4129 = vmatpush1.msra.mxu0 0.0
    %4130 = vmatprep.subr.mxu0 0.0
    %4131 = vmatpush1.msra.mxu0 0.0
    %4132 = vmatprep.subr.mxu0 0.0
    %4133 = vmatpush1.msra.mxu0 0.0
    %4134 = vmatprep.subr.mxu0 0.0
    %4135 = vmatpush1.msra.mxu0 0.0
    %4136 = vmatprep.subr.mxu0 0.0
    %4137 = vmatpush1.msra.mxu0 0.0
    %4138 = vmatprep.subr.mxu0 0.0
    %4139 = vmatpush1.msra.mxu0 0.0
    %4140 = vmatprep.subr.mxu0 0.0
    %4141 = vmatpush1.msra.mxu0 0.0
    %4142 = vmatprep.subr.mxu0 0.0
    %4143 = vmatpush1.msra.mxu0 0.0
    %4144 = vmatprep.subr.mxu0 0.0
    %4145 = vmatpush1.msra.mxu0 0.0
    %4146 = vmatprep.subr.mxu0 0.0
    %4147 = vmatpush1.msra.mxu0 0.0
    %4148 = vmatprep.subr.mxu0 0.0
    %4149 = vmatpush1.msra.mxu0 0.0
    %4150 = vmatprep.subr.mxu0 0.0
    %4151 = vmatpush1.msra.mxu0 0.0
    %4152 = vmatprep.subr.mxu0 0.0
    %4153 = vmatpush1.msra.mxu0 0.0
    %4154 = vmatprep.mubr.f32.mxu0 0.0
    %4155 = vmatmul.mubr.f32.gmra.mrb[0].mxu0 %v3821
    %v4156 = vpop.f32.mrb[0].mxu0
    %v4157 = vadd.f32 0.0, %v4156
    %v4158 = vpop.f32.mrb[0].mxu0
    %4159 = vmatprep.mubr.f32.mxu0 0.0
    %4160 = vmatmul.mubr.f32.gmra.mrb[0].mxu0 %v3824
    %v4161 = vpop.f32.mrb[0].mxu0
    %v4162 = vadd.f32 0.0, %v4161
    %v4163 = vpop.f32.mrb[0].mxu0
    %4164 = vmatprep.mubr.f32.mxu0 0.0
    %4165 = vmatmul.mubr.f32.gmra.mrb[0].mxu0 %v3827
    %v4166 = vpop.f32.mrb[0].mxu0
    %v4167 = vadd.f32 0.0, %v4166
    %v4168 = vpop.f32.mrb[0].mxu0
    %4169 = vmatprep.mubr.f32.mxu0 0.0
    %4170 = vmatmul.mubr.f32.gmra.mrb[0].mxu0 %v3830
    %v4171 = vpop.f32.mrb[0].mxu0
    %v4172 = vadd.f32 0.0, %v4171
    %v4173 = vpop.f32.mrb[0].mxu0
    %4174 = vmatprep.mubr.f32.mxu0 0.0
    %4175 = vmatmul.mubr.f32.gmra.mrb[0].mxu0 %v3833
    %v4176 = vpop.f32.mrb[0].mxu0
    %v4177 = vadd.f32 0.0, %v4176
    %v4178 = vpop.f32.mrb[0].mxu0
    %4179 = vmatprep.mubr.f32.mxu0 0.0
    %4180 = vmatmul.mubr.f32.gmra.mrb[0].mxu0 %v3836
    %v4181 = vpop.f32.mrb[0].mxu0
    %v4182 = vadd.f32 0.0, %v4181
    %v4183 = vpop.f32.mrb[0].mxu0
    %4184 = vmatprep.mubr.f32.mxu0 0.0
    %4185 = vmatmul.mubr.f32.gmra.mrb[0].mxu0 %v3839
    %v4186 = vpop.f32.mrb[0].mxu0
    %v4187 = vadd.f32 0.0, %v4186
    %v4188 = vpop.f32.mrb[0].mxu0
    %4189 = vmatprep.mubr.f32.mxu0 0.0
    %4190 = vmatmul.mubr.f32.gmra.mrb[0].mxu0 %v3842
    %v4191 = vpop.f32.mrb[0].mxu0
    %v4192 = vadd.f32 0.0, %v4191
    %v4193 = vpop.f32.mrb[0].mxu0
    %4194 = vmatprep.mubr.f32.mxu0 0.0
    %4195 = vmatmul.mubr.f32.gmra.mrb[0].mxu0 %v3845
    %v4196 = vpop.f32.mrb[0].mxu0
    %v4197 = vadd.f32 0.0, %v4196
    %v4198 = vpop.f32.mrb[0].mxu0
    %4199 = vmatprep.mubr.f32.mxu0 0.0
    %4200 = vmatmul.mubr.f32.gmra.mrb[0].mxu0 %v3848
    %v4201 = vpop.f32.mrb[0].mxu0
    %v4202 = vadd.f32 0.0, %v4201
    %v4203 = vpop.f32.mrb[0].mxu0
    %4204 = vmatprep.mubr.f32.mxu0 0.0
    %4205 = vmatmul.mubr.f32.gmra.mrb[0].mxu0 %v3851
    %v4206 = vpop.f32.mrb[0].mxu0
    %v4207 = vadd.f32 0.0, %v4206
    %v4208 = vpop.f32.mrb[0].mxu0
    %4209 = vmatprep.mubr.f32.mxu0 0.0
    %4210 = vmatmul.mubr.f32.gmra.mrb[0].mxu0 %v3854
    %v4211 = vpop.f32.mrb[0].mxu0
    %v4212 = vadd.f32 0.0, %v4211
    %v4213 = vpop.f32.mrb[0].mxu0
    %4214 = vmatprep.mubr.f32.mxu0 0.0
    %4215 = vmatmul.mubr.f32.gmra.mrb[0].mxu0 %v3857
    %v4216 = vpop.f32.mrb[0].mxu0
    %v4217 = vadd.f32 0.0, %v4216
    %v4218 = vpop.f32.mrb[0].mxu0
    %4219 = vmatprep.mubr.f32.mxu0 0.0
    %4220 = vmatmul.mubr.f32.gmra.mrb[0].mxu0 %v3860
    %v4221 = vpop.f32.mrb[0].mxu0
    %v4222 = vadd.f32 0.0, %v4221
    %v4223 = vpop.f32.mrb[0].mxu0
    %4224 = vmatprep.mubr.f32.mxu0 0.0
    %4225 = vmatmul.mubr.f32.gmra.mrb[0].mxu0 %v3863
    %v4226 = vpop.f32.mrb[0].mxu0
    %v4227 = vadd.f32 0.0, %v4226
    %v4228 = vpop.f32.mrb[0].mxu0
    %4229 = vmatprep.mubr.f32.mxu0 0.0
    %4230 = vmatmul.mubr.f32.gmra.mrb[0].mxu0 %v3866
    %v4231 = vpop.f32.mrb[0].mxu0
    %v4232 = vadd.f32 0.0, %v4231
    %v4233 = vpop.f32.mrb[0].mxu0
    %4234 = vmatprep.mubr.f32.mxu0 0.0
    %4235 = vmatmul.mubr.f32.gmra.mrb[0].mxu0 %v3869
    %v4236 = vpop.f32.mrb[0].mxu0
    %v4237 = vadd.f32 0.0, %v4236
    %v4238 = vpop.f32.mrb[0].mxu0
    %4239 = vmatprep.mubr.f32.mxu0 0.0
    %4240 = vmatmul.mubr.f32.gmra.mrb[0].mxu0 %v3872
    %v4241 = vpop.f32.mrb[0].mxu0
    %v4242 = vadd.f32 0.0, %v4241
    %v4243 = vpop.f32.mrb[0].mxu0
    %4244 = vmatprep.mubr.f32.mxu0 0.0
    %4245 = vmatmul.mubr.f32.gmra.mrb[0].mxu0 %v3875
    %v4246 = vpop.f32.mrb[0].mxu0
    %v4247 = vadd.f32 0.0, %v4246
    %v4248 = vpop.f32.mrb[0].mxu0
    %4249 = vmatprep.mubr.f32.mxu0 0.0
    %4250 = vmatmul.mubr.f32.gmra.mrb[0].mxu0 %v3878
    %v4251 = vpop.f32.mrb[0].mxu0
    %v4252 = vadd.f32 0.0, %v4251
    %v4253 = vpop.f32.mrb[0].mxu0
    %4254 = vmatprep.mubr.f32.mxu0 0.0
    %4255 = vmatmul.mubr.f32.gmra.mrb[0].mxu0 %v3881
    %v4256 = vpop.f32.mrb[0].mxu0
    %v4257 = vadd.f32 0.0, %v4256
    %v4258 = vpop.f32.mrb[0].mxu0
    %4259 = vmatprep.mubr.f32.mxu0 0.0
    %4260 = vmatmul.mubr.f32.gmra.mrb[0].mxu0 %v3884
    %v4261 = vpop.f32.mrb[0].mxu0
    %v4262 = vadd.f32 0.0, %v4261
    %v4263 = vpop.f32.mrb[0].mxu0
    %4264 = vmatprep.mubr.f32.mxu0 0.0
    %4265 = vmatmul.mubr.f32.gmra.mrb[0].mxu0 %v3887
    %v4266 = vpop.f32.mrb[0].mxu0
    %v4267 = vadd.f32 0.0, %v4266
    %v4268 = vpop.f32.mrb[0].mxu0
    %4269 = vmatprep.mubr.f32.mxu0 0.0
    %4270 = vmatmul.mubr.f32.gmra.mrb[0].mxu0 %v3890
    %v4271 = vpop.f32.mrb[0].mxu0
    %v4272 = vadd.f32 0.0, %v4271
    %v4273 = vpop.f32.mrb[0].mxu0
    %4274 = vmatprep.mubr.f32.mxu0 0.0
    %4275 = vmatmul.mubr.f32.gmra.mrb[0].mxu0 %v3893
    %v4276 = vpop.f32.mrb[0].mxu0
    %v4277 = vadd.f32 0.0, %v4276
    %v4278 = vpop.f32.mrb[0].mxu0
    %4279 = vmatprep.mubr.f32.mxu0 0.0
    %4280 = vmatmul.mubr.f32.gmra.mrb[0].mxu0 %v3896
    %v4281 = vpop.f32.mrb[0].mxu0
    %v4282 = vadd.f32 0.0, %v4281
    %v4283 = vpop.f32.mrb[0].mxu0
    %4284 = vmatprep.mubr.f32.mxu0 0.0
    %4285 = vmatmul.mubr.f32.gmra.mrb[0].mxu0 %v3899
    %v4286 = vpop.f32.mrb[0].mxu0
    %v4287 = vadd.f32 0.0, %v4286
    %v4288 = vpop.f32.mrb[0].mxu0
    %4289 = vmatprep.mubr.f32.mxu0 0.0
    %4290 = vmatmul.mubr.f32.gmra.mrb[0].mxu0 %v3902
    %v4291 = vpop.f32.mrb[0].mxu0
    %v4292 = vadd.f32 0.0, %v4291
    %v4293 = vpop.f32.mrb[0].mxu0
    %4294 = vmatprep.mubr.f32.mxu0 0.0
    %4295 = vmatmul.mubr.f32.gmra.mrb[0].mxu0 %v3905
    %v4296 = vpop.f32.mrb[0].mxu0
    %v4297 = vadd.f32 0.0, %v4296
    %v4298 = vpop.f32.mrb[0].mxu0
    %4299 = vmatprep.mubr.f32.mxu0 0.0
    %4300 = vmatmul.mubr.f32.gmra.mrb[0].mxu0 %v3908
    %v4301 = vpop.f32.mrb[0].mxu0
    %v4302 = vadd.f32 0.0, %v4301
    %v4303 = vpop.f32.mrb[0].mxu0
    %4304 = vmatprep.mubr.f32.mxu0 0.0
    %4305 = vmatmul.mubr.f32.gmra.mrb[0].mxu0 %v3911
    %v4306 = vpop.f32.mrb[0].mxu0
    %v4307 = vadd.f32 0.0, %v4306
    %v4308 = vpop.f32.mrb[0].mxu0
    %4309 = vmatprep.mubr.f32.mxu0 0.0
    %4310 = vmatmul.mubr.f32.gmra.mrb[0].mxu0 %v3914
    %v4311 = vpop.f32.mrb[0].mxu0
    %v4312 = vadd.f32 0.0, %v4311
    %v4313 = vpop.f32.mrb[0].mxu0
    %4314 = vmatprep.mubr.f32.mxu0 0.0
    %4315 = vmatmul.mubr.f32.gmra.mrb[0].mxu0 %v3917
    %v4316 = vpop.f32.mrb[0].mxu0
    %v4317 = vadd.f32 0.0, %v4316
    %v4318 = vpop.f32.mrb[0].mxu0
    %4319 = vmatprep.mubr.f32.mxu0 0.0
    %4320 = vmatmul.mubr.f32.gmra.mrb[0].mxu0 %v3920
    %v4321 = vpop.f32.mrb[0].mxu0
    %v4322 = vadd.f32 0.0, %v4321
    %v4323 = vpop.f32.mrb[0].mxu0
    %4324 = vmatprep.mubr.f32.mxu0 0.0
    %4325 = vmatmul.mubr.f32.gmra.mrb[0].mxu0 %v3923
    %v4326 = vpop.f32.mrb[0].mxu0
    %v4327 = vadd.f32 0.0, %v4326
    %v4328 = vpop.f32.mrb[0].mxu0
    %4329 = vmatprep.mubr.f32.mxu0 0.0
    %4330 = vmatmul.mubr.f32.gmra.mrb[0].mxu0 %v3926
    %v4331 = vpop.f32.mrb[0].mxu0
    %v4332 = vadd.f32 0.0, %v4331
    %v4333 = vpop.f32.mrb[0].mxu0
    %4334 = vmatprep.mubr.f32.mxu0 0.0
    %4335 = vmatmul.mubr.f32.gmra.mrb[0].mxu0 %v3929
    %v4336 = vpop.f32.mrb[0].mxu0
    %v4337 = vadd.f32 0.0, %v4336
    %v4338 = vpop.f32.mrb[0].mxu0
    %4339 = vmatprep.mubr.f32.mxu0 0.0
    %4340 = vmatmul.mubr.f32.gmra.mrb[0].mxu0 %v3932
    %v4341 = vpop.f32.mrb[0].mxu0
    %v4342 = vadd.f32 0.0, %v4341
    %v4343 = vpop.f32.mrb[0].mxu0
    %4344 = vmatprep.mubr.f32.mxu0 0.0
    %4345 = vmatmul.mubr.f32.gmra.mrb[0].mxu0 %v3935
    %v4346 = vpop.f32.mrb[0].mxu0
    %v4347 = vadd.f32 0.0, %v4346
    %v4348 = vpop.f32.mrb[0].mxu0
    %4349 = vmatprep.mubr.f32.mxu0 0.0
    %4350 = vmatmul.mubr.f32.gmra.mrb[0].mxu0 %v3938
    %v4351 = vpop.f32.mrb[0].mxu0
    %v4352 = vadd.f32 0.0, %v4351
    %v4353 = vpop.f32.mrb[0].mxu0
    %4354 = vmatprep.mubr.f32.mxu0 0.0
    %4355 = vmatmul.mubr.f32.gmra.mrb[0].mxu0 %v3941
    %v4356 = vpop.f32.mrb[0].mxu0
    %v4357 = vadd.f32 0.0, %v4356
    %v4358 = vpop.f32.mrb[0].mxu0
    %4359 = vmatprep.mubr.f32.mxu0 0.0
    %4360 = vmatmul.mubr.f32.gmra.mrb[0].mxu0 %v3944
    %v4361 = vpop.f32.mrb[0].mxu0
    %v4362 = vadd.f32 0.0, %v4361
    %v4363 = vpop.f32.mrb[0].mxu0
    %4364 = vmatprep.mubr.f32.mxu0 0.0
    %4365 = vmatmul.mubr.f32.gmra.mrb[0].mxu0 %v3947
    %v4366 = vpop.f32.mrb[0].mxu0
    %v4367 = vadd.f32 0.0, %v4366
    %v4368 = vpop.f32.mrb[0].mxu0
    %4369 = vmatprep.mubr.f32.mxu0 0.0
    %4370 = vmatmul.mubr.f32.gmra.mrb[0].mxu0 %v3950
    %v4371 = vpop.f32.mrb[0].mxu0
    %v4372 = vadd.f32 0.0, %v4371
    %v4373 = vpop.f32.mrb[0].mxu0
    %4374 = vmatprep.mubr.f32.mxu0 0.0
    %4375 = vmatmul.mubr.f32.gmra.mrb[0].mxu0 %v3953
    %v4376 = vpop.f32.mrb[0].mxu0
    %v4377 = vadd.f32 0.0, %v4376
    %v4378 = vpop.f32.mrb[0].mxu0
    %4379 = vmatprep.mubr.f32.mxu0 0.0
    %4380 = vmatmul.mubr.f32.gmra.mrb[0].mxu0 %v3956
    %v4381 = vpop.f32.mrb[0].mxu0
    %v4382 = vadd.f32 0.0, %v4381
    %v4383 = vpop.f32.mrb[0].mxu0
    %4384 = vmatprep.mubr.f32.mxu0 0.0
    %4385 = vmatmul.mubr.f32.gmra.mrb[0].mxu0 %v3959
    %v4386 = vpop.f32.mrb[0].mxu0
    %v4387 = vadd.f32 0.0, %v4386
    %v4388 = vpop.f32.mrb[0].mxu0
    %4389 = vmatprep.mubr.f32.mxu0 0.0
    %4390 = vmatmul.mubr.f32.gmra.mrb[0].mxu0 %v3962
    %v4391 = vpop.f32.mrb[0].mxu0
    %v4392 = vadd.f32 0.0, %v4391
    %v4393 = vpop.f32.mrb[0].mxu0
    %4394 = vmatprep.mubr.f32.mxu0 0.0
    %4395 = vmatmul.mubr.f32.gmra.mrb[0].mxu0 %v3965
    %v4396 = vpop.f32.mrb[0].mxu0
    %v4397 = vadd.f32 0.0, %v4396
    %v4398 = vpop.f32.mrb[0].mxu0
    %4399 = vmatprep.mubr.f32.mxu0 0.0
    %4400 = vmatmul.mubr.f32.gmra.mrb[0].mxu0 %v3968
    %v4401 = vpop.f32.mrb[0].mxu0
    %v4402 = vadd.f32 0.0, %v4401
    %v4403 = vpop.f32.mrb[0].mxu0
    %4404 = vmatprep.mubr.f32.mxu0 0.0
    %4405 = vmatmul.mubr.f32.gmra.mrb[0].mxu0 %v3971
    %v4406 = vpop.f32.mrb[0].mxu0
    %v4407 = vadd.f32 0.0, %v4406
    %v4408 = vpop.f32.mrb[0].mxu0
    %4409 = vmatprep.mubr.f32.mxu0 0.0
    %4410 = vmatmul.mubr.f32.gmra.mrb[0].mxu0 %v3974
    %v4411 = vpop.f32.mrb[0].mxu0
    %v4412 = vadd.f32 0.0, %v4411
    %v4413 = vpop.f32.mrb[0].mxu0
    %4414 = vmatprep.mubr.f32.mxu0 0.0
    %4415 = vmatmul.mubr.f32.gmra.mrb[0].mxu0 %v3977
    %v4416 = vpop.f32.mrb[0].mxu0
    %v4417 = vadd.f32 0.0, %v4416
    %v4418 = vpop.f32.mrb[0].mxu0
    %4419 = vmatprep.mubr.f32.mxu0 0.0
    %4420 = vmatmul.mubr.f32.gmra.mrb[0].mxu0 %v3980
    %v4421 = vpop.f32.mrb[0].mxu0
    %v4422 = vadd.f32 0.0, %v4421
    %v4423 = vpop.f32.mrb[0].mxu0
    %4424 = vmatprep.mubr.f32.mxu0 0.0
    %4425 = vmatmul.mubr.f32.gmra.mrb[0].mxu0 %v3983
    %v4426 = vpop.f32.mrb[0].mxu0
    %v4427 = vadd.f32 0.0, %v4426
    %v4428 = vpop.f32.mrb[0].mxu0
    %4429 = vmatprep.mubr.f32.mxu0 0.0
    %4430 = vmatmul.mubr.f32.gmra.mrb[0].mxu0 %v3986
    %v4431 = vpop.f32.mrb[0].mxu0
    %v4432 = vadd.f32 0.0, %v4431
    %v4433 = vpop.f32.mrb[0].mxu0
    %4434 = vmatprep.mubr.f32.mxu0 0.0
    %4435 = vmatmul.mubr.f32.gmra.mrb[0].mxu0 %v3989
    %v4436 = vpop.f32.mrb[0].mxu0
    %v4437 = vadd.f32 0.0, %v4436
    %v4438 = vpop.f32.mrb[0].mxu0
    %4439 = vmatprep.mubr.f32.mxu0 0.0
    %4440 = vmatmul.mubr.f32.gmra.mrb[0].mxu0 %v3992
    %v4441 = vpop.f32.mrb[0].mxu0
    %v4442 = vadd.f32 0.0, %v4441
    %v4443 = vpop.f32.mrb[0].mxu0
    %4444 = vmatprep.mubr.f32.mxu0 0.0
    %4445 = vmatmul.mubr.f32.gmra.mrb[0].mxu0 %v3995
    %v4446 = vpop.f32.mrb[0].mxu0
    %v4447 = vadd.f32 0.0, %v4446
    %v4448 = vpop.f32.mrb[0].mxu0
    %4449 = vmatprep.mubr.f32.mxu0 0.0
    %4450 = vmatmul.mubr.f32.gmra.mrb[0].mxu0 %v3998
    %v4451 = vpop.f32.mrb[0].mxu0
    %v4452 = vadd.f32 0.0, %v4451
    %v4453 = vpop.f32.mrb[0].mxu0
    %4454 = vmatprep.mubr.f32.mxu0 0.0
    %4455 = vmatmul.mubr.f32.gmra.mrb[0].mxu0 %v4001
    %v4456 = vpop.f32.mrb[0].mxu0
    %v4457 = vadd.f32 0.0, %v4456
    %v4458 = vpop.f32.mrb[0].mxu0
    %4459 = vmatprep.mubr.f32.mxu0 0.0
    %4460 = vmatmul.mubr.f32.gmra.mrb[0].mxu0 %v4004
    %v4461 = vpop.f32.mrb[0].mxu0
    %v4462 = vadd.f32 0.0, %v4461
    %v4463 = vpop.f32.mrb[0].mxu0
    %4464 = vmatprep.mubr.f32.mxu0 0.0
    %4465 = vmatmul.mubr.f32.gmra.mrb[0].mxu0 %v4007
    %v4466 = vpop.f32.mrb[0].mxu0
    %v4467 = vadd.f32 0.0, %v4466
    %v4468 = vpop.f32.mrb[0].mxu0
    %4469 = vmatprep.mubr.f32.mxu0 0.0
    %4470 = vmatmul.mubr.f32.gmra.mrb[0].mxu0 %v4010
    %v4471 = vpop.f32.mrb[0].mxu0
    %v4472 = vadd.f32 0.0, %v4471
    %v4473 = vpop.f32.mrb[0].mxu0
    %4474 = vmatprep.mubr.f32.mxu0 0.0
    %4475 = vmatmul.mubr.f32.gmra.mrb[0].mxu0 %v4013
    %v4476 = vpop.f32.mrb[0].mxu0
    %v4477 = vadd.f32 0.0, %v4476
    %v4478 = vpop.f32.mrb[0].mxu0
    %4479 = vmatprep.mubr.f32.mxu0 0.0
    %4480 = vmatmul.mubr.f32.gmra.mrb[0].mxu0 %v4016
    %v4481 = vpop.f32.mrb[0].mxu0
    %v4482 = vadd.f32 0.0, %v4481
    %v4483 = vpop.f32.mrb[0].mxu0
    %4484 = vmatprep.mubr.f32.mxu0 0.0
    %4485 = vmatmul.mubr.f32.gmra.mrb[0].mxu0 %v4019
    %v4486 = vpop.f32.mrb[0].mxu0
    %v4487 = vadd.f32 0.0, %v4486
    %v4488 = vpop.f32.mrb[0].mxu0
    %4489 = vmatprep.mubr.f32.mxu0 0.0
    %4490 = vmatmul.mubr.f32.gmra.mrb[0].mxu0 %v4022
    %v4491 = vpop.f32.mrb[0].mxu0
    %v4492 = vadd.f32 0.0, %v4491
    %v4493 = vpop.f32.mrb[0].mxu0
    %4494 = vmatprep.mubr.f32.mxu0 0.0
    %4495 = vmatmul.mubr.f32.gmra.mrb[0].mxu0 %v4025
    %v4496 = vpop.f32.mrb[0].mxu0
    %v4497 = vadd.f32 0.0, %v4496
    %v4498 = vpop.f32.mrb[0].mxu0
    %4499 = vmatprep.mubr.f32.mxu0 0.0
    %4500 = vmatmul.mubr.f32.gmra.mrb[0].mxu0 %v4028
    %v4501 = vpop.f32.mrb[0].mxu0
    %v4502 = vadd.f32 0.0, %v4501
    %v4503 = vpop.f32.mrb[0].mxu0
    %4504 = vmatprep.mubr.f32.mxu0 0.0
    %4505 = vmatmul.mubr.f32.gmra.mrb[0].mxu0 %v4031
    %v4506 = vpop.f32.mrb[0].mxu0
    %v4507 = vadd.f32 0.0, %v4506
    %v4508 = vpop.f32.mrb[0].mxu0
    %4509 = vmatprep.mubr.f32.mxu0 0.0
    %4510 = vmatmul.mubr.f32.gmra.mrb[0].mxu0 %v4034
    %v4511 = vpop.f32.mrb[0].mxu0
    %v4512 = vadd.f32 0.0, %v4511
    %v4513 = vpop.f32.mrb[0].mxu0
    %4514 = vmatprep.mubr.f32.mxu0 0.0
    %4515 = vmatmul.mubr.f32.gmra.mrb[0].mxu0 %v4037
    %v4516 = vpop.f32.mrb[0].mxu0
    %v4517 = vadd.f32 0.0, %v4516
    %v4518 = vpop.f32.mrb[0].mxu0
    %4519 = vmatprep.mubr.f32.mxu0 0.0
    %4520 = vmatmul.mubr.f32.gmra.mrb[0].mxu0 %v4040
    %v4521 = vpop.f32.mrb[0].mxu0
    %v4522 = vadd.f32 0.0, %v4521
    %v4523 = vpop.f32.mrb[0].mxu0
    %4524 = vmatprep.mubr.f32.mxu0 0.0
    %4525 = vmatmul.mubr.f32.gmra.mrb[0].mxu0 %v4043
    %v4526 = vpop.f32.mrb[0].mxu0
    %v4527 = vadd.f32 0.0, %v4526
    %v4528 = vpop.f32.mrb[0].mxu0
    %4529 = vmatprep.mubr.f32.mxu0 0.0
    %4530 = vmatmul.mubr.f32.gmra.mrb[0].mxu0 %v4046
    %v4531 = vpop.f32.mrb[0].mxu0
    %v4532 = vadd.f32 0.0, %v4531
    %v4533 = vpop.f32.mrb[0].mxu0
    %4534 = vmatprep.mubr.f32.mxu0 0.0
    %4535 = vmatmul.mubr.f32.gmra.mrb[0].mxu0 %v4049
    %v4536 = vpop.f32.mrb[0].mxu0
    %v4537 = vadd.f32 0.0, %v4536
    %v4538 = vpop.f32.mrb[0].mxu0
    %4539 = vmatprep.mubr.f32.mxu0 0.0
    %4540 = vmatmul.mubr.f32.gmra.mrb[0].mxu0 %v4052
    %v4541 = vpop.f32.mrb[0].mxu0
    %v4542 = vadd.f32 0.0, %v4541
    %v4543 = vpop.f32.mrb[0].mxu0
    %4544 = vmatprep.mubr.f32.mxu0 0.0
    %4545 = vmatmul.mubr.f32.gmra.mrb[0].mxu0 %v4055
    %v4546 = vpop.f32.mrb[0].mxu0
    %v4547 = vadd.f32 0.0, %v4546
    %v4548 = vpop.f32.mrb[0].mxu0
    %4549 = vmatprep.mubr.f32.mxu0 0.0
    %4550 = vmatmul.mubr.f32.gmra.mrb[0].mxu0 %v4058
    %v4551 = vpop.f32.mrb[0].mxu0
    %v4552 = vadd.f32 0.0, %v4551
    %v4553 = vpop.f32.mrb[0].mxu0
    %4554 = vmatprep.mubr.f32.mxu0 0.0
    %4555 = vmatmul.mubr.f32.gmra.mrb[0].mxu0 %v4061
    %v4556 = vpop.f32.mrb[0].mxu0
    %v4557 = vadd.f32 0.0, %v4556
    %v4558 = vpop.f32.mrb[0].mxu0
    %4559 = vmatprep.mubr.f32.mxu0 0.0
    %4560 = vmatmul.mubr.f32.gmra.mrb[0].mxu0 %v4064
    %v4561 = vpop.f32.mrb[0].mxu0
    %v4562 = vadd.f32 0.0, %v4561
    %v4563 = vpop.f32.mrb[0].mxu0
    %4564 = vmatprep.mubr.f32.mxu0 0.0
    %4565 = vmatmul.mubr.f32.gmra.mrb[0].mxu0 %v4067
    %v4566 = vpop.f32.mrb[0].mxu0
    %v4567 = vadd.f32 0.0, %v4566
    %v4568 = vpop.f32.mrb[0].mxu0
    %4569 = vmatprep.mubr.f32.mxu0 0.0
    %4570 = vmatmul.mubr.f32.gmra.mrb[0].mxu0 %v4070
    %v4571 = vpop.f32.mrb[0].mxu0
    %v4572 = vadd.f32 0.0, %v4571
    %v4573 = vpop.f32.mrb[0].mxu0
    %4574 = vmatprep.mubr.f32.mxu0 0.0
    %4575 = vmatmul.mubr.f32.gmra.mrb[0].mxu0 %v4073
    %v4576 = vpop.f32.mrb[0].mxu0
    %v4577 = vadd.f32 0.0, %v4576
    %v4578 = vpop.f32.mrb[0].mxu0
    %4579 = vmatprep.mubr.f32.mxu0 0.0
    %4580 = vmatmul.mubr.f32.gmra.mrb[0].mxu0 %v4076
    %v4581 = vpop.f32.mrb[0].mxu0
    %v4582 = vadd.f32 0.0, %v4581
    %v4583 = vpop.f32.mrb[0].mxu0
    %4584 = vmatprep.mubr.f32.mxu0 0.0
    %4585 = vmatmul.mubr.f32.gmra.mrb[0].mxu0 %v4079
    %v4586 = vpop.f32.mrb[0].mxu0
    %v4587 = vadd.f32 0.0, %v4586
    %v4588 = vpop.f32.mrb[0].mxu0
    %4589 = vmatprep.mubr.f32.mxu0 0.0
    %4590 = vmatmul.mubr.f32.gmra.mrb[0].mxu0 %v4082
    %v4591 = vpop.f32.mrb[0].mxu0
    %v4592 = vadd.f32 0.0, %v4591
    %v4593 = vpop.f32.mrb[0].mxu0
    %4594 = vmatprep.mubr.f32.mxu0 0.0
    %4595 = vmatmul.mubr.f32.gmra.mrb[0].mxu0 %v4085
    %v4596 = vpop.f32.mrb[0].mxu0
    %v4597 = vadd.f32 0.0, %v4596
    %v4598 = vpop.f32.mrb[0].mxu0
    %4599 = vmatprep.mubr.f32.mxu0 0.0
    %4600 = vmatmul.mubr.f32.gmra.mrb[0].mxu0 %v4088
    %v4601 = vpop.f32.mrb[0].mxu0
    %v4602 = vadd.f32 0.0, %v4601
    %v4603 = vpop.f32.mrb[0].mxu0
    %4604 = vdwg.mxu0
    %v4605 = vadd.f32 %v3638, %v4157
    %v4606 = vadd.f32 %v3639, %v4162
    %v4607 = vadd.f32 %v3640, %v4167
    %v4608 = vadd.f32 %v3641, %v4172
    %v4609 = vadd.f32 %v3642, %v4177
    %v4610 = vadd.f32 %v3643, %v4182
    %v4611 = vadd.f32 %v3644, %v4187
    %v4612 = vadd.f32 %v3645, %v4192
    %v4613 = vadd.f32 %v3646, %v4197
    %v4614 = vadd.f32 %v3647, %v4202
    %v4615 = vadd.f32 %v3648, %v4207
    %v4616 = vadd.f32 %v3649, %v4212
    %v4617 = vadd.f32 %v3650, %v4217
    %v4618 = vadd.f32 %v3651, %v4222
    %v4619 = vadd.f32 %v3652, %v4227
    %v4620 = vadd.f32 %v3653, %v4232
    %v4621 = vadd.f32 %v3654, %v4237
    %v4622 = vadd.f32 %v3655, %v4242
    %v4623 = vadd.f32 %v3656, %v4247
    %v4624 = vadd.f32 %v3657, %v4252
    %v4625 = vadd.f32 %v3658, %v4257
    %v4626 = vadd.f32 %v3659, %v4262
    %v4627 = vadd.f32 %v3660, %v4267
    %v4628 = vadd.f32 %v3661, %v4272
    %v4629 = vadd.f32 %v3662, %v4277
    %v4630 = vadd.f32 %v3663, %v4282
    %v4631 = vadd.f32 %v3664, %v4287
    %v4632 = vadd.f32 %v3665, %v4292
    %v4633 = vadd.f32 %v3666, %v4297
    %v4634 = vadd.f32 %v3667, %v4302
    %v4635 = vadd.f32 %v3668, %v4307
    %v4636 = vadd.f32 %v3669, %v4312
    %v4637 = vadd.f32 %v3670, %v4317
    %v4638 = vadd.f32 %v3671, %v4322
    %v4639 = vadd.f32 %v3672, %v4327
    %v4640 = vadd.f32 %v3673, %v4332
    %v4641 = vadd.f32 %v3674, %v4337
    %v4642 = vadd.f32 %v3675, %v4342
    %v4643 = vadd.f32 %v3676, %v4347
    %v4644 = vadd.f32 %v3677, %v4352
    %v4645 = vadd.f32 %v3678, %v4357
    %v4646 = vadd.f32 %v3679, %v4362
    %v4647 = vadd.f32 %v3680, %v4367
    %v4648 = vadd.f32 %v3681, %v4372
    %v4649 = vadd.f32 %v3682, %v4377
    %v4650 = vadd.f32 %v3683, %v4382
    %v4651 = vadd.f32 %v3684, %v4387
    %v4652 = vadd.f32 %v3685, %v4392
    %v4653 = vadd.f32 %v3686, %v4397
    %v4654 = vadd.f32 %v3687, %v4402
    %v4655 = vadd.f32 %v3688, %v4407
    %v4656 = vadd.f32 %v3689, %v4412
    %v4657 = vadd.f32 %v3690, %v4417
    %v4658 = vadd.f32 %v3691, %v4422
    %v4659 = vadd.f32 %v3692, %v4427
    %v4660 = vadd.f32 %v3693, %v4432
    %v4661 = vadd.f32 %v3694, %v4437
    %v4662 = vadd.f32 %v3695, %v4442
    %v4663 = vadd.f32 %v3696, %v4447
    %v4664 = vadd.f32 %v3697, %v4452
    %v4665 = vadd.f32 %v3698, %v4457
    %v4666 = vadd.f32 %v3699, %v4462
    %v4667 = vadd.f32 %v3700, %v4467
    %v4668 = vadd.f32 %v3701, %v4472
    %v4669 = vadd.f32 %v3702, %v4477
    %v4670 = vadd.f32 %v3703, %v4482
    %v4671 = vadd.f32 %v3704, %v4487
    %v4672 = vadd.f32 %v3705, %v4492
    %v4673 = vadd.f32 %v3706, %v4497
    %v4674 = vadd.f32 %v3707, %v4502
    %v4675 = vadd.f32 %v3708, %v4507
    %v4676 = vadd.f32 %v3709, %v4512
    %v4677 = vadd.f32 %v3710, %v4517
    %v4678 = vadd.f32 %v3711, %v4522
    %v4679 = vadd.f32 %v3712, %v4527
    %v4680 = vadd.f32 %v3713, %v4532
    %v4681 = vadd.f32 %v3714, %v4537
    %v4682 = vadd.f32 %v3715, %v4542
    %v4683 = vadd.f32 %v3716, %v4547
    %v4684 = vadd.f32 %v3717, %v4552
    %v4685 = vadd.f32 %v3718, %v4557
    %v4686 = vadd.f32 %v3719, %v4562
    %v4687 = vadd.f32 %v3720, %v4567
    %v4688 = vadd.f32 %v3721, %v4572
    %v4689 = vadd.f32 %v3722, %v4577
    %v4690 = vadd.f32 %v3723, %v4582
    %v4691 = vadd.f32 %v3724, %v4587
    %v4692 = vadd.f32 %v3725, %v4592
    %v4693 = vadd.f32 %v3726, %v4597
    %v4694 = vadd.f32 %v3727, %v4602
    %v4695 = vld [vmem:[%s0 + $0x15] sm:$0xff]
    %v4696 = vld [vmem:[%s0 + $0x1d] sm:$0xff]
    %v4697 = vld [vmem:[%s0 + $0x25] sm:$0xff]
    %v4698 = vld [vmem:[%s0 + $0x2d] sm:$0xff]
    %v4699 = vld [vmem:[%s0 + $0x35] sm:$0xff]
    %v4700 = vld [vmem:[%s0 + $0x3d] sm:$0xff]
    %v4701 = vld [vmem:[%s0 + $0x45] sm:$0xff]
    %v4702 = vld [vmem:[%s0 + $0x4d] sm:$0xff]
    %v4703 = vld [vmem:[%s0 + $0x55] sm:$0xff]
    %v4704 = vld [vmem:[%s0 + $0x5d] sm:$0xff]
    %v4705 = vld [vmem:[%s0 + $0x65] sm:$0xff]
    %v4706 = vld [vmem:[%s0 + $0x6d] sm:$0xff]
    %v4707 = vld [vmem:[%s0 + $0x75] sm:$0xff]
    %v4708 = vld [vmem:[%s0 + $0x7d] sm:$0xff]
    %v4709 = vld [vmem:[%s0 + $0x85] sm:$0xff]
    %v4710 = vld [vmem:[%s0 + $0x8d] sm:$0xff]
    %v4711 = vld [vmem:[%s0 + $0x95] sm:$0xff]
    %v4712 = vld [vmem:[%s0 + $0x9d] sm:$0xff]
    %v4713 = vld [vmem:[%s0 + $0xa5] sm:$0xff]
    %v4714 = vld [vmem:[%s0 + $0xad] sm:$0xff]
    %v4715 = vld [vmem:[%s0 + $0xb5] sm:$0xff]
    %v4716 = vld [vmem:[%s0 + $0xbd] sm:$0xff]
    %v4717 = vld [vmem:[%s0 + $0xc5] sm:$0xff]
    %v4718 = vld [vmem:[%s0 + $0xcd] sm:$0xff]
    %v4719 = vld [vmem:[%s0 + $0xd5] sm:$0xff]
    %v4720 = vld [vmem:[%s0 + $0xdd] sm:$0xff]
    %v4721 = vld [vmem:[%s0 + $0xe5] sm:$0xff]
    %v4722 = vld [vmem:[%s0 + $0xed] sm:$0xff]
    %v4723 = vld [vmem:[%s0 + $0xf5] sm:$0xff]
    %v4724 = vld [vmem:[%s0 + $0xfd] sm:$0xff]
    %v4725 = vld [vmem:[%s0 + $0x105] sm:$0xff]
    %v4726 = vld [vmem:[%s0 + $0x10d] sm:$0xff]
    %v4727 = vld [vmem:[%s0 + $0x115] sm:$0xff]
    %v4728 = vld [vmem:[%s0 + $0x11d] sm:$0xff]
    %v4729 = vld [vmem:[%s0 + $0x125] sm:$0xff]
    %v4730 = vld [vmem:[%s0 + $0x12d] sm:$0xff]
    %v4731 = vld [vmem:[%s0 + $0x135] sm:$0xff]
    %v4732 = vld [vmem:[%s0 + $0x13d] sm:$0xff]
    %v4733 = vld [vmem:[%s0 + $0x145] sm:$0xff]
    %v4734 = vld [vmem:[%s0 + $0x14d] sm:$0xff]
    %v4735 = vld [vmem:[%s0 + $0x155] sm:$0xff]
    %v4736 = vld [vmem:[%s0 + $0x15d] sm:$0xff]
    %v4737 = vld [vmem:[%s0 + $0x165] sm:$0xff]
    %v4738 = vld [vmem:[%s0 + $0x16d] sm:$0xff]
    %v4739 = vld [vmem:[%s0 + $0x175] sm:$0xff]
    %v4740 = vld [vmem:[%s0 + $0x17d] sm:$0xff]
    %v4741 = vld [vmem:[%s0 + $0x185] sm:$0xff]
    %v4742 = vld [vmem:[%s0 + $0x18d] sm:$0xff]
    %v4743 = vld [vmem:[%s0 + $0x195] sm:$0xff]
    %v4744 = vld [vmem:[%s0 + $0x19d] sm:$0xff]
    %v4745 = vld [vmem:[%s0 + $0x1a5] sm:$0xff]
    %v4746 = vld [vmem:[%s0 + $0x1ad] sm:$0xff]
    %v4747 = vld [vmem:[%s0 + $0x1b5] sm:$0xff]
    %v4748 = vld [vmem:[%s0 + $0x1bd] sm:$0xff]
    %v4749 = vld [vmem:[%s0 + $0x1c5] sm:$0xff]
    %v4750 = vld [vmem:[%s0 + $0x1cd] sm:$0xff]
    %v4751 = vld [vmem:[%s0 + $0x1d5] sm:$0xff]
    %v4752 = vld [vmem:[%s0 + $0x1dd] sm:$0xff]
    %v4753 = vld [vmem:[%s0 + $0x1e5] sm:$0xff]
    %v4754 = vld [vmem:[%s0 + $0x1ed] sm:$0xff]
    %v4755 = vld [vmem:[%s0 + $0x1f5] sm:$0xff]
    %v4756 = vld [vmem:[%s0 + $0x1fd] sm:$0xff]
    %v4757 = vld [vmem:[%s0 + $0x205] sm:$0xff]
    %v4758 = vld [vmem:[%s0 + $0x20d] sm:$0xff]
    %v4759 = vld [vmem:[%s0 + $0x215] sm:$0xff]
    %v4760 = vld [vmem:[%s0 + $0x21d] sm:$0xff]
    %v4761 = vld [vmem:[%s0 + $0x225] sm:$0xff]
    %v4762 = vld [vmem:[%s0 + $0x22d] sm:$0xff]
    %v4763 = vld [vmem:[%s0 + $0x235] sm:$0xff]
    %v4764 = vld [vmem:[%s0 + $0x23d] sm:$0xff]
    %v4765 = vld [vmem:[%s0 + $0x245] sm:$0xff]
    %v4766 = vld [vmem:[%s0 + $0x24d] sm:$0xff]
    %v4767 = vld [vmem:[%s0 + $0x255] sm:$0xff]
    %v4768 = vld [vmem:[%s0 + $0x25d] sm:$0xff]
    %v4769 = vld [vmem:[%s0 + $0x265] sm:$0xff]
    %v4770 = vld [vmem:[%s0 + $0x26d] sm:$0xff]
    %v4771 = vld [vmem:[%s0 + $0x275] sm:$0xff]
    %v4772 = vld [vmem:[%s0 + $0x27d] sm:$0xff]
    %v4773 = vld [vmem:[%s0 + $0x285] sm:$0xff]
    %v4774 = vld [vmem:[%s0 + $0x28d] sm:$0xff]
    %v4775 = vld [vmem:[%s0 + $0x295] sm:$0xff]
    %v4776 = vld [vmem:[%s0 + $0x29d] sm:$0xff]
    %v4777 = vld [vmem:[%s0 + $0x2a5] sm:$0xff]
    %v4778 = vld [vmem:[%s0 + $0x2ad] sm:$0xff]
    %v4779 = vld [vmem:[%s0 + $0x2b5] sm:$0xff]
    %v4780 = vld [vmem:[%s0 + $0x2bd] sm:$0xff]
    %v4781 = vld [vmem:[%s0 + $0x2c5] sm:$0xff]
    %v4782 = vld [vmem:[%s0 + $0x2cd] sm:$0xff]
    %v4783 = vld [vmem:[%s0 + $0x2d5] sm:$0xff]
    %v4784 = vld [vmem:[%s0 + $0x2dd] sm:$0xff]
    %s4785 = scalar_lea.vmem %s1, 40
    %v4786 = vld [vmem:[%s4785] sm:$0xff]
    %v4788 = vsel %vm223, %v4695, 0
    %v4791 = vsel %vm223, %v4696, 0
    %v4794 = vsel %vm223, %v4697, 0
    %v4797 = vsel %vm223, %v4698, 0
    %v4800 = vsel %vm223, %v4699, 0
    %v4803 = vsel %vm223, %v4700, 0
    %v4806 = vsel %vm223, %v4701, 0
    %v4809 = vsel %vm223, %v4702, 0
    %v4812 = vsel %vm223, %v4703, 0
    %v4815 = vsel %vm223, %v4704, 0
    %v4818 = vsel %vm223, %v4705, 0
    %v4821 = vsel %vm223, %v4706, 0
    %v4824 = vsel %vm223, %v4707, 0
    %v4827 = vsel %vm223, %v4708, 0
    %v4830 = vsel %vm223, %v4709, 0
    %v4833 = vsel %vm223, %v4710, 0
    %v4836 = vsel %vm223, %v4711, 0
    %v4839 = vsel %vm223, %v4712, 0
    %v4842 = vsel %vm223, %v4713, 0
    %v4845 = vsel %vm223, %v4714, 0
    %v4848 = vsel %vm223, %v4715, 0
    %v4851 = vsel %vm223, %v4716, 0
    %v4854 = vsel %vm223, %v4717, 0
    %v4857 = vsel %vm223, %v4718, 0
    %v4860 = vsel %vm223, %v4719, 0
    %v4863 = vsel %vm223, %v4720, 0
    %v4866 = vsel %vm223, %v4721, 0
    %v4869 = vsel %vm223, %v4722, 0
    %v4872 = vsel %vm223, %v4723, 0
    %v4875 = vsel %vm223, %v4724, 0
    %v4878 = vsel %vm223, %v4725, 0
    %v4881 = vsel %vm223, %v4726, 0
    %v4884 = vsel %vm223, %v4727, 0
    %v4887 = vsel %vm223, %v4728, 0
    %v4890 = vsel %vm223, %v4729, 0
    %v4893 = vsel %vm223, %v4730, 0
    %v4896 = vsel %vm223, %v4731, 0
    %v4899 = vsel %vm223, %v4732, 0
    %v4902 = vsel %vm223, %v4733, 0
    %v4905 = vsel %vm223, %v4734, 0
    %v4908 = vsel %vm223, %v4735, 0
    %v4911 = vsel %vm223, %v4736, 0
    %v4914 = vsel %vm223, %v4737, 0
    %v4917 = vsel %vm223, %v4738, 0
    %v4920 = vsel %vm223, %v4739, 0
    %v4923 = vsel %vm223, %v4740, 0
    %v4926 = vsel %vm223, %v4741, 0
    %v4929 = vsel %vm223, %v4742, 0
    %v4932 = vsel %vm223, %v4743, 0
    %v4935 = vsel %vm223, %v4744, 0
    %v4938 = vsel %vm223, %v4745, 0
    %v4941 = vsel %vm223, %v4746, 0
    %v4944 = vsel %vm223, %v4747, 0
    %v4947 = vsel %vm223, %v4748, 0
    %v4950 = vsel %vm223, %v4749, 0
    %v4953 = vsel %vm223, %v4750, 0
    %v4956 = vsel %vm223, %v4751, 0
    %v4959 = vsel %vm223, %v4752, 0
    %v4962 = vsel %vm223, %v4753, 0
    %v4965 = vsel %vm223, %v4754, 0
    %v4968 = vsel %vm223, %v4755, 0
    %v4971 = vsel %vm223, %v4756, 0
    %v4974 = vsel %vm223, %v4757, 0
    %v4977 = vsel %vm223, %v4758, 0
    %v4980 = vsel %vm223, %v4759, 0
    %v4983 = vsel %vm223, %v4760, 0
    %v4986 = vsel %vm223, %v4761, 0
    %v4989 = vsel %vm223, %v4762, 0
    %v4992 = vsel %vm223, %v4763, 0
    %v4995 = vsel %vm223, %v4764, 0
    %v4998 = vsel %vm223, %v4765, 0
    %v5001 = vsel %vm223, %v4766, 0
    %v5004 = vsel %vm223, %v4767, 0
    %v5007 = vsel %vm223, %v4768, 0
    %v5010 = vsel %vm223, %v4769, 0
    %v5013 = vsel %vm223, %v4770, 0
    %v5016 = vsel %vm223, %v4771, 0
    %v5019 = vsel %vm223, %v4772, 0
    %v5022 = vsel %vm223, %v4773, 0
    %v5025 = vsel %vm223, %v4774, 0
    %v5028 = vsel %vm223, %v4775, 0
    %v5031 = vsel %vm223, %v4776, 0
    %v5034 = vsel %vm223, %v4777, 0
    %v5037 = vsel %vm223, %v4778, 0
    %v5040 = vsel %vm223, %v4779, 0
    %v5043 = vsel %vm223, %v4780, 0
    %v5046 = vsel %vm223, %v4781, 0
    %v5049 = vsel %vm223, %v4782, 0
    %v5052 = vsel %vm223, %v4783, 0
    %v5055 = vsel %vm223, %v4784, 0
    %5057 = vmatprep.subr.mxu0 0.0
    %5058 = vmatpush1.msra.mxu0 %v4786
    %5059 = vmatprep.subr.mxu0 0.0
    %5060 = vmatpush1.msra.mxu0 0.0
    %5061 = vmatprep.subr.mxu0 0.0
    %5062 = vmatpush1.msra.mxu0 0.0
    %5063 = vmatprep.subr.mxu0 0.0
    %5064 = vmatpush1.msra.mxu0 0.0
    %5065 = vmatprep.subr.mxu0 0.0
    %5066 = vmatpush1.msra.mxu0 0.0
    %5067 = vmatprep.subr.mxu0 0.0
    %5068 = vmatpush1.msra.mxu0 0.0
    %5069 = vmatprep.subr.mxu0 0.0
    %5070 = vmatpush1.msra.mxu0 0.0
    %5071 = vmatprep.subr.mxu0 0.0
    %5072 = vmatpush1.msra.mxu0 0.0
    %5073 = vmatprep.subr.mxu0 0.0
    %5074 = vmatpush1.msra.mxu0 0.0
    %5075 = vmatprep.subr.mxu0 0.0
    %5076 = vmatpush1.msra.mxu0 0.0
    %5077 = vmatprep.subr.mxu0 0.0
    %5078 = vmatpush1.msra.mxu0 0.0
    %5079 = vmatprep.subr.mxu0 0.0
    %5080 = vmatpush1.msra.mxu0 0.0
    %5081 = vmatprep.subr.mxu0 0.0
    %5082 = vmatpush1.msra.mxu0 0.0
    %5083 = vmatprep.subr.mxu0 0.0
    %5084 = vmatpush1.msra.mxu0 0.0
    %5085 = vmatprep.subr.mxu0 0.0
    %5086 = vmatpush1.msra.mxu0 0.0
    %5087 = vmatprep.subr.mxu0 0.0
    %5088 = vmatpush1.msra.mxu0 0.0
    %5089 = vmatprep.subr.mxu0 0.0
    %5090 = vmatpush1.msra.mxu0 0.0
    %5091 = vmatprep.subr.mxu0 0.0
    %5092 = vmatpush1.msra.mxu0 0.0
    %5093 = vmatprep.subr.mxu0 0.0
    %5094 = vmatpush1.msra.mxu0 0.0
    %5095 = vmatprep.subr.mxu0 0.0
    %5096 = vmatpush1.msra.mxu0 0.0
    %5097 = vmatprep.subr.mxu0 0.0
    %5098 = vmatpush1.msra.mxu0 0.0
    %5099 = vmatprep.subr.mxu0 0.0
    %5100 = vmatpush1.msra.mxu0 0.0
    %5101 = vmatprep.subr.mxu0 0.0
    %5102 = vmatpush1.msra.mxu0 0.0
    %5103 = vmatprep.subr.mxu0 0.0
    %5104 = vmatpush1.msra.mxu0 0.0
    %5105 = vmatprep.subr.mxu0 0.0
    %5106 = vmatpush1.msra.mxu0 0.0
    %5107 = vmatprep.subr.mxu0 0.0
    %5108 = vmatpush1.msra.mxu0 0.0
    %5109 = vmatprep.subr.mxu0 0.0
    %5110 = vmatpush1.msra.mxu0 0.0
    %5111 = vmatprep.subr.mxu0 0.0
    %5112 = vmatpush1.msra.mxu0 0.0
    %5113 = vmatprep.subr.mxu0 0.0
    %5114 = vmatpush1.msra.mxu0 0.0
    %5115 = vmatprep.subr.mxu0 0.0
    %5116 = vmatpush1.msra.mxu0 0.0
    %5117 = vmatprep.subr.mxu0 0.0
    %5118 = vmatpush1.msra.mxu0 0.0
    %5119 = vmatprep.subr.mxu0 0.0
    %5120 = vmatpush1.msra.mxu0 0.0
    %5121 = vmatprep.mubr.f32.mxu0 0.0
    %5122 = vmatmul.mubr.f32.gmra.mrb[0].mxu0 %v4788
    %v5123 = vpop.f32.mrb[0].mxu0
    %v5124 = vadd.f32 0.0, %v5123
    %v5125 = vpop.f32.mrb[0].mxu0
    %5126 = vmatprep.mubr.f32.mxu0 0.0
    %5127 = vmatmul.mubr.f32.gmra.mrb[0].mxu0 %v4791
    %v5128 = vpop.f32.mrb[0].mxu0
    %v5129 = vadd.f32 0.0, %v5128
    %v5130 = vpop.f32.mrb[0].mxu0
    %5131 = vmatprep.mubr.f32.mxu0 0.0
    %5132 = vmatmul.mubr.f32.gmra.mrb[0].mxu0 %v4794
    %v5133 = vpop.f32.mrb[0].mxu0
    %v5134 = vadd.f32 0.0, %v5133
    %v5135 = vpop.f32.mrb[0].mxu0
    %5136 = vmatprep.mubr.f32.mxu0 0.0
    %5137 = vmatmul.mubr.f32.gmra.mrb[0].mxu0 %v4797
    %v5138 = vpop.f32.mrb[0].mxu0
    %v5139 = vadd.f32 0.0, %v5138
    %v5140 = vpop.f32.mrb[0].mxu0
    %5141 = vmatprep.mubr.f32.mxu0 0.0
    %5142 = vmatmul.mubr.f32.gmra.mrb[0].mxu0 %v4800
    %v5143 = vpop.f32.mrb[0].mxu0
    %v5144 = vadd.f32 0.0, %v5143
    %v5145 = vpop.f32.mrb[0].mxu0
    %5146 = vmatprep.mubr.f32.mxu0 0.0
    %5147 = vmatmul.mubr.f32.gmra.mrb[0].mxu0 %v4803
    %v5148 = vpop.f32.mrb[0].mxu0
    %v5149 = vadd.f32 0.0, %v5148
    %v5150 = vpop.f32.mrb[0].mxu0
    %5151 = vmatprep.mubr.f32.mxu0 0.0
    %5152 = vmatmul.mubr.f32.gmra.mrb[0].mxu0 %v4806
    %v5153 = vpop.f32.mrb[0].mxu0
    %v5154 = vadd.f32 0.0, %v5153
    %v5155 = vpop.f32.mrb[0].mxu0
    %5156 = vmatprep.mubr.f32.mxu0 0.0
    %5157 = vmatmul.mubr.f32.gmra.mrb[0].mxu0 %v4809
    %v5158 = vpop.f32.mrb[0].mxu0
    %v5159 = vadd.f32 0.0, %v5158
    %v5160 = vpop.f32.mrb[0].mxu0
    %5161 = vmatprep.mubr.f32.mxu0 0.0
    %5162 = vmatmul.mubr.f32.gmra.mrb[0].mxu0 %v4812
    %v5163 = vpop.f32.mrb[0].mxu0
    %v5164 = vadd.f32 0.0, %v5163
    %v5165 = vpop.f32.mrb[0].mxu0
    %5166 = vmatprep.mubr.f32.mxu0 0.0
    %5167 = vmatmul.mubr.f32.gmra.mrb[0].mxu0 %v4815
    %v5168 = vpop.f32.mrb[0].mxu0
    %v5169 = vadd.f32 0.0, %v5168
    %v5170 = vpop.f32.mrb[0].mxu0
    %5171 = vmatprep.mubr.f32.mxu0 0.0
    %5172 = vmatmul.mubr.f32.gmra.mrb[0].mxu0 %v4818
    %v5173 = vpop.f32.mrb[0].mxu0
    %v5174 = vadd.f32 0.0, %v5173
    %v5175 = vpop.f32.mrb[0].mxu0
    %5176 = vmatprep.mubr.f32.mxu0 0.0
    %5177 = vmatmul.mubr.f32.gmra.mrb[0].mxu0 %v4821
    %v5178 = vpop.f32.mrb[0].mxu0
    %v5179 = vadd.f32 0.0, %v5178
    %v5180 = vpop.f32.mrb[0].mxu0
    %5181 = vmatprep.mubr.f32.mxu0 0.0
    %5182 = vmatmul.mubr.f32.gmra.mrb[0].mxu0 %v4824
    %v5183 = vpop.f32.mrb[0].mxu0
    %v5184 = vadd.f32 0.0, %v5183
    %v5185 = vpop.f32.mrb[0].mxu0
    %5186 = vmatprep.mubr.f32.mxu0 0.0
    %5187 = vmatmul.mubr.f32.gmra.mrb[0].mxu0 %v4827
    %v5188 = vpop.f32.mrb[0].mxu0
    %v5189 = vadd.f32 0.0, %v5188
    %v5190 = vpop.f32.mrb[0].mxu0
    %5191 = vmatprep.mubr.f32.mxu0 0.0
    %5192 = vmatmul.mubr.f32.gmra.mrb[0].mxu0 %v4830
    %v5193 = vpop.f32.mrb[0].mxu0
    %v5194 = vadd.f32 0.0, %v5193
    %v5195 = vpop.f32.mrb[0].mxu0
    %5196 = vmatprep.mubr.f32.mxu0 0.0
    %5197 = vmatmul.mubr.f32.gmra.mrb[0].mxu0 %v4833
    %v5198 = vpop.f32.mrb[0].mxu0
    %v5199 = vadd.f32 0.0, %v5198
    %v5200 = vpop.f32.mrb[0].mxu0
    %5201 = vmatprep.mubr.f32.mxu0 0.0
    %5202 = vmatmul.mubr.f32.gmra.mrb[0].mxu0 %v4836
    %v5203 = vpop.f32.mrb[0].mxu0
    %v5204 = vadd.f32 0.0, %v5203
    %v5205 = vpop.f32.mrb[0].mxu0
    %5206 = vmatprep.mubr.f32.mxu0 0.0
    %5207 = vmatmul.mubr.f32.gmra.mrb[0].mxu0 %v4839
    %v5208 = vpop.f32.mrb[0].mxu0
    %v5209 = vadd.f32 0.0, %v5208
    %v5210 = vpop.f32.mrb[0].mxu0
    %5211 = vmatprep.mubr.f32.mxu0 0.0
    %5212 = vmatmul.mubr.f32.gmra.mrb[0].mxu0 %v4842
    %v5213 = vpop.f32.mrb[0].mxu0
    %v5214 = vadd.f32 0.0, %v5213
    %v5215 = vpop.f32.mrb[0].mxu0
    %5216 = vmatprep.mubr.f32.mxu0 0.0
    %5217 = vmatmul.mubr.f32.gmra.mrb[0].mxu0 %v4845
    %v5218 = vpop.f32.mrb[0].mxu0
    %v5219 = vadd.f32 0.0, %v5218
    %v5220 = vpop.f32.mrb[0].mxu0
    %5221 = vmatprep.mubr.f32.mxu0 0.0
    %5222 = vmatmul.mubr.f32.gmra.mrb[0].mxu0 %v4848
    %v5223 = vpop.f32.mrb[0].mxu0
    %v5224 = vadd.f32 0.0, %v5223
    %v5225 = vpop.f32.mrb[0].mxu0
    %5226 = vmatprep.mubr.f32.mxu0 0.0
    %5227 = vmatmul.mubr.f32.gmra.mrb[0].mxu0 %v4851
    %v5228 = vpop.f32.mrb[0].mxu0
    %v5229 = vadd.f32 0.0, %v5228
    %v5230 = vpop.f32.mrb[0].mxu0
    %5231 = vmatprep.mubr.f32.mxu0 0.0
    %5232 = vmatmul.mubr.f32.gmra.mrb[0].mxu0 %v4854
    %v5233 = vpop.f32.mrb[0].mxu0
    %v5234 = vadd.f32 0.0, %v5233
    %v5235 = vpop.f32.mrb[0].mxu0
    %5236 = vmatprep.mubr.f32.mxu0 0.0
    %5237 = vmatmul.mubr.f32.gmra.mrb[0].mxu0 %v4857
    %v5238 = vpop.f32.mrb[0].mxu0
    %v5239 = vadd.f32 0.0, %v5238
    %v5240 = vpop.f32.mrb[0].mxu0
    %5241 = vmatprep.mubr.f32.mxu0 0.0
    %5242 = vmatmul.mubr.f32.gmra.mrb[0].mxu0 %v4860
    %v5243 = vpop.f32.mrb[0].mxu0
    %v5244 = vadd.f32 0.0, %v5243
    %v5245 = vpop.f32.mrb[0].mxu0
    %5246 = vmatprep.mubr.f32.mxu0 0.0
    %5247 = vmatmul.mubr.f32.gmra.mrb[0].mxu0 %v4863
    %v5248 = vpop.f32.mrb[0].mxu0
    %v5249 = vadd.f32 0.0, %v5248
    %v5250 = vpop.f32.mrb[0].mxu0
    %5251 = vmatprep.mubr.f32.mxu0 0.0
    %5252 = vmatmul.mubr.f32.gmra.mrb[0].mxu0 %v4866
    %v5253 = vpop.f32.mrb[0].mxu0
    %v5254 = vadd.f32 0.0, %v5253
    %v5255 = vpop.f32.mrb[0].mxu0
    %5256 = vmatprep.mubr.f32.mxu0 0.0
    %5257 = vmatmul.mubr.f32.gmra.mrb[0].mxu0 %v4869
    %v5258 = vpop.f32.mrb[0].mxu0
    %v5259 = vadd.f32 0.0, %v5258
    %v5260 = vpop.f32.mrb[0].mxu0
    %5261 = vmatprep.mubr.f32.mxu0 0.0
    %5262 = vmatmul.mubr.f32.gmra.mrb[0].mxu0 %v4872
    %v5263 = vpop.f32.mrb[0].mxu0
    %v5264 = vadd.f32 0.0, %v5263
    %v5265 = vpop.f32.mrb[0].mxu0
    %5266 = vmatprep.mubr.f32.mxu0 0.0
    %5267 = vmatmul.mubr.f32.gmra.mrb[0].mxu0 %v4875
    %v5268 = vpop.f32.mrb[0].mxu0
    %v5269 = vadd.f32 0.0, %v5268
    %v5270 = vpop.f32.mrb[0].mxu0
    %5271 = vmatprep.mubr.f32.mxu0 0.0
    %5272 = vmatmul.mubr.f32.gmra.mrb[0].mxu0 %v4878
    %v5273 = vpop.f32.mrb[0].mxu0
    %v5274 = vadd.f32 0.0, %v5273
    %v5275 = vpop.f32.mrb[0].mxu0
    %5276 = vmatprep.mubr.f32.mxu0 0.0
    %5277 = vmatmul.mubr.f32.gmra.mrb[0].mxu0 %v4881
    %v5278 = vpop.f32.mrb[0].mxu0
    %v5279 = vadd.f32 0.0, %v5278
    %v5280 = vpop.f32.mrb[0].mxu0
    %5281 = vmatprep.mubr.f32.mxu0 0.0
    %5282 = vmatmul.mubr.f32.gmra.mrb[0].mxu0 %v4884
    %v5283 = vpop.f32.mrb[0].mxu0
    %v5284 = vadd.f32 0.0, %v5283
    %v5285 = vpop.f32.mrb[0].mxu0
    %5286 = vmatprep.mubr.f32.mxu0 0.0
    %5287 = vmatmul.mubr.f32.gmra.mrb[0].mxu0 %v4887
    %v5288 = vpop.f32.mrb[0].mxu0
    %v5289 = vadd.f32 0.0, %v5288
    %v5290 = vpop.f32.mrb[0].mxu0
    %5291 = vmatprep.mubr.f32.mxu0 0.0
    %5292 = vmatmul.mubr.f32.gmra.mrb[0].mxu0 %v4890
    %v5293 = vpop.f32.mrb[0].mxu0
    %v5294 = vadd.f32 0.0, %v5293
    %v5295 = vpop.f32.mrb[0].mxu0
    %5296 = vmatprep.mubr.f32.mxu0 0.0
    %5297 = vmatmul.mubr.f32.gmra.mrb[0].mxu0 %v4893
    %v5298 = vpop.f32.mrb[0].mxu0
    %v5299 = vadd.f32 0.0, %v5298
    %v5300 = vpop.f32.mrb[0].mxu0
    %5301 = vmatprep.mubr.f32.mxu0 0.0
    %5302 = vmatmul.mubr.f32.gmra.mrb[0].mxu0 %v4896
    %v5303 = vpop.f32.mrb[0].mxu0
    %v5304 = vadd.f32 0.0, %v5303
    %v5305 = vpop.f32.mrb[0].mxu0
    %5306 = vmatprep.mubr.f32.mxu0 0.0
    %5307 = vmatmul.mubr.f32.gmra.mrb[0].mxu0 %v4899
    %v5308 = vpop.f32.mrb[0].mxu0
    %v5309 = vadd.f32 0.0, %v5308
    %v5310 = vpop.f32.mrb[0].mxu0
    %5311 = vmatprep.mubr.f32.mxu0 0.0
    %5312 = vmatmul.mubr.f32.gmra.mrb[0].mxu0 %v4902
    %v5313 = vpop.f32.mrb[0].mxu0
    %v5314 = vadd.f32 0.0, %v5313
    %v5315 = vpop.f32.mrb[0].mxu0
    %5316 = vmatprep.mubr.f32.mxu0 0.0
    %5317 = vmatmul.mubr.f32.gmra.mrb[0].mxu0 %v4905
    %v5318 = vpop.f32.mrb[0].mxu0
    %v5319 = vadd.f32 0.0, %v5318
    %v5320 = vpop.f32.mrb[0].mxu0
    %5321 = vmatprep.mubr.f32.mxu0 0.0
    %5322 = vmatmul.mubr.f32.gmra.mrb[0].mxu0 %v4908
    %v5323 = vpop.f32.mrb[0].mxu0
    %v5324 = vadd.f32 0.0, %v5323
    %v5325 = vpop.f32.mrb[0].mxu0
    %5326 = vmatprep.mubr.f32.mxu0 0.0
    %5327 = vmatmul.mubr.f32.gmra.mrb[0].mxu0 %v4911
    %v5328 = vpop.f32.mrb[0].mxu0
    %v5329 = vadd.f32 0.0, %v5328
    %v5330 = vpop.f32.mrb[0].mxu0
    %5331 = vmatprep.mubr.f32.mxu0 0.0
    %5332 = vmatmul.mubr.f32.gmra.mrb[0].mxu0 %v4914
    %v5333 = vpop.f32.mrb[0].mxu0
    %v5334 = vadd.f32 0.0, %v5333
    %v5335 = vpop.f32.mrb[0].mxu0
    %5336 = vmatprep.mubr.f32.mxu0 0.0
    %5337 = vmatmul.mubr.f32.gmra.mrb[0].mxu0 %v4917
    %v5338 = vpop.f32.mrb[0].mxu0
    %v5339 = vadd.f32 0.0, %v5338
    %v5340 = vpop.f32.mrb[0].mxu0
    %5341 = vmatprep.mubr.f32.mxu0 0.0
    %5342 = vmatmul.mubr.f32.gmra.mrb[0].mxu0 %v4920
    %v5343 = vpop.f32.mrb[0].mxu0
    %v5344 = vadd.f32 0.0, %v5343
    %v5345 = vpop.f32.mrb[0].mxu0
    %5346 = vmatprep.mubr.f32.mxu0 0.0
    %5347 = vmatmul.mubr.f32.gmra.mrb[0].mxu0 %v4923
    %v5348 = vpop.f32.mrb[0].mxu0
    %v5349 = vadd.f32 0.0, %v5348
    %v5350 = vpop.f32.mrb[0].mxu0
    %5351 = vmatprep.mubr.f32.mxu0 0.0
    %5352 = vmatmul.mubr.f32.gmra.mrb[0].mxu0 %v4926
    %v5353 = vpop.f32.mrb[0].mxu0
    %v5354 = vadd.f32 0.0, %v5353
    %v5355 = vpop.f32.mrb[0].mxu0
    %5356 = vmatprep.mubr.f32.mxu0 0.0
    %5357 = vmatmul.mubr.f32.gmra.mrb[0].mxu0 %v4929
    %v5358 = vpop.f32.mrb[0].mxu0
    %v5359 = vadd.f32 0.0, %v5358
    %v5360 = vpop.f32.mrb[0].mxu0
    %5361 = vmatprep.mubr.f32.mxu0 0.0
    %5362 = vmatmul.mubr.f32.gmra.mrb[0].mxu0 %v4932
    %v5363 = vpop.f32.mrb[0].mxu0
    %v5364 = vadd.f32 0.0, %v5363
    %v5365 = vpop.f32.mrb[0].mxu0
    %5366 = vmatprep.mubr.f32.mxu0 0.0
    %5367 = vmatmul.mubr.f32.gmra.mrb[0].mxu0 %v4935
    %v5368 = vpop.f32.mrb[0].mxu0
    %v5369 = vadd.f32 0.0, %v5368
    %v5370 = vpop.f32.mrb[0].mxu0
    %5371 = vmatprep.mubr.f32.mxu0 0.0
    %5372 = vmatmul.mubr.f32.gmra.mrb[0].mxu0 %v4938
    %v5373 = vpop.f32.mrb[0].mxu0
    %v5374 = vadd.f32 0.0, %v5373
    %v5375 = vpop.f32.mrb[0].mxu0
    %5376 = vmatprep.mubr.f32.mxu0 0.0
    %5377 = vmatmul.mubr.f32.gmra.mrb[0].mxu0 %v4941
    %v5378 = vpop.f32.mrb[0].mxu0
    %v5379 = vadd.f32 0.0, %v5378
    %v5380 = vpop.f32.mrb[0].mxu0
    %5381 = vmatprep.mubr.f32.mxu0 0.0
    %5382 = vmatmul.mubr.f32.gmra.mrb[0].mxu0 %v4944
    %v5383 = vpop.f32.mrb[0].mxu0
    %v5384 = vadd.f32 0.0, %v5383
    %v5385 = vpop.f32.mrb[0].mxu0
    %5386 = vmatprep.mubr.f32.mxu0 0.0
    %5387 = vmatmul.mubr.f32.gmra.mrb[0].mxu0 %v4947
    %v5388 = vpop.f32.mrb[0].mxu0
    %v5389 = vadd.f32 0.0, %v5388
    %v5390 = vpop.f32.mrb[0].mxu0
    %5391 = vmatprep.mubr.f32.mxu0 0.0
    %5392 = vmatmul.mubr.f32.gmra.mrb[0].mxu0 %v4950
    %v5393 = vpop.f32.mrb[0].mxu0
    %v5394 = vadd.f32 0.0, %v5393
    %v5395 = vpop.f32.mrb[0].mxu0
    %5396 = vmatprep.mubr.f32.mxu0 0.0
    %5397 = vmatmul.mubr.f32.gmra.mrb[0].mxu0 %v4953
    %v5398 = vpop.f32.mrb[0].mxu0
    %v5399 = vadd.f32 0.0, %v5398
    %v5400 = vpop.f32.mrb[0].mxu0
    %5401 = vmatprep.mubr.f32.mxu0 0.0
    %5402 = vmatmul.mubr.f32.gmra.mrb[0].mxu0 %v4956
    %v5403 = vpop.f32.mrb[0].mxu0
    %v5404 = vadd.f32 0.0, %v5403
    %v5405 = vpop.f32.mrb[0].mxu0
    %5406 = vmatprep.mubr.f32.mxu0 0.0
    %5407 = vmatmul.mubr.f32.gmra.mrb[0].mxu0 %v4959
    %v5408 = vpop.f32.mrb[0].mxu0
    %v5409 = vadd.f32 0.0, %v5408
    %v5410 = vpop.f32.mrb[0].mxu0
    %5411 = vmatprep.mubr.f32.mxu0 0.0
    %5412 = vmatmul.mubr.f32.gmra.mrb[0].mxu0 %v4962
    %v5413 = vpop.f32.mrb[0].mxu0
    %v5414 = vadd.f32 0.0, %v5413
    %v5415 = vpop.f32.mrb[0].mxu0
    %5416 = vmatprep.mubr.f32.mxu0 0.0
    %5417 = vmatmul.mubr.f32.gmra.mrb[0].mxu0 %v4965
    %v5418 = vpop.f32.mrb[0].mxu0
    %v5419 = vadd.f32 0.0, %v5418
    %v5420 = vpop.f32.mrb[0].mxu0
    %5421 = vmatprep.mubr.f32.mxu0 0.0
    %5422 = vmatmul.mubr.f32.gmra.mrb[0].mxu0 %v4968
    %v5423 = vpop.f32.mrb[0].mxu0
    %v5424 = vadd.f32 0.0, %v5423
    %v5425 = vpop.f32.mrb[0].mxu0
    %5426 = vmatprep.mubr.f32.mxu0 0.0
    %5427 = vmatmul.mubr.f32.gmra.mrb[0].mxu0 %v4971
    %v5428 = vpop.f32.mrb[0].mxu0
    %v5429 = vadd.f32 0.0, %v5428
    %v5430 = vpop.f32.mrb[0].mxu0
    %5431 = vmatprep.mubr.f32.mxu0 0.0
    %5432 = vmatmul.mubr.f32.gmra.mrb[0].mxu0 %v4974
    %v5433 = vpop.f32.mrb[0].mxu0
    %v5434 = vadd.f32 0.0, %v5433
    %v5435 = vpop.f32.mrb[0].mxu0
    %5436 = vmatprep.mubr.f32.mxu0 0.0
    %5437 = vmatmul.mubr.f32.gmra.mrb[0].mxu0 %v4977
    %v5438 = vpop.f32.mrb[0].mxu0
    %v5439 = vadd.f32 0.0, %v5438
    %v5440 = vpop.f32.mrb[0].mxu0
    %5441 = vmatprep.mubr.f32.mxu0 0.0
    %5442 = vmatmul.mubr.f32.gmra.mrb[0].mxu0 %v4980
    %v5443 = vpop.f32.mrb[0].mxu0
    %v5444 = vadd.f32 0.0, %v5443
    %v5445 = vpop.f32.mrb[0].mxu0
    %5446 = vmatprep.mubr.f32.mxu0 0.0
    %5447 = vmatmul.mubr.f32.gmra.mrb[0].mxu0 %v4983
    %v5448 = vpop.f32.mrb[0].mxu0
    %v5449 = vadd.f32 0.0, %v5448
    %v5450 = vpop.f32.mrb[0].mxu0
    %5451 = vmatprep.mubr.f32.mxu0 0.0
    %5452 = vmatmul.mubr.f32.gmra.mrb[0].mxu0 %v4986
    %v5453 = vpop.f32.mrb[0].mxu0
    %v5454 = vadd.f32 0.0, %v5453
    %v5455 = vpop.f32.mrb[0].mxu0
    %5456 = vmatprep.mubr.f32.mxu0 0.0
    %5457 = vmatmul.mubr.f32.gmra.mrb[0].mxu0 %v4989
    %v5458 = vpop.f32.mrb[0].mxu0
    %v5459 = vadd.f32 0.0, %v5458
    %v5460 = vpop.f32.mrb[0].mxu0
    %5461 = vmatprep.mubr.f32.mxu0 0.0
    %5462 = vmatmul.mubr.f32.gmra.mrb[0].mxu0 %v4992
    %v5463 = vpop.f32.mrb[0].mxu0
    %v5464 = vadd.f32 0.0, %v5463
    %v5465 = vpop.f32.mrb[0].mxu0
    %5466 = vmatprep.mubr.f32.mxu0 0.0
    %5467 = vmatmul.mubr.f32.gmra.mrb[0].mxu0 %v4995
    %v5468 = vpop.f32.mrb[0].mxu0
    %v5469 = vadd.f32 0.0, %v5468
    %v5470 = vpop.f32.mrb[0].mxu0
    %5471 = vmatprep.mubr.f32.mxu0 0.0
    %5472 = vmatmul.mubr.f32.gmra.mrb[0].mxu0 %v4998
    %v5473 = vpop.f32.mrb[0].mxu0
    %v5474 = vadd.f32 0.0, %v5473
    %v5475 = vpop.f32.mrb[0].mxu0
    %5476 = vmatprep.mubr.f32.mxu0 0.0
    %5477 = vmatmul.mubr.f32.gmra.mrb[0].mxu0 %v5001
    %v5478 = vpop.f32.mrb[0].mxu0
    %v5479 = vadd.f32 0.0, %v5478
    %v5480 = vpop.f32.mrb[0].mxu0
    %5481 = vmatprep.mubr.f32.mxu0 0.0
    %5482 = vmatmul.mubr.f32.gmra.mrb[0].mxu0 %v5004
    %v5483 = vpop.f32.mrb[0].mxu0
    %v5484 = vadd.f32 0.0, %v5483
    %v5485 = vpop.f32.mrb[0].mxu0
    %5486 = vmatprep.mubr.f32.mxu0 0.0
    %5487 = vmatmul.mubr.f32.gmra.mrb[0].mxu0 %v5007
    %v5488 = vpop.f32.mrb[0].mxu0
    %v5489 = vadd.f32 0.0, %v5488
    %v5490 = vpop.f32.mrb[0].mxu0
    %5491 = vmatprep.mubr.f32.mxu0 0.0
    %5492 = vmatmul.mubr.f32.gmra.mrb[0].mxu0 %v5010
    %v5493 = vpop.f32.mrb[0].mxu0
    %v5494 = vadd.f32 0.0, %v5493
    %v5495 = vpop.f32.mrb[0].mxu0
    %5496 = vmatprep.mubr.f32.mxu0 0.0
    %5497 = vmatmul.mubr.f32.gmra.mrb[0].mxu0 %v5013
    %v5498 = vpop.f32.mrb[0].mxu0
    %v5499 = vadd.f32 0.0, %v5498
    %v5500 = vpop.f32.mrb[0].mxu0
    %5501 = vmatprep.mubr.f32.mxu0 0.0
    %5502 = vmatmul.mubr.f32.gmra.mrb[0].mxu0 %v5016
    %v5503 = vpop.f32.mrb[0].mxu0
    %v5504 = vadd.f32 0.0, %v5503
    %v5505 = vpop.f32.mrb[0].mxu0
    %5506 = vmatprep.mubr.f32.mxu0 0.0
    %5507 = vmatmul.mubr.f32.gmra.mrb[0].mxu0 %v5019
    %v5508 = vpop.f32.mrb[0].mxu0
    %v5509 = vadd.f32 0.0, %v5508
    %v5510 = vpop.f32.mrb[0].mxu0
    %5511 = vmatprep.mubr.f32.mxu0 0.0
    %5512 = vmatmul.mubr.f32.gmra.mrb[0].mxu0 %v5022
    %v5513 = vpop.f32.mrb[0].mxu0
    %v5514 = vadd.f32 0.0, %v5513
    %v5515 = vpop.f32.mrb[0].mxu0
    %5516 = vmatprep.mubr.f32.mxu0 0.0
    %5517 = vmatmul.mubr.f32.gmra.mrb[0].mxu0 %v5025
    %v5518 = vpop.f32.mrb[0].mxu0
    %v5519 = vadd.f32 0.0, %v5518
    %v5520 = vpop.f32.mrb[0].mxu0
    %5521 = vmatprep.mubr.f32.mxu0 0.0
    %5522 = vmatmul.mubr.f32.gmra.mrb[0].mxu0 %v5028
    %v5523 = vpop.f32.mrb[0].mxu0
    %v5524 = vadd.f32 0.0, %v5523
    %v5525 = vpop.f32.mrb[0].mxu0
    %5526 = vmatprep.mubr.f32.mxu0 0.0
    %5527 = vmatmul.mubr.f32.gmra.mrb[0].mxu0 %v5031
    %v5528 = vpop.f32.mrb[0].mxu0
    %v5529 = vadd.f32 0.0, %v5528
    %v5530 = vpop.f32.mrb[0].mxu0
    %5531 = vmatprep.mubr.f32.mxu0 0.0
    %5532 = vmatmul.mubr.f32.gmra.mrb[0].mxu0 %v5034
    %v5533 = vpop.f32.mrb[0].mxu0
    %v5534 = vadd.f32 0.0, %v5533
    %v5535 = vpop.f32.mrb[0].mxu0
    %5536 = vmatprep.mubr.f32.mxu0 0.0
    %5537 = vmatmul.mubr.f32.gmra.mrb[0].mxu0 %v5037
    %v5538 = vpop.f32.mrb[0].mxu0
    %v5539 = vadd.f32 0.0, %v5538
    %v5540 = vpop.f32.mrb[0].mxu0
    %5541 = vmatprep.mubr.f32.mxu0 0.0
    %5542 = vmatmul.mubr.f32.gmra.mrb[0].mxu0 %v5040
    %v5543 = vpop.f32.mrb[0].mxu0
    %v5544 = vadd.f32 0.0, %v5543
    %v5545 = vpop.f32.mrb[0].mxu0
    %5546 = vmatprep.mubr.f32.mxu0 0.0
    %5547 = vmatmul.mubr.f32.gmra.mrb[0].mxu0 %v5043
    %v5548 = vpop.f32.mrb[0].mxu0
    %v5549 = vadd.f32 0.0, %v5548
    %v5550 = vpop.f32.mrb[0].mxu0
    %5551 = vmatprep.mubr.f32.mxu0 0.0
    %5552 = vmatmul.mubr.f32.gmra.mrb[0].mxu0 %v5046
    %v5553 = vpop.f32.mrb[0].mxu0
    %v5554 = vadd.f32 0.0, %v5553
    %v5555 = vpop.f32.mrb[0].mxu0
    %5556 = vmatprep.mubr.f32.mxu0 0.0
    %5557 = vmatmul.mubr.f32.gmra.mrb[0].mxu0 %v5049
    %v5558 = vpop.f32.mrb[0].mxu0
    %v5559 = vadd.f32 0.0, %v5558
    %v5560 = vpop.f32.mrb[0].mxu0
    %5561 = vmatprep.mubr.f32.mxu0 0.0
    %5562 = vmatmul.mubr.f32.gmra.mrb[0].mxu0 %v5052
    %v5563 = vpop.f32.mrb[0].mxu0
    %v5564 = vadd.f32 0.0, %v5563
    %v5565 = vpop.f32.mrb[0].mxu0
    %5566 = vmatprep.mubr.f32.mxu0 0.0
    %5567 = vmatmul.mubr.f32.gmra.mrb[0].mxu0 %v5055
    %v5568 = vpop.f32.mrb[0].mxu0
    %v5569 = vadd.f32 0.0, %v5568
    %v5570 = vpop.f32.mrb[0].mxu0
    %5571 = vdwg.mxu0
    %v5572 = vadd.f32 %v4605, %v5124
    %v5573 = vadd.f32 %v4606, %v5129
    %v5574 = vadd.f32 %v4607, %v5134
    %v5575 = vadd.f32 %v4608, %v5139
    %v5576 = vadd.f32 %v4609, %v5144
    %v5577 = vadd.f32 %v4610, %v5149
    %v5578 = vadd.f32 %v4611, %v5154
    %v5579 = vadd.f32 %v4612, %v5159
    %v5580 = vadd.f32 %v4613, %v5164
    %v5581 = vadd.f32 %v4614, %v5169
    %v5582 = vadd.f32 %v4615, %v5174
    %v5583 = vadd.f32 %v4616, %v5179
    %v5584 = vadd.f32 %v4617, %v5184
    %v5585 = vadd.f32 %v4618, %v5189
    %v5586 = vadd.f32 %v4619, %v5194
    %v5587 = vadd.f32 %v4620, %v5199
    %v5588 = vadd.f32 %v4621, %v5204
    %v5589 = vadd.f32 %v4622, %v5209
    %v5590 = vadd.f32 %v4623, %v5214
    %v5591 = vadd.f32 %v4624, %v5219
    %v5592 = vadd.f32 %v4625, %v5224
    %v5593 = vadd.f32 %v4626, %v5229
    %v5594 = vadd.f32 %v4627, %v5234
    %v5595 = vadd.f32 %v4628, %v5239
    %v5596 = vadd.f32 %v4629, %v5244
    %v5597 = vadd.f32 %v4630, %v5249
    %v5598 = vadd.f32 %v4631, %v5254
    %v5599 = vadd.f32 %v4632, %v5259
    %v5600 = vadd.f32 %v4633, %v5264
    %v5601 = vadd.f32 %v4634, %v5269
    %v5602 = vadd.f32 %v4635, %v5274
    %v5603 = vadd.f32 %v4636, %v5279
    %v5604 = vadd.f32 %v4637, %v5284
    %v5605 = vadd.f32 %v4638, %v5289
    %v5606 = vadd.f32 %v4639, %v5294
    %v5607 = vadd.f32 %v4640, %v5299
    %v5608 = vadd.f32 %v4641, %v5304
    %v5609 = vadd.f32 %v4642, %v5309
    %v5610 = vadd.f32 %v4643, %v5314
    %v5611 = vadd.f32 %v4644, %v5319
    %v5612 = vadd.f32 %v4645, %v5324
    %v5613 = vadd.f32 %v4646, %v5329
    %v5614 = vadd.f32 %v4647, %v5334
    %v5615 = vadd.f32 %v4648, %v5339
    %v5616 = vadd.f32 %v4649, %v5344
    %v5617 = vadd.f32 %v4650, %v5349
    %v5618 = vadd.f32 %v4651, %v5354
    %v5619 = vadd.f32 %v4652, %v5359
    %v5620 = vadd.f32 %v4653, %v5364
    %v5621 = vadd.f32 %v4654, %v5369
    %v5622 = vadd.f32 %v4655, %v5374
    %v5623 = vadd.f32 %v4656, %v5379
    %v5624 = vadd.f32 %v4657, %v5384
    %v5625 = vadd.f32 %v4658, %v5389
    %v5626 = vadd.f32 %v4659, %v5394
    %v5627 = vadd.f32 %v4660, %v5399
    %v5628 = vadd.f32 %v4661, %v5404
    %v5629 = vadd.f32 %v4662, %v5409
    %v5630 = vadd.f32 %v4663, %v5414
    %v5631 = vadd.f32 %v4664, %v5419
    %v5632 = vadd.f32 %v4665, %v5424
    %v5633 = vadd.f32 %v4666, %v5429
    %v5634 = vadd.f32 %v4667, %v5434
    %v5635 = vadd.f32 %v4668, %v5439
    %v5636 = vadd.f32 %v4669, %v5444
    %v5637 = vadd.f32 %v4670, %v5449
    %v5638 = vadd.f32 %v4671, %v5454
    %v5639 = vadd.f32 %v4672, %v5459
    %v5640 = vadd.f32 %v4673, %v5464
    %v5641 = vadd.f32 %v4674, %v5469
    %v5642 = vadd.f32 %v4675, %v5474
    %v5643 = vadd.f32 %v4676, %v5479
    %v5644 = vadd.f32 %v4677, %v5484
    %v5645 = vadd.f32 %v4678, %v5489
    %v5646 = vadd.f32 %v4679, %v5494
    %v5647 = vadd.f32 %v4680, %v5499
    %v5648 = vadd.f32 %v4681, %v5504
    %v5649 = vadd.f32 %v4682, %v5509
    %v5650 = vadd.f32 %v4683, %v5514
    %v5651 = vadd.f32 %v4684, %v5519
    %v5652 = vadd.f32 %v4685, %v5524
    %v5653 = vadd.f32 %v4686, %v5529
    %v5654 = vadd.f32 %v4687, %v5534
    %v5655 = vadd.f32 %v4688, %v5539
    %v5656 = vadd.f32 %v4689, %v5544
    %v5657 = vadd.f32 %v4690, %v5549
    %v5658 = vadd.f32 %v4691, %v5554
    %v5659 = vadd.f32 %v4692, %v5559
    %v5660 = vadd.f32 %v4693, %v5564
    %v5661 = vadd.f32 %v4694, %v5569
    %v5662 = vld [vmem:[%s0 + $0x25] sm:$0xff]
    %v5663 = vld [vmem:[%s0 + $0x2d] sm:$0xff]
    %v5664 = vld [vmem:[%s0 + $0x35] sm:$0xff]
    %v5665 = vld [vmem:[%s0 + $0x3d] sm:$0xff]
    %v5666 = vld [vmem:[%s0 + $0x45] sm:$0xff]
    %v5667 = vld [vmem:[%s0 + $0x4d] sm:$0xff]
    %v5668 = vld [vmem:[%s0 + $0x55] sm:$0xff]
    %v5669 = vld [vmem:[%s0 + $0x5d] sm:$0xff]
    %v5670 = vld [vmem:[%s0 + $0x65] sm:$0xff]
    %v5671 = vld [vmem:[%s0 + $0x6d] sm:$0xff]
    %v5672 = vld [vmem:[%s0 + $0x75] sm:$0xff]
    %v5673 = vld [vmem:[%s0 + $0x7d] sm:$0xff]
    %v5674 = vld [vmem:[%s0 + $0x85] sm:$0xff]
    %v5675 = vld [vmem:[%s0 + $0x8d] sm:$0xff]
    %v5676 = vld [vmem:[%s0 + $0x95] sm:$0xff]
    %v5677 = vld [vmem:[%s0 + $0x9d] sm:$0xff]
    %v5678 = vld [vmem:[%s0 + $0xa5] sm:$0xff]
    %v5679 = vld [vmem:[%s0 + $0xad] sm:$0xff]
    %v5680 = vld [vmem:[%s0 + $0xb5] sm:$0xff]
    %v5681 = vld [vmem:[%s0 + $0xbd] sm:$0xff]
    %v5682 = vld [vmem:[%s0 + $0xc5] sm:$0xff]
    %v5683 = vld [vmem:[%s0 + $0xcd] sm:$0xff]
    %v5684 = vld [vmem:[%s0 + $0xd5] sm:$0xff]
    %v5685 = vld [vmem:[%s0 + $0xdd] sm:$0xff]
    %v5686 = vld [vmem:[%s0 + $0xe5] sm:$0xff]
    %v5687 = vld [vmem:[%s0 + $0xed] sm:$0xff]
    %v5688 = vld [vmem:[%s0 + $0xf5] sm:$0xff]
    %v5689 = vld [vmem:[%s0 + $0xfd] sm:$0xff]
    %v5690 = vld [vmem:[%s0 + $0x105] sm:$0xff]
    %v5691 = vld [vmem:[%s0 + $0x10d] sm:$0xff]
    %v5692 = vld [vmem:[%s0 + $0x115] sm:$0xff]
    %v5693 = vld [vmem:[%s0 + $0x11d] sm:$0xff]
    %v5694 = vld [vmem:[%s0 + $0x125] sm:$0xff]
    %v5695 = vld [vmem:[%s0 + $0x12d] sm:$0xff]
    %v5696 = vld [vmem:[%s0 + $0x135] sm:$0xff]
    %v5697 = vld [vmem:[%s0 + $0x13d] sm:$0xff]
    %v5698 = vld [vmem:[%s0 + $0x145] sm:$0xff]
    %v5699 = vld [vmem:[%s0 + $0x14d] sm:$0xff]
    %v5700 = vld [vmem:[%s0 + $0x155] sm:$0xff]
    %v5701 = vld [vmem:[%s0 + $0x15d] sm:$0xff]
    %v5702 = vld [vmem:[%s0 + $0x165] sm:$0xff]
    %v5703 = vld [vmem:[%s0 + $0x16d] sm:$0xff]
    %v5704 = vld [vmem:[%s0 + $0x175] sm:$0xff]
    %v5705 = vld [vmem:[%s0 + $0x17d] sm:$0xff]
    %v5706 = vld [vmem:[%s0 + $0x185] sm:$0xff]
    %v5707 = vld [vmem:[%s0 + $0x18d] sm:$0xff]
    %v5708 = vld [vmem:[%s0 + $0x195] sm:$0xff]
    %v5709 = vld [vmem:[%s0 + $0x19d] sm:$0xff]
    %v5710 = vld [vmem:[%s0 + $0x1a5] sm:$0xff]
    %v5711 = vld [vmem:[%s0 + $0x1ad] sm:$0xff]
    %v5712 = vld [vmem:[%s0 + $0x1b5] sm:$0xff]
    %v5713 = vld [vmem:[%s0 + $0x1bd] sm:$0xff]
    %v5714 = vld [vmem:[%s0 + $0x1c5] sm:$0xff]
    %v5715 = vld [vmem:[%s0 + $0x1cd] sm:$0xff]
    %v5716 = vld [vmem:[%s0 + $0x1d5] sm:$0xff]
    %v5717 = vld [vmem:[%s0 + $0x1dd] sm:$0xff]
    %v5718 = vld [vmem:[%s0 + $0x1e5] sm:$0xff]
    %v5719 = vld [vmem:[%s0 + $0x1ed] sm:$0xff]
    %v5720 = vld [vmem:[%s0 + $0x1f5] sm:$0xff]
    %v5721 = vld [vmem:[%s0 + $0x1fd] sm:$0xff]
    %v5722 = vld [vmem:[%s0 + $0x205] sm:$0xff]
    %v5723 = vld [vmem:[%s0 + $0x20d] sm:$0xff]
    %v5724 = vld [vmem:[%s0 + $0x215] sm:$0xff]
    %v5725 = vld [vmem:[%s0 + $0x21d] sm:$0xff]
    %v5726 = vld [vmem:[%s0 + $0x225] sm:$0xff]
    %v5727 = vld [vmem:[%s0 + $0x22d] sm:$0xff]
    %v5728 = vld [vmem:[%s0 + $0x235] sm:$0xff]
    %v5729 = vld [vmem:[%s0 + $0x23d] sm:$0xff]
    %v5730 = vld [vmem:[%s0 + $0x245] sm:$0xff]
    %v5731 = vld [vmem:[%s0 + $0x24d] sm:$0xff]
    %v5732 = vld [vmem:[%s0 + $0x255] sm:$0xff]
    %v5733 = vld [vmem:[%s0 + $0x25d] sm:$0xff]
    %v5734 = vld [vmem:[%s0 + $0x265] sm:$0xff]
    %v5735 = vld [vmem:[%s0 + $0x26d] sm:$0xff]
    %v5736 = vld [vmem:[%s0 + $0x275] sm:$0xff]
    %v5737 = vld [vmem:[%s0 + $0x27d] sm:$0xff]
    %v5738 = vld [vmem:[%s0 + $0x285] sm:$0xff]
    %v5739 = vld [vmem:[%s0 + $0x28d] sm:$0xff]
    %v5740 = vld [vmem:[%s0 + $0x295] sm:$0xff]
    %v5741 = vld [vmem:[%s0 + $0x29d] sm:$0xff]
    %v5742 = vld [vmem:[%s0 + $0x2a5] sm:$0xff]
    %v5743 = vld [vmem:[%s0 + $0x2ad] sm:$0xff]
    %v5744 = vld [vmem:[%s0 + $0x2b5] sm:$0xff]
    %v5745 = vld [vmem:[%s0 + $0x2bd] sm:$0xff]
    %v5746 = vld [vmem:[%s0 + $0x2c5] sm:$0xff]
    %v5747 = vld [vmem:[%s0 + $0x2cd] sm:$0xff]
    %v5748 = vld [vmem:[%s0 + $0x2d5] sm:$0xff]
    %v5749 = vld [vmem:[%s0 + $0x2dd] sm:$0xff]
    %v5750 = vld [vmem:[%s0 + $0x2e5] sm:$0xff]
    %v5751 = vld [vmem:[%s0 + $0x2ed] sm:$0xff]
    %s5752 = scalar_lea.vmem %s1, 48
    %v5753 = vld [vmem:[%s5752] sm:$0xff]
    %v5755 = vsel %vm223, %v5662, 0
    %v5758 = vsel %vm223, %v5663, 0
    %v5761 = vsel %vm223, %v5664, 0
    %v5764 = vsel %vm223, %v5665, 0
    %v5767 = vsel %vm223, %v5666, 0
    %v5770 = vsel %vm223, %v5667, 0
    %v5773 = vsel %vm223, %v5668, 0
    %v5776 = vsel %vm223, %v5669, 0
    %v5779 = vsel %vm223, %v5670, 0
    %v5782 = vsel %vm223, %v5671, 0
    %v5785 = vsel %vm223, %v5672, 0
    %v5788 = vsel %vm223, %v5673, 0
    %v5791 = vsel %vm223, %v5674, 0
    %v5794 = vsel %vm223, %v5675, 0
    %v5797 = vsel %vm223, %v5676, 0
    %v5800 = vsel %vm223, %v5677, 0
    %v5803 = vsel %vm223, %v5678, 0
    %v5806 = vsel %vm223, %v5679, 0
    %v5809 = vsel %vm223, %v5680, 0
    %v5812 = vsel %vm223, %v5681, 0
    %v5815 = vsel %vm223, %v5682, 0
    %v5818 = vsel %vm223, %v5683, 0
    %v5821 = vsel %vm223, %v5684, 0
    %v5824 = vsel %vm223, %v5685, 0
    %v5827 = vsel %vm223, %v5686, 0
    %v5830 = vsel %vm223, %v5687, 0
    %v5833 = vsel %vm223, %v5688, 0
    %v5836 = vsel %vm223, %v5689, 0
    %v5839 = vsel %vm223, %v5690, 0
    %v5842 = vsel %vm223, %v5691, 0
    %v5845 = vsel %vm223, %v5692, 0
    %v5848 = vsel %vm223, %v5693, 0
    %v5851 = vsel %vm223, %v5694, 0
    %v5854 = vsel %vm223, %v5695, 0
    %v5857 = vsel %vm223, %v5696, 0
    %v5860 = vsel %vm223, %v5697, 0
    %v5863 = vsel %vm223, %v5698, 0
    %v5866 = vsel %vm223, %v5699, 0
    %v5869 = vsel %vm223, %v5700, 0
    %v5872 = vsel %vm223, %v5701, 0
    %v5875 = vsel %vm223, %v5702, 0
    %v5878 = vsel %vm223, %v5703, 0
    %v5881 = vsel %vm223, %v5704, 0
    %v5884 = vsel %vm223, %v5705, 0
    %v5887 = vsel %vm223, %v5706, 0
    %v5890 = vsel %vm223, %v5707, 0
    %v5893 = vsel %vm223, %v5708, 0
    %v5896 = vsel %vm223, %v5709, 0
    %v5899 = vsel %vm223, %v5710, 0
    %v5902 = vsel %vm223, %v5711, 0
    %v5905 = vsel %vm223, %v5712, 0
    %v5908 = vsel %vm223, %v5713, 0
    %v5911 = vsel %vm223, %v5714, 0
    %v5914 = vsel %vm223, %v5715, 0
    %v5917 = vsel %vm223, %v5716, 0
    %v5920 = vsel %vm223, %v5717, 0
    %v5923 = vsel %vm223, %v5718, 0
    %v5926 = vsel %vm223, %v5719, 0
    %v5929 = vsel %vm223, %v5720, 0
    %v5932 = vsel %vm223, %v5721, 0
    %v5935 = vsel %vm223, %v5722, 0
    %v5938 = vsel %vm223, %v5723, 0
    %v5941 = vsel %vm223, %v5724, 0
    %v5944 = vsel %vm223, %v5725, 0
    %v5947 = vsel %vm223, %v5726, 0
    %v5950 = vsel %vm223, %v5727, 0
    %v5953 = vsel %vm223, %v5728, 0
    %v5956 = vsel %vm223, %v5729, 0
    %v5959 = vsel %vm223, %v5730, 0
    %v5962 = vsel %vm223, %v5731, 0
    %v5965 = vsel %vm223, %v5732, 0
    %v5968 = vsel %vm223, %v5733, 0
    %v5971 = vsel %vm223, %v5734, 0
    %v5974 = vsel %vm223, %v5735, 0
    %v5977 = vsel %vm223, %v5736, 0
    %v5980 = vsel %vm223, %v5737, 0
    %v5983 = vsel %vm223, %v5738, 0
    %v5986 = vsel %vm223, %v5739, 0
    %v5989 = vsel %vm223, %v5740, 0
    %v5992 = vsel %vm223, %v5741, 0
    %v5995 = vsel %vm223, %v5742, 0
    %v5998 = vsel %vm223, %v5743, 0
    %v6001 = vsel %vm223, %v5744, 0
    %v6004 = vsel %vm223, %v5745, 0
    %v6007 = vsel %vm223, %v5746, 0
    %v6010 = vsel %vm223, %v5747, 0
    %v6013 = vsel %vm223, %v5748, 0
    %v6016 = vsel %vm223, %v5749, 0
    %v6019 = vsel %vm223, %v5750, 0
    %v6022 = vsel %vm223, %v5751, 0
    %6024 = vmatprep.subr.mxu0 0.0
    %6025 = vmatpush1.msra.mxu0 %v5753
    %6026 = vmatprep.subr.mxu0 0.0
    %6027 = vmatpush1.msra.mxu0 0.0
    %6028 = vmatprep.subr.mxu0 0.0
    %6029 = vmatpush1.msra.mxu0 0.0
    %6030 = vmatprep.subr.mxu0 0.0
    %6031 = vmatpush1.msra.mxu0 0.0
    %6032 = vmatprep.subr.mxu0 0.0
    %6033 = vmatpush1.msra.mxu0 0.0
    %6034 = vmatprep.subr.mxu0 0.0
    %6035 = vmatpush1.msra.mxu0 0.0
    %6036 = vmatprep.subr.mxu0 0.0
    %6037 = vmatpush1.msra.mxu0 0.0
    %6038 = vmatprep.subr.mxu0 0.0
    %6039 = vmatpush1.msra.mxu0 0.0
    %6040 = vmatprep.subr.mxu0 0.0
    %6041 = vmatpush1.msra.mxu0 0.0
    %6042 = vmatprep.subr.mxu0 0.0
    %6043 = vmatpush1.msra.mxu0 0.0
    %6044 = vmatprep.subr.mxu0 0.0
    %6045 = vmatpush1.msra.mxu0 0.0
    %6046 = vmatprep.subr.mxu0 0.0
    %6047 = vmatpush1.msra.mxu0 0.0
    %6048 = vmatprep.subr.mxu0 0.0
    %6049 = vmatpush1.msra.mxu0 0.0
    %6050 = vmatprep.subr.mxu0 0.0
    %6051 = vmatpush1.msra.mxu0 0.0
    %6052 = vmatprep.subr.mxu0 0.0
    %6053 = vmatpush1.msra.mxu0 0.0
    %6054 = vmatprep.subr.mxu0 0.0
    %6055 = vmatpush1.msra.mxu0 0.0
    %6056 = vmatprep.subr.mxu0 0.0
    %6057 = vmatpush1.msra.mxu0 0.0
    %6058 = vmatprep.subr.mxu0 0.0
    %6059 = vmatpush1.msra.mxu0 0.0
    %6060 = vmatprep.subr.mxu0 0.0
    %6061 = vmatpush1.msra.mxu0 0.0
    %6062 = vmatprep.subr.mxu0 0.0
    %6063 = vmatpush1.msra.mxu0 0.0
    %6064 = vmatprep.subr.mxu0 0.0
    %6065 = vmatpush1.msra.mxu0 0.0
    %6066 = vmatprep.subr.mxu0 0.0
    %6067 = vmatpush1.msra.mxu0 0.0
    %6068 = vmatprep.subr.mxu0 0.0
    %6069 = vmatpush1.msra.mxu0 0.0
    %6070 = vmatprep.subr.mxu0 0.0
    %6071 = vmatpush1.msra.mxu0 0.0
    %6072 = vmatprep.subr.mxu0 0.0
    %6073 = vmatpush1.msra.mxu0 0.0
    %6074 = vmatprep.subr.mxu0 0.0
    %6075 = vmatpush1.msra.mxu0 0.0
    %6076 = vmatprep.subr.mxu0 0.0
    %6077 = vmatpush1.msra.mxu0 0.0
    %6078 = vmatprep.subr.mxu0 0.0
    %6079 = vmatpush1.msra.mxu0 0.0
    %6080 = vmatprep.subr.mxu0 0.0
    %6081 = vmatpush1.msra.mxu0 0.0
    %6082 = vmatprep.subr.mxu0 0.0
    %6083 = vmatpush1.msra.mxu0 0.0
    %6084 = vmatprep.subr.mxu0 0.0
    %6085 = vmatpush1.msra.mxu0 0.0
    %6086 = vmatprep.subr.mxu0 0.0
    %6087 = vmatpush1.msra.mxu0 0.0
    %6088 = vmatprep.mubr.f32.mxu0 0.0
    %6089 = vmatmul.mubr.f32.gmra.mrb[0].mxu0 %v5755
    %v6090 = vpop.f32.mrb[0].mxu0
    %v6091 = vadd.f32 0.0, %v6090
    %v6092 = vpop.f32.mrb[0].mxu0
    %6093 = vmatprep.mubr.f32.mxu0 0.0
    %6094 = vmatmul.mubr.f32.gmra.mrb[0].mxu0 %v5758
    %v6095 = vpop.f32.mrb[0].mxu0
    %v6096 = vadd.f32 0.0, %v6095
    %v6097 = vpop.f32.mrb[0].mxu0
    %6098 = vmatprep.mubr.f32.mxu0 0.0
    %6099 = vmatmul.mubr.f32.gmra.mrb[0].mxu0 %v5761
    %v6100 = vpop.f32.mrb[0].mxu0
    %v6101 = vadd.f32 0.0, %v6100
    %v6102 = vpop.f32.mrb[0].mxu0
    %6103 = vmatprep.mubr.f32.mxu0 0.0
    %6104 = vmatmul.mubr.f32.gmra.mrb[0].mxu0 %v5764
    %v6105 = vpop.f32.mrb[0].mxu0
    %v6106 = vadd.f32 0.0, %v6105
    %v6107 = vpop.f32.mrb[0].mxu0
    %6108 = vmatprep.mubr.f32.mxu0 0.0
    %6109 = vmatmul.mubr.f32.gmra.mrb[0].mxu0 %v5767
    %v6110 = vpop.f32.mrb[0].mxu0
    %v6111 = vadd.f32 0.0, %v6110
    %v6112 = vpop.f32.mrb[0].mxu0
    %6113 = vmatprep.mubr.f32.mxu0 0.0
    %6114 = vmatmul.mubr.f32.gmra.mrb[0].mxu0 %v5770
    %v6115 = vpop.f32.mrb[0].mxu0
    %v6116 = vadd.f32 0.0, %v6115
    %v6117 = vpop.f32.mrb[0].mxu0
    %6118 = vmatprep.mubr.f32.mxu0 0.0
    %6119 = vmatmul.mubr.f32.gmra.mrb[0].mxu0 %v5773
    %v6120 = vpop.f32.mrb[0].mxu0
    %v6121 = vadd.f32 0.0, %v6120
    %v6122 = vpop.f32.mrb[0].mxu0
    %6123 = vmatprep.mubr.f32.mxu0 0.0
    %6124 = vmatmul.mubr.f32.gmra.mrb[0].mxu0 %v5776
    %v6125 = vpop.f32.mrb[0].mxu0
    %v6126 = vadd.f32 0.0, %v6125
    %v6127 = vpop.f32.mrb[0].mxu0
    %6128 = vmatprep.mubr.f32.mxu0 0.0
    %6129 = vmatmul.mubr.f32.gmra.mrb[0].mxu0 %v5779
    %v6130 = vpop.f32.mrb[0].mxu0
    %v6131 = vadd.f32 0.0, %v6130
    %v6132 = vpop.f32.mrb[0].mxu0
    %6133 = vmatprep.mubr.f32.mxu0 0.0
    %6134 = vmatmul.mubr.f32.gmra.mrb[0].mxu0 %v5782
    %v6135 = vpop.f32.mrb[0].mxu0
    %v6136 = vadd.f32 0.0, %v6135
    %v6137 = vpop.f32.mrb[0].mxu0
    %6138 = vmatprep.mubr.f32.mxu0 0.0
    %6139 = vmatmul.mubr.f32.gmra.mrb[0].mxu0 %v5785
    %v6140 = vpop.f32.mrb[0].mxu0
    %v6141 = vadd.f32 0.0, %v6140
    %v6142 = vpop.f32.mrb[0].mxu0
    %6143 = vmatprep.mubr.f32.mxu0 0.0
    %6144 = vmatmul.mubr.f32.gmra.mrb[0].mxu0 %v5788
    %v6145 = vpop.f32.mrb[0].mxu0
    %v6146 = vadd.f32 0.0, %v6145
    %v6147 = vpop.f32.mrb[0].mxu0
    %6148 = vmatprep.mubr.f32.mxu0 0.0
    %6149 = vmatmul.mubr.f32.gmra.mrb[0].mxu0 %v5791
    %v6150 = vpop.f32.mrb[0].mxu0
    %v6151 = vadd.f32 0.0, %v6150
    %v6152 = vpop.f32.mrb[0].mxu0
    %6153 = vmatprep.mubr.f32.mxu0 0.0
    %6154 = vmatmul.mubr.f32.gmra.mrb[0].mxu0 %v5794
    %v6155 = vpop.f32.mrb[0].mxu0
    %v6156 = vadd.f32 0.0, %v6155
    %v6157 = vpop.f32.mrb[0].mxu0
    %6158 = vmatprep.mubr.f32.mxu0 0.0
    %6159 = vmatmul.mubr.f32.gmra.mrb[0].mxu0 %v5797
    %v6160 = vpop.f32.mrb[0].mxu0
    %v6161 = vadd.f32 0.0, %v6160
    %v6162 = vpop.f32.mrb[0].mxu0
    %6163 = vmatprep.mubr.f32.mxu0 0.0
    %6164 = vmatmul.mubr.f32.gmra.mrb[0].mxu0 %v5800
    %v6165 = vpop.f32.mrb[0].mxu0
    %v6166 = vadd.f32 0.0, %v6165
    %v6167 = vpop.f32.mrb[0].mxu0
    %6168 = vmatprep.mubr.f32.mxu0 0.0
    %6169 = vmatmul.mubr.f32.gmra.mrb[0].mxu0 %v5803
    %v6170 = vpop.f32.mrb[0].mxu0
    %v6171 = vadd.f32 0.0, %v6170
    %v6172 = vpop.f32.mrb[0].mxu0
    %6173 = vmatprep.mubr.f32.mxu0 0.0
    %6174 = vmatmul.mubr.f32.gmra.mrb[0].mxu0 %v5806
    %v6175 = vpop.f32.mrb[0].mxu0
    %v6176 = vadd.f32 0.0, %v6175
    %v6177 = vpop.f32.mrb[0].mxu0
    %6178 = vmatprep.mubr.f32.mxu0 0.0
    %6179 = vmatmul.mubr.f32.gmra.mrb[0].mxu0 %v5809
    %v6180 = vpop.f32.mrb[0].mxu0
    %v6181 = vadd.f32 0.0, %v6180
    %v6182 = vpop.f32.mrb[0].mxu0
    %6183 = vmatprep.mubr.f32.mxu0 0.0
    %6184 = vmatmul.mubr.f32.gmra.mrb[0].mxu0 %v5812
    %v6185 = vpop.f32.mrb[0].mxu0
    %v6186 = vadd.f32 0.0, %v6185
    %v6187 = vpop.f32.mrb[0].mxu0
    %6188 = vmatprep.mubr.f32.mxu0 0.0
    %6189 = vmatmul.mubr.f32.gmra.mrb[0].mxu0 %v5815
    %v6190 = vpop.f32.mrb[0].mxu0
    %v6191 = vadd.f32 0.0, %v6190
    %v6192 = vpop.f32.mrb[0].mxu0
    %6193 = vmatprep.mubr.f32.mxu0 0.0
    %6194 = vmatmul.mubr.f32.gmra.mrb[0].mxu0 %v5818
    %v6195 = vpop.f32.mrb[0].mxu0
    %v6196 = vadd.f32 0.0, %v6195
    %v6197 = vpop.f32.mrb[0].mxu0
    %6198 = vmatprep.mubr.f32.mxu0 0.0
    %6199 = vmatmul.mubr.f32.gmra.mrb[0].mxu0 %v5821
    %v6200 = vpop.f32.mrb[0].mxu0
    %v6201 = vadd.f32 0.0, %v6200
    %v6202 = vpop.f32.mrb[0].mxu0
    %6203 = vmatprep.mubr.f32.mxu0 0.0
    %6204 = vmatmul.mubr.f32.gmra.mrb[0].mxu0 %v5824
    %v6205 = vpop.f32.mrb[0].mxu0
    %v6206 = vadd.f32 0.0, %v6205
    %v6207 = vpop.f32.mrb[0].mxu0
    %6208 = vmatprep.mubr.f32.mxu0 0.0
    %6209 = vmatmul.mubr.f32.gmra.mrb[0].mxu0 %v5827
    %v6210 = vpop.f32.mrb[0].mxu0
    %v6211 = vadd.f32 0.0, %v6210
    %v6212 = vpop.f32.mrb[0].mxu0
    %6213 = vmatprep.mubr.f32.mxu0 0.0
    %6214 = vmatmul.mubr.f32.gmra.mrb[0].mxu0 %v5830
    %v6215 = vpop.f32.mrb[0].mxu0
    %v6216 = vadd.f32 0.0, %v6215
    %v6217 = vpop.f32.mrb[0].mxu0
    %6218 = vmatprep.mubr.f32.mxu0 0.0
    %6219 = vmatmul.mubr.f32.gmra.mrb[0].mxu0 %v5833
    %v6220 = vpop.f32.mrb[0].mxu0
    %v6221 = vadd.f32 0.0, %v6220
    %v6222 = vpop.f32.mrb[0].mxu0
    %6223 = vmatprep.mubr.f32.mxu0 0.0
    %6224 = vmatmul.mubr.f32.gmra.mrb[0].mxu0 %v5836
    %v6225 = vpop.f32.mrb[0].mxu0
    %v6226 = vadd.f32 0.0, %v6225
    %v6227 = vpop.f32.mrb[0].mxu0
    %6228 = vmatprep.mubr.f32.mxu0 0.0
    %6229 = vmatmul.mubr.f32.gmra.mrb[0].mxu0 %v5839
    %v6230 = vpop.f32.mrb[0].mxu0
    %v6231 = vadd.f32 0.0, %v6230
    %v6232 = vpop.f32.mrb[0].mxu0
    %6233 = vmatprep.mubr.f32.mxu0 0.0
    %6234 = vmatmul.mubr.f32.gmra.mrb[0].mxu0 %v5842
    %v6235 = vpop.f32.mrb[0].mxu0
    %v6236 = vadd.f32 0.0, %v6235
    %v6237 = vpop.f32.mrb[0].mxu0
    %6238 = vmatprep.mubr.f32.mxu0 0.0
    %6239 = vmatmul.mubr.f32.gmra.mrb[0].mxu0 %v5845
    %v6240 = vpop.f32.mrb[0].mxu0
    %v6241 = vadd.f32 0.0, %v6240
    %v6242 = vpop.f32.mrb[0].mxu0
    %6243 = vmatprep.mubr.f32.mxu0 0.0
    %6244 = vmatmul.mubr.f32.gmra.mrb[0].mxu0 %v5848
    %v6245 = vpop.f32.mrb[0].mxu0
    %v6246 = vadd.f32 0.0, %v6245
    %v6247 = vpop.f32.mrb[0].mxu0
    %6248 = vmatprep.mubr.f32.mxu0 0.0
    %6249 = vmatmul.mubr.f32.gmra.mrb[0].mxu0 %v5851
    %v6250 = vpop.f32.mrb[0].mxu0
    %v6251 = vadd.f32 0.0, %v6250
    %v6252 = vpop.f32.mrb[0].mxu0
    %6253 = vmatprep.mubr.f32.mxu0 0.0
    %6254 = vmatmul.mubr.f32.gmra.mrb[0].mxu0 %v5854
    %v6255 = vpop.f32.mrb[0].mxu0
    %v6256 = vadd.f32 0.0, %v6255
    %v6257 = vpop.f32.mrb[0].mxu0
    %6258 = vmatprep.mubr.f32.mxu0 0.0
    %6259 = vmatmul.mubr.f32.gmra.mrb[0].mxu0 %v5857
    %v6260 = vpop.f32.mrb[0].mxu0
    %v6261 = vadd.f32 0.0, %v6260
    %v6262 = vpop.f32.mrb[0].mxu0
    %6263 = vmatprep.mubr.f32.mxu0 0.0
    %6264 = vmatmul.mubr.f32.gmra.mrb[0].mxu0 %v5860
    %v6265 = vpop.f32.mrb[0].mxu0
    %v6266 = vadd.f32 0.0, %v6265
    %v6267 = vpop.f32.mrb[0].mxu0
    %6268 = vmatprep.mubr.f32.mxu0 0.0
    %6269 = vmatmul.mubr.f32.gmra.mrb[0].mxu0 %v5863
    %v6270 = vpop.f32.mrb[0].mxu0
    %v6271 = vadd.f32 0.0, %v6270
    %v6272 = vpop.f32.mrb[0].mxu0
    %6273 = vmatprep.mubr.f32.mxu0 0.0
    %6274 = vmatmul.mubr.f32.gmra.mrb[0].mxu0 %v5866
    %v6275 = vpop.f32.mrb[0].mxu0
    %v6276 = vadd.f32 0.0, %v6275
    %v6277 = vpop.f32.mrb[0].mxu0
    %6278 = vmatprep.mubr.f32.mxu0 0.0
    %6279 = vmatmul.mubr.f32.gmra.mrb[0].mxu0 %v5869
    %v6280 = vpop.f32.mrb[0].mxu0
    %v6281 = vadd.f32 0.0, %v6280
    %v6282 = vpop.f32.mrb[0].mxu0
    %6283 = vmatprep.mubr.f32.mxu0 0.0
    %6284 = vmatmul.mubr.f32.gmra.mrb[0].mxu0 %v5872
    %v6285 = vpop.f32.mrb[0].mxu0
    %v6286 = vadd.f32 0.0, %v6285
    %v6287 = vpop.f32.mrb[0].mxu0
    %6288 = vmatprep.mubr.f32.mxu0 0.0
    %6289 = vmatmul.mubr.f32.gmra.mrb[0].mxu0 %v5875
    %v6290 = vpop.f32.mrb[0].mxu0
    %v6291 = vadd.f32 0.0, %v6290
    %v6292 = vpop.f32.mrb[0].mxu0
    %6293 = vmatprep.mubr.f32.mxu0 0.0
    %6294 = vmatmul.mubr.f32.gmra.mrb[0].mxu0 %v5878
    %v6295 = vpop.f32.mrb[0].mxu0
    %v6296 = vadd.f32 0.0, %v6295
    %v6297 = vpop.f32.mrb[0].mxu0
    %6298 = vmatprep.mubr.f32.mxu0 0.0
    %6299 = vmatmul.mubr.f32.gmra.mrb[0].mxu0 %v5881
    %v6300 = vpop.f32.mrb[0].mxu0
    %v6301 = vadd.f32 0.0, %v6300
    %v6302 = vpop.f32.mrb[0].mxu0
    %6303 = vmatprep.mubr.f32.mxu0 0.0
    %6304 = vmatmul.mubr.f32.gmra.mrb[0].mxu0 %v5884
    %v6305 = vpop.f32.mrb[0].mxu0
    %v6306 = vadd.f32 0.0, %v6305
    %v6307 = vpop.f32.mrb[0].mxu0
    %6308 = vmatprep.mubr.f32.mxu0 0.0
    %6309 = vmatmul.mubr.f32.gmra.mrb[0].mxu0 %v5887
    %v6310 = vpop.f32.mrb[0].mxu0
    %v6311 = vadd.f32 0.0, %v6310
    %v6312 = vpop.f32.mrb[0].mxu0
    %6313 = vmatprep.mubr.f32.mxu0 0.0
    %6314 = vmatmul.mubr.f32.gmra.mrb[0].mxu0 %v5890
    %v6315 = vpop.f32.mrb[0].mxu0
    %v6316 = vadd.f32 0.0, %v6315
    %v6317 = vpop.f32.mrb[0].mxu0
    %6318 = vmatprep.mubr.f32.mxu0 0.0
    %6319 = vmatmul.mubr.f32.gmra.mrb[0].mxu0 %v5893
    %v6320 = vpop.f32.mrb[0].mxu0
    %v6321 = vadd.f32 0.0, %v6320
    %v6322 = vpop.f32.mrb[0].mxu0
    %6323 = vmatprep.mubr.f32.mxu0 0.0
    %6324 = vmatmul.mubr.f32.gmra.mrb[0].mxu0 %v5896
    %v6325 = vpop.f32.mrb[0].mxu0
    %v6326 = vadd.f32 0.0, %v6325
    %v6327 = vpop.f32.mrb[0].mxu0
    %6328 = vmatprep.mubr.f32.mxu0 0.0
    %6329 = vmatmul.mubr.f32.gmra.mrb[0].mxu0 %v5899
    %v6330 = vpop.f32.mrb[0].mxu0
    %v6331 = vadd.f32 0.0, %v6330
    %v6332 = vpop.f32.mrb[0].mxu0
    %6333 = vmatprep.mubr.f32.mxu0 0.0
    %6334 = vmatmul.mubr.f32.gmra.mrb[0].mxu0 %v5902
    %v6335 = vpop.f32.mrb[0].mxu0
    %v6336 = vadd.f32 0.0, %v6335
    %v6337 = vpop.f32.mrb[0].mxu0
    %6338 = vmatprep.mubr.f32.mxu0 0.0
    %6339 = vmatmul.mubr.f32.gmra.mrb[0].mxu0 %v5905
    %v6340 = vpop.f32.mrb[0].mxu0
    %v6341 = vadd.f32 0.0, %v6340
    %v6342 = vpop.f32.mrb[0].mxu0
    %6343 = vmatprep.mubr.f32.mxu0 0.0
    %6344 = vmatmul.mubr.f32.gmra.mrb[0].mxu0 %v5908
    %v6345 = vpop.f32.mrb[0].mxu0
    %v6346 = vadd.f32 0.0, %v6345
    %v6347 = vpop.f32.mrb[0].mxu0
    %6348 = vmatprep.mubr.f32.mxu0 0.0
    %6349 = vmatmul.mubr.f32.gmra.mrb[0].mxu0 %v5911
    %v6350 = vpop.f32.mrb[0].mxu0
    %v6351 = vadd.f32 0.0, %v6350
    %v6352 = vpop.f32.mrb[0].mxu0
    %6353 = vmatprep.mubr.f32.mxu0 0.0
    %6354 = vmatmul.mubr.f32.gmra.mrb[0].mxu0 %v5914
    %v6355 = vpop.f32.mrb[0].mxu0
    %v6356 = vadd.f32 0.0, %v6355
    %v6357 = vpop.f32.mrb[0].mxu0
    %6358 = vmatprep.mubr.f32.mxu0 0.0
    %6359 = vmatmul.mubr.f32.gmra.mrb[0].mxu0 %v5917
    %v6360 = vpop.f32.mrb[0].mxu0
    %v6361 = vadd.f32 0.0, %v6360
    %v6362 = vpop.f32.mrb[0].mxu0
    %6363 = vmatprep.mubr.f32.mxu0 0.0
    %6364 = vmatmul.mubr.f32.gmra.mrb[0].mxu0 %v5920
    %v6365 = vpop.f32.mrb[0].mxu0
    %v6366 = vadd.f32 0.0, %v6365
    %v6367 = vpop.f32.mrb[0].mxu0
    %6368 = vmatprep.mubr.f32.mxu0 0.0
    %6369 = vmatmul.mubr.f32.gmra.mrb[0].mxu0 %v5923
    %v6370 = vpop.f32.mrb[0].mxu0
    %v6371 = vadd.f32 0.0, %v6370
    %v6372 = vpop.f32.mrb[0].mxu0
    %6373 = vmatprep.mubr.f32.mxu0 0.0
    %6374 = vmatmul.mubr.f32.gmra.mrb[0].mxu0 %v5926
    %v6375 = vpop.f32.mrb[0].mxu0
    %v6376 = vadd.f32 0.0, %v6375
    %v6377 = vpop.f32.mrb[0].mxu0
    %6378 = vmatprep.mubr.f32.mxu0 0.0
    %6379 = vmatmul.mubr.f32.gmra.mrb[0].mxu0 %v5929
    %v6380 = vpop.f32.mrb[0].mxu0
    %v6381 = vadd.f32 0.0, %v6380
    %v6382 = vpop.f32.mrb[0].mxu0
    %6383 = vmatprep.mubr.f32.mxu0 0.0
    %6384 = vmatmul.mubr.f32.gmra.mrb[0].mxu0 %v5932
    %v6385 = vpop.f32.mrb[0].mxu0
    %v6386 = vadd.f32 0.0, %v6385
    %v6387 = vpop.f32.mrb[0].mxu0
    %6388 = vmatprep.mubr.f32.mxu0 0.0
    %6389 = vmatmul.mubr.f32.gmra.mrb[0].mxu0 %v5935
    %v6390 = vpop.f32.mrb[0].mxu0
    %v6391 = vadd.f32 0.0, %v6390
    %v6392 = vpop.f32.mrb[0].mxu0
    %6393 = vmatprep.mubr.f32.mxu0 0.0
    %6394 = vmatmul.mubr.f32.gmra.mrb[0].mxu0 %v5938
    %v6395 = vpop.f32.mrb[0].mxu0
    %v6396 = vadd.f32 0.0, %v6395
    %v6397 = vpop.f32.mrb[0].mxu0
    %6398 = vmatprep.mubr.f32.mxu0 0.0
    %6399 = vmatmul.mubr.f32.gmra.mrb[0].mxu0 %v5941
    %v6400 = vpop.f32.mrb[0].mxu0
    %v6401 = vadd.f32 0.0, %v6400
    %v6402 = vpop.f32.mrb[0].mxu0
    %6403 = vmatprep.mubr.f32.mxu0 0.0
    %6404 = vmatmul.mubr.f32.gmra.mrb[0].mxu0 %v5944
    %v6405 = vpop.f32.mrb[0].mxu0
    %v6406 = vadd.f32 0.0, %v6405
    %v6407 = vpop.f32.mrb[0].mxu0
    %6408 = vmatprep.mubr.f32.mxu0 0.0
    %6409 = vmatmul.mubr.f32.gmra.mrb[0].mxu0 %v5947
    %v6410 = vpop.f32.mrb[0].mxu0
    %v6411 = vadd.f32 0.0, %v6410
    %v6412 = vpop.f32.mrb[0].mxu0
    %6413 = vmatprep.mubr.f32.mxu0 0.0
    %6414 = vmatmul.mubr.f32.gmra.mrb[0].mxu0 %v5950
    %v6415 = vpop.f32.mrb[0].mxu0
    %v6416 = vadd.f32 0.0, %v6415
    %v6417 = vpop.f32.mrb[0].mxu0
    %6418 = vmatprep.mubr.f32.mxu0 0.0
    %6419 = vmatmul.mubr.f32.gmra.mrb[0].mxu0 %v5953
    %v6420 = vpop.f32.mrb[0].mxu0
    %v6421 = vadd.f32 0.0, %v6420
    %v6422 = vpop.f32.mrb[0].mxu0
    %6423 = vmatprep.mubr.f32.mxu0 0.0
    %6424 = vmatmul.mubr.f32.gmra.mrb[0].mxu0 %v5956
    %v6425 = vpop.f32.mrb[0].mxu0
    %v6426 = vadd.f32 0.0, %v6425
    %v6427 = vpop.f32.mrb[0].mxu0
    %6428 = vmatprep.mubr.f32.mxu0 0.0
    %6429 = vmatmul.mubr.f32.gmra.mrb[0].mxu0 %v5959
    %v6430 = vpop.f32.mrb[0].mxu0
    %v6431 = vadd.f32 0.0, %v6430
    %v6432 = vpop.f32.mrb[0].mxu0
    %6433 = vmatprep.mubr.f32.mxu0 0.0
    %6434 = vmatmul.mubr.f32.gmra.mrb[0].mxu0 %v5962
    %v6435 = vpop.f32.mrb[0].mxu0
    %v6436 = vadd.f32 0.0, %v6435
    %v6437 = vpop.f32.mrb[0].mxu0
    %6438 = vmatprep.mubr.f32.mxu0 0.0
    %6439 = vmatmul.mubr.f32.gmra.mrb[0].mxu0 %v5965
    %v6440 = vpop.f32.mrb[0].mxu0
    %v6441 = vadd.f32 0.0, %v6440
    %v6442 = vpop.f32.mrb[0].mxu0
    %6443 = vmatprep.mubr.f32.mxu0 0.0
    %6444 = vmatmul.mubr.f32.gmra.mrb[0].mxu0 %v5968
    %v6445 = vpop.f32.mrb[0].mxu0
    %v6446 = vadd.f32 0.0, %v6445
    %v6447 = vpop.f32.mrb[0].mxu0
    %6448 = vmatprep.mubr.f32.mxu0 0.0
    %6449 = vmatmul.mubr.f32.gmra.mrb[0].mxu0 %v5971
    %v6450 = vpop.f32.mrb[0].mxu0
    %v6451 = vadd.f32 0.0, %v6450
    %v6452 = vpop.f32.mrb[0].mxu0
    %6453 = vmatprep.mubr.f32.mxu0 0.0
    %6454 = vmatmul.mubr.f32.gmra.mrb[0].mxu0 %v5974
    %v6455 = vpop.f32.mrb[0].mxu0
    %v6456 = vadd.f32 0.0, %v6455
    %v6457 = vpop.f32.mrb[0].mxu0
    %6458 = vmatprep.mubr.f32.mxu0 0.0
    %6459 = vmatmul.mubr.f32.gmra.mrb[0].mxu0 %v5977
    %v6460 = vpop.f32.mrb[0].mxu0
    %v6461 = vadd.f32 0.0, %v6460
    %v6462 = vpop.f32.mrb[0].mxu0
    %6463 = vmatprep.mubr.f32.mxu0 0.0
    %6464 = vmatmul.mubr.f32.gmra.mrb[0].mxu0 %v5980
    %v6465 = vpop.f32.mrb[0].mxu0
    %v6466 = vadd.f32 0.0, %v6465
    %v6467 = vpop.f32.mrb[0].mxu0
    %6468 = vmatprep.mubr.f32.mxu0 0.0
    %6469 = vmatmul.mubr.f32.gmra.mrb[0].mxu0 %v5983
    %v6470 = vpop.f32.mrb[0].mxu0
    %v6471 = vadd.f32 0.0, %v6470
    %v6472 = vpop.f32.mrb[0].mxu0
    %6473 = vmatprep.mubr.f32.mxu0 0.0
    %6474 = vmatmul.mubr.f32.gmra.mrb[0].mxu0 %v5986
    %v6475 = vpop.f32.mrb[0].mxu0
    %v6476 = vadd.f32 0.0, %v6475
    %v6477 = vpop.f32.mrb[0].mxu0
    %6478 = vmatprep.mubr.f32.mxu0 0.0
    %6479 = vmatmul.mubr.f32.gmra.mrb[0].mxu0 %v5989
    %v6480 = vpop.f32.mrb[0].mxu0
    %v6481 = vadd.f32 0.0, %v6480
    %v6482 = vpop.f32.mrb[0].mxu0
    %6483 = vmatprep.mubr.f32.mxu0 0.0
    %6484 = vmatmul.mubr.f32.gmra.mrb[0].mxu0 %v5992
    %v6485 = vpop.f32.mrb[0].mxu0
    %v6486 = vadd.f32 0.0, %v6485
    %v6487 = vpop.f32.mrb[0].mxu0
    %6488 = vmatprep.mubr.f32.mxu0 0.0
    %6489 = vmatmul.mubr.f32.gmra.mrb[0].mxu0 %v5995
    %v6490 = vpop.f32.mrb[0].mxu0
    %v6491 = vadd.f32 0.0, %v6490
    %v6492 = vpop.f32.mrb[0].mxu0
    %6493 = vmatprep.mubr.f32.mxu0 0.0
    %6494 = vmatmul.mubr.f32.gmra.mrb[0].mxu0 %v5998
    %v6495 = vpop.f32.mrb[0].mxu0
    %v6496 = vadd.f32 0.0, %v6495
    %v6497 = vpop.f32.mrb[0].mxu0
    %6498 = vmatprep.mubr.f32.mxu0 0.0
    %6499 = vmatmul.mubr.f32.gmra.mrb[0].mxu0 %v6001
    %v6500 = vpop.f32.mrb[0].mxu0
    %v6501 = vadd.f32 0.0, %v6500
    %v6502 = vpop.f32.mrb[0].mxu0
    %6503 = vmatprep.mubr.f32.mxu0 0.0
    %6504 = vmatmul.mubr.f32.gmra.mrb[0].mxu0 %v6004
    %v6505 = vpop.f32.mrb[0].mxu0
    %v6506 = vadd.f32 0.0, %v6505
    %v6507 = vpop.f32.mrb[0].mxu0
    %6508 = vmatprep.mubr.f32.mxu0 0.0
    %6509 = vmatmul.mubr.f32.gmra.mrb[0].mxu0 %v6007
    %v6510 = vpop.f32.mrb[0].mxu0
    %v6511 = vadd.f32 0.0, %v6510
    %v6512 = vpop.f32.mrb[0].mxu0
    %6513 = vmatprep.mubr.f32.mxu0 0.0
    %6514 = vmatmul.mubr.f32.gmra.mrb[0].mxu0 %v6010
    %v6515 = vpop.f32.mrb[0].mxu0
    %v6516 = vadd.f32 0.0, %v6515
    %v6517 = vpop.f32.mrb[0].mxu0
    %6518 = vmatprep.mubr.f32.mxu0 0.0
    %6519 = vmatmul.mubr.f32.gmra.mrb[0].mxu0 %v6013
    %v6520 = vpop.f32.mrb[0].mxu0
    %v6521 = vadd.f32 0.0, %v6520
    %v6522 = vpop.f32.mrb[0].mxu0
    %6523 = vmatprep.mubr.f32.mxu0 0.0
    %6524 = vmatmul.mubr.f32.gmra.mrb[0].mxu0 %v6016
    %v6525 = vpop.f32.mrb[0].mxu0
    %v6526 = vadd.f32 0.0, %v6525
    %v6527 = vpop.f32.mrb[0].mxu0
    %6528 = vmatprep.mubr.f32.mxu0 0.0
    %6529 = vmatmul.mubr.f32.gmra.mrb[0].mxu0 %v6019
    %v6530 = vpop.f32.mrb[0].mxu0
    %v6531 = vadd.f32 0.0, %v6530
    %v6532 = vpop.f32.mrb[0].mxu0
    %6533 = vmatprep.mubr.f32.mxu0 0.0
    %6534 = vmatmul.mubr.f32.gmra.mrb[0].mxu0 %v6022
    %v6535 = vpop.f32.mrb[0].mxu0
    %v6536 = vadd.f32 0.0, %v6535
    %v6537 = vpop.f32.mrb[0].mxu0
    %6538 = vdwg.mxu0
    %v6539 = vadd.f32 %v5572, %v6091
    %v6540 = vadd.f32 %v5573, %v6096
    %v6541 = vadd.f32 %v5574, %v6101
    %v6542 = vadd.f32 %v5575, %v6106
    %v6543 = vadd.f32 %v5576, %v6111
    %v6544 = vadd.f32 %v5577, %v6116
    %v6545 = vadd.f32 %v5578, %v6121
    %v6546 = vadd.f32 %v5579, %v6126
    %v6547 = vadd.f32 %v5580, %v6131
    %v6548 = vadd.f32 %v5581, %v6136
    %v6549 = vadd.f32 %v5582, %v6141
    %v6550 = vadd.f32 %v5583, %v6146
    %v6551 = vadd.f32 %v5584, %v6151
    %v6552 = vadd.f32 %v5585, %v6156
    %v6553 = vadd.f32 %v5586, %v6161
    %v6554 = vadd.f32 %v5587, %v6166
    %v6555 = vadd.f32 %v5588, %v6171
    %v6556 = vadd.f32 %v5589, %v6176
    %v6557 = vadd.f32 %v5590, %v6181
    %v6558 = vadd.f32 %v5591, %v6186
    %v6559 = vadd.f32 %v5592, %v6191
    %v6560 = vadd.f32 %v5593, %v6196
    %v6561 = vadd.f32 %v5594, %v6201
    %v6562 = vadd.f32 %v5595, %v6206
    %v6563 = vadd.f32 %v5596, %v6211
    %v6564 = vadd.f32 %v5597, %v6216
    %v6565 = vadd.f32 %v5598, %v6221
    %v6566 = vadd.f32 %v5599, %v6226
    %v6567 = vadd.f32 %v5600, %v6231
    %v6568 = vadd.f32 %v5601, %v6236
    %v6569 = vadd.f32 %v5602, %v6241
    %v6570 = vadd.f32 %v5603, %v6246
    %v6571 = vadd.f32 %v5604, %v6251
    %v6572 = vadd.f32 %v5605, %v6256
    %v6573 = vadd.f32 %v5606, %v6261
    %v6574 = vadd.f32 %v5607, %v6266
    %v6575 = vadd.f32 %v5608, %v6271
    %v6576 = vadd.f32 %v5609, %v6276
    %v6577 = vadd.f32 %v5610, %v6281
    %v6578 = vadd.f32 %v5611, %v6286
    %v6579 = vadd.f32 %v5612, %v6291
    %v6580 = vadd.f32 %v5613, %v6296
    %v6581 = vadd.f32 %v5614, %v6301
    %v6582 = vadd.f32 %v5615, %v6306
    %v6583 = vadd.f32 %v5616, %v6311
    %v6584 = vadd.f32 %v5617, %v6316
    %v6585 = vadd.f32 %v5618, %v6321
    %v6586 = vadd.f32 %v5619, %v6326
    %v6587 = vadd.f32 %v5620, %v6331
    %v6588 = vadd.f32 %v5621, %v6336
    %v6589 = vadd.f32 %v5622, %v6341
    %v6590 = vadd.f32 %v5623, %v6346
    %v6591 = vadd.f32 %v5624, %v6351
    %v6592 = vadd.f32 %v5625, %v6356
    %v6593 = vadd.f32 %v5626, %v6361
    %v6594 = vadd.f32 %v5627, %v6366
    %v6595 = vadd.f32 %v5628, %v6371
    %v6596 = vadd.f32 %v5629, %v6376
    %v6597 = vadd.f32 %v5630, %v6381
    %v6598 = vadd.f32 %v5631, %v6386
    %v6599 = vadd.f32 %v5632, %v6391
    %v6600 = vadd.f32 %v5633, %v6396
    %v6601 = vadd.f32 %v5634, %v6401
    %v6602 = vadd.f32 %v5635, %v6406
    %v6603 = vadd.f32 %v5636, %v6411
    %v6604 = vadd.f32 %v5637, %v6416
    %v6605 = vadd.f32 %v5638, %v6421
    %v6606 = vadd.f32 %v5639, %v6426
    %v6607 = vadd.f32 %v5640, %v6431
    %v6608 = vadd.f32 %v5641, %v6436
    %v6609 = vadd.f32 %v5642, %v6441
    %v6610 = vadd.f32 %v5643, %v6446
    %v6611 = vadd.f32 %v5644, %v6451
    %v6612 = vadd.f32 %v5645, %v6456
    %v6613 = vadd.f32 %v5646, %v6461
    %v6614 = vadd.f32 %v5647, %v6466
    %v6615 = vadd.f32 %v5648, %v6471
    %v6616 = vadd.f32 %v5649, %v6476
    %v6617 = vadd.f32 %v5650, %v6481
    %v6618 = vadd.f32 %v5651, %v6486
    %v6619 = vadd.f32 %v5652, %v6491
    %v6620 = vadd.f32 %v5653, %v6496
    %v6621 = vadd.f32 %v5654, %v6501
    %v6622 = vadd.f32 %v5655, %v6506
    %v6623 = vadd.f32 %v5656, %v6511
    %v6624 = vadd.f32 %v5657, %v6516
    %v6625 = vadd.f32 %v5658, %v6521
    %v6626 = vadd.f32 %v5659, %v6526
    %v6627 = vadd.f32 %v5660, %v6531
    %v6628 = vadd.f32 %v5661, %v6536
    %v6629 = vld [vmem:[%s0 + $0x26] sm:$0xff]
    %v6630 = vld [vmem:[%s0 + $0x2e] sm:$0xff]
    %v6631 = vld [vmem:[%s0 + $0x36] sm:$0xff]
    %v6632 = vld [vmem:[%s0 + $0x3e] sm:$0xff]
    %v6633 = vld [vmem:[%s0 + $0x46] sm:$0xff]
    %v6634 = vld [vmem:[%s0 + $0x4e] sm:$0xff]
    %v6635 = vld [vmem:[%s0 + $0x56] sm:$0xff]
    %v6636 = vld [vmem:[%s0 + $0x5e] sm:$0xff]
    %v6637 = vld [vmem:[%s0 + $0x66] sm:$0xff]
    %v6638 = vld [vmem:[%s0 + $0x6e] sm:$0xff]
    %v6639 = vld [vmem:[%s0 + $0x76] sm:$0xff]
    %v6640 = vld [vmem:[%s0 + $0x7e] sm:$0xff]
    %v6641 = vld [vmem:[%s0 + $0x86] sm:$0xff]
    %v6642 = vld [vmem:[%s0 + $0x8e] sm:$0xff]
    %v6643 = vld [vmem:[%s0 + $0x96] sm:$0xff]
    %v6644 = vld [vmem:[%s0 + $0x9e] sm:$0xff]
    %v6645 = vld [vmem:[%s0 + $0xa6] sm:$0xff]
    %v6646 = vld [vmem:[%s0 + $0xae] sm:$0xff]
    %v6647 = vld [vmem:[%s0 + $0xb6] sm:$0xff]
    %v6648 = vld [vmem:[%s0 + $0xbe] sm:$0xff]
    %v6649 = vld [vmem:[%s0 + $0xc6] sm:$0xff]
    %v6650 = vld [vmem:[%s0 + $0xce] sm:$0xff]
    %v6651 = vld [vmem:[%s0 + $0xd6] sm:$0xff]
    %v6652 = vld [vmem:[%s0 + $0xde] sm:$0xff]
    %v6653 = vld [vmem:[%s0 + $0xe6] sm:$0xff]
    %v6654 = vld [vmem:[%s0 + $0xee] sm:$0xff]
    %v6655 = vld [vmem:[%s0 + $0xf6] sm:$0xff]
    %v6656 = vld [vmem:[%s0 + $0xfe] sm:$0xff]
    %v6657 = vld [vmem:[%s0 + $0x106] sm:$0xff]
    %v6658 = vld [vmem:[%s0 + $0x10e] sm:$0xff]
    %v6659 = vld [vmem:[%s0 + $0x116] sm:$0xff]
    %v6660 = vld [vmem:[%s0 + $0x11e] sm:$0xff]
    %v6661 = vld [vmem:[%s0 + $0x126] sm:$0xff]
    %v6662 = vld [vmem:[%s0 + $0x12e] sm:$0xff]
    %v6663 = vld [vmem:[%s0 + $0x136] sm:$0xff]
    %v6664 = vld [vmem:[%s0 + $0x13e] sm:$0xff]
    %v6665 = vld [vmem:[%s0 + $0x146] sm:$0xff]
    %v6666 = vld [vmem:[%s0 + $0x14e] sm:$0xff]
    %v6667 = vld [vmem:[%s0 + $0x156] sm:$0xff]
    %v6668 = vld [vmem:[%s0 + $0x15e] sm:$0xff]
    %v6669 = vld [vmem:[%s0 + $0x166] sm:$0xff]
    %v6670 = vld [vmem:[%s0 + $0x16e] sm:$0xff]
    %v6671 = vld [vmem:[%s0 + $0x176] sm:$0xff]
    %v6672 = vld [vmem:[%s0 + $0x17e] sm:$0xff]
    %v6673 = vld [vmem:[%s0 + $0x186] sm:$0xff]
    %v6674 = vld [vmem:[%s0 + $0x18e] sm:$0xff]
    %v6675 = vld [vmem:[%s0 + $0x196] sm:$0xff]
    %v6676 = vld [vmem:[%s0 + $0x19e] sm:$0xff]
    %v6677 = vld [vmem:[%s0 + $0x1a6] sm:$0xff]
    %v6678 = vld [vmem:[%s0 + $0x1ae] sm:$0xff]
    %v6679 = vld [vmem:[%s0 + $0x1b6] sm:$0xff]
    %v6680 = vld [vmem:[%s0 + $0x1be] sm:$0xff]
    %v6681 = vld [vmem:[%s0 + $0x1c6] sm:$0xff]
    %v6682 = vld [vmem:[%s0 + $0x1ce] sm:$0xff]
    %v6683 = vld [vmem:[%s0 + $0x1d6] sm:$0xff]
    %v6684 = vld [vmem:[%s0 + $0x1de] sm:$0xff]
    %v6685 = vld [vmem:[%s0 + $0x1e6] sm:$0xff]
    %v6686 = vld [vmem:[%s0 + $0x1ee] sm:$0xff]
    %v6687 = vld [vmem:[%s0 + $0x1f6] sm:$0xff]
    %v6688 = vld [vmem:[%s0 + $0x1fe] sm:$0xff]
    %v6689 = vld [vmem:[%s0 + $0x206] sm:$0xff]
    %v6690 = vld [vmem:[%s0 + $0x20e] sm:$0xff]
    %v6691 = vld [vmem:[%s0 + $0x216] sm:$0xff]
    %v6692 = vld [vmem:[%s0 + $0x21e] sm:$0xff]
    %v6693 = vld [vmem:[%s0 + $0x226] sm:$0xff]
    %v6694 = vld [vmem:[%s0 + $0x22e] sm:$0xff]
    %v6695 = vld [vmem:[%s0 + $0x236] sm:$0xff]
    %v6696 = vld [vmem:[%s0 + $0x23e] sm:$0xff]
    %v6697 = vld [vmem:[%s0 + $0x246] sm:$0xff]
    %v6698 = vld [vmem:[%s0 + $0x24e] sm:$0xff]
    %v6699 = vld [vmem:[%s0 + $0x256] sm:$0xff]
    %v6700 = vld [vmem:[%s0 + $0x25e] sm:$0xff]
    %v6701 = vld [vmem:[%s0 + $0x266] sm:$0xff]
    %v6702 = vld [vmem:[%s0 + $0x26e] sm:$0xff]
    %v6703 = vld [vmem:[%s0 + $0x276] sm:$0xff]
    %v6704 = vld [vmem:[%s0 + $0x27e] sm:$0xff]
    %v6705 = vld [vmem:[%s0 + $0x286] sm:$0xff]
    %v6706 = vld [vmem:[%s0 + $0x28e] sm:$0xff]
    %v6707 = vld [vmem:[%s0 + $0x296] sm:$0xff]
    %v6708 = vld [vmem:[%s0 + $0x29e] sm:$0xff]
    %v6709 = vld [vmem:[%s0 + $0x2a6] sm:$0xff]
    %v6710 = vld [vmem:[%s0 + $0x2ae] sm:$0xff]
    %v6711 = vld [vmem:[%s0 + $0x2b6] sm:$0xff]
    %v6712 = vld [vmem:[%s0 + $0x2be] sm:$0xff]
    %v6713 = vld [vmem:[%s0 + $0x2c6] sm:$0xff]
    %v6714 = vld [vmem:[%s0 + $0x2ce] sm:$0xff]
    %v6715 = vld [vmem:[%s0 + $0x2d6] sm:$0xff]
    %v6716 = vld [vmem:[%s0 + $0x2de] sm:$0xff]
    %v6717 = vld [vmem:[%s0 + $0x2e6] sm:$0xff]
    %v6718 = vld [vmem:[%s0 + $0x2ee] sm:$0xff]
    %s6719 = scalar_lea.vmem %s1, 56
    %v6720 = vld [vmem:[%s6719] sm:$0xff]
    %v6722 = vsel %vm223, %v6629, 0
    %v6725 = vsel %vm223, %v6630, 0
    %v6728 = vsel %vm223, %v6631, 0
    %v6731 = vsel %vm223, %v6632, 0
    %v6734 = vsel %vm223, %v6633, 0
    %v6737 = vsel %vm223, %v6634, 0
    %v6740 = vsel %vm223, %v6635, 0
    %v6743 = vsel %vm223, %v6636, 0
    %v6746 = vsel %vm223, %v6637, 0
    %v6749 = vsel %vm223, %v6638, 0
    %v6752 = vsel %vm223, %v6639, 0
    %v6755 = vsel %vm223, %v6640, 0
    %v6758 = vsel %vm223, %v6641, 0
    %v6761 = vsel %vm223, %v6642, 0
    %v6764 = vsel %vm223, %v6643, 0
    %v6767 = vsel %vm223, %v6644, 0
    %v6770 = vsel %vm223, %v6645, 0
    %v6773 = vsel %vm223, %v6646, 0
    %v6776 = vsel %vm223, %v6647, 0
    %v6779 = vsel %vm223, %v6648, 0
    %v6782 = vsel %vm223, %v6649, 0
    %v6785 = vsel %vm223, %v6650, 0
    %v6788 = vsel %vm223, %v6651, 0
    %v6791 = vsel %vm223, %v6652, 0
    %v6794 = vsel %vm223, %v6653, 0
    %v6797 = vsel %vm223, %v6654, 0
    %v6800 = vsel %vm223, %v6655, 0
    %v6803 = vsel %vm223, %v6656, 0
    %v6806 = vsel %vm223, %v6657, 0
    %v6809 = vsel %vm223, %v6658, 0
    %v6812 = vsel %vm223, %v6659, 0
    %v6815 = vsel %vm223, %v6660, 0
    %v6818 = vsel %vm223, %v6661, 0
    %v6821 = vsel %vm223, %v6662, 0
    %v6824 = vsel %vm223, %v6663, 0
    %v6827 = vsel %vm223, %v6664, 0
    %v6830 = vsel %vm223, %v6665, 0
    %v6833 = vsel %vm223, %v6666, 0
    %v6836 = vsel %vm223, %v6667, 0
    %v6839 = vsel %vm223, %v6668, 0
    %v6842 = vsel %vm223, %v6669, 0
    %v6845 = vsel %vm223, %v6670, 0
    %v6848 = vsel %vm223, %v6671, 0
    %v6851 = vsel %vm223, %v6672, 0
    %v6854 = vsel %vm223, %v6673, 0
    %v6857 = vsel %vm223, %v6674, 0
    %v6860 = vsel %vm223, %v6675, 0
    %v6863 = vsel %vm223, %v6676, 0
    %v6866 = vsel %vm223, %v6677, 0
    %v6869 = vsel %vm223, %v6678, 0
    %v6872 = vsel %vm223, %v6679, 0
    %v6875 = vsel %vm223, %v6680, 0
    %v6878 = vsel %vm223, %v6681, 0
    %v6881 = vsel %vm223, %v6682, 0
    %v6884 = vsel %vm223, %v6683, 0
    %v6887 = vsel %vm223, %v6684, 0
    %v6890 = vsel %vm223, %v6685, 0
    %v6893 = vsel %vm223, %v6686, 0
    %v6896 = vsel %vm223, %v6687, 0
    %v6899 = vsel %vm223, %v6688, 0
    %v6902 = vsel %vm223, %v6689, 0
    %v6905 = vsel %vm223, %v6690, 0
    %v6908 = vsel %vm223, %v6691, 0
    %v6911 = vsel %vm223, %v6692, 0
    %v6914 = vsel %vm223, %v6693, 0
    %v6917 = vsel %vm223, %v6694, 0
    %v6920 = vsel %vm223, %v6695, 0
    %v6923 = vsel %vm223, %v6696, 0
    %v6926 = vsel %vm223, %v6697, 0
    %v6929 = vsel %vm223, %v6698, 0
    %v6932 = vsel %vm223, %v6699, 0
    %v6935 = vsel %vm223, %v6700, 0
    %v6938 = vsel %vm223, %v6701, 0
    %v6941 = vsel %vm223, %v6702, 0
    %v6944 = vsel %vm223, %v6703, 0
    %v6947 = vsel %vm223, %v6704, 0
    %v6950 = vsel %vm223, %v6705, 0
    %v6953 = vsel %vm223, %v6706, 0
    %v6956 = vsel %vm223, %v6707, 0
    %v6959 = vsel %vm223, %v6708, 0
    %v6962 = vsel %vm223, %v6709, 0
    %v6965 = vsel %vm223, %v6710, 0
    %v6968 = vsel %vm223, %v6711, 0
    %v6971 = vsel %vm223, %v6712, 0
    %v6974 = vsel %vm223, %v6713, 0
    %v6977 = vsel %vm223, %v6714, 0
    %v6980 = vsel %vm223, %v6715, 0
    %v6983 = vsel %vm223, %v6716, 0
    %v6986 = vsel %vm223, %v6717, 0
    %v6989 = vsel %vm223, %v6718, 0
    %6991 = vmatprep.subr.mxu0 0.0
    %6992 = vmatpush1.msra.mxu0 %v6720
    %6993 = vmatprep.subr.mxu0 0.0
    %6994 = vmatpush1.msra.mxu0 0.0
    %6995 = vmatprep.subr.mxu0 0.0
    %6996 = vmatpush1.msra.mxu0 0.0
    %6997 = vmatprep.subr.mxu0 0.0
    %6998 = vmatpush1.msra.mxu0 0.0
    %6999 = vmatprep.subr.mxu0 0.0
    %7000 = vmatpush1.msra.mxu0 0.0
    %7001 = vmatprep.subr.mxu0 0.0
    %7002 = vmatpush1.msra.mxu0 0.0
    %7003 = vmatprep.subr.mxu0 0.0
    %7004 = vmatpush1.msra.mxu0 0.0
    %7005 = vmatprep.subr.mxu0 0.0
    %7006 = vmatpush1.msra.mxu0 0.0
    %7007 = vmatprep.subr.mxu0 0.0
    %7008 = vmatpush1.msra.mxu0 0.0
    %7009 = vmatprep.subr.mxu0 0.0
    %7010 = vmatpush1.msra.mxu0 0.0
    %7011 = vmatprep.subr.mxu0 0.0
    %7012 = vmatpush1.msra.mxu0 0.0
    %7013 = vmatprep.subr.mxu0 0.0
    %7014 = vmatpush1.msra.mxu0 0.0
    %7015 = vmatprep.subr.mxu0 0.0
    %7016 = vmatpush1.msra.mxu0 0.0
    %7017 = vmatprep.subr.mxu0 0.0
    %7018 = vmatpush1.msra.mxu0 0.0
    %7019 = vmatprep.subr.mxu0 0.0
    %7020 = vmatpush1.msra.mxu0 0.0
    %7021 = vmatprep.subr.mxu0 0.0
    %7022 = vmatpush1.msra.mxu0 0.0
    %7023 = vmatprep.subr.mxu0 0.0
    %7024 = vmatpush1.msra.mxu0 0.0
    %7025 = vmatprep.subr.mxu0 0.0
    %7026 = vmatpush1.msra.mxu0 0.0
    %7027 = vmatprep.subr.mxu0 0.0
    %7028 = vmatpush1.msra.mxu0 0.0
    %7029 = vmatprep.subr.mxu0 0.0
    %7030 = vmatpush1.msra.mxu0 0.0
    %7031 = vmatprep.subr.mxu0 0.0
    %7032 = vmatpush1.msra.mxu0 0.0
    %7033 = vmatprep.subr.mxu0 0.0
    %7034 = vmatpush1.msra.mxu0 0.0
    %7035 = vmatprep.subr.mxu0 0.0
    %7036 = vmatpush1.msra.mxu0 0.0
    %7037 = vmatprep.subr.mxu0 0.0
    %7038 = vmatpush1.msra.mxu0 0.0
    %7039 = vmatprep.subr.mxu0 0.0
    %7040 = vmatpush1.msra.mxu0 0.0
    %7041 = vmatprep.subr.mxu0 0.0
    %7042 = vmatpush1.msra.mxu0 0.0
    %7043 = vmatprep.subr.mxu0 0.0
    %7044 = vmatpush1.msra.mxu0 0.0
    %7045 = vmatprep.subr.mxu0 0.0
    %7046 = vmatpush1.msra.mxu0 0.0
    %7047 = vmatprep.subr.mxu0 0.0
    %7048 = vmatpush1.msra.mxu0 0.0
    %7049 = vmatprep.subr.mxu0 0.0
    %7050 = vmatpush1.msra.mxu0 0.0
    %7051 = vmatprep.subr.mxu0 0.0
    %7052 = vmatpush1.msra.mxu0 0.0
    %7053 = vmatprep.subr.mxu0 0.0
    %7054 = vmatpush1.msra.mxu0 0.0
    %7055 = vmatprep.mubr.f32.mxu0 0.0
    %7056 = vmatmul.mubr.f32.gmra.mrb[0].mxu0 %v6722
    %v7057 = vpop.f32.mrb[0].mxu0
    %v7058 = vadd.f32 0.0, %v7057
    %v7059 = vpop.f32.mrb[0].mxu0
    %7060 = vmatprep.mubr.f32.mxu0 0.0
    %7061 = vmatmul.mubr.f32.gmra.mrb[0].mxu0 %v6725
    %v7062 = vpop.f32.mrb[0].mxu0
    %v7063 = vadd.f32 0.0, %v7062
    %v7064 = vpop.f32.mrb[0].mxu0
    %7065 = vmatprep.mubr.f32.mxu0 0.0
    %7066 = vmatmul.mubr.f32.gmra.mrb[0].mxu0 %v6728
    %v7067 = vpop.f32.mrb[0].mxu0
    %v7068 = vadd.f32 0.0, %v7067
    %v7069 = vpop.f32.mrb[0].mxu0
    %7070 = vmatprep.mubr.f32.mxu0 0.0
    %7071 = vmatmul.mubr.f32.gmra.mrb[0].mxu0 %v6731
    %v7072 = vpop.f32.mrb[0].mxu0
    %v7073 = vadd.f32 0.0, %v7072
    %v7074 = vpop.f32.mrb[0].mxu0
    %7075 = vmatprep.mubr.f32.mxu0 0.0
    %7076 = vmatmul.mubr.f32.gmra.mrb[0].mxu0 %v6734
    %v7077 = vpop.f32.mrb[0].mxu0
    %v7078 = vadd.f32 0.0, %v7077
    %v7079 = vpop.f32.mrb[0].mxu0
    %7080 = vmatprep.mubr.f32.mxu0 0.0
    %7081 = vmatmul.mubr.f32.gmra.mrb[0].mxu0 %v6737
    %v7082 = vpop.f32.mrb[0].mxu0
    %v7083 = vadd.f32 0.0, %v7082
    %v7084 = vpop.f32.mrb[0].mxu0
    %7085 = vmatprep.mubr.f32.mxu0 0.0
    %7086 = vmatmul.mubr.f32.gmra.mrb[0].mxu0 %v6740
    %v7087 = vpop.f32.mrb[0].mxu0
    %v7088 = vadd.f32 0.0, %v7087
    %v7089 = vpop.f32.mrb[0].mxu0
    %7090 = vmatprep.mubr.f32.mxu0 0.0
    %7091 = vmatmul.mubr.f32.gmra.mrb[0].mxu0 %v6743
    %v7092 = vpop.f32.mrb[0].mxu0
    %v7093 = vadd.f32 0.0, %v7092
    %v7094 = vpop.f32.mrb[0].mxu0
    %7095 = vmatprep.mubr.f32.mxu0 0.0
    %7096 = vmatmul.mubr.f32.gmra.mrb[0].mxu0 %v6746
    %v7097 = vpop.f32.mrb[0].mxu0
    %v7098 = vadd.f32 0.0, %v7097
    %v7099 = vpop.f32.mrb[0].mxu0
    %7100 = vmatprep.mubr.f32.mxu0 0.0
    %7101 = vmatmul.mubr.f32.gmra.mrb[0].mxu0 %v6749
    %v7102 = vpop.f32.mrb[0].mxu0
    %v7103 = vadd.f32 0.0, %v7102
    %v7104 = vpop.f32.mrb[0].mxu0
    %7105 = vmatprep.mubr.f32.mxu0 0.0
    %7106 = vmatmul.mubr.f32.gmra.mrb[0].mxu0 %v6752
    %v7107 = vpop.f32.mrb[0].mxu0
    %v7108 = vadd.f32 0.0, %v7107
    %v7109 = vpop.f32.mrb[0].mxu0
    %7110 = vmatprep.mubr.f32.mxu0 0.0
    %7111 = vmatmul.mubr.f32.gmra.mrb[0].mxu0 %v6755
    %v7112 = vpop.f32.mrb[0].mxu0
    %v7113 = vadd.f32 0.0, %v7112
    %v7114 = vpop.f32.mrb[0].mxu0
    %7115 = vmatprep.mubr.f32.mxu0 0.0
    %7116 = vmatmul.mubr.f32.gmra.mrb[0].mxu0 %v6758
    %v7117 = vpop.f32.mrb[0].mxu0
    %v7118 = vadd.f32 0.0, %v7117
    %v7119 = vpop.f32.mrb[0].mxu0
    %7120 = vmatprep.mubr.f32.mxu0 0.0
    %7121 = vmatmul.mubr.f32.gmra.mrb[0].mxu0 %v6761
    %v7122 = vpop.f32.mrb[0].mxu0
    %v7123 = vadd.f32 0.0, %v7122
    %v7124 = vpop.f32.mrb[0].mxu0
    %7125 = vmatprep.mubr.f32.mxu0 0.0
    %7126 = vmatmul.mubr.f32.gmra.mrb[0].mxu0 %v6764
    %v7127 = vpop.f32.mrb[0].mxu0
    %v7128 = vadd.f32 0.0, %v7127
    %v7129 = vpop.f32.mrb[0].mxu0
    %7130 = vmatprep.mubr.f32.mxu0 0.0
    %7131 = vmatmul.mubr.f32.gmra.mrb[0].mxu0 %v6767
    %v7132 = vpop.f32.mrb[0].mxu0
    %v7133 = vadd.f32 0.0, %v7132
    %v7134 = vpop.f32.mrb[0].mxu0
    %7135 = vmatprep.mubr.f32.mxu0 0.0
    %7136 = vmatmul.mubr.f32.gmra.mrb[0].mxu0 %v6770
    %v7137 = vpop.f32.mrb[0].mxu0
    %v7138 = vadd.f32 0.0, %v7137
    %v7139 = vpop.f32.mrb[0].mxu0
    %7140 = vmatprep.mubr.f32.mxu0 0.0
    %7141 = vmatmul.mubr.f32.gmra.mrb[0].mxu0 %v6773
    %v7142 = vpop.f32.mrb[0].mxu0
    %v7143 = vadd.f32 0.0, %v7142
    %v7144 = vpop.f32.mrb[0].mxu0
    %7145 = vmatprep.mubr.f32.mxu0 0.0
    %7146 = vmatmul.mubr.f32.gmra.mrb[0].mxu0 %v6776
    %v7147 = vpop.f32.mrb[0].mxu0
    %v7148 = vadd.f32 0.0, %v7147
    %v7149 = vpop.f32.mrb[0].mxu0
    %7150 = vmatprep.mubr.f32.mxu0 0.0
    %7151 = vmatmul.mubr.f32.gmra.mrb[0].mxu0 %v6779
    %v7152 = vpop.f32.mrb[0].mxu0
    %v7153 = vadd.f32 0.0, %v7152
    %v7154 = vpop.f32.mrb[0].mxu0
    %7155 = vmatprep.mubr.f32.mxu0 0.0
    %7156 = vmatmul.mubr.f32.gmra.mrb[0].mxu0 %v6782
    %v7157 = vpop.f32.mrb[0].mxu0
    %v7158 = vadd.f32 0.0, %v7157
    %v7159 = vpop.f32.mrb[0].mxu0
    %7160 = vmatprep.mubr.f32.mxu0 0.0
    %7161 = vmatmul.mubr.f32.gmra.mrb[0].mxu0 %v6785
    %v7162 = vpop.f32.mrb[0].mxu0
    %v7163 = vadd.f32 0.0, %v7162
    %v7164 = vpop.f32.mrb[0].mxu0
    %7165 = vmatprep.mubr.f32.mxu0 0.0
    %7166 = vmatmul.mubr.f32.gmra.mrb[0].mxu0 %v6788
    %v7167 = vpop.f32.mrb[0].mxu0
    %v7168 = vadd.f32 0.0, %v7167
    %v7169 = vpop.f32.mrb[0].mxu0
    %7170 = vmatprep.mubr.f32.mxu0 0.0
    %7171 = vmatmul.mubr.f32.gmra.mrb[0].mxu0 %v6791
    %v7172 = vpop.f32.mrb[0].mxu0
    %v7173 = vadd.f32 0.0, %v7172
    %v7174 = vpop.f32.mrb[0].mxu0
    %7175 = vmatprep.mubr.f32.mxu0 0.0
    %7176 = vmatmul.mubr.f32.gmra.mrb[0].mxu0 %v6794
    %v7177 = vpop.f32.mrb[0].mxu0
    %v7178 = vadd.f32 0.0, %v7177
    %v7179 = vpop.f32.mrb[0].mxu0
    %7180 = vmatprep.mubr.f32.mxu0 0.0
    %7181 = vmatmul.mubr.f32.gmra.mrb[0].mxu0 %v6797
    %v7182 = vpop.f32.mrb[0].mxu0
    %v7183 = vadd.f32 0.0, %v7182
    %v7184 = vpop.f32.mrb[0].mxu0
    %7185 = vmatprep.mubr.f32.mxu0 0.0
    %7186 = vmatmul.mubr.f32.gmra.mrb[0].mxu0 %v6800
    %v7187 = vpop.f32.mrb[0].mxu0
    %v7188 = vadd.f32 0.0, %v7187
    %v7189 = vpop.f32.mrb[0].mxu0
    %7190 = vmatprep.mubr.f32.mxu0 0.0
    %7191 = vmatmul.mubr.f32.gmra.mrb[0].mxu0 %v6803
    %v7192 = vpop.f32.mrb[0].mxu0
    %v7193 = vadd.f32 0.0, %v7192
    %v7194 = vpop.f32.mrb[0].mxu0
    %7195 = vmatprep.mubr.f32.mxu0 0.0
    %7196 = vmatmul.mubr.f32.gmra.mrb[0].mxu0 %v6806
    %v7197 = vpop.f32.mrb[0].mxu0
    %v7198 = vadd.f32 0.0, %v7197
    %v7199 = vpop.f32.mrb[0].mxu0
    %7200 = vmatprep.mubr.f32.mxu0 0.0
    %7201 = vmatmul.mubr.f32.gmra.mrb[0].mxu0 %v6809
    %v7202 = vpop.f32.mrb[0].mxu0
    %v7203 = vadd.f32 0.0, %v7202
    %v7204 = vpop.f32.mrb[0].mxu0
    %7205 = vmatprep.mubr.f32.mxu0 0.0
    %7206 = vmatmul.mubr.f32.gmra.mrb[0].mxu0 %v6812
    %v7207 = vpop.f32.mrb[0].mxu0
    %v7208 = vadd.f32 0.0, %v7207
    %v7209 = vpop.f32.mrb[0].mxu0
    %7210 = vmatprep.mubr.f32.mxu0 0.0
    %7211 = vmatmul.mubr.f32.gmra.mrb[0].mxu0 %v6815
    %v7212 = vpop.f32.mrb[0].mxu0
    %v7213 = vadd.f32 0.0, %v7212
    %v7214 = vpop.f32.mrb[0].mxu0
    %7215 = vmatprep.mubr.f32.mxu0 0.0
    %7216 = vmatmul.mubr.f32.gmra.mrb[0].mxu0 %v6818
    %v7217 = vpop.f32.mrb[0].mxu0
    %v7218 = vadd.f32 0.0, %v7217
    %v7219 = vpop.f32.mrb[0].mxu0
    %7220 = vmatprep.mubr.f32.mxu0 0.0
    %7221 = vmatmul.mubr.f32.gmra.mrb[0].mxu0 %v6821
    %v7222 = vpop.f32.mrb[0].mxu0
    %v7223 = vadd.f32 0.0, %v7222
    %v7224 = vpop.f32.mrb[0].mxu0
    %7225 = vmatprep.mubr.f32.mxu0 0.0
    %7226 = vmatmul.mubr.f32.gmra.mrb[0].mxu0 %v6824
    %v7227 = vpop.f32.mrb[0].mxu0
    %v7228 = vadd.f32 0.0, %v7227
    %v7229 = vpop.f32.mrb[0].mxu0
    %7230 = vmatprep.mubr.f32.mxu0 0.0
    %7231 = vmatmul.mubr.f32.gmra.mrb[0].mxu0 %v6827
    %v7232 = vpop.f32.mrb[0].mxu0
    %v7233 = vadd.f32 0.0, %v7232
    %v7234 = vpop.f32.mrb[0].mxu0
    %7235 = vmatprep.mubr.f32.mxu0 0.0
    %7236 = vmatmul.mubr.f32.gmra.mrb[0].mxu0 %v6830
    %v7237 = vpop.f32.mrb[0].mxu0
    %v7238 = vadd.f32 0.0, %v7237
    %v7239 = vpop.f32.mrb[0].mxu0
    %7240 = vmatprep.mubr.f32.mxu0 0.0
    %7241 = vmatmul.mubr.f32.gmra.mrb[0].mxu0 %v6833
    %v7242 = vpop.f32.mrb[0].mxu0
    %v7243 = vadd.f32 0.0, %v7242
    %v7244 = vpop.f32.mrb[0].mxu0
    %7245 = vmatprep.mubr.f32.mxu0 0.0
    %7246 = vmatmul.mubr.f32.gmra.mrb[0].mxu0 %v6836
    %v7247 = vpop.f32.mrb[0].mxu0
    %v7248 = vadd.f32 0.0, %v7247
    %v7249 = vpop.f32.mrb[0].mxu0
    %7250 = vmatprep.mubr.f32.mxu0 0.0
    %7251 = vmatmul.mubr.f32.gmra.mrb[0].mxu0 %v6839
    %v7252 = vpop.f32.mrb[0].mxu0
    %v7253 = vadd.f32 0.0, %v7252
    %v7254 = vpop.f32.mrb[0].mxu0
    %7255 = vmatprep.mubr.f32.mxu0 0.0
    %7256 = vmatmul.mubr.f32.gmra.mrb[0].mxu0 %v6842
    %v7257 = vpop.f32.mrb[0].mxu0
    %v7258 = vadd.f32 0.0, %v7257
    %v7259 = vpop.f32.mrb[0].mxu0
    %7260 = vmatprep.mubr.f32.mxu0 0.0
    %7261 = vmatmul.mubr.f32.gmra.mrb[0].mxu0 %v6845
    %v7262 = vpop.f32.mrb[0].mxu0
    %v7263 = vadd.f32 0.0, %v7262
    %v7264 = vpop.f32.mrb[0].mxu0
    %7265 = vmatprep.mubr.f32.mxu0 0.0
    %7266 = vmatmul.mubr.f32.gmra.mrb[0].mxu0 %v6848
    %v7267 = vpop.f32.mrb[0].mxu0
    %v7268 = vadd.f32 0.0, %v7267
    %v7269 = vpop.f32.mrb[0].mxu0
    %7270 = vmatprep.mubr.f32.mxu0 0.0
    %7271 = vmatmul.mubr.f32.gmra.mrb[0].mxu0 %v6851
    %v7272 = vpop.f32.mrb[0].mxu0
    %v7273 = vadd.f32 0.0, %v7272
    %v7274 = vpop.f32.mrb[0].mxu0
    %7275 = vmatprep.mubr.f32.mxu0 0.0
    %7276 = vmatmul.mubr.f32.gmra.mrb[0].mxu0 %v6854
    %v7277 = vpop.f32.mrb[0].mxu0
    %v7278 = vadd.f32 0.0, %v7277
    %v7279 = vpop.f32.mrb[0].mxu0
    %7280 = vmatprep.mubr.f32.mxu0 0.0
    %7281 = vmatmul.mubr.f32.gmra.mrb[0].mxu0 %v6857
    %v7282 = vpop.f32.mrb[0].mxu0
    %v7283 = vadd.f32 0.0, %v7282
    %v7284 = vpop.f32.mrb[0].mxu0
    %7285 = vmatprep.mubr.f32.mxu0 0.0
    %7286 = vmatmul.mubr.f32.gmra.mrb[0].mxu0 %v6860
    %v7287 = vpop.f32.mrb[0].mxu0
    %v7288 = vadd.f32 0.0, %v7287
    %v7289 = vpop.f32.mrb[0].mxu0
    %7290 = vmatprep.mubr.f32.mxu0 0.0
    %7291 = vmatmul.mubr.f32.gmra.mrb[0].mxu0 %v6863
    %v7292 = vpop.f32.mrb[0].mxu0
    %v7293 = vadd.f32 0.0, %v7292
    %v7294 = vpop.f32.mrb[0].mxu0
    %7295 = vmatprep.mubr.f32.mxu0 0.0
    %7296 = vmatmul.mubr.f32.gmra.mrb[0].mxu0 %v6866
    %v7297 = vpop.f32.mrb[0].mxu0
    %v7298 = vadd.f32 0.0, %v7297
    %v7299 = vpop.f32.mrb[0].mxu0
    %7300 = vmatprep.mubr.f32.mxu0 0.0
    %7301 = vmatmul.mubr.f32.gmra.mrb[0].mxu0 %v6869
    %v7302 = vpop.f32.mrb[0].mxu0
    %v7303 = vadd.f32 0.0, %v7302
    %v7304 = vpop.f32.mrb[0].mxu0
    %7305 = vmatprep.mubr.f32.mxu0 0.0
    %7306 = vmatmul.mubr.f32.gmra.mrb[0].mxu0 %v6872
    %v7307 = vpop.f32.mrb[0].mxu0
    %v7308 = vadd.f32 0.0, %v7307
    %v7309 = vpop.f32.mrb[0].mxu0
    %7310 = vmatprep.mubr.f32.mxu0 0.0
    %7311 = vmatmul.mubr.f32.gmra.mrb[0].mxu0 %v6875
    %v7312 = vpop.f32.mrb[0].mxu0
    %v7313 = vadd.f32 0.0, %v7312
    %v7314 = vpop.f32.mrb[0].mxu0
    %7315 = vmatprep.mubr.f32.mxu0 0.0
    %7316 = vmatmul.mubr.f32.gmra.mrb[0].mxu0 %v6878
    %v7317 = vpop.f32.mrb[0].mxu0
    %v7318 = vadd.f32 0.0, %v7317
    %v7319 = vpop.f32.mrb[0].mxu0
    %7320 = vmatprep.mubr.f32.mxu0 0.0
    %7321 = vmatmul.mubr.f32.gmra.mrb[0].mxu0 %v6881
    %v7322 = vpop.f32.mrb[0].mxu0
    %v7323 = vadd.f32 0.0, %v7322
    %v7324 = vpop.f32.mrb[0].mxu0
    %7325 = vmatprep.mubr.f32.mxu0 0.0
    %7326 = vmatmul.mubr.f32.gmra.mrb[0].mxu0 %v6884
    %v7327 = vpop.f32.mrb[0].mxu0
    %v7328 = vadd.f32 0.0, %v7327
    %v7329 = vpop.f32.mrb[0].mxu0
    %7330 = vmatprep.mubr.f32.mxu0 0.0
    %7331 = vmatmul.mubr.f32.gmra.mrb[0].mxu0 %v6887
    %v7332 = vpop.f32.mrb[0].mxu0
    %v7333 = vadd.f32 0.0, %v7332
    %v7334 = vpop.f32.mrb[0].mxu0
    %7335 = vmatprep.mubr.f32.mxu0 0.0
    %7336 = vmatmul.mubr.f32.gmra.mrb[0].mxu0 %v6890
    %v7337 = vpop.f32.mrb[0].mxu0
    %v7338 = vadd.f32 0.0, %v7337
    %v7339 = vpop.f32.mrb[0].mxu0
    %7340 = vmatprep.mubr.f32.mxu0 0.0
    %7341 = vmatmul.mubr.f32.gmra.mrb[0].mxu0 %v6893
    %v7342 = vpop.f32.mrb[0].mxu0
    %v7343 = vadd.f32 0.0, %v7342
    %v7344 = vpop.f32.mrb[0].mxu0
    %7345 = vmatprep.mubr.f32.mxu0 0.0
    %7346 = vmatmul.mubr.f32.gmra.mrb[0].mxu0 %v6896
    %v7347 = vpop.f32.mrb[0].mxu0
    %v7348 = vadd.f32 0.0, %v7347
    %v7349 = vpop.f32.mrb[0].mxu0
    %7350 = vmatprep.mubr.f32.mxu0 0.0
    %7351 = vmatmul.mubr.f32.gmra.mrb[0].mxu0 %v6899
    %v7352 = vpop.f32.mrb[0].mxu0
    %v7353 = vadd.f32 0.0, %v7352
    %v7354 = vpop.f32.mrb[0].mxu0
    %7355 = vmatprep.mubr.f32.mxu0 0.0
    %7356 = vmatmul.mubr.f32.gmra.mrb[0].mxu0 %v6902
    %v7357 = vpop.f32.mrb[0].mxu0
    %v7358 = vadd.f32 0.0, %v7357
    %v7359 = vpop.f32.mrb[0].mxu0
    %7360 = vmatprep.mubr.f32.mxu0 0.0
    %7361 = vmatmul.mubr.f32.gmra.mrb[0].mxu0 %v6905
    %v7362 = vpop.f32.mrb[0].mxu0
    %v7363 = vadd.f32 0.0, %v7362
    %v7364 = vpop.f32.mrb[0].mxu0
    %7365 = vmatprep.mubr.f32.mxu0 0.0
    %7366 = vmatmul.mubr.f32.gmra.mrb[0].mxu0 %v6908
    %v7367 = vpop.f32.mrb[0].mxu0
    %v7368 = vadd.f32 0.0, %v7367
    %v7369 = vpop.f32.mrb[0].mxu0
    %7370 = vmatprep.mubr.f32.mxu0 0.0
    %7371 = vmatmul.mubr.f32.gmra.mrb[0].mxu0 %v6911
    %v7372 = vpop.f32.mrb[0].mxu0
    %v7373 = vadd.f32 0.0, %v7372
    %v7374 = vpop.f32.mrb[0].mxu0
    %7375 = vmatprep.mubr.f32.mxu0 0.0
    %7376 = vmatmul.mubr.f32.gmra.mrb[0].mxu0 %v6914
    %v7377 = vpop.f32.mrb[0].mxu0
    %v7378 = vadd.f32 0.0, %v7377
    %v7379 = vpop.f32.mrb[0].mxu0
    %7380 = vmatprep.mubr.f32.mxu0 0.0
    %7381 = vmatmul.mubr.f32.gmra.mrb[0].mxu0 %v6917
    %v7382 = vpop.f32.mrb[0].mxu0
    %v7383 = vadd.f32 0.0, %v7382
    %v7384 = vpop.f32.mrb[0].mxu0
    %7385 = vmatprep.mubr.f32.mxu0 0.0
    %7386 = vmatmul.mubr.f32.gmra.mrb[0].mxu0 %v6920
    %v7387 = vpop.f32.mrb[0].mxu0
    %v7388 = vadd.f32 0.0, %v7387
    %v7389 = vpop.f32.mrb[0].mxu0
    %7390 = vmatprep.mubr.f32.mxu0 0.0
    %7391 = vmatmul.mubr.f32.gmra.mrb[0].mxu0 %v6923
    %v7392 = vpop.f32.mrb[0].mxu0
    %v7393 = vadd.f32 0.0, %v7392
    %v7394 = vpop.f32.mrb[0].mxu0
    %7395 = vmatprep.mubr.f32.mxu0 0.0
    %7396 = vmatmul.mubr.f32.gmra.mrb[0].mxu0 %v6926
    %v7397 = vpop.f32.mrb[0].mxu0
    %v7398 = vadd.f32 0.0, %v7397
    %v7399 = vpop.f32.mrb[0].mxu0
    %7400 = vmatprep.mubr.f32.mxu0 0.0
    %7401 = vmatmul.mubr.f32.gmra.mrb[0].mxu0 %v6929
    %v7402 = vpop.f32.mrb[0].mxu0
    %v7403 = vadd.f32 0.0, %v7402
    %v7404 = vpop.f32.mrb[0].mxu0
    %7405 = vmatprep.mubr.f32.mxu0 0.0
    %7406 = vmatmul.mubr.f32.gmra.mrb[0].mxu0 %v6932
    %v7407 = vpop.f32.mrb[0].mxu0
    %v7408 = vadd.f32 0.0, %v7407
    %v7409 = vpop.f32.mrb[0].mxu0
    %7410 = vmatprep.mubr.f32.mxu0 0.0
    %7411 = vmatmul.mubr.f32.gmra.mrb[0].mxu0 %v6935
    %v7412 = vpop.f32.mrb[0].mxu0
    %v7413 = vadd.f32 0.0, %v7412
    %v7414 = vpop.f32.mrb[0].mxu0
    %7415 = vmatprep.mubr.f32.mxu0 0.0
    %7416 = vmatmul.mubr.f32.gmra.mrb[0].mxu0 %v6938
    %v7417 = vpop.f32.mrb[0].mxu0
    %v7418 = vadd.f32 0.0, %v7417
    %v7419 = vpop.f32.mrb[0].mxu0
    %7420 = vmatprep.mubr.f32.mxu0 0.0
    %7421 = vmatmul.mubr.f32.gmra.mrb[0].mxu0 %v6941
    %v7422 = vpop.f32.mrb[0].mxu0
    %v7423 = vadd.f32 0.0, %v7422
    %v7424 = vpop.f32.mrb[0].mxu0
    %7425 = vmatprep.mubr.f32.mxu0 0.0
    %7426 = vmatmul.mubr.f32.gmra.mrb[0].mxu0 %v6944
    %v7427 = vpop.f32.mrb[0].mxu0
    %v7428 = vadd.f32 0.0, %v7427
    %v7429 = vpop.f32.mrb[0].mxu0
    %7430 = vmatprep.mubr.f32.mxu0 0.0
    %7431 = vmatmul.mubr.f32.gmra.mrb[0].mxu0 %v6947
    %v7432 = vpop.f32.mrb[0].mxu0
    %v7433 = vadd.f32 0.0, %v7432
    %v7434 = vpop.f32.mrb[0].mxu0
    %7435 = vmatprep.mubr.f32.mxu0 0.0
    %7436 = vmatmul.mubr.f32.gmra.mrb[0].mxu0 %v6950
    %v7437 = vpop.f32.mrb[0].mxu0
    %v7438 = vadd.f32 0.0, %v7437
    %v7439 = vpop.f32.mrb[0].mxu0
    %7440 = vmatprep.mubr.f32.mxu0 0.0
    %7441 = vmatmul.mubr.f32.gmra.mrb[0].mxu0 %v6953
    %v7442 = vpop.f32.mrb[0].mxu0
    %v7443 = vadd.f32 0.0, %v7442
    %v7444 = vpop.f32.mrb[0].mxu0
    %7445 = vmatprep.mubr.f32.mxu0 0.0
    %7446 = vmatmul.mubr.f32.gmra.mrb[0].mxu0 %v6956
    %v7447 = vpop.f32.mrb[0].mxu0
    %v7448 = vadd.f32 0.0, %v7447
    %v7449 = vpop.f32.mrb[0].mxu0
    %7450 = vmatprep.mubr.f32.mxu0 0.0
    %7451 = vmatmul.mubr.f32.gmra.mrb[0].mxu0 %v6959
    %v7452 = vpop.f32.mrb[0].mxu0
    %v7453 = vadd.f32 0.0, %v7452
    %v7454 = vpop.f32.mrb[0].mxu0
    %7455 = vmatprep.mubr.f32.mxu0 0.0
    %7456 = vmatmul.mubr.f32.gmra.mrb[0].mxu0 %v6962
    %v7457 = vpop.f32.mrb[0].mxu0
    %v7458 = vadd.f32 0.0, %v7457
    %v7459 = vpop.f32.mrb[0].mxu0
    %7460 = vmatprep.mubr.f32.mxu0 0.0
    %7461 = vmatmul.mubr.f32.gmra.mrb[0].mxu0 %v6965
    %v7462 = vpop.f32.mrb[0].mxu0
    %v7463 = vadd.f32 0.0, %v7462
    %v7464 = vpop.f32.mrb[0].mxu0
    %7465 = vmatprep.mubr.f32.mxu0 0.0
    %7466 = vmatmul.mubr.f32.gmra.mrb[0].mxu0 %v6968
    %v7467 = vpop.f32.mrb[0].mxu0
    %v7468 = vadd.f32 0.0, %v7467
    %v7469 = vpop.f32.mrb[0].mxu0
    %7470 = vmatprep.mubr.f32.mxu0 0.0
    %7471 = vmatmul.mubr.f32.gmra.mrb[0].mxu0 %v6971
    %v7472 = vpop.f32.mrb[0].mxu0
    %v7473 = vadd.f32 0.0, %v7472
    %v7474 = vpop.f32.mrb[0].mxu0
    %7475 = vmatprep.mubr.f32.mxu0 0.0
    %7476 = vmatmul.mubr.f32.gmra.mrb[0].mxu0 %v6974
    %v7477 = vpop.f32.mrb[0].mxu0
    %v7478 = vadd.f32 0.0, %v7477
    %v7479 = vpop.f32.mrb[0].mxu0
    %7480 = vmatprep.mubr.f32.mxu0 0.0
    %7481 = vmatmul.mubr.f32.gmra.mrb[0].mxu0 %v6977
    %v7482 = vpop.f32.mrb[0].mxu0
    %v7483 = vadd.f32 0.0, %v7482
    %v7484 = vpop.f32.mrb[0].mxu0
    %7485 = vmatprep.mubr.f32.mxu0 0.0
    %7486 = vmatmul.mubr.f32.gmra.mrb[0].mxu0 %v6980
    %v7487 = vpop.f32.mrb[0].mxu0
    %v7488 = vadd.f32 0.0, %v7487
    %v7489 = vpop.f32.mrb[0].mxu0
    %7490 = vmatprep.mubr.f32.mxu0 0.0
    %7491 = vmatmul.mubr.f32.gmra.mrb[0].mxu0 %v6983
    %v7492 = vpop.f32.mrb[0].mxu0
    %v7493 = vadd.f32 0.0, %v7492
    %v7494 = vpop.f32.mrb[0].mxu0
    %7495 = vmatprep.mubr.f32.mxu0 0.0
    %7496 = vmatmul.mubr.f32.gmra.mrb[0].mxu0 %v6986
    %v7497 = vpop.f32.mrb[0].mxu0
    %v7498 = vadd.f32 0.0, %v7497
    %v7499 = vpop.f32.mrb[0].mxu0
    %7500 = vmatprep.mubr.f32.mxu0 0.0
    %7501 = vmatmul.mubr.f32.gmra.mrb[0].mxu0 %v6989
    %v7502 = vpop.f32.mrb[0].mxu0
    %v7503 = vadd.f32 0.0, %v7502
    %v7504 = vpop.f32.mrb[0].mxu0
    %7505 = vdwg.mxu0
    %v7506 = vadd.f32 %v6539, %v7058
    %v7507 = vadd.f32 %v6540, %v7063
    %v7508 = vadd.f32 %v6541, %v7068
    %v7509 = vadd.f32 %v6542, %v7073
    %v7510 = vadd.f32 %v6543, %v7078
    %v7511 = vadd.f32 %v6544, %v7083
    %v7512 = vadd.f32 %v6545, %v7088
    %v7513 = vadd.f32 %v6546, %v7093
    %v7514 = vadd.f32 %v6547, %v7098
    %v7515 = vadd.f32 %v6548, %v7103
    %v7516 = vadd.f32 %v6549, %v7108
    %v7517 = vadd.f32 %v6550, %v7113
    %v7518 = vadd.f32 %v6551, %v7118
    %v7519 = vadd.f32 %v6552, %v7123
    %v7520 = vadd.f32 %v6553, %v7128
    %v7521 = vadd.f32 %v6554, %v7133
    %v7522 = vadd.f32 %v6555, %v7138
    %v7523 = vadd.f32 %v6556, %v7143
    %v7524 = vadd.f32 %v6557, %v7148
    %v7525 = vadd.f32 %v6558, %v7153
    %v7526 = vadd.f32 %v6559, %v7158
    %v7527 = vadd.f32 %v6560, %v7163
    %v7528 = vadd.f32 %v6561, %v7168
    %v7529 = vadd.f32 %v6562, %v7173
    %v7530 = vadd.f32 %v6563, %v7178
    %v7531 = vadd.f32 %v6564, %v7183
    %v7532 = vadd.f32 %v6565, %v7188
    %v7533 = vadd.f32 %v6566, %v7193
    %v7534 = vadd.f32 %v6567, %v7198
    %v7535 = vadd.f32 %v6568, %v7203
    %v7536 = vadd.f32 %v6569, %v7208
    %v7537 = vadd.f32 %v6570, %v7213
    %v7538 = vadd.f32 %v6571, %v7218
    %v7539 = vadd.f32 %v6572, %v7223
    %v7540 = vadd.f32 %v6573, %v7228
    %v7541 = vadd.f32 %v6574, %v7233
    %v7542 = vadd.f32 %v6575, %v7238
    %v7543 = vadd.f32 %v6576, %v7243
    %v7544 = vadd.f32 %v6577, %v7248
    %v7545 = vadd.f32 %v6578, %v7253
    %v7546 = vadd.f32 %v6579, %v7258
    %v7547 = vadd.f32 %v6580, %v7263
    %v7548 = vadd.f32 %v6581, %v7268
    %v7549 = vadd.f32 %v6582, %v7273
    %v7550 = vadd.f32 %v6583, %v7278
    %v7551 = vadd.f32 %v6584, %v7283
    %v7552 = vadd.f32 %v6585, %v7288
    %v7553 = vadd.f32 %v6586, %v7293
    %v7554 = vadd.f32 %v6587, %v7298
    %v7555 = vadd.f32 %v6588, %v7303
    %v7556 = vadd.f32 %v6589, %v7308
    %v7557 = vadd.f32 %v6590, %v7313
    %v7558 = vadd.f32 %v6591, %v7318
    %v7559 = vadd.f32 %v6592, %v7323
    %v7560 = vadd.f32 %v6593, %v7328
    %v7561 = vadd.f32 %v6594, %v7333
    %v7562 = vadd.f32 %v6595, %v7338
    %v7563 = vadd.f32 %v6596, %v7343
    %v7564 = vadd.f32 %v6597, %v7348
    %v7565 = vadd.f32 %v6598, %v7353
    %v7566 = vadd.f32 %v6599, %v7358
    %v7567 = vadd.f32 %v6600, %v7363
    %v7568 = vadd.f32 %v6601, %v7368
    %v7569 = vadd.f32 %v6602, %v7373
    %v7570 = vadd.f32 %v6603, %v7378
    %v7571 = vadd.f32 %v6604, %v7383
    %v7572 = vadd.f32 %v6605, %v7388
    %v7573 = vadd.f32 %v6606, %v7393
    %v7574 = vadd.f32 %v6607, %v7398
    %v7575 = vadd.f32 %v6608, %v7403
    %v7576 = vadd.f32 %v6609, %v7408
    %v7577 = vadd.f32 %v6610, %v7413
    %v7578 = vadd.f32 %v6611, %v7418
    %v7579 = vadd.f32 %v6612, %v7423
    %v7580 = vadd.f32 %v6613, %v7428
    %v7581 = vadd.f32 %v6614, %v7433
    %v7582 = vadd.f32 %v6615, %v7438
    %v7583 = vadd.f32 %v6616, %v7443
    %v7584 = vadd.f32 %v6617, %v7448
    %v7585 = vadd.f32 %v6618, %v7453
    %v7586 = vadd.f32 %v6619, %v7458
    %v7587 = vadd.f32 %v6620, %v7463
    %v7588 = vadd.f32 %v6621, %v7468
    %v7589 = vadd.f32 %v6622, %v7473
    %v7590 = vadd.f32 %v6623, %v7478
    %v7591 = vadd.f32 %v6624, %v7483
    %v7592 = vadd.f32 %v6625, %v7488
    %v7593 = vadd.f32 %v6626, %v7493
    %v7594 = vadd.f32 %v6627, %v7498
    %v7595 = vadd.f32 %v6628, %v7503
    %v7596 = vld [vmem:[%s0 + $0x27] sm:$0xff]
    %v7597 = vld [vmem:[%s0 + $0x2f] sm:$0xff]
    %v7598 = vld [vmem:[%s0 + $0x37] sm:$0xff]
    %v7599 = vld [vmem:[%s0 + $0x3f] sm:$0xff]
    %v7600 = vld [vmem:[%s0 + $0x47] sm:$0xff]
    %v7601 = vld [vmem:[%s0 + $0x4f] sm:$0xff]
    %v7602 = vld [vmem:[%s0 + $0x57] sm:$0xff]
    %v7603 = vld [vmem:[%s0 + $0x5f] sm:$0xff]
    %v7604 = vld [vmem:[%s0 + $0x67] sm:$0xff]
    %v7605 = vld [vmem:[%s0 + $0x6f] sm:$0xff]
    %v7606 = vld [vmem:[%s0 + $0x77] sm:$0xff]
    %v7607 = vld [vmem:[%s0 + $0x7f] sm:$0xff]
    %v7608 = vld [vmem:[%s0 + $0x87] sm:$0xff]
    %v7609 = vld [vmem:[%s0 + $0x8f] sm:$0xff]
    %v7610 = vld [vmem:[%s0 + $0x97] sm:$0xff]
    %v7611 = vld [vmem:[%s0 + $0x9f] sm:$0xff]
    %v7612 = vld [vmem:[%s0 + $0xa7] sm:$0xff]
    %v7613 = vld [vmem:[%s0 + $0xaf] sm:$0xff]
    %v7614 = vld [vmem:[%s0 + $0xb7] sm:$0xff]
    %v7615 = vld [vmem:[%s0 + $0xbf] sm:$0xff]
    %v7616 = vld [vmem:[%s0 + $0xc7] sm:$0xff]
    %v7617 = vld [vmem:[%s0 + $0xcf] sm:$0xff]
    %v7618 = vld [vmem:[%s0 + $0xd7] sm:$0xff]
    %v7619 = vld [vmem:[%s0 + $0xdf] sm:$0xff]
    %v7620 = vld [vmem:[%s0 + $0xe7] sm:$0xff]
    %v7621 = vld [vmem:[%s0 + $0xef] sm:$0xff]
    %v7622 = vld [vmem:[%s0 + $0xf7] sm:$0xff]
    %v7623 = vld [vmem:[%s0 + $0xff] sm:$0xff]
    %v7624 = vld [vmem:[%s0 + $0x107] sm:$0xff]
    %v7625 = vld [vmem:[%s0 + $0x10f] sm:$0xff]
    %v7626 = vld [vmem:[%s0 + $0x117] sm:$0xff]
    %v7627 = vld [vmem:[%s0 + $0x11f] sm:$0xff]
    %v7628 = vld [vmem:[%s0 + $0x127] sm:$0xff]
    %v7629 = vld [vmem:[%s0 + $0x12f] sm:$0xff]
    %v7630 = vld [vmem:[%s0 + $0x137] sm:$0xff]
    %v7631 = vld [vmem:[%s0 + $0x13f] sm:$0xff]
    %v7632 = vld [vmem:[%s0 + $0x147] sm:$0xff]
    %v7633 = vld [vmem:[%s0 + $0x14f] sm:$0xff]
    %v7634 = vld [vmem:[%s0 + $0x157] sm:$0xff]
    %v7635 = vld [vmem:[%s0 + $0x15f] sm:$0xff]
    %v7636 = vld [vmem:[%s0 + $0x167] sm:$0xff]
    %v7637 = vld [vmem:[%s0 + $0x16f] sm:$0xff]
    %v7638 = vld [vmem:[%s0 + $0x177] sm:$0xff]
    %v7639 = vld [vmem:[%s0 + $0x17f] sm:$0xff]
    %v7640 = vld [vmem:[%s0 + $0x187] sm:$0xff]
    %v7641 = vld [vmem:[%s0 + $0x18f] sm:$0xff]
    %v7642 = vld [vmem:[%s0 + $0x197] sm:$0xff]
    %v7643 = vld [vmem:[%s0 + $0x19f] sm:$0xff]
    %v7644 = vld [vmem:[%s0 + $0x1a7] sm:$0xff]
    %v7645 = vld [vmem:[%s0 + $0x1af] sm:$0xff]
    %v7646 = vld [vmem:[%s0 + $0x1b7] sm:$0xff]
    %v7647 = vld [vmem:[%s0 + $0x1bf] sm:$0xff]
    %v7648 = vld [vmem:[%s0 + $0x1c7] sm:$0xff]
    %v7649 = vld [vmem:[%s0 + $0x1cf] sm:$0xff]
    %v7650 = vld [vmem:[%s0 + $0x1d7] sm:$0xff]
    %v7651 = vld [vmem:[%s0 + $0x1df] sm:$0xff]
    %v7652 = vld [vmem:[%s0 + $0x1e7] sm:$0xff]
    %v7653 = vld [vmem:[%s0 + $0x1ef] sm:$0xff]
    %v7654 = vld [vmem:[%s0 + $0x1f7] sm:$0xff]
    %v7655 = vld [vmem:[%s0 + $0x1ff] sm:$0xff]
    %v7656 = vld [vmem:[%s0 + $0x207] sm:$0xff]
    %v7657 = vld [vmem:[%s0 + $0x20f] sm:$0xff]
    %v7658 = vld [vmem:[%s0 + $0x217] sm:$0xff]
    %v7659 = vld [vmem:[%s0 + $0x21f] sm:$0xff]
    %v7660 = vld [vmem:[%s0 + $0x227] sm:$0xff]
    %v7661 = vld [vmem:[%s0 + $0x22f] sm:$0xff]
    %v7662 = vld [vmem:[%s0 + $0x237] sm:$0xff]
    %v7663 = vld [vmem:[%s0 + $0x23f] sm:$0xff]
    %v7664 = vld [vmem:[%s0 + $0x247] sm:$0xff]
    %v7665 = vld [vmem:[%s0 + $0x24f] sm:$0xff]
    %v7666 = vld [vmem:[%s0 + $0x257] sm:$0xff]
    %v7667 = vld [vmem:[%s0 + $0x25f] sm:$0xff]
    %v7668 = vld [vmem:[%s0 + $0x267] sm:$0xff]
    %v7669 = vld [vmem:[%s0 + $0x26f] sm:$0xff]
    %v7670 = vld [vmem:[%s0 + $0x277] sm:$0xff]
    %v7671 = vld [vmem:[%s0 + $0x27f] sm:$0xff]
    %v7672 = vld [vmem:[%s0 + $0x287] sm:$0xff]
    %v7673 = vld [vmem:[%s0 + $0x28f] sm:$0xff]
    %v7674 = vld [vmem:[%s0 + $0x297] sm:$0xff]
    %v7675 = vld [vmem:[%s0 + $0x29f] sm:$0xff]
    %v7676 = vld [vmem:[%s0 + $0x2a7] sm:$0xff]
    %v7677 = vld [vmem:[%s0 + $0x2af] sm:$0xff]
    %v7678 = vld [vmem:[%s0 + $0x2b7] sm:$0xff]
    %v7679 = vld [vmem:[%s0 + $0x2bf] sm:$0xff]
    %v7680 = vld [vmem:[%s0 + $0x2c7] sm:$0xff]
    %v7681 = vld [vmem:[%s0 + $0x2cf] sm:$0xff]
    %v7682 = vld [vmem:[%s0 + $0x2d7] sm:$0xff]
    %v7683 = vld [vmem:[%s0 + $0x2df] sm:$0xff]
    %v7684 = vld [vmem:[%s0 + $0x2e7] sm:$0xff]
    %v7685 = vld [vmem:[%s0 + $0x2ef] sm:$0xff]
    %s7686 = scalar_lea.vmem %s1, 64
    %v7687 = vld [vmem:[%s7686] sm:$0xff]
    %v7689 = vsel %vm223, %v7596, 0
    %v7692 = vsel %vm223, %v7597, 0
    %v7695 = vsel %vm223, %v7598, 0
    %v7698 = vsel %vm223, %v7599, 0
    %v7701 = vsel %vm223, %v7600, 0
    %v7704 = vsel %vm223, %v7601, 0
    %v7707 = vsel %vm223, %v7602, 0
    %v7710 = vsel %vm223, %v7603, 0
    %v7713 = vsel %vm223, %v7604, 0
    %v7716 = vsel %vm223, %v7605, 0
    %v7719 = vsel %vm223, %v7606, 0
    %v7722 = vsel %vm223, %v7607, 0
    %v7725 = vsel %vm223, %v7608, 0
    %v7728 = vsel %vm223, %v7609, 0
    %v7731 = vsel %vm223, %v7610, 0
    %v7734 = vsel %vm223, %v7611, 0
    %v7737 = vsel %vm223, %v7612, 0
    %v7740 = vsel %vm223, %v7613, 0
    %v7743 = vsel %vm223, %v7614, 0
    %v7746 = vsel %vm223, %v7615, 0
    %v7749 = vsel %vm223, %v7616, 0
    %v7752 = vsel %vm223, %v7617, 0
    %v7755 = vsel %vm223, %v7618, 0
    %v7758 = vsel %vm223, %v7619, 0
    %v7761 = vsel %vm223, %v7620, 0
    %v7764 = vsel %vm223, %v7621, 0
    %v7767 = vsel %vm223, %v7622, 0
    %v7770 = vsel %vm223, %v7623, 0
    %v7773 = vsel %vm223, %v7624, 0
    %v7776 = vsel %vm223, %v7625, 0
    %v7779 = vsel %vm223, %v7626, 0
    %v7782 = vsel %vm223, %v7627, 0
    %v7785 = vsel %vm223, %v7628, 0
    %v7788 = vsel %vm223, %v7629, 0
    %v7791 = vsel %vm223, %v7630, 0
    %v7794 = vsel %vm223, %v7631, 0
    %v7797 = vsel %vm223, %v7632, 0
    %v7800 = vsel %vm223, %v7633, 0
    %v7803 = vsel %vm223, %v7634, 0
    %v7806 = vsel %vm223, %v7635, 0
    %v7809 = vsel %vm223, %v7636, 0
    %v7812 = vsel %vm223, %v7637, 0
    %v7815 = vsel %vm223, %v7638, 0
    %v7818 = vsel %vm223, %v7639, 0
    %v7821 = vsel %vm223, %v7640, 0
    %v7824 = vsel %vm223, %v7641, 0
    %v7827 = vsel %vm223, %v7642, 0
    %v7830 = vsel %vm223, %v7643, 0
    %v7833 = vsel %vm223, %v7644, 0
    %v7836 = vsel %vm223, %v7645, 0
    %v7839 = vsel %vm223, %v7646, 0
    %v7842 = vsel %vm223, %v7647, 0
    %v7845 = vsel %vm223, %v7648, 0
    %v7848 = vsel %vm223, %v7649, 0
    %v7851 = vsel %vm223, %v7650, 0
    %v7854 = vsel %vm223, %v7651, 0
    %v7857 = vsel %vm223, %v7652, 0
    %v7860 = vsel %vm223, %v7653, 0
    %v7863 = vsel %vm223, %v7654, 0
    %v7866 = vsel %vm223, %v7655, 0
    %v7869 = vsel %vm223, %v7656, 0
    %v7872 = vsel %vm223, %v7657, 0
    %v7875 = vsel %vm223, %v7658, 0
    %v7878 = vsel %vm223, %v7659, 0
    %v7881 = vsel %vm223, %v7660, 0
    %v7884 = vsel %vm223, %v7661, 0
    %v7887 = vsel %vm223, %v7662, 0
    %v7890 = vsel %vm223, %v7663, 0
    %v7893 = vsel %vm223, %v7664, 0
    %v7896 = vsel %vm223, %v7665, 0
    %v7899 = vsel %vm223, %v7666, 0
    %v7902 = vsel %vm223, %v7667, 0
    %v7905 = vsel %vm223, %v7668, 0
    %v7908 = vsel %vm223, %v7669, 0
    %v7911 = vsel %vm223, %v7670, 0
    %v7914 = vsel %vm223, %v7671, 0
    %v7917 = vsel %vm223, %v7672, 0
    %v7920 = vsel %vm223, %v7673, 0
    %v7923 = vsel %vm223, %v7674, 0
    %v7926 = vsel %vm223, %v7675, 0
    %v7929 = vsel %vm223, %v7676, 0
    %v7932 = vsel %vm223, %v7677, 0
    %v7935 = vsel %vm223, %v7678, 0
    %v7938 = vsel %vm223, %v7679, 0
    %v7941 = vsel %vm223, %v7680, 0
    %v7944 = vsel %vm223, %v7681, 0
    %v7947 = vsel %vm223, %v7682, 0
    %v7950 = vsel %vm223, %v7683, 0
    %v7953 = vsel %vm223, %v7684, 0
    %v7956 = vsel %vm223, %v7685, 0
    %7958 = vmatprep.subr.mxu0 0.0
    %7959 = vmatpush1.msra.mxu0 %v7687
    %7960 = vmatprep.subr.mxu0 0.0
    %7961 = vmatpush1.msra.mxu0 0.0
    %7962 = vmatprep.subr.mxu0 0.0
    %7963 = vmatpush1.msra.mxu0 0.0
    %7964 = vmatprep.subr.mxu0 0.0
    %7965 = vmatpush1.msra.mxu0 0.0
    %7966 = vmatprep.subr.mxu0 0.0
    %7967 = vmatpush1.msra.mxu0 0.0
    %7968 = vmatprep.subr.mxu0 0.0
    %7969 = vmatpush1.msra.mxu0 0.0
    %7970 = vmatprep.subr.mxu0 0.0
    %7971 = vmatpush1.msra.mxu0 0.0
    %7972 = vmatprep.subr.mxu0 0.0
    %7973 = vmatpush1.msra.mxu0 0.0
    %7974 = vmatprep.subr.mxu0 0.0
    %7975 = vmatpush1.msra.mxu0 0.0
    %7976 = vmatprep.subr.mxu0 0.0
    %7977 = vmatpush1.msra.mxu0 0.0
    %7978 = vmatprep.subr.mxu0 0.0
    %7979 = vmatpush1.msra.mxu0 0.0
    %7980 = vmatprep.subr.mxu0 0.0
    %7981 = vmatpush1.msra.mxu0 0.0
    %7982 = vmatprep.subr.mxu0 0.0
    %7983 = vmatpush1.msra.mxu0 0.0
    %7984 = vmatprep.subr.mxu0 0.0
    %7985 = vmatpush1.msra.mxu0 0.0
    %7986 = vmatprep.subr.mxu0 0.0
    %7987 = vmatpush1.msra.mxu0 0.0
    %7988 = vmatprep.subr.mxu0 0.0
    %7989 = vmatpush1.msra.mxu0 0.0
    %7990 = vmatprep.subr.mxu0 0.0
    %7991 = vmatpush1.msra.mxu0 0.0
    %7992 = vmatprep.subr.mxu0 0.0
    %7993 = vmatpush1.msra.mxu0 0.0
    %7994 = vmatprep.subr.mxu0 0.0
    %7995 = vmatpush1.msra.mxu0 0.0
    %7996 = vmatprep.subr.mxu0 0.0
    %7997 = vmatpush1.msra.mxu0 0.0
    %7998 = vmatprep.subr.mxu0 0.0
    %7999 = vmatpush1.msra.mxu0 0.0
    %8000 = vmatprep.subr.mxu0 0.0
    %8001 = vmatpush1.msra.mxu0 0.0
    %8002 = vmatprep.subr.mxu0 0.0
    %8003 = vmatpush1.msra.mxu0 0.0
    %8004 = vmatprep.subr.mxu0 0.0
    %8005 = vmatpush1.msra.mxu0 0.0
    %8006 = vmatprep.subr.mxu0 0.0
    %8007 = vmatpush1.msra.mxu0 0.0
    %8008 = vmatprep.subr.mxu0 0.0
    %8009 = vmatpush1.msra.mxu0 0.0
    %8010 = vmatprep.subr.mxu0 0.0
    %8011 = vmatpush1.msra.mxu0 0.0
    %8012 = vmatprep.subr.mxu0 0.0
    %8013 = vmatpush1.msra.mxu0 0.0
    %8014 = vmatprep.subr.mxu0 0.0
    %8015 = vmatpush1.msra.mxu0 0.0
    %8016 = vmatprep.subr.mxu0 0.0
    %8017 = vmatpush1.msra.mxu0 0.0
    %8018 = vmatprep.subr.mxu0 0.0
    %8019 = vmatpush1.msra.mxu0 0.0
    %8020 = vmatprep.subr.mxu0 0.0
    %8021 = vmatpush1.msra.mxu0 0.0
    %8022 = vmatprep.mubr.f32.mxu0 0.0
    %8023 = vmatmul.mubr.f32.gmra.mrb[0].mxu0 %v7689
    %v8024 = vpop.f32.mrb[0].mxu0
    %v8025 = vadd.f32 0.0, %v8024
    %v8026 = vpop.f32.mrb[0].mxu0
    %8027 = vmatprep.mubr.f32.mxu0 0.0
    %8028 = vmatmul.mubr.f32.gmra.mrb[0].mxu0 %v7692
    %v8029 = vpop.f32.mrb[0].mxu0
    %v8030 = vadd.f32 0.0, %v8029
    %v8031 = vpop.f32.mrb[0].mxu0
    %8032 = vmatprep.mubr.f32.mxu0 0.0
    %8033 = vmatmul.mubr.f32.gmra.mrb[0].mxu0 %v7695
    %v8034 = vpop.f32.mrb[0].mxu0
    %v8035 = vadd.f32 0.0, %v8034
    %v8036 = vpop.f32.mrb[0].mxu0
    %8037 = vmatprep.mubr.f32.mxu0 0.0
    %8038 = vmatmul.mubr.f32.gmra.mrb[0].mxu0 %v7698
    %v8039 = vpop.f32.mrb[0].mxu0
    %v8040 = vadd.f32 0.0, %v8039
    %v8041 = vpop.f32.mrb[0].mxu0
    %8042 = vmatprep.mubr.f32.mxu0 0.0
    %8043 = vmatmul.mubr.f32.gmra.mrb[0].mxu0 %v7701
    %v8044 = vpop.f32.mrb[0].mxu0
    %v8045 = vadd.f32 0.0, %v8044
    %v8046 = vpop.f32.mrb[0].mxu0
    %8047 = vmatprep.mubr.f32.mxu0 0.0
    %8048 = vmatmul.mubr.f32.gmra.mrb[0].mxu0 %v7704
    %v8049 = vpop.f32.mrb[0].mxu0
    %v8050 = vadd.f32 0.0, %v8049
    %v8051 = vpop.f32.mrb[0].mxu0
    %8052 = vmatprep.mubr.f32.mxu0 0.0
    %8053 = vmatmul.mubr.f32.gmra.mrb[0].mxu0 %v7707
    %v8054 = vpop.f32.mrb[0].mxu0
    %v8055 = vadd.f32 0.0, %v8054
    %v8056 = vpop.f32.mrb[0].mxu0
    %8057 = vmatprep.mubr.f32.mxu0 0.0
    %8058 = vmatmul.mubr.f32.gmra.mrb[0].mxu0 %v7710
    %v8059 = vpop.f32.mrb[0].mxu0
    %v8060 = vadd.f32 0.0, %v8059
    %v8061 = vpop.f32.mrb[0].mxu0
    %8062 = vmatprep.mubr.f32.mxu0 0.0
    %8063 = vmatmul.mubr.f32.gmra.mrb[0].mxu0 %v7713
    %v8064 = vpop.f32.mrb[0].mxu0
    %v8065 = vadd.f32 0.0, %v8064
    %v8066 = vpop.f32.mrb[0].mxu0
    %8067 = vmatprep.mubr.f32.mxu0 0.0
    %8068 = vmatmul.mubr.f32.gmra.mrb[0].mxu0 %v7716
    %v8069 = vpop.f32.mrb[0].mxu0
    %v8070 = vadd.f32 0.0, %v8069
    %v8071 = vpop.f32.mrb[0].mxu0
    %8072 = vmatprep.mubr.f32.mxu0 0.0
    %8073 = vmatmul.mubr.f32.gmra.mrb[0].mxu0 %v7719
    %v8074 = vpop.f32.mrb[0].mxu0
    %v8075 = vadd.f32 0.0, %v8074
    %v8076 = vpop.f32.mrb[0].mxu0
    %8077 = vmatprep.mubr.f32.mxu0 0.0
    %8078 = vmatmul.mubr.f32.gmra.mrb[0].mxu0 %v7722
    %v8079 = vpop.f32.mrb[0].mxu0
    %v8080 = vadd.f32 0.0, %v8079
    %v8081 = vpop.f32.mrb[0].mxu0
    %8082 = vmatprep.mubr.f32.mxu0 0.0
    %8083 = vmatmul.mubr.f32.gmra.mrb[0].mxu0 %v7725
    %v8084 = vpop.f32.mrb[0].mxu0
    %v8085 = vadd.f32 0.0, %v8084
    %v8086 = vpop.f32.mrb[0].mxu0
    %8087 = vmatprep.mubr.f32.mxu0 0.0
    %8088 = vmatmul.mubr.f32.gmra.mrb[0].mxu0 %v7728
    %v8089 = vpop.f32.mrb[0].mxu0
    %v8090 = vadd.f32 0.0, %v8089
    %v8091 = vpop.f32.mrb[0].mxu0
    %8092 = vmatprep.mubr.f32.mxu0 0.0
    %8093 = vmatmul.mubr.f32.gmra.mrb[0].mxu0 %v7731
    %v8094 = vpop.f32.mrb[0].mxu0
    %v8095 = vadd.f32 0.0, %v8094
    %v8096 = vpop.f32.mrb[0].mxu0
    %8097 = vmatprep.mubr.f32.mxu0 0.0
    %8098 = vmatmul.mubr.f32.gmra.mrb[0].mxu0 %v7734
    %v8099 = vpop.f32.mrb[0].mxu0
    %v8100 = vadd.f32 0.0, %v8099
    %v8101 = vpop.f32.mrb[0].mxu0
    %8102 = vmatprep.mubr.f32.mxu0 0.0
    %8103 = vmatmul.mubr.f32.gmra.mrb[0].mxu0 %v7737
    %v8104 = vpop.f32.mrb[0].mxu0
    %v8105 = vadd.f32 0.0, %v8104
    %v8106 = vpop.f32.mrb[0].mxu0
    %8107 = vmatprep.mubr.f32.mxu0 0.0
    %8108 = vmatmul.mubr.f32.gmra.mrb[0].mxu0 %v7740
    %v8109 = vpop.f32.mrb[0].mxu0
    %v8110 = vadd.f32 0.0, %v8109
    %v8111 = vpop.f32.mrb[0].mxu0
    %8112 = vmatprep.mubr.f32.mxu0 0.0
    %8113 = vmatmul.mubr.f32.gmra.mrb[0].mxu0 %v7743
    %v8114 = vpop.f32.mrb[0].mxu0
    %v8115 = vadd.f32 0.0, %v8114
    %v8116 = vpop.f32.mrb[0].mxu0
    %8117 = vmatprep.mubr.f32.mxu0 0.0
    %8118 = vmatmul.mubr.f32.gmra.mrb[0].mxu0 %v7746
    %v8119 = vpop.f32.mrb[0].mxu0
    %v8120 = vadd.f32 0.0, %v8119
    %v8121 = vpop.f32.mrb[0].mxu0
    %8122 = vmatprep.mubr.f32.mxu0 0.0
    %8123 = vmatmul.mubr.f32.gmra.mrb[0].mxu0 %v7749
    %v8124 = vpop.f32.mrb[0].mxu0
    %v8125 = vadd.f32 0.0, %v8124
    %v8126 = vpop.f32.mrb[0].mxu0
    %8127 = vmatprep.mubr.f32.mxu0 0.0
    %8128 = vmatmul.mubr.f32.gmra.mrb[0].mxu0 %v7752
    %v8129 = vpop.f32.mrb[0].mxu0
    %v8130 = vadd.f32 0.0, %v8129
    %v8131 = vpop.f32.mrb[0].mxu0
    %8132 = vmatprep.mubr.f32.mxu0 0.0
    %8133 = vmatmul.mubr.f32.gmra.mrb[0].mxu0 %v7755
    %v8134 = vpop.f32.mrb[0].mxu0
    %v8135 = vadd.f32 0.0, %v8134
    %v8136 = vpop.f32.mrb[0].mxu0
    %8137 = vmatprep.mubr.f32.mxu0 0.0
    %8138 = vmatmul.mubr.f32.gmra.mrb[0].mxu0 %v7758
    %v8139 = vpop.f32.mrb[0].mxu0
    %v8140 = vadd.f32 0.0, %v8139
    %v8141 = vpop.f32.mrb[0].mxu0
    %8142 = vmatprep.mubr.f32.mxu0 0.0
    %8143 = vmatmul.mubr.f32.gmra.mrb[0].mxu0 %v7761
    %v8144 = vpop.f32.mrb[0].mxu0
    %v8145 = vadd.f32 0.0, %v8144
    %v8146 = vpop.f32.mrb[0].mxu0
    %8147 = vmatprep.mubr.f32.mxu0 0.0
    %8148 = vmatmul.mubr.f32.gmra.mrb[0].mxu0 %v7764
    %v8149 = vpop.f32.mrb[0].mxu0
    %v8150 = vadd.f32 0.0, %v8149
    %v8151 = vpop.f32.mrb[0].mxu0
    %8152 = vmatprep.mubr.f32.mxu0 0.0
    %8153 = vmatmul.mubr.f32.gmra.mrb[0].mxu0 %v7767
    %v8154 = vpop.f32.mrb[0].mxu0
    %v8155 = vadd.f32 0.0, %v8154
    %v8156 = vpop.f32.mrb[0].mxu0
    %8157 = vmatprep.mubr.f32.mxu0 0.0
    %8158 = vmatmul.mubr.f32.gmra.mrb[0].mxu0 %v7770
    %v8159 = vpop.f32.mrb[0].mxu0
    %v8160 = vadd.f32 0.0, %v8159
    %v8161 = vpop.f32.mrb[0].mxu0
    %8162 = vmatprep.mubr.f32.mxu0 0.0
    %8163 = vmatmul.mubr.f32.gmra.mrb[0].mxu0 %v7773
    %v8164 = vpop.f32.mrb[0].mxu0
    %v8165 = vadd.f32 0.0, %v8164
    %v8166 = vpop.f32.mrb[0].mxu0
    %8167 = vmatprep.mubr.f32.mxu0 0.0
    %8168 = vmatmul.mubr.f32.gmra.mrb[0].mxu0 %v7776
    %v8169 = vpop.f32.mrb[0].mxu0
    %v8170 = vadd.f32 0.0, %v8169
    %v8171 = vpop.f32.mrb[0].mxu0
    %8172 = vmatprep.mubr.f32.mxu0 0.0
    %8173 = vmatmul.mubr.f32.gmra.mrb[0].mxu0 %v7779
    %v8174 = vpop.f32.mrb[0].mxu0
    %v8175 = vadd.f32 0.0, %v8174
    %v8176 = vpop.f32.mrb[0].mxu0
    %8177 = vmatprep.mubr.f32.mxu0 0.0
    %8178 = vmatmul.mubr.f32.gmra.mrb[0].mxu0 %v7782
    %v8179 = vpop.f32.mrb[0].mxu0
    %v8180 = vadd.f32 0.0, %v8179
    %v8181 = vpop.f32.mrb[0].mxu0
    %8182 = vmatprep.mubr.f32.mxu0 0.0
    %8183 = vmatmul.mubr.f32.gmra.mrb[0].mxu0 %v7785
    %v8184 = vpop.f32.mrb[0].mxu0
    %v8185 = vadd.f32 0.0, %v8184
    %v8186 = vpop.f32.mrb[0].mxu0
    %8187 = vmatprep.mubr.f32.mxu0 0.0
    %8188 = vmatmul.mubr.f32.gmra.mrb[0].mxu0 %v7788
    %v8189 = vpop.f32.mrb[0].mxu0
    %v8190 = vadd.f32 0.0, %v8189
    %v8191 = vpop.f32.mrb[0].mxu0
    %8192 = vmatprep.mubr.f32.mxu0 0.0
    %8193 = vmatmul.mubr.f32.gmra.mrb[0].mxu0 %v7791
    %v8194 = vpop.f32.mrb[0].mxu0
    %v8195 = vadd.f32 0.0, %v8194
    %v8196 = vpop.f32.mrb[0].mxu0
    %8197 = vmatprep.mubr.f32.mxu0 0.0
    %8198 = vmatmul.mubr.f32.gmra.mrb[0].mxu0 %v7794
    %v8199 = vpop.f32.mrb[0].mxu0
    %v8200 = vadd.f32 0.0, %v8199
    %v8201 = vpop.f32.mrb[0].mxu0
    %8202 = vmatprep.mubr.f32.mxu0 0.0
    %8203 = vmatmul.mubr.f32.gmra.mrb[0].mxu0 %v7797
    %v8204 = vpop.f32.mrb[0].mxu0
    %v8205 = vadd.f32 0.0, %v8204
    %v8206 = vpop.f32.mrb[0].mxu0
    %8207 = vmatprep.mubr.f32.mxu0 0.0
    %8208 = vmatmul.mubr.f32.gmra.mrb[0].mxu0 %v7800
    %v8209 = vpop.f32.mrb[0].mxu0
    %v8210 = vadd.f32 0.0, %v8209
    %v8211 = vpop.f32.mrb[0].mxu0
    %8212 = vmatprep.mubr.f32.mxu0 0.0
    %8213 = vmatmul.mubr.f32.gmra.mrb[0].mxu0 %v7803
    %v8214 = vpop.f32.mrb[0].mxu0
    %v8215 = vadd.f32 0.0, %v8214
    %v8216 = vpop.f32.mrb[0].mxu0
    %8217 = vmatprep.mubr.f32.mxu0 0.0
    %8218 = vmatmul.mubr.f32.gmra.mrb[0].mxu0 %v7806
    %v8219 = vpop.f32.mrb[0].mxu0
    %v8220 = vadd.f32 0.0, %v8219
    %v8221 = vpop.f32.mrb[0].mxu0
    %8222 = vmatprep.mubr.f32.mxu0 0.0
    %8223 = vmatmul.mubr.f32.gmra.mrb[0].mxu0 %v7809
    %v8224 = vpop.f32.mrb[0].mxu0
    %v8225 = vadd.f32 0.0, %v8224
    %v8226 = vpop.f32.mrb[0].mxu0
    %8227 = vmatprep.mubr.f32.mxu0 0.0
    %8228 = vmatmul.mubr.f32.gmra.mrb[0].mxu0 %v7812
    %v8229 = vpop.f32.mrb[0].mxu0
    %v8230 = vadd.f32 0.0, %v8229
    %v8231 = vpop.f32.mrb[0].mxu0
    %8232 = vmatprep.mubr.f32.mxu0 0.0
    %8233 = vmatmul.mubr.f32.gmra.mrb[0].mxu0 %v7815
    %v8234 = vpop.f32.mrb[0].mxu0
    %v8235 = vadd.f32 0.0, %v8234
    %v8236 = vpop.f32.mrb[0].mxu0
    %8237 = vmatprep.mubr.f32.mxu0 0.0
    %8238 = vmatmul.mubr.f32.gmra.mrb[0].mxu0 %v7818
    %v8239 = vpop.f32.mrb[0].mxu0
    %v8240 = vadd.f32 0.0, %v8239
    %v8241 = vpop.f32.mrb[0].mxu0
    %8242 = vmatprep.mubr.f32.mxu0 0.0
    %8243 = vmatmul.mubr.f32.gmra.mrb[0].mxu0 %v7821
    %v8244 = vpop.f32.mrb[0].mxu0
    %v8245 = vadd.f32 0.0, %v8244
    %v8246 = vpop.f32.mrb[0].mxu0
    %8247 = vmatprep.mubr.f32.mxu0 0.0
    %8248 = vmatmul.mubr.f32.gmra.mrb[0].mxu0 %v7824
    %v8249 = vpop.f32.mrb[0].mxu0
    %v8250 = vadd.f32 0.0, %v8249
    %v8251 = vpop.f32.mrb[0].mxu0
    %8252 = vmatprep.mubr.f32.mxu0 0.0
    %8253 = vmatmul.mubr.f32.gmra.mrb[0].mxu0 %v7827
    %v8254 = vpop.f32.mrb[0].mxu0
    %v8255 = vadd.f32 0.0, %v8254
    %v8256 = vpop.f32.mrb[0].mxu0
    %8257 = vmatprep.mubr.f32.mxu0 0.0
    %8258 = vmatmul.mubr.f32.gmra.mrb[0].mxu0 %v7830
    %v8259 = vpop.f32.mrb[0].mxu0
    %v8260 = vadd.f32 0.0, %v8259
    %v8261 = vpop.f32.mrb[0].mxu0
    %8262 = vmatprep.mubr.f32.mxu0 0.0
    %8263 = vmatmul.mubr.f32.gmra.mrb[0].mxu0 %v7833
    %v8264 = vpop.f32.mrb[0].mxu0
    %v8265 = vadd.f32 0.0, %v8264
    %v8266 = vpop.f32.mrb[0].mxu0
    %8267 = vmatprep.mubr.f32.mxu0 0.0
    %8268 = vmatmul.mubr.f32.gmra.mrb[0].mxu0 %v7836
    %v8269 = vpop.f32.mrb[0].mxu0
    %v8270 = vadd.f32 0.0, %v8269
    %v8271 = vpop.f32.mrb[0].mxu0
    %8272 = vmatprep.mubr.f32.mxu0 0.0
    %8273 = vmatmul.mubr.f32.gmra.mrb[0].mxu0 %v7839
    %v8274 = vpop.f32.mrb[0].mxu0
    %v8275 = vadd.f32 0.0, %v8274
    %v8276 = vpop.f32.mrb[0].mxu0
    %8277 = vmatprep.mubr.f32.mxu0 0.0
    %8278 = vmatmul.mubr.f32.gmra.mrb[0].mxu0 %v7842
    %v8279 = vpop.f32.mrb[0].mxu0
    %v8280 = vadd.f32 0.0, %v8279
    %v8281 = vpop.f32.mrb[0].mxu0
    %8282 = vmatprep.mubr.f32.mxu0 0.0
    %8283 = vmatmul.mubr.f32.gmra.mrb[0].mxu0 %v7845
    %v8284 = vpop.f32.mrb[0].mxu0
    %v8285 = vadd.f32 0.0, %v8284
    %v8286 = vpop.f32.mrb[0].mxu0
    %8287 = vmatprep.mubr.f32.mxu0 0.0
    %8288 = vmatmul.mubr.f32.gmra.mrb[0].mxu0 %v7848
    %v8289 = vpop.f32.mrb[0].mxu0
    %v8290 = vadd.f32 0.0, %v8289
    %v8291 = vpop.f32.mrb[0].mxu0
    %8292 = vmatprep.mubr.f32.mxu0 0.0
    %8293 = vmatmul.mubr.f32.gmra.mrb[0].mxu0 %v7851
    %v8294 = vpop.f32.mrb[0].mxu0
    %v8295 = vadd.f32 0.0, %v8294
    %v8296 = vpop.f32.mrb[0].mxu0
    %8297 = vmatprep.mubr.f32.mxu0 0.0
    %8298 = vmatmul.mubr.f32.gmra.mrb[0].mxu0 %v7854
    %v8299 = vpop.f32.mrb[0].mxu0
    %v8300 = vadd.f32 0.0, %v8299
    %v8301 = vpop.f32.mrb[0].mxu0
    %8302 = vmatprep.mubr.f32.mxu0 0.0
    %8303 = vmatmul.mubr.f32.gmra.mrb[0].mxu0 %v7857
    %v8304 = vpop.f32.mrb[0].mxu0
    %v8305 = vadd.f32 0.0, %v8304
    %v8306 = vpop.f32.mrb[0].mxu0
    %8307 = vmatprep.mubr.f32.mxu0 0.0
    %8308 = vmatmul.mubr.f32.gmra.mrb[0].mxu0 %v7860
    %v8309 = vpop.f32.mrb[0].mxu0
    %v8310 = vadd.f32 0.0, %v8309
    %v8311 = vpop.f32.mrb[0].mxu0
    %8312 = vmatprep.mubr.f32.mxu0 0.0
    %8313 = vmatmul.mubr.f32.gmra.mrb[0].mxu0 %v7863
    %v8314 = vpop.f32.mrb[0].mxu0
    %v8315 = vadd.f32 0.0, %v8314
    %v8316 = vpop.f32.mrb[0].mxu0
    %8317 = vmatprep.mubr.f32.mxu0 0.0
    %8318 = vmatmul.mubr.f32.gmra.mrb[0].mxu0 %v7866
    %v8319 = vpop.f32.mrb[0].mxu0
    %v8320 = vadd.f32 0.0, %v8319
    %v8321 = vpop.f32.mrb[0].mxu0
    %8322 = vmatprep.mubr.f32.mxu0 0.0
    %8323 = vmatmul.mubr.f32.gmra.mrb[0].mxu0 %v7869
    %v8324 = vpop.f32.mrb[0].mxu0
    %v8325 = vadd.f32 0.0, %v8324
    %v8326 = vpop.f32.mrb[0].mxu0
    %8327 = vmatprep.mubr.f32.mxu0 0.0
    %8328 = vmatmul.mubr.f32.gmra.mrb[0].mxu0 %v7872
    %v8329 = vpop.f32.mrb[0].mxu0
    %v8330 = vadd.f32 0.0, %v8329
    %v8331 = vpop.f32.mrb[0].mxu0
    %8332 = vmatprep.mubr.f32.mxu0 0.0
    %8333 = vmatmul.mubr.f32.gmra.mrb[0].mxu0 %v7875
    %v8334 = vpop.f32.mrb[0].mxu0
    %v8335 = vadd.f32 0.0, %v8334
    %v8336 = vpop.f32.mrb[0].mxu0
    %8337 = vmatprep.mubr.f32.mxu0 0.0
    %8338 = vmatmul.mubr.f32.gmra.mrb[0].mxu0 %v7878
    %v8339 = vpop.f32.mrb[0].mxu0
    %v8340 = vadd.f32 0.0, %v8339
    %v8341 = vpop.f32.mrb[0].mxu0
    %8342 = vmatprep.mubr.f32.mxu0 0.0
    %8343 = vmatmul.mubr.f32.gmra.mrb[0].mxu0 %v7881
    %v8344 = vpop.f32.mrb[0].mxu0
    %v8345 = vadd.f32 0.0, %v8344
    %v8346 = vpop.f32.mrb[0].mxu0
    %8347 = vmatprep.mubr.f32.mxu0 0.0
    %8348 = vmatmul.mubr.f32.gmra.mrb[0].mxu0 %v7884
    %v8349 = vpop.f32.mrb[0].mxu0
    %v8350 = vadd.f32 0.0, %v8349
    %v8351 = vpop.f32.mrb[0].mxu0
    %8352 = vmatprep.mubr.f32.mxu0 0.0
    %8353 = vmatmul.mubr.f32.gmra.mrb[0].mxu0 %v7887
    %v8354 = vpop.f32.mrb[0].mxu0
    %v8355 = vadd.f32 0.0, %v8354
    %v8356 = vpop.f32.mrb[0].mxu0
    %8357 = vmatprep.mubr.f32.mxu0 0.0
    %8358 = vmatmul.mubr.f32.gmra.mrb[0].mxu0 %v7890
    %v8359 = vpop.f32.mrb[0].mxu0
    %v8360 = vadd.f32 0.0, %v8359
    %v8361 = vpop.f32.mrb[0].mxu0
    %8362 = vmatprep.mubr.f32.mxu0 0.0
    %8363 = vmatmul.mubr.f32.gmra.mrb[0].mxu0 %v7893
    %v8364 = vpop.f32.mrb[0].mxu0
    %v8365 = vadd.f32 0.0, %v8364
    %v8366 = vpop.f32.mrb[0].mxu0
    %8367 = vmatprep.mubr.f32.mxu0 0.0
    %8368 = vmatmul.mubr.f32.gmra.mrb[0].mxu0 %v7896
    %v8369 = vpop.f32.mrb[0].mxu0
    %v8370 = vadd.f32 0.0, %v8369
    %v8371 = vpop.f32.mrb[0].mxu0
    %8372 = vmatprep.mubr.f32.mxu0 0.0
    %8373 = vmatmul.mubr.f32.gmra.mrb[0].mxu0 %v7899
    %v8374 = vpop.f32.mrb[0].mxu0
    %v8375 = vadd.f32 0.0, %v8374
    %v8376 = vpop.f32.mrb[0].mxu0
    %8377 = vmatprep.mubr.f32.mxu0 0.0
    %8378 = vmatmul.mubr.f32.gmra.mrb[0].mxu0 %v7902
    %v8379 = vpop.f32.mrb[0].mxu0
    %v8380 = vadd.f32 0.0, %v8379
    %v8381 = vpop.f32.mrb[0].mxu0
    %8382 = vmatprep.mubr.f32.mxu0 0.0
    %8383 = vmatmul.mubr.f32.gmra.mrb[0].mxu0 %v7905
    %v8384 = vpop.f32.mrb[0].mxu0
    %v8385 = vadd.f32 0.0, %v8384
    %v8386 = vpop.f32.mrb[0].mxu0
    %8387 = vmatprep.mubr.f32.mxu0 0.0
    %8388 = vmatmul.mubr.f32.gmra.mrb[0].mxu0 %v7908
    %v8389 = vpop.f32.mrb[0].mxu0
    %v8390 = vadd.f32 0.0, %v8389
    %v8391 = vpop.f32.mrb[0].mxu0
    %8392 = vmatprep.mubr.f32.mxu0 0.0
    %8393 = vmatmul.mubr.f32.gmra.mrb[0].mxu0 %v7911
    %v8394 = vpop.f32.mrb[0].mxu0
    %v8395 = vadd.f32 0.0, %v8394
    %v8396 = vpop.f32.mrb[0].mxu0
    %8397 = vmatprep.mubr.f32.mxu0 0.0
    %8398 = vmatmul.mubr.f32.gmra.mrb[0].mxu0 %v7914
    %v8399 = vpop.f32.mrb[0].mxu0
    %v8400 = vadd.f32 0.0, %v8399
    %v8401 = vpop.f32.mrb[0].mxu0
    %8402 = vmatprep.mubr.f32.mxu0 0.0
    %8403 = vmatmul.mubr.f32.gmra.mrb[0].mxu0 %v7917
    %v8404 = vpop.f32.mrb[0].mxu0
    %v8405 = vadd.f32 0.0, %v8404
    %v8406 = vpop.f32.mrb[0].mxu0
    %8407 = vmatprep.mubr.f32.mxu0 0.0
    %8408 = vmatmul.mubr.f32.gmra.mrb[0].mxu0 %v7920
    %v8409 = vpop.f32.mrb[0].mxu0
    %v8410 = vadd.f32 0.0, %v8409
    %v8411 = vpop.f32.mrb[0].mxu0
    %8412 = vmatprep.mubr.f32.mxu0 0.0
    %8413 = vmatmul.mubr.f32.gmra.mrb[0].mxu0 %v7923
    %v8414 = vpop.f32.mrb[0].mxu0
    %v8415 = vadd.f32 0.0, %v8414
    %v8416 = vpop.f32.mrb[0].mxu0
    %8417 = vmatprep.mubr.f32.mxu0 0.0
    %8418 = vmatmul.mubr.f32.gmra.mrb[0].mxu0 %v7926
    %v8419 = vpop.f32.mrb[0].mxu0
    %v8420 = vadd.f32 0.0, %v8419
    %v8421 = vpop.f32.mrb[0].mxu0
    %8422 = vmatprep.mubr.f32.mxu0 0.0
    %8423 = vmatmul.mubr.f32.gmra.mrb[0].mxu0 %v7929
    %v8424 = vpop.f32.mrb[0].mxu0
    %v8425 = vadd.f32 0.0, %v8424
    %v8426 = vpop.f32.mrb[0].mxu0
    %8427 = vmatprep.mubr.f32.mxu0 0.0
    %8428 = vmatmul.mubr.f32.gmra.mrb[0].mxu0 %v7932
    %v8429 = vpop.f32.mrb[0].mxu0
    %v8430 = vadd.f32 0.0, %v8429
    %v8431 = vpop.f32.mrb[0].mxu0
    %8432 = vmatprep.mubr.f32.mxu0 0.0
    %8433 = vmatmul.mubr.f32.gmra.mrb[0].mxu0 %v7935
    %v8434 = vpop.f32.mrb[0].mxu0
    %v8435 = vadd.f32 0.0, %v8434
    %v8436 = vpop.f32.mrb[0].mxu0
    %8437 = vmatprep.mubr.f32.mxu0 0.0
    %8438 = vmatmul.mubr.f32.gmra.mrb[0].mxu0 %v7938
    %v8439 = vpop.f32.mrb[0].mxu0
    %v8440 = vadd.f32 0.0, %v8439
    %v8441 = vpop.f32.mrb[0].mxu0
    %8442 = vmatprep.mubr.f32.mxu0 0.0
    %8443 = vmatmul.mubr.f32.gmra.mrb[0].mxu0 %v7941
    %v8444 = vpop.f32.mrb[0].mxu0
    %v8445 = vadd.f32 0.0, %v8444
    %v8446 = vpop.f32.mrb[0].mxu0
    %8447 = vmatprep.mubr.f32.mxu0 0.0
    %8448 = vmatmul.mubr.f32.gmra.mrb[0].mxu0 %v7944
    %v8449 = vpop.f32.mrb[0].mxu0
    %v8450 = vadd.f32 0.0, %v8449
    %v8451 = vpop.f32.mrb[0].mxu0
    %8452 = vmatprep.mubr.f32.mxu0 0.0
    %8453 = vmatmul.mubr.f32.gmra.mrb[0].mxu0 %v7947
    %v8454 = vpop.f32.mrb[0].mxu0
    %v8455 = vadd.f32 0.0, %v8454
    %v8456 = vpop.f32.mrb[0].mxu0
    %8457 = vmatprep.mubr.f32.mxu0 0.0
    %8458 = vmatmul.mubr.f32.gmra.mrb[0].mxu0 %v7950
    %v8459 = vpop.f32.mrb[0].mxu0
    %v8460 = vadd.f32 0.0, %v8459
    %v8461 = vpop.f32.mrb[0].mxu0
    %8462 = vmatprep.mubr.f32.mxu0 0.0
    %8463 = vmatmul.mubr.f32.gmra.mrb[0].mxu0 %v7953
    %v8464 = vpop.f32.mrb[0].mxu0
    %v8465 = vadd.f32 0.0, %v8464
    %v8466 = vpop.f32.mrb[0].mxu0
    %8467 = vmatprep.mubr.f32.mxu0 0.0
    %8468 = vmatmul.mubr.f32.gmra.mrb[0].mxu0 %v7956
    %v8469 = vpop.f32.mrb[0].mxu0
    %v8470 = vadd.f32 0.0, %v8469
    %v8471 = vpop.f32.mrb[0].mxu0
    %8472 = vdwg.mxu0
    %v8473 = vadd.f32 %v7506, %v8025
    %v8474 = vadd.f32 %v7507, %v8030
    %v8475 = vadd.f32 %v7508, %v8035
    %v8476 = vadd.f32 %v7509, %v8040
    %v8477 = vadd.f32 %v7510, %v8045
    %v8478 = vadd.f32 %v7511, %v8050
    %v8479 = vadd.f32 %v7512, %v8055
    %v8480 = vadd.f32 %v7513, %v8060
    %v8481 = vadd.f32 %v7514, %v8065
    %v8482 = vadd.f32 %v7515, %v8070
    %v8483 = vadd.f32 %v7516, %v8075
    %v8484 = vadd.f32 %v7517, %v8080
    %v8485 = vadd.f32 %v7518, %v8085
    %v8486 = vadd.f32 %v7519, %v8090
    %v8487 = vadd.f32 %v7520, %v8095
    %v8488 = vadd.f32 %v7521, %v8100
    %v8489 = vadd.f32 %v7522, %v8105
    %v8490 = vadd.f32 %v7523, %v8110
    %v8491 = vadd.f32 %v7524, %v8115
    %v8492 = vadd.f32 %v7525, %v8120
    %v8493 = vadd.f32 %v7526, %v8125
    %v8494 = vadd.f32 %v7527, %v8130
    %v8495 = vadd.f32 %v7528, %v8135
    %v8496 = vadd.f32 %v7529, %v8140
    %v8497 = vadd.f32 %v7530, %v8145
    %v8498 = vadd.f32 %v7531, %v8150
    %v8499 = vadd.f32 %v7532, %v8155
    %v8500 = vadd.f32 %v7533, %v8160
    %v8501 = vadd.f32 %v7534, %v8165
    %v8502 = vadd.f32 %v7535, %v8170
    %v8503 = vadd.f32 %v7536, %v8175
    %v8504 = vadd.f32 %v7537, %v8180
    %v8505 = vadd.f32 %v7538, %v8185
    %v8506 = vadd.f32 %v7539, %v8190
    %v8507 = vadd.f32 %v7540, %v8195
    %v8508 = vadd.f32 %v7541, %v8200
    %v8509 = vadd.f32 %v7542, %v8205
    %v8510 = vadd.f32 %v7543, %v8210
    %v8511 = vadd.f32 %v7544, %v8215
    %v8512 = vadd.f32 %v7545, %v8220
    %v8513 = vadd.f32 %v7546, %v8225
    %v8514 = vadd.f32 %v7547, %v8230
    %v8515 = vadd.f32 %v7548, %v8235
    %v8516 = vadd.f32 %v7549, %v8240
    %v8517 = vadd.f32 %v7550, %v8245
    %v8518 = vadd.f32 %v7551, %v8250
    %v8519 = vadd.f32 %v7552, %v8255
    %v8520 = vadd.f32 %v7553, %v8260
    %v8521 = vadd.f32 %v7554, %v8265
    %v8522 = vadd.f32 %v7555, %v8270
    %v8523 = vadd.f32 %v7556, %v8275
    %v8524 = vadd.f32 %v7557, %v8280
    %v8525 = vadd.f32 %v7558, %v8285
    %v8526 = vadd.f32 %v7559, %v8290
    %v8527 = vadd.f32 %v7560, %v8295
    %v8528 = vadd.f32 %v7561, %v8300
    %v8529 = vadd.f32 %v7562, %v8305
    %v8530 = vadd.f32 %v7563, %v8310
    %v8531 = vadd.f32 %v7564, %v8315
    %v8532 = vadd.f32 %v7565, %v8320
    %v8533 = vadd.f32 %v7566, %v8325
    %v8534 = vadd.f32 %v7567, %v8330
    %v8535 = vadd.f32 %v7568, %v8335
    %v8536 = vadd.f32 %v7569, %v8340
    %v8537 = vadd.f32 %v7570, %v8345
    %v8538 = vadd.f32 %v7571, %v8350
    %v8539 = vadd.f32 %v7572, %v8355
    %v8540 = vadd.f32 %v7573, %v8360
    %v8541 = vadd.f32 %v7574, %v8365
    %v8542 = vadd.f32 %v7575, %v8370
    %v8543 = vadd.f32 %v7576, %v8375
    %v8544 = vadd.f32 %v7577, %v8380
    %v8545 = vadd.f32 %v7578, %v8385
    %v8546 = vadd.f32 %v7579, %v8390
    %v8547 = vadd.f32 %v7580, %v8395
    %v8548 = vadd.f32 %v7581, %v8400
    %v8549 = vadd.f32 %v7582, %v8405
    %v8550 = vadd.f32 %v7583, %v8410
    %v8551 = vadd.f32 %v7584, %v8415
    %v8552 = vadd.f32 %v7585, %v8420
    %v8553 = vadd.f32 %v7586, %v8425
    %v8554 = vadd.f32 %v7587, %v8430
    %v8555 = vadd.f32 %v7588, %v8435
    %v8556 = vadd.f32 %v7589, %v8440
    %v8557 = vadd.f32 %v7590, %v8445
    %v8558 = vadd.f32 %v7591, %v8450
    %v8559 = vadd.f32 %v7592, %v8455
    %v8560 = vadd.f32 %v7593, %v8460
    %v8561 = vadd.f32 %v7594, %v8465
    %v8562 = vadd.f32 %v7595, %v8470
    %v8563 = vld [vmem:[%s2] sm:$0x1]
    %v8565 = vlaneseq
    %v8566 = vshrl.u32 %v8565, 7
    %v8567 = vsub.s32 0, %v8566
    %v8568 = vrot.slane %v8563, %v8567
    %v8570 = vadd.f32 %v8473, %v8568
    %v8571 = vadd.f32 %v8474, %v8568
    %v8572 = vadd.f32 %v8475, %v8568
    %v8573 = vadd.f32 %v8476, %v8568
    %v8574 = vadd.f32 %v8477, %v8568
    %v8575 = vadd.f32 %v8478, %v8568
    %v8576 = vadd.f32 %v8479, %v8568
    %v8577 = vadd.f32 %v8480, %v8568
    %v8578 = vadd.f32 %v8481, %v8568
    %v8579 = vadd.f32 %v8482, %v8568
    %v8580 = vadd.f32 %v8483, %v8568
    %v8581 = vadd.f32 %v8484, %v8568
    %v8582 = vadd.f32 %v8485, %v8568
    %v8583 = vadd.f32 %v8486, %v8568
    %v8584 = vadd.f32 %v8487, %v8568
    %v8585 = vadd.f32 %v8488, %v8568
    %v8586 = vadd.f32 %v8489, %v8568
    %v8587 = vadd.f32 %v8490, %v8568
    %v8588 = vadd.f32 %v8491, %v8568
    %v8589 = vadd.f32 %v8492, %v8568
    %v8590 = vadd.f32 %v8493, %v8568
    %v8591 = vadd.f32 %v8494, %v8568
    %v8592 = vadd.f32 %v8495, %v8568
    %v8593 = vadd.f32 %v8496, %v8568
    %v8594 = vadd.f32 %v8497, %v8568
    %v8595 = vadd.f32 %v8498, %v8568
    %v8596 = vadd.f32 %v8499, %v8568
    %v8597 = vadd.f32 %v8500, %v8568
    %v8598 = vadd.f32 %v8501, %v8568
    %v8599 = vadd.f32 %v8502, %v8568
    %v8600 = vadd.f32 %v8503, %v8568
    %v8601 = vadd.f32 %v8504, %v8568
    %v8602 = vadd.f32 %v8505, %v8568
    %v8603 = vadd.f32 %v8506, %v8568
    %v8604 = vadd.f32 %v8507, %v8568
    %v8605 = vadd.f32 %v8508, %v8568
    %v8606 = vadd.f32 %v8509, %v8568
    %v8607 = vadd.f32 %v8510, %v8568
    %v8608 = vadd.f32 %v8511, %v8568
    %v8609 = vadd.f32 %v8512, %v8568
    %v8610 = vadd.f32 %v8513, %v8568
    %v8611 = vadd.f32 %v8514, %v8568
    %v8612 = vadd.f32 %v8515, %v8568
    %v8613 = vadd.f32 %v8516, %v8568
    %v8614 = vadd.f32 %v8517, %v8568
    %v8615 = vadd.f32 %v8518, %v8568
    %v8616 = vadd.f32 %v8519, %v8568
    %v8617 = vadd.f32 %v8520, %v8568
    %v8618 = vadd.f32 %v8521, %v8568
    %v8619 = vadd.f32 %v8522, %v8568
    %v8620 = vadd.f32 %v8523, %v8568
    %v8621 = vadd.f32 %v8524, %v8568
    %v8622 = vadd.f32 %v8525, %v8568
    %v8623 = vadd.f32 %v8526, %v8568
    %v8624 = vadd.f32 %v8527, %v8568
    %v8625 = vadd.f32 %v8528, %v8568
    %v8626 = vadd.f32 %v8529, %v8568
    %v8627 = vadd.f32 %v8530, %v8568
    %v8628 = vadd.f32 %v8531, %v8568
    %v8629 = vadd.f32 %v8532, %v8568
    %v8630 = vadd.f32 %v8533, %v8568
    %v8631 = vadd.f32 %v8534, %v8568
    %v8632 = vadd.f32 %v8535, %v8568
    %v8633 = vadd.f32 %v8536, %v8568
    %v8634 = vadd.f32 %v8537, %v8568
    %v8635 = vadd.f32 %v8538, %v8568
    %v8636 = vadd.f32 %v8539, %v8568
    %v8637 = vadd.f32 %v8540, %v8568
    %v8638 = vadd.f32 %v8541, %v8568
    %v8639 = vadd.f32 %v8542, %v8568
    %v8640 = vadd.f32 %v8543, %v8568
    %v8641 = vadd.f32 %v8544, %v8568
    %v8642 = vadd.f32 %v8545, %v8568
    %v8643 = vadd.f32 %v8546, %v8568
    %v8644 = vadd.f32 %v8547, %v8568
    %v8645 = vadd.f32 %v8548, %v8568
    %v8646 = vadd.f32 %v8549, %v8568
    %v8647 = vadd.f32 %v8550, %v8568
    %v8648 = vadd.f32 %v8551, %v8568
    %v8649 = vadd.f32 %v8552, %v8568
    %v8650 = vadd.f32 %v8553, %v8568
    %v8651 = vadd.f32 %v8554, %v8568
    %v8652 = vadd.f32 %v8555, %v8568
    %v8653 = vadd.f32 %v8556, %v8568
    %v8654 = vadd.f32 %v8557, %v8568
    %v8655 = vadd.f32 %v8558, %v8568
    %v8656 = vadd.f32 %v8559, %v8568
    %v8657 = vadd.f32 %v8560, %v8568
    %v8658 = vadd.f32 %v8561, %v8568
    %v8659 = vadd.f32 %v8562, %v8568
    %v8660 = vmax.f32 %v8570, 0.0
    %v8661 = vmax.f32 %v8571, 0.0
    %v8662 = vmax.f32 %v8572, 0.0
    %v8663 = vmax.f32 %v8573, 0.0
    %v8664 = vmax.f32 %v8574, 0.0
    %v8665 = vmax.f32 %v8575, 0.0
    %v8666 = vmax.f32 %v8576, 0.0
    %v8667 = vmax.f32 %v8577, 0.0
    %v8668 = vmax.f32 %v8578, 0.0
    %v8669 = vmax.f32 %v8579, 0.0
    %v8670 = vmax.f32 %v8580, 0.0
    %v8671 = vmax.f32 %v8581, 0.0
    %v8672 = vmax.f32 %v8582, 0.0
    %v8673 = vmax.f32 %v8583, 0.0
    %v8674 = vmax.f32 %v8584, 0.0
    %v8675 = vmax.f32 %v8585, 0.0
    %v8676 = vmax.f32 %v8586, 0.0
    %v8677 = vmax.f32 %v8587, 0.0
    %v8678 = vmax.f32 %v8588, 0.0
    %v8679 = vmax.f32 %v8589, 0.0
    %v8680 = vmax.f32 %v8590, 0.0
    %v8681 = vmax.f32 %v8591, 0.0
    %v8682 = vmax.f32 %v8592, 0.0
    %v8683 = vmax.f32 %v8593, 0.0
    %v8684 = vmax.f32 %v8594, 0.0
    %v8685 = vmax.f32 %v8595, 0.0
    %v8686 = vmax.f32 %v8596, 0.0
    %v8687 = vmax.f32 %v8597, 0.0
    %v8688 = vmax.f32 %v8598, 0.0
    %v8689 = vmax.f32 %v8599, 0.0
    %v8690 = vmax.f32 %v8600, 0.0
    %v8691 = vmax.f32 %v8601, 0.0
    %v8692 = vmax.f32 %v8602, 0.0
    %v8693 = vmax.f32 %v8603, 0.0
    %v8694 = vmax.f32 %v8604, 0.0
    %v8695 = vmax.f32 %v8605, 0.0
    %v8696 = vmax.f32 %v8606, 0.0
    %v8697 = vmax.f32 %v8607, 0.0
    %v8698 = vmax.f32 %v8608, 0.0
    %v8699 = vmax.f32 %v8609, 0.0
    %v8700 = vmax.f32 %v8610, 0.0
    %v8701 = vmax.f32 %v8611, 0.0
    %v8702 = vmax.f32 %v8612, 0.0
    %v8703 = vmax.f32 %v8613, 0.0
    %v8704 = vmax.f32 %v8614, 0.0
    %v8705 = vmax.f32 %v8615, 0.0
    %v8706 = vmax.f32 %v8616, 0.0
    %v8707 = vmax.f32 %v8617, 0.0
    %v8708 = vmax.f32 %v8618, 0.0
    %v8709 = vmax.f32 %v8619, 0.0
    %v8710 = vmax.f32 %v8620, 0.0
    %v8711 = vmax.f32 %v8621, 0.0
    %v8712 = vmax.f32 %v8622, 0.0
    %v8713 = vmax.f32 %v8623, 0.0
    %v8714 = vmax.f32 %v8624, 0.0
    %v8715 = vmax.f32 %v8625, 0.0
    %v8716 = vmax.f32 %v8626, 0.0
    %v8717 = vmax.f32 %v8627, 0.0
    %v8718 = vmax.f32 %v8628, 0.0
    %v8719 = vmax.f32 %v8629, 0.0
    %v8720 = vmax.f32 %v8630, 0.0
    %v8721 = vmax.f32 %v8631, 0.0
    %v8722 = vmax.f32 %v8632, 0.0
    %v8723 = vmax.f32 %v8633, 0.0
    %v8724 = vmax.f32 %v8634, 0.0
    %v8725 = vmax.f32 %v8635, 0.0
    %v8726 = vmax.f32 %v8636, 0.0
    %v8727 = vmax.f32 %v8637, 0.0
    %v8728 = vmax.f32 %v8638, 0.0
    %v8729 = vmax.f32 %v8639, 0.0
    %v8730 = vmax.f32 %v8640, 0.0
    %v8731 = vmax.f32 %v8641, 0.0
    %v8732 = vmax.f32 %v8642, 0.0
    %v8733 = vmax.f32 %v8643, 0.0
    %v8734 = vmax.f32 %v8644, 0.0
    %v8735 = vmax.f32 %v8645, 0.0
    %v8736 = vmax.f32 %v8646, 0.0
    %v8737 = vmax.f32 %v8647, 0.0
    %v8738 = vmax.f32 %v8648, 0.0
    %v8739 = vmax.f32 %v8649, 0.0
    %v8740 = vmax.f32 %v8650, 0.0
    %v8741 = vmax.f32 %v8651, 0.0
    %v8742 = vmax.f32 %v8652, 0.0
    %v8743 = vmax.f32 %v8653, 0.0
    %v8744 = vmax.f32 %v8654, 0.0
    %v8745 = vmax.f32 %v8655, 0.0
    %v8746 = vmax.f32 %v8656, 0.0
    %v8747 = vmax.f32 %v8657, 0.0
    %v8748 = vmax.f32 %v8658, 0.0
    %v8749 = vmax.f32 %v8659, 0.0
    %v8750 = vld [vmem:[%s3] sm:$0xff]
    %v8751 = vld [vmem:[%s3 + $0x8] sm:$0xff]
    %v8752 = vld [vmem:[%s3 + $0x10] sm:$0xff]
    %v8753 = vld [vmem:[%s3 + $0x18] sm:$0xff]
    %v8754 = vld [vmem:[%s3 + $0x20] sm:$0xff]
    %v8755 = vld [vmem:[%s3 + $0x28] sm:$0xff]
    %v8756 = vld [vmem:[%s3 + $0x30] sm:$0xff]
    %v8757 = vld [vmem:[%s3 + $0x38] sm:$0xff]
    %v8758 = vld [vmem:[%s3 + $0x40] sm:$0xff]
    %v8759 = vld [vmem:[%s3 + $0x48] sm:$0xff]
    %v8760 = vld [vmem:[%s3 + $0x50] sm:$0xff]
    %v8761 = vld [vmem:[%s3 + $0x58] sm:$0xff]
    %v8762 = vld [vmem:[%s3 + $0x60] sm:$0xff]
    %v8763 = vld [vmem:[%s3 + $0x68] sm:$0xff]
    %v8764 = vld [vmem:[%s3 + $0x70] sm:$0xff]
    %v8765 = vld [vmem:[%s3 + $0x78] sm:$0xff]
    %v8766 = vld [vmem:[%s3 + $0x80] sm:$0xff]
    %v8767 = vld [vmem:[%s3 + $0x88] sm:$0xff]
    %v8768 = vld [vmem:[%s3 + $0x90] sm:$0xff]
    %v8769 = vld [vmem:[%s3 + $0x98] sm:$0xff]
    %v8770 = vld [vmem:[%s3 + $0xa0] sm:$0xff]
    %v8771 = vld [vmem:[%s3 + $0xa8] sm:$0xff]
    %v8772 = vld [vmem:[%s3 + $0xb0] sm:$0xff]
    %v8773 = vld [vmem:[%s3 + $0xb8] sm:$0xff]
    %v8774 = vld [vmem:[%s3 + $0xc0] sm:$0xff]
    %v8775 = vld [vmem:[%s3 + $0xc8] sm:$0xff]
    %v8776 = vld [vmem:[%s3 + $0xd0] sm:$0xff]
    %v8777 = vld [vmem:[%s3 + $0xd8] sm:$0xff]
    %v8778 = vld [vmem:[%s3 + $0xe0] sm:$0xff]
    %v8779 = vld [vmem:[%s3 + $0xe8] sm:$0xff]
    %v8780 = vld [vmem:[%s3 + $0xf0] sm:$0xff]
    %v8781 = vld [vmem:[%s3 + $0xf8] sm:$0xff]
    %v8782 = vld [vmem:[%s3 + $0x100] sm:$0xff]
    %v8783 = vld [vmem:[%s3 + $0x108] sm:$0xff]
    %v8784 = vld [vmem:[%s3 + $0x110] sm:$0xff]
    %v8785 = vld [vmem:[%s3 + $0x118] sm:$0xff]
    %v8786 = vld [vmem:[%s3 + $0x120] sm:$0xff]
    %v8787 = vld [vmem:[%s3 + $0x128] sm:$0xff]
    %v8788 = vld [vmem:[%s3 + $0x130] sm:$0xff]
    %v8789 = vld [vmem:[%s3 + $0x138] sm:$0xff]
    %v8790 = vld [vmem:[%s3 + $0x140] sm:$0xff]
    %v8791 = vld [vmem:[%s3 + $0x148] sm:$0xff]
    %v8792 = vld [vmem:[%s3 + $0x150] sm:$0xff]
    %v8793 = vld [vmem:[%s3 + $0x158] sm:$0xff]
    %v8794 = vld [vmem:[%s3 + $0x160] sm:$0xff]
    %v8795 = vld [vmem:[%s3 + $0x168] sm:$0xff]
    %v8796 = vld [vmem:[%s3 + $0x170] sm:$0xff]
    %v8797 = vld [vmem:[%s3 + $0x178] sm:$0xff]
    %v8798 = vld [vmem:[%s3 + $0x180] sm:$0xff]
    %v8799 = vld [vmem:[%s3 + $0x188] sm:$0xff]
    %v8800 = vld [vmem:[%s3 + $0x190] sm:$0xff]
    %v8801 = vld [vmem:[%s3 + $0x198] sm:$0xff]
    %v8802 = vld [vmem:[%s3 + $0x1a0] sm:$0xff]
    %v8803 = vld [vmem:[%s3 + $0x1a8] sm:$0xff]
    %v8804 = vld [vmem:[%s3 + $0x1b0] sm:$0xff]
    %v8805 = vld [vmem:[%s3 + $0x1b8] sm:$0xff]
    %v8806 = vld [vmem:[%s3 + $0x1c0] sm:$0xff]
    %v8807 = vld [vmem:[%s3 + $0x1c8] sm:$0xff]
    %v8808 = vld [vmem:[%s3 + $0x1d0] sm:$0xff]
    %v8809 = vld [vmem:[%s3 + $0x1d8] sm:$0xff]
    %v8810 = vld [vmem:[%s3 + $0x1e0] sm:$0xff]
    %v8811 = vld [vmem:[%s3 + $0x1e8] sm:$0xff]
    %v8812 = vld [vmem:[%s3 + $0x1f0] sm:$0xff]
    %v8813 = vld [vmem:[%s3 + $0x1f8] sm:$0xff]
    %v8814 = vld [vmem:[%s3 + $0x200] sm:$0xff]
    %v8815 = vld [vmem:[%s3 + $0x208] sm:$0xff]
    %v8816 = vld [vmem:[%s3 + $0x210] sm:$0xff]
    %v8817 = vld [vmem:[%s3 + $0x218] sm:$0xff]
    %v8818 = vld [vmem:[%s3 + $0x220] sm:$0xff]
    %v8819 = vld [vmem:[%s3 + $0x228] sm:$0xff]
    %v8820 = vld [vmem:[%s3 + $0x230] sm:$0xff]
    %v8821 = vld [vmem:[%s3 + $0x238] sm:$0xff]
    %v8822 = vld [vmem:[%s3 + $0x240] sm:$0xff]
    %v8823 = vld [vmem:[%s3 + $0x248] sm:$0xff]
    %v8824 = vld [vmem:[%s3 + $0x250] sm:$0xff]
    %v8825 = vld [vmem:[%s3 + $0x258] sm:$0xff]
    %v8826 = vld [vmem:[%s3 + $0x260] sm:$0xff]
    %v8827 = vld [vmem:[%s3 + $0x268] sm:$0xff]
    %v8828 = vld [vmem:[%s3 + $0x270] sm:$0xff]
    %v8829 = vld [vmem:[%s3 + $0x278] sm:$0xff]
    %v8830 = vld [vmem:[%s3 + $0x280] sm:$0xff]
    %v8831 = vld [vmem:[%s3 + $0x288] sm:$0xff]
    %v8832 = vld [vmem:[%s3 + $0x290] sm:$0xff]
    %v8833 = vld [vmem:[%s3 + $0x298] sm:$0xff]
    %v8834 = vld [vmem:[%s3 + $0x2a0] sm:$0xff]
    %v8835 = vld [vmem:[%s3 + $0x2a8] sm:$0xff]
    %v8836 = vld [vmem:[%s3 + $0x2b0] sm:$0xff]
    %v8837 = vld [vmem:[%s3 + $0x2b8] sm:$0xff]
    %v8838 = vld [vmem:[%s3 + $0x2c0] sm:$0xff]
    %v8839 = vld [vmem:[%s3 + $0x2c8] sm:$0xff]
    %8841 = vset.pattern.permute.xlu0 0
    %8842 = vperm.xlu0 %8841, %v8750
    %v8843 = vpop.permute.xlu0 %8842
    %8846 = vset.pattern.permute.xlu0 0
    %8847 = vperm.xlu0 %8846, %v8751
    %v8848 = vpop.permute.xlu0 %8847
    %8851 = vset.pattern.permute.xlu0 0
    %8852 = vperm.xlu0 %8851, %v8752
    %v8853 = vpop.permute.xlu0 %8852
    %8856 = vset.pattern.permute.xlu0 0
    %8857 = vperm.xlu0 %8856, %v8753
    %v8858 = vpop.permute.xlu0 %8857
    %8861 = vset.pattern.permute.xlu0 0
    %8862 = vperm.xlu0 %8861, %v8754
    %v8863 = vpop.permute.xlu0 %8862
    %8866 = vset.pattern.permute.xlu0 0
    %8867 = vperm.xlu0 %8866, %v8755
    %v8868 = vpop.permute.xlu0 %8867
    %8871 = vset.pattern.permute.xlu0 0
    %8872 = vperm.xlu0 %8871, %v8756
    %v8873 = vpop.permute.xlu0 %8872
    %8876 = vset.pattern.permute.xlu0 0
    %8877 = vperm.xlu0 %8876, %v8757
    %v8878 = vpop.permute.xlu0 %8877
    %8881 = vset.pattern.permute.xlu0 0
    %8882 = vperm.xlu0 %8881, %v8758
    %v8883 = vpop.permute.xlu0 %8882
    %8886 = vset.pattern.permute.xlu0 0
    %8887 = vperm.xlu0 %8886, %v8759
    %v8888 = vpop.permute.xlu0 %8887
    %8891 = vset.pattern.permute.xlu0 0
    %8892 = vperm.xlu0 %8891, %v8760
    %v8893 = vpop.permute.xlu0 %8892
    %8896 = vset.pattern.permute.xlu0 0
    %8897 = vperm.xlu0 %8896, %v8761
    %v8898 = vpop.permute.xlu0 %8897
    %8901 = vset.pattern.permute.xlu0 0
    %8902 = vperm.xlu0 %8901, %v8762
    %v8903 = vpop.permute.xlu0 %8902
    %8906 = vset.pattern.permute.xlu0 0
    %8907 = vperm.xlu0 %8906, %v8763
    %v8908 = vpop.permute.xlu0 %8907
    %8911 = vset.pattern.permute.xlu0 0
    %8912 = vperm.xlu0 %8911, %v8764
    %v8913 = vpop.permute.xlu0 %8912
    %8916 = vset.pattern.permute.xlu0 0
    %8917 = vperm.xlu0 %8916, %v8765
    %v8918 = vpop.permute.xlu0 %8917
    %8921 = vset.pattern.permute.xlu0 0
    %8922 = vperm.xlu0 %8921, %v8766
    %v8923 = vpop.permute.xlu0 %8922
    %8926 = vset.pattern.permute.xlu0 0
    %8927 = vperm.xlu0 %8926, %v8767
    %v8928 = vpop.permute.xlu0 %8927
    %8931 = vset.pattern.permute.xlu0 0
    %8932 = vperm.xlu0 %8931, %v8768
    %v8933 = vpop.permute.xlu0 %8932
    %8936 = vset.pattern.permute.xlu0 0
    %8937 = vperm.xlu0 %8936, %v8769
    %v8938 = vpop.permute.xlu0 %8937
    %8941 = vset.pattern.permute.xlu0 0
    %8942 = vperm.xlu0 %8941, %v8770
    %v8943 = vpop.permute.xlu0 %8942
    %8946 = vset.pattern.permute.xlu0 0
    %8947 = vperm.xlu0 %8946, %v8771
    %v8948 = vpop.permute.xlu0 %8947
    %8951 = vset.pattern.permute.xlu0 0
    %8952 = vperm.xlu0 %8951, %v8772
    %v8953 = vpop.permute.xlu0 %8952
    %8956 = vset.pattern.permute.xlu0 0
    %8957 = vperm.xlu0 %8956, %v8773
    %v8958 = vpop.permute.xlu0 %8957
    %8961 = vset.pattern.permute.xlu0 0
    %8962 = vperm.xlu0 %8961, %v8774
    %v8963 = vpop.permute.xlu0 %8962
    %8966 = vset.pattern.permute.xlu0 0
    %8967 = vperm.xlu0 %8966, %v8775
    %v8968 = vpop.permute.xlu0 %8967
    %8971 = vset.pattern.permute.xlu0 0
    %8972 = vperm.xlu0 %8971, %v8776
    %v8973 = vpop.permute.xlu0 %8972
    %8976 = vset.pattern.permute.xlu0 0
    %8977 = vperm.xlu0 %8976, %v8777
    %v8978 = vpop.permute.xlu0 %8977
    %8981 = vset.pattern.permute.xlu0 0
    %8982 = vperm.xlu0 %8981, %v8778
    %v8983 = vpop.permute.xlu0 %8982
    %8986 = vset.pattern.permute.xlu0 0
    %8987 = vperm.xlu0 %8986, %v8779
    %v8988 = vpop.permute.xlu0 %8987
    %8991 = vset.pattern.permute.xlu0 0
    %8992 = vperm.xlu0 %8991, %v8780
    %v8993 = vpop.permute.xlu0 %8992
    %8996 = vset.pattern.permute.xlu0 0
    %8997 = vperm.xlu0 %8996, %v8781
    %v8998 = vpop.permute.xlu0 %8997
    %9001 = vset.pattern.permute.xlu0 0
    %9002 = vperm.xlu0 %9001, %v8782
    %v9003 = vpop.permute.xlu0 %9002
    %9006 = vset.pattern.permute.xlu0 0
    %9007 = vperm.xlu0 %9006, %v8783
    %v9008 = vpop.permute.xlu0 %9007
    %9011 = vset.pattern.permute.xlu0 0
    %9012 = vperm.xlu0 %9011, %v8784
    %v9013 = vpop.permute.xlu0 %9012
    %9016 = vset.pattern.permute.xlu0 0
    %9017 = vperm.xlu0 %9016, %v8785
    %v9018 = vpop.permute.xlu0 %9017
    %9021 = vset.pattern.permute.xlu0 0
    %9022 = vperm.xlu0 %9021, %v8786
    %v9023 = vpop.permute.xlu0 %9022
    %9026 = vset.pattern.permute.xlu0 0
    %9027 = vperm.xlu0 %9026, %v8787
    %v9028 = vpop.permute.xlu0 %9027
    %9031 = vset.pattern.permute.xlu0 0
    %9032 = vperm.xlu0 %9031, %v8788
    %v9033 = vpop.permute.xlu0 %9032
    %9036 = vset.pattern.permute.xlu0 0
    %9037 = vperm.xlu0 %9036, %v8789
    %v9038 = vpop.permute.xlu0 %9037
    %9041 = vset.pattern.permute.xlu0 0
    %9042 = vperm.xlu0 %9041, %v8790
    %v9043 = vpop.permute.xlu0 %9042
    %9046 = vset.pattern.permute.xlu0 0
    %9047 = vperm.xlu0 %9046, %v8791
    %v9048 = vpop.permute.xlu0 %9047
    %9051 = vset.pattern.permute.xlu0 0
    %9052 = vperm.xlu0 %9051, %v8792
    %v9053 = vpop.permute.xlu0 %9052
    %9056 = vset.pattern.permute.xlu0 0
    %9057 = vperm.xlu0 %9056, %v8793
    %v9058 = vpop.permute.xlu0 %9057
    %9061 = vset.pattern.permute.xlu0 0
    %9062 = vperm.xlu0 %9061, %v8794
    %v9063 = vpop.permute.xlu0 %9062
    %9066 = vset.pattern.permute.xlu0 0
    %9067 = vperm.xlu0 %9066, %v8795
    %v9068 = vpop.permute.xlu0 %9067
    %9071 = vset.pattern.permute.xlu0 0
    %9072 = vperm.xlu0 %9071, %v8796
    %v9073 = vpop.permute.xlu0 %9072
    %9076 = vset.pattern.permute.xlu0 0
    %9077 = vperm.xlu0 %9076, %v8797
    %v9078 = vpop.permute.xlu0 %9077
    %9081 = vset.pattern.permute.xlu0 0
    %9082 = vperm.xlu0 %9081, %v8798
    %v9083 = vpop.permute.xlu0 %9082
    %9086 = vset.pattern.permute.xlu0 0
    %9087 = vperm.xlu0 %9086, %v8799
    %v9088 = vpop.permute.xlu0 %9087
    %9091 = vset.pattern.permute.xlu0 0
    %9092 = vperm.xlu0 %9091, %v8800
    %v9093 = vpop.permute.xlu0 %9092
    %9096 = vset.pattern.permute.xlu0 0
    %9097 = vperm.xlu0 %9096, %v8801
    %v9098 = vpop.permute.xlu0 %9097
    %9101 = vset.pattern.permute.xlu0 0
    %9102 = vperm.xlu0 %9101, %v8802
    %v9103 = vpop.permute.xlu0 %9102
    %9106 = vset.pattern.permute.xlu0 0
    %9107 = vperm.xlu0 %9106, %v8803
    %v9108 = vpop.permute.xlu0 %9107
    %9111 = vset.pattern.permute.xlu0 0
    %9112 = vperm.xlu0 %9111, %v8804
    %v9113 = vpop.permute.xlu0 %9112
    %9116 = vset.pattern.permute.xlu0 0
    %9117 = vperm.xlu0 %9116, %v8805
    %v9118 = vpop.permute.xlu0 %9117
    %9121 = vset.pattern.permute.xlu0 0
    %9122 = vperm.xlu0 %9121, %v8806
    %v9123 = vpop.permute.xlu0 %9122
    %9126 = vset.pattern.permute.xlu0 0
    %9127 = vperm.xlu0 %9126, %v8807
    %v9128 = vpop.permute.xlu0 %9127
    %9131 = vset.pattern.permute.xlu0 0
    %9132 = vperm.xlu0 %9131, %v8808
    %v9133 = vpop.permute.xlu0 %9132
    %9136 = vset.pattern.permute.xlu0 0
    %9137 = vperm.xlu0 %9136, %v8809
    %v9138 = vpop.permute.xlu0 %9137
    %9141 = vset.pattern.permute.xlu0 0
    %9142 = vperm.xlu0 %9141, %v8810
    %v9143 = vpop.permute.xlu0 %9142
    %9146 = vset.pattern.permute.xlu0 0
    %9147 = vperm.xlu0 %9146, %v8811
    %v9148 = vpop.permute.xlu0 %9147
    %9151 = vset.pattern.permute.xlu0 0
    %9152 = vperm.xlu0 %9151, %v8812
    %v9153 = vpop.permute.xlu0 %9152
    %9156 = vset.pattern.permute.xlu0 0
    %9157 = vperm.xlu0 %9156, %v8813
    %v9158 = vpop.permute.xlu0 %9157
    %9161 = vset.pattern.permute.xlu0 0
    %9162 = vperm.xlu0 %9161, %v8814
    %v9163 = vpop.permute.xlu0 %9162
    %9166 = vset.pattern.permute.xlu0 0
    %9167 = vperm.xlu0 %9166, %v8815
    %v9168 = vpop.permute.xlu0 %9167
    %9171 = vset.pattern.permute.xlu0 0
    %9172 = vperm.xlu0 %9171, %v8816
    %v9173 = vpop.permute.xlu0 %9172
    %9176 = vset.pattern.permute.xlu0 0
    %9177 = vperm.xlu0 %9176, %v8817
    %v9178 = vpop.permute.xlu0 %9177
    %9181 = vset.pattern.permute.xlu0 0
    %9182 = vperm.xlu0 %9181, %v8818
    %v9183 = vpop.permute.xlu0 %9182
    %9186 = vset.pattern.permute.xlu0 0
    %9187 = vperm.xlu0 %9186, %v8819
    %v9188 = vpop.permute.xlu0 %9187
    %9191 = vset.pattern.permute.xlu0 0
    %9192 = vperm.xlu0 %9191, %v8820
    %v9193 = vpop.permute.xlu0 %9192
    %9196 = vset.pattern.permute.xlu0 0
    %9197 = vperm.xlu0 %9196, %v8821
    %v9198 = vpop.permute.xlu0 %9197
    %9201 = vset.pattern.permute.xlu0 0
    %9202 = vperm.xlu0 %9201, %v8822
    %v9203 = vpop.permute.xlu0 %9202
    %9206 = vset.pattern.permute.xlu0 0
    %9207 = vperm.xlu0 %9206, %v8823
    %v9208 = vpop.permute.xlu0 %9207
    %9211 = vset.pattern.permute.xlu0 0
    %9212 = vperm.xlu0 %9211, %v8824
    %v9213 = vpop.permute.xlu0 %9212
    %9216 = vset.pattern.permute.xlu0 0
    %9217 = vperm.xlu0 %9216, %v8825
    %v9218 = vpop.permute.xlu0 %9217
    %9221 = vset.pattern.permute.xlu0 0
    %9222 = vperm.xlu0 %9221, %v8826
    %v9223 = vpop.permute.xlu0 %9222
    %9226 = vset.pattern.permute.xlu0 0
    %9227 = vperm.xlu0 %9226, %v8827
    %v9228 = vpop.permute.xlu0 %9227
    %9231 = vset.pattern.permute.xlu0 0
    %9232 = vperm.xlu0 %9231, %v8828
    %v9233 = vpop.permute.xlu0 %9232
    %9236 = vset.pattern.permute.xlu0 0
    %9237 = vperm.xlu0 %9236, %v8829
    %v9238 = vpop.permute.xlu0 %9237
    %9241 = vset.pattern.permute.xlu0 0
    %9242 = vperm.xlu0 %9241, %v8830
    %v9243 = vpop.permute.xlu0 %9242
    %9246 = vset.pattern.permute.xlu0 0
    %9247 = vperm.xlu0 %9246, %v8831
    %v9248 = vpop.permute.xlu0 %9247
    %9251 = vset.pattern.permute.xlu0 0
    %9252 = vperm.xlu0 %9251, %v8832
    %v9253 = vpop.permute.xlu0 %9252
    %9256 = vset.pattern.permute.xlu0 0
    %9257 = vperm.xlu0 %9256, %v8833
    %v9258 = vpop.permute.xlu0 %9257
    %9261 = vset.pattern.permute.xlu0 0
    %9262 = vperm.xlu0 %9261, %v8834
    %v9263 = vpop.permute.xlu0 %9262
    %9266 = vset.pattern.permute.xlu0 0
    %9267 = vperm.xlu0 %9266, %v8835
    %v9268 = vpop.permute.xlu0 %9267
    %9271 = vset.pattern.permute.xlu0 0
    %9272 = vperm.xlu0 %9271, %v8836
    %v9273 = vpop.permute.xlu0 %9272
    %9276 = vset.pattern.permute.xlu0 0
    %9277 = vperm.xlu0 %9276, %v8837
    %v9278 = vpop.permute.xlu0 %9277
    %9281 = vset.pattern.permute.xlu0 0
    %9282 = vperm.xlu0 %9281, %v8838
    %v9283 = vpop.permute.xlu0 %9282
    %9286 = vset.pattern.permute.xlu0 0
    %9287 = vperm.xlu0 %9286, %v8839
    %v9288 = vpop.permute.xlu0 %9287
    %v9290 = vmul.f32 %v8660, %v8843
    %v9291 = vmul.f32 %v8661, %v8848
    %v9292 = vmul.f32 %v8662, %v8853
    %v9293 = vmul.f32 %v8663, %v8858
    %v9294 = vmul.f32 %v8664, %v8863
    %v9295 = vmul.f32 %v8665, %v8868
    %v9296 = vmul.f32 %v8666, %v8873
    %v9297 = vmul.f32 %v8667, %v8878
    %v9298 = vmul.f32 %v8668, %v8883
    %v9299 = vmul.f32 %v8669, %v8888
    %v9300 = vmul.f32 %v8670, %v8893
    %v9301 = vmul.f32 %v8671, %v8898
    %v9302 = vmul.f32 %v8672, %v8903
    %v9303 = vmul.f32 %v8673, %v8908
    %v9304 = vmul.f32 %v8674, %v8913
    %v9305 = vmul.f32 %v8675, %v8918
    %v9306 = vmul.f32 %v8676, %v8923
    %v9307 = vmul.f32 %v8677, %v8928
    %v9308 = vmul.f32 %v8678, %v8933
    %v9309 = vmul.f32 %v8679, %v8938
    %v9310 = vmul.f32 %v8680, %v8943
    %v9311 = vmul.f32 %v8681, %v8948
    %v9312 = vmul.f32 %v8682, %v8953
    %v9313 = vmul.f32 %v8683, %v8958
    %v9314 = vmul.f32 %v8684, %v8963
    %v9315 = vmul.f32 %v8685, %v8968
    %v9316 = vmul.f32 %v8686, %v8973
    %v9317 = vmul.f32 %v8687, %v8978
    %v9318 = vmul.f32 %v8688, %v8983
    %v9319 = vmul.f32 %v8689, %v8988
    %v9320 = vmul.f32 %v8690, %v8993
    %v9321 = vmul.f32 %v8691, %v8998
    %v9322 = vmul.f32 %v8692, %v9003
    %v9323 = vmul.f32 %v8693, %v9008
    %v9324 = vmul.f32 %v8694, %v9013
    %v9325 = vmul.f32 %v8695, %v9018
    %v9326 = vmul.f32 %v8696, %v9023
    %v9327 = vmul.f32 %v8697, %v9028
    %v9328 = vmul.f32 %v8698, %v9033
    %v9329 = vmul.f32 %v8699, %v9038
    %v9330 = vmul.f32 %v8700, %v9043
    %v9331 = vmul.f32 %v8701, %v9048
    %v9332 = vmul.f32 %v8702, %v9053
    %v9333 = vmul.f32 %v8703, %v9058
    %v9334 = vmul.f32 %v8704, %v9063
    %v9335 = vmul.f32 %v8705, %v9068
    %v9336 = vmul.f32 %v8706, %v9073
    %v9337 = vmul.f32 %v8707, %v9078
    %v9338 = vmul.f32 %v8708, %v9083
    %v9339 = vmul.f32 %v8709, %v9088
    %v9340 = vmul.f32 %v8710, %v9093
    %v9341 = vmul.f32 %v8711, %v9098
    %v9342 = vmul.f32 %v8712, %v9103
    %v9343 = vmul.f32 %v8713, %v9108
    %v9344 = vmul.f32 %v8714, %v9113
    %v9345 = vmul.f32 %v8715, %v9118
    %v9346 = vmul.f32 %v8716, %v9123
    %v9347 = vmul.f32 %v8717, %v9128
    %v9348 = vmul.f32 %v8718, %v9133
    %v9349 = vmul.f32 %v8719, %v9138
    %v9350 = vmul.f32 %v8720, %v9143
    %v9351 = vmul.f32 %v8721, %v9148
    %v9352 = vmul.f32 %v8722, %v9153
    %v9353 = vmul.f32 %v8723, %v9158
    %v9354 = vmul.f32 %v8724, %v9163
    %v9355 = vmul.f32 %v8725, %v9168
    %v9356 = vmul.f32 %v8726, %v9173
    %v9357 = vmul.f32 %v8727, %v9178
    %v9358 = vmul.f32 %v8728, %v9183
    %v9359 = vmul.f32 %v8729, %v9188
    %v9360 = vmul.f32 %v8730, %v9193
    %v9361 = vmul.f32 %v8731, %v9198
    %v9362 = vmul.f32 %v8732, %v9203
    %v9363 = vmul.f32 %v8733, %v9208
    %v9364 = vmul.f32 %v8734, %v9213
    %v9365 = vmul.f32 %v8735, %v9218
    %v9366 = vmul.f32 %v8736, %v9223
    %v9367 = vmul.f32 %v8737, %v9228
    %v9368 = vmul.f32 %v8738, %v9233
    %v9369 = vmul.f32 %v8739, %v9238
    %v9370 = vmul.f32 %v8740, %v9243
    %v9371 = vmul.f32 %v8741, %v9248
    %v9372 = vmul.f32 %v8742, %v9253
    %v9373 = vmul.f32 %v8743, %v9258
    %v9374 = vmul.f32 %v8744, %v9263
    %v9375 = vmul.f32 %v8745, %v9268
    %v9376 = vmul.f32 %v8746, %v9273
    %v9377 = vmul.f32 %v8747, %v9278
    %v9378 = vmul.f32 %v8748, %v9283
    %v9379 = vmul.f32 %v8749, %v9288
    %v9380 = vadd.f32 %v9290, %v9291
    %v9381 = vadd.f32 %v9380, %v9292
    %v9382 = vadd.f32 %v9381, %v9293
    %v9383 = vadd.f32 %v9382, %v9294
    %v9384 = vadd.f32 %v9383, %v9295
    %v9385 = vadd.f32 %v9384, %v9296
    %v9386 = vadd.f32 %v9385, %v9297
    %v9387 = vadd.f32 %v9386, %v9298
    %v9388 = vadd.f32 %v9387, %v9299
    %v9389 = vadd.f32 %v9388, %v9300
    %v9390 = vadd.f32 %v9389, %v9301
    %v9391 = vadd.f32 %v9390, %v9302
    %v9392 = vadd.f32 %v9391, %v9303
    %v9393 = vadd.f32 %v9392, %v9304
    %v9394 = vadd.f32 %v9393, %v9305
    %v9395 = vadd.f32 %v9394, %v9306
    %v9396 = vadd.f32 %v9395, %v9307
    %v9397 = vadd.f32 %v9396, %v9308
    %v9398 = vadd.f32 %v9397, %v9309
    %v9399 = vadd.f32 %v9398, %v9310
    %v9400 = vadd.f32 %v9399, %v9311
    %v9401 = vadd.f32 %v9400, %v9312
    %v9402 = vadd.f32 %v9401, %v9313
    %v9403 = vadd.f32 %v9402, %v9314
    %v9404 = vadd.f32 %v9403, %v9315
    %v9405 = vadd.f32 %v9404, %v9316
    %v9406 = vadd.f32 %v9405, %v9317
    %v9407 = vadd.f32 %v9406, %v9318
    %v9408 = vadd.f32 %v9407, %v9319
    %v9409 = vadd.f32 %v9408, %v9320
    %v9410 = vadd.f32 %v9409, %v9321
    %v9411 = vadd.f32 %v9410, %v9322
    %v9412 = vadd.f32 %v9411, %v9323
    %v9413 = vadd.f32 %v9412, %v9324
    %v9414 = vadd.f32 %v9413, %v9325
    %v9415 = vadd.f32 %v9414, %v9326
    %v9416 = vadd.f32 %v9415, %v9327
    %v9417 = vadd.f32 %v9416, %v9328
    %v9418 = vadd.f32 %v9417, %v9329
    %v9419 = vadd.f32 %v9418, %v9330
    %v9420 = vadd.f32 %v9419, %v9331
    %v9421 = vadd.f32 %v9420, %v9332
    %v9422 = vadd.f32 %v9421, %v9333
    %v9423 = vadd.f32 %v9422, %v9334
    %v9424 = vrot.slane %v9423, 4
    %v9425 = vadd.f32 %v9423, %v9424
    %v9426 = vrot.slane %v9425, 2
    %v9427 = vadd.f32 %v9425, %v9426
    %v9428 = vrot.slane %v9427, 1
    %v9429 = vadd.f32 %v9427, %v9428
    %v9430 = vadd.f32 %v9335, %v9336
    %v9431 = vadd.f32 %v9430, %v9337
    %v9432 = vadd.f32 %v9431, %v9338
    %v9433 = vadd.f32 %v9432, %v9339
    %v9434 = vadd.f32 %v9433, %v9340
    %v9435 = vadd.f32 %v9434, %v9341
    %v9436 = vadd.f32 %v9435, %v9342
    %v9437 = vadd.f32 %v9436, %v9343
    %v9438 = vadd.f32 %v9437, %v9344
    %v9439 = vadd.f32 %v9438, %v9345
    %v9440 = vadd.f32 %v9439, %v9346
    %v9441 = vadd.f32 %v9440, %v9347
    %v9442 = vadd.f32 %v9441, %v9348
    %v9443 = vadd.f32 %v9442, %v9349
    %v9444 = vadd.f32 %v9443, %v9350
    %v9445 = vadd.f32 %v9444, %v9351
    %v9446 = vadd.f32 %v9445, %v9352
    %v9447 = vadd.f32 %v9446, %v9353
    %v9448 = vadd.f32 %v9447, %v9354
    %v9449 = vadd.f32 %v9448, %v9355
    %v9450 = vadd.f32 %v9449, %v9356
    %v9451 = vadd.f32 %v9450, %v9357
    %v9452 = vadd.f32 %v9451, %v9358
    %v9453 = vadd.f32 %v9452, %v9359
    %v9454 = vadd.f32 %v9453, %v9360
    %v9455 = vadd.f32 %v9454, %v9361
    %v9456 = vadd.f32 %v9455, %v9362
    %v9457 = vadd.f32 %v9456, %v9363
    %v9458 = vadd.f32 %v9457, %v9364
    %v9459 = vadd.f32 %v9458, %v9365
    %v9460 = vadd.f32 %v9459, %v9366
    %v9461 = vadd.f32 %v9460, %v9367
    %v9462 = vadd.f32 %v9461, %v9368
    %v9463 = vadd.f32 %v9462, %v9369
    %v9464 = vadd.f32 %v9463, %v9370
    %v9465 = vadd.f32 %v9464, %v9371
    %v9466 = vadd.f32 %v9465, %v9372
    %v9467 = vadd.f32 %v9466, %v9373
    %v9468 = vadd.f32 %v9467, %v9374
    %v9469 = vadd.f32 %v9468, %v9375
    %v9470 = vadd.f32 %v9469, %v9376
    %v9471 = vadd.f32 %v9470, %v9377
    %v9472 = vadd.f32 %v9471, %v9378
    %v9473 = vadd.f32 %v9472, %v9379
    %v9474 = vrot.slane %v9473, 4
    %v9475 = vadd.f32 %v9473, %v9474
    %v9476 = vrot.slane %v9475, 2
    %v9477 = vadd.f32 %v9475, %v9476
    %v9478 = vrot.slane %v9477, 1
    %v9479 = vadd.f32 %v9477, %v9478
    %vm9482 = vcmask 1041409
    %v9483 = vsel %vm9482, %v9479, %v9429
    %9485 = vst [vmem:[#allocation2] sm:$0x3] %v9483
    %v9486 = vpack.c.bf16 %v9429, %v9429
    %v9487 = vpack.c.bf16 %v9479, %v9479
    %v9488 = vld [vmem:[%s4] sm:$0xf]
    %v9489 = vld [vmem:[%s4 + $0x4] sm:$0xf]
    %v9490 = vld [vmem:[%s4 + $0x8] sm:$0xf]
    %v9491 = vld [vmem:[%s4 + $0xc] sm:$0xf]
    %v9492 = vld [vmem:[%s4 + $0x10] sm:$0xf]
    %v9493 = vld [vmem:[%s4 + $0x14] sm:$0xf]
    %v9494 = vld [vmem:[%s4 + $0x18] sm:$0xf]
    %v9495 = vld [vmem:[%s4 + $0x1c] sm:$0xf]
    %v9496 = vld [vmem:[%s4 + $0x20] sm:$0xf]
    %v9497 = vld [vmem:[%s4 + $0x24] sm:$0xf]
    %v9498 = vld [vmem:[%s4 + $0x28] sm:$0xf]
    %v9499 = vld [vmem:[%s4 + $0x2c] sm:$0xf]
    %v9500 = vld [vmem:[%s4 + $0x30] sm:$0xf]
    %v9501 = vld [vmem:[%s4 + $0x34] sm:$0xf]
    %v9502 = vld [vmem:[%s4 + $0x38] sm:$0xf]
    %v9503 = vld [vmem:[%s4 + $0x3c] sm:$0xf]
    %v9504 = vld [vmem:[%s5] sm:$0x1]
    %v9506 = vlaneseq
    %v9507 = vshrl.u32 %v9506, 7
    %v9508 = vsub.s32 0, %v9507
    %v9509 = vrot.slane %v9504, %v9508
    %v9513 = vunpack.c.l.b16 %v9486
    %v9514 = vunpack.c.l.b16 %v9487
    %v9515 = vsel %vm9482, %v9514, %v9513
    %v9516 = vpack.c.b16 %v9515, %v9515
    %v9534 = vunpack.c.l.b16 %v9488
    %v9535 = vunpack.c.l.b16 %v9489
    %v9536 = vunpack.c.l.b16 %v9490
    %v9537 = vunpack.c.l.b16 %v9491
    %v9538 = vunpack.c.l.b16 %v9492
    %v9539 = vunpack.c.l.b16 %v9493
    %v9540 = vunpack.c.l.b16 %v9494
    %v9541 = vunpack.c.l.b16 %v9495
    %v9542 = vunpack.c.l.b16 %v9496
    %v9543 = vunpack.c.l.b16 %v9497
    %v9544 = vunpack.c.l.b16 %v9498
    %v9545 = vunpack.c.l.b16 %v9499
    %v9546 = vunpack.c.l.b16 %v9500
    %v9547 = vunpack.c.l.b16 %v9501
    %v9548 = vunpack.c.l.b16 %v9502
    %v9549 = vunpack.c.l.b16 %v9503
    %v9550 = vpack.c.b16 %v9535, %v9534
    %v9551 = vpack.c.b16 %v9537, %v9536
    %v9552 = vpack.c.b16 %v9539, %v9538
    %v9553 = vpack.c.b16 %v9541, %v9540
    %v9554 = vpack.c.b16 %v9543, %v9542
    %v9555 = vpack.c.b16 %v9545, %v9544
    %v9556 = vpack.c.b16 %v9547, %v9546
    %v9557 = vpack.c.b16 %v9549, %v9548
    %9566 = vmatprep.subr.bf16.mxu0 0
    %9567 = vmatpush1.bf16.msra.mxu0 %v9550
    %9568 = vmatprep.subr.bf16.mxu0 0
    %9569 = vmatpush1.bf16.msra.mxu0 %v9551
    %9570 = vmatprep.subr.bf16.mxu0 0
    %9571 = vmatpush1.bf16.msra.mxu0 %v9552
    %9572 = vmatprep.subr.bf16.mxu0 0
    %9573 = vmatpush1.bf16.msra.mxu0 %v9553
    %9574 = vmatprep.subr.bf16.mxu0 0
    %9575 = vmatpush1.bf16.msra.mxu0 %v9554
    %9576 = vmatprep.subr.bf16.mxu0 0
    %9577 = vmatpush1.bf16.msra.mxu0 %v9555
    %9578 = vmatprep.subr.bf16.mxu0 0
    %9579 = vmatpush1.bf16.msra.mxu0 %v9556
    %9580 = vmatprep.subr.bf16.mxu0 0
    %9581 = vmatpush1.bf16.msra.mxu0 %v9557
    %9582 = vmatprep.subr.bf16.mxu0 0
    %9583 = vmatpush1.bf16.msra.mxu0 0
    %9584 = vmatprep.subr.bf16.mxu0 0
    %9585 = vmatpush1.bf16.msra.mxu0 0
    %9586 = vmatprep.subr.bf16.mxu0 0
    %9587 = vmatpush1.bf16.msra.mxu0 0
    %9588 = vmatprep.subr.bf16.mxu0 0
    %9589 = vmatpush1.bf16.msra.mxu0 0
    %9590 = vmatprep.subr.bf16.mxu0 0
    %9591 = vmatpush1.bf16.msra.mxu0 0
    %9592 = vmatprep.subr.bf16.mxu0 0
    %9593 = vmatpush1.bf16.msra.mxu0 0
    %9594 = vmatprep.subr.bf16.mxu0 0
    %9595 = vmatpush1.bf16.msra.mxu0 0
    %9596 = vmatprep.subr.bf16.mxu0 0
    %9597 = vmatpush1.bf16.msra.mxu0 0
    %9598 = vmatprep.mubr.bf16.mxu0 0
    %9599 = vmatmul.mubr.bf16.gmra.mrb[0].mxu0 %v9516
    %v9600 = vpop.f32.mrb[0].mxu0
    %v9601 = vadd.f32 %v9509, %v9600
    %v9602 = vpop.f32.mrb[0].mxu0
    %v9603 = vpop.f32.mrb[0].mxu0
    %v9604 = vpop.f32.mrb[0].mxu0
    %9605 = vdwg.mxu0
    %vm9606 = vcmask 1041408
    %v9607 = vsel %vm9606, %v9601, 0.0
    %v9608 = vrot.slane %v9607, 4
    %v9609 = vadd.f32 %v9607, %v9608
    %v9610 = vrot.slane %v9609, 2
    %v9611 = vadd.f32 %v9609, %v9610
    %v9612 = vrot.slane %v9611, 1
    %v9613 = vadd.f32 %v9611, %v9612
    %v9614 = vrcp.pop 2.0
    %v9615 = vmul.f32 %v9613, %v9614
    %v9616 = vsub.f32 %v9601, %v9615
    %v9617 = vmul.f32 %v9616, %v9616
    %v9618 = vsel %vm9606, %v9617, 0.0
    %v9619 = vrot.slane %v9618, 4
    %v9620 = vadd.f32 %v9618, %v9619
    %v9621 = vrot.slane %v9620, 2
    %v9622 = vadd.f32 %v9620, %v9621
    %v9623 = vrot.slane %v9622, 1
    %v9624 = vadd.f32 %v9622, %v9623
    %v9625 = vmul.f32 %v9624, %v9614
    %v9626 = vadd.f32 %v9625, 1e-05
    %v9627 = vrsqrt.pop %v9626
    %v9628 = vmul.f32 %v9616, %v9627
    %v9629 = vld [vmem:[%s6] sm:$0x1]
    %v9631 = vlaneseq
    %v9632 = vshrl.u32 %v9631, 7
    %v9633 = vsub.s32 0, %v9632
    %v9634 = vrot.slane %v9629, %v9633
    %v9636 = vmul.f32 %v9628, %v9634
    %v9637 = vld [vmem:[%s7] sm:$0x1]
    %v9639 = vlaneseq
    %v9640 = vshrl.u32 %v9639, 7
    %v9641 = vsub.s32 0, %v9640
    %v9642 = vrot.slane %v9637, %v9641
    %v9644 = vadd.f32 %v9636, %v9642
    %v9645 = vmax.f32 %v9644, 0.0
    %v9646 = vpack.c.bf16 %v9645, %v9645
    %v9647 = vld [vmem:[%s8] sm:$0xf]
    %v9648 = vld [vmem:[%s8 + $0x4] sm:$0xf]
    %v9649 = vld [vmem:[%s8 + $0x8] sm:$0xf]
    %v9650 = vld [vmem:[%s8 + $0xc] sm:$0xf]
    %v9651 = vld [vmem:[%s8 + $0x10] sm:$0xf]
    %v9652 = vld [vmem:[%s8 + $0x14] sm:$0xf]
    %v9653 = vld [vmem:[%s8 + $0x18] sm:$0xf]
    %v9654 = vld [vmem:[%s8 + $0x1c] sm:$0xf]
    %v9655 = vld [vmem:[%s8 + $0x20] sm:$0xf]
    %v9656 = vld [vmem:[%s8 + $0x24] sm:$0xf]
    %v9657 = vld [vmem:[%s8 + $0x28] sm:$0xf]
    %v9658 = vld [vmem:[%s8 + $0x2c] sm:$0xf]
    %v9659 = vld [vmem:[%s8 + $0x30] sm:$0xf]
    %v9660 = vld [vmem:[%s8 + $0x34] sm:$0xf]
    %v9661 = vld [vmem:[%s8 + $0x38] sm:$0xf]
    %v9662 = vld [vmem:[%s8 + $0x3c] sm:$0xf]
    %v9663 = vld [vmem:[%s9] sm:$0x1]
    %v9665 = vlaneseq
    %v9666 = vshrl.u32 %v9665, 7
    %v9667 = vsub.s32 0, %v9666
    %v9668 = vrot.slane %v9663, %v9667
    %v9686 = vunpack.c.l.b16 %v9647
    %v9687 = vunpack.c.l.b16 %v9648
    %v9688 = vunpack.c.l.b16 %v9649
    %v9689 = vunpack.c.l.b16 %v9650
    %v9690 = vunpack.c.l.b16 %v9651
    %v9691 = vunpack.c.l.b16 %v9652
    %v9692 = vunpack.c.l.b16 %v9653
    %v9693 = vunpack.c.l.b16 %v9654
    %v9694 = vunpack.c.l.b16 %v9655
    %v9695 = vunpack.c.l.b16 %v9656
    %v9696 = vunpack.c.l.b16 %v9657
    %v9697 = vunpack.c.l.b16 %v9658
    %v9698 = vunpack.c.l.b16 %v9659
    %v9699 = vunpack.c.l.b16 %v9660
    %v9700 = vunpack.c.l.b16 %v9661
    %v9701 = vunpack.c.l.b16 %v9662
    %v9702 = vpack.c.b16 %v9687, %v9686
    %v9703 = vpack.c.b16 %v9689, %v9688
    %v9704 = vpack.c.b16 %v9691, %v9690
    %v9705 = vpack.c.b16 %v9693, %v9692
    %v9706 = vpack.c.b16 %v9695, %v9694
    %v9707 = vpack.c.b16 %v9697, %v9696
    %v9708 = vpack.c.b16 %v9699, %v9698
    %v9709 = vpack.c.b16 %v9701, %v9700
    %9718 = vmatprep.subr.bf16.mxu0 0
    %9719 = vmatpush1.bf16.msra.mxu0 %v9702
    %9720 = vmatprep.subr.bf16.mxu0 0
    %9721 = vmatpush1.bf16.msra.mxu0 %v9703
    %9722 = vmatprep.subr.bf16.mxu0 0
    %9723 = vmatpush1.bf16.msra.mxu0 %v9704
    %9724 = vmatprep.subr.bf16.mxu0 0
    %9725 = vmatpush1.bf16.msra.mxu0 %v9705
    %9726 = vmatprep.subr.bf16.mxu0 0
    %9727 = vmatpush1.bf16.msra.mxu0 %v9706
    %9728 = vmatprep.subr.bf16.mxu0 0
    %9729 = vmatpush1.bf16.msra.mxu0 %v9707
    %9730 = vmatprep.subr.bf16.mxu0 0
    %9731 = vmatpush1.bf16.msra.mxu0 %v9708
    %9732 = vmatprep.subr.bf16.mxu0 0
    %9733 = vmatpush1.bf16.msra.mxu0 %v9709
    %9734 = vmatprep.subr.bf16.mxu0 0
    %9735 = vmatpush1.bf16.msra.mxu0 0
    %9736 = vmatprep.subr.bf16.mxu0 0
    %9737 = vmatpush1.bf16.msra.mxu0 0
    %9738 = vmatprep.subr.bf16.mxu0 0
    %9739 = vmatpush1.bf16.msra.mxu0 0
    %9740 = vmatprep.subr.bf16.mxu0 0
    %9741 = vmatpush1.bf16.msra.mxu0 0
    %9742 = vmatprep.subr.bf16.mxu0 0
    %9743 = vmatpush1.bf16.msra.mxu0 0
    %9744 = vmatprep.subr.bf16.mxu0 0
    %9745 = vmatpush1.bf16.msra.mxu0 0
    %9746 = vmatprep.subr.bf16.mxu0 0
    %9747 = vmatpush1.bf16.msra.mxu0 0
    %9748 = vmatprep.subr.bf16.mxu0 0
    %9749 = vmatpush1.bf16.msra.mxu0 0
    %9750 = vmatprep.mubr.bf16.mxu0 0
    %9751 = vmatmul.mubr.bf16.gmra.mrb[0].mxu0 %v9646
    %v9752 = vpop.f32.mrb[0].mxu0
    %v9753 = vadd.f32 %v9668, %v9752
    %v9754 = vpop.f32.mrb[0].mxu0
    %v9755 = vpop.f32.mrb[0].mxu0
    %v9756 = vpop.f32.mrb[0].mxu0
    %9757 = vdwg.mxu0
    %9758 = vst [vmem:[#allocation4] sm:$0x3] %v9753
    // Predicated region
    $region42: #{simclr_forward.1} parent=1 // pred_check
      _
    $region43: #{simclr_forward.1} parent=1 // pred_check_branch
      %9760 = sbr.rel (0) target = $region45
    $region44: #{simclr_forward.1} parent=1 // pred_region
      %s9762 = ssub.s32 32, 32
      %9763 = vsyncadd [#allocation3], %s9762
      %s9765 = sshll.u32 [#allocation2], 4
      %s9766 = int_to_ptr.vmem [resolvable:$true] %s9765
      %9768 = dma.vmem_to_hbm [thread:$0]  %s9766, 32, %s10, [#allocation3]
    $region45: #{simclr_forward.1} parent=1 // pred_fallthru
      _
    // Predicated region
    $region46: #{simclr_forward.1} parent=1 // pred_check
      _
    $region47: #{simclr_forward.1} parent=1 // pred_check_branch
      %9770 = sbr.rel (0) target = $region49
    $region48: #{simclr_forward.1} parent=1 // pred_region
      %s9772 = ssub.s32 32, 32
      %9773 = vsyncadd [#allocation5], %s9772
      %s9775 = sshll.u32 [#allocation4], 4
      %s9776 = int_to_ptr.vmem [resolvable:$true] %s9775
      %9778 = dma.vmem_to_hbm [thread:$0]  %s9776, 32, %s11, [#allocation5]
    $region49: #{simclr_forward.1} parent=1 // pred_fallthru
      _
    // Predicated region
    $region50: #{simclr_forward.1} parent=1 // pred_check
      _
    $region51: #{simclr_forward.1} parent=1 // pred_check_branch
      %9780 = sbr.rel (0) target = $region53
    $region52: #{simclr_forward.1} parent=1 // pred_region
      %9781 = dma.done [#allocation3], 32
    $region53: #{simclr_forward.1} parent=1 // pred_fallthru
      _
    // Predicated region
    $region54: #{simclr_forward.1} parent=1 // pred_check
      _
    $region55: #{simclr_forward.1} parent=1 // pred_check_branch
      %9783 = sbr.rel (0) target = $region57
    $region56: #{simclr_forward.1} parent=1 // pred_region
      %9784 = dma.done [#allocation5], 32
    $region57: #{simclr_forward.1} parent=1 // pred_fallthru
      _
    %9785 = vsyncpa [#allocation3], 1
    %9786 = vsyncpa [#allocation5], 1

</llo_original>
